<compile_context>
chip_gen: v7x
topology: tpu7x:2x2x1
jax: 0.10.0
libtpu: 0.0.40
codegen_flags: <defaults>
</compile_context>

<pallas_src>
import numpy as np
import jax
import jax.numpy as jnp
from jax.experimental import pallas as pl
from jax.experimental.pallas import tpu as pltpu

C_FEAT = 2048            # channels out of the "base" (matches nn.BatchNorm2d(2048))
PATCH = 16               # synthetic base: 16x16 stride-16 patch conv
FEAT_H, FEAT_W = 24, 12  # feature map spatial size implied by AvgPool5((24,12))
HW = FEAT_H * FEAT_W     # 288 spatial positions per image
BN_EPS = 1e-5

# (kernel_h, kernel_w, stride_h, stride_w) of AvgPool1..AvgPool5
_POOLS = [(3, 3, 3, 3), (6, 6, 3, 3), (9, 9, 3, 3), (12, 12, 3, 3),
          (FEAT_H, FEAT_W, 24, 24)]

N_ROWS = sum(((FEAT_H - kh) // sh + 1) * ((FEAT_W - kw) // sw + 1)
             for kh, kw, sh, sw in _POOLS)   # 32 + 21 + 12 + 5 + 1 = 71
N_ROWS_PAD = 72                              # pad to a multiple of 8 (unmasked stores)


def _pool_matrix():
    """(72, 288) matrix Q (last row zero-padding) so Q @ x_flat == concat of all
    AvgPool2d outputs.  Row ordering matches torch: per pool level, h-major /
    w-minor, identical to x.view(n, c, oh*ow).  Row 70 is AvgPool5 (== global
    average pool over the 24x12 map)."""
    rows = []
    for kh, kw, sh, sw in _POOLS:
        oh = (FEAT_H - kh) // sh + 1
        ow = (FEAT_W - kw) // sw + 1
        for i in range(oh):
            for j in range(ow):
                m = np.zeros((FEAT_H, FEAT_W), np.float32)
                m[i * sh:i * sh + kh, j * sw:j * sw + kw] = 1.0 / (kh * kw)
                rows.append(m.reshape(-1))
    q = np.stack(rows, axis=0)                                   # (71, 288)
    pad = np.zeros((N_ROWS_PAD - N_ROWS, HW), np.float32)
    return np.concatenate([q, pad], axis=0)                      # (72, 288)


# ---------------------------------------------------------------------------
# Fused kernel: backbone matmul + bias/BN/ReLU epilogue + pooling matmul
# ---------------------------------------------------------------------------
def _make_fused_kernel(tb):
    def kernel(x_ref, w_ref, scale_ref, shift_ref, q_ref, sp_ref):
        # One fused (tb*288, K) @ (K, tn) bf16 matmul, f32 accumulation.
        h = jnp.dot(x_ref[...], w_ref[...], preferred_element_type=jnp.float32)
        # bias + inference-BN + ReLU, applied once on the fused result
        # (single (1, tn) broadcast, no per-image loop).
        h = jnp.maximum(h * scale_ref[...] + shift_ref[...], 0.0)
        h16 = h.astype(jnp.bfloat16)             # feed the pooling MXU in bf16
        q = q_ref[...]                           # (72, 288) bf16 pooling matrix
        for i in range(tb):                      # tb is a small compile-time constant
            sp_ref[i] = jnp.dot(q, h16[i * HW:(i + 1) * HW, :],
                                preferred_element_type=jnp.float32)
    return kernel


def fused_forward(x_cols, w, scale_row, shift_row, q, n_batch, *, tn=512, tb=None):
    """x_cols: (n*288, K) im2col -> pooled spatial features (n, 72, C_FEAT) f32."""
    M, K = x_cols.shape
    N = w.shape[1]
    assert M == n_batch * HW and N % tn == 0
    if tb is None:
        tb = min(n_batch, 8)                     # images per grid step
    n_bt = pl.cdiv(n_batch, tb)
    n_pad = n_bt * tb
    if n_pad != n_batch:                         # pad batch to a multiple of tb
        x_cols = jnp.concatenate(
            [x_cols, jnp.zeros(((n_pad - n_batch) * HW, K), x_cols.dtype)], axis=0)

    # bf16 operands for both MXU matmuls (accumulation stays f32).
    x16 = x_cols.astype(jnp.bfloat16)
    w16 = w.astype(jnp.bfloat16)
    q16 = q.astype(jnp.bfloat16)

    cost = pl.CostEstimate(
        flops=2 * n_pad * HW * K * N + 2 * n_pad * N_ROWS_PAD * HW * N,
        transcendentals=0,
        bytes_accessed=(n_pad * HW * K * 2 + K * N * 2 + N_ROWS_PAD * HW * 2
                        + 2 * N * 4 + n_pad * N_ROWS_PAD * N * 4))

    out = pl.pallas_call(
        _make_fused_kernel(tb),
        out_shape=jax.ShapeDtypeStruct((n_pad, N_ROWS_PAD, N), jnp.float32),
        grid_spec=pltpu.PrefetchScalarGridSpec(
            num_scalar_prefetch=0,
            # channel tiles outermost (weight DMA'd exactly once per tile),
            # batch tiles innermost (bounded per-step VMEM, many pipeline steps)
            grid=(N // tn, n_bt),
            in_specs=[
                pl.BlockSpec((tb * HW, K), lambda j, b: (b, 0)),       # im2col (bf16)
                pl.BlockSpec((K, tn), lambda j, b: (0, j)),            # weight tile
                pl.BlockSpec((1, tn), lambda j, b: (0, j)),            # BN scale
                pl.BlockSpec((1, tn), lambda j, b: (0, j)),            # folded bias/shift
                pl.BlockSpec((N_ROWS_PAD, HW), lambda j, b: (0, 0)),   # pooling matrix
            ],
            out_specs=pl.BlockSpec((tb, N_ROWS_PAD, tn), lambda j, b: (b, 0, j))),
        compiler_params=pltpu.CompilerParams(
            dimension_semantics=("parallel", "arbitrary"),  # v7x: 4 channel tiles / 2 TCs
            vmem_limit_bytes=32 << 20),
        cost_estimate=cost,
    )(x16, w16, scale_row, shift_row, q16)
    return out[:n_batch]


# ---------------------------------------------------------------------------
# Full model forward
# ---------------------------------------------------------------------------
def init_params(key):
    k1, k2, k3, k4, k5, k6 = jax.random.split(key, 6)
    kdim = 3 * PATCH * PATCH
    return {
        "conv_w": jax.random.normal(k1, (kdim, C_FEAT), jnp.float32) * 0.02,
        "conv_b": jax.random.normal(k2, (C_FEAT,), jnp.float32) * 0.02,
        "bn_gamma": 1.0 + 0.1 * jax.random.normal(k3, (C_FEAT,), jnp.float32),
        "bn_beta": 0.1 * jax.random.normal(k4, (C_FEAT,), jnp.float32),
        "bn_mean": 0.1 * jax.random.normal(k5, (C_FEAT,), jnp.float32),
        "bn_var": jax.random.uniform(k6, (C_FEAT,), jnp.float32, 0.5, 1.5),
    }


def _im2col(x_nchw):
    n, c, h, wd = x_nchw.shape
    fh, fw = h // PATCH, wd // PATCH
    assert (fh, fw) == (FEAT_H, FEAT_W)
    xi = x_nchw.reshape(n, c, fh, PATCH, fw, PATCH)
    xi = xi.transpose(0, 2, 4, 1, 3, 5).reshape(n * fh * fw, c * PATCH * PATCH)
    return xi


def model_forward(x_nchw, params):
    n = x_nchw.shape[0]
    xi = _im2col(x_nchw)                                      # layout-only glue

    # Fold inference BatchNorm into per-channel scale/shift, and fold the conv
    # bias through it:  relu((x@w + b)*s + t) == relu((x@w)*s + (b*s + t)).
    inv_std = 1.0 / jnp.sqrt(params["bn_var"] + BN_EPS)
    scale = params["bn_gamma"] * inv_std                      # (C,)
    shift = params["bn_beta"] - params["bn_mean"] * scale     # (C,)
    shift_c = params["conv_b"] * scale + shift                # (C,)

    q = jnp.asarray(_pool_matrix())                           # (72, 288) constant

    sp = fused_forward(xi, params["conv_w"], scale[None, :], shift_c[None, :],
                       q, n)                                  # (N, 72, C)

    # Global average pool over (24,12) == AvgPool5 == pooling row 70.
    gap = sp[:, N_ROWS - 1, :]                                # (N, C)
    spatial_feature = jnp.transpose(sp[:, :N_ROWS, :], (0, 2, 1))   # (N, C, 71)
    return gap, spatial_feature


def reference_forward(x_nchw, params):
    """Pure-JAX f32 reference for the same synthetic-backbone forward."""
    n = x_nchw.shape[0]
    xi = _im2col(x_nchw)
    feat = xi @ params["conv_w"] + params["conv_b"]           # (n*HW, C)
    inv_std = 1.0 / jnp.sqrt(params["bn_var"] + BN_EPS)
    feat = (feat - params["bn_mean"]) * (params["bn_gamma"] * inv_std) + params["bn_beta"]
    feat = jnp.maximum(feat, 0.0).reshape(n, HW, C_FEAT)
    q = jnp.asarray(_pool_matrix())[:N_ROWS]                  # (71, 288)
    sp = jnp.einsum("rk,nkc->nrc", q, feat)                   # (n, 71, C)
    return sp[:, -1, :], jnp.transpose(sp, (0, 2, 1))


if __name__ == "__main__":
    key = jax.random.PRNGKey(0)
    kx, kp = jax.random.split(key)
    # image size 384x192 -> 24x12 feature map (consistent with AvgPool5((24,12)))
    x = jax.random.normal(kx, (2, 3, FEAT_H * PATCH, FEAT_W * PATCH), jnp.float32)
    params = init_params(kp)

    gap, spatial = jax.jit(model_forward)(x, params)
    jax.block_until_ready((gap, spatial))

    assert gap.shape == (2, C_FEAT), gap.shape
    assert spatial.shape == (2, C_FEAT, N_ROWS), spatial.shape

    # Validate against the pure-JAX reference (relaxed tolerance for bf16 MXU inputs).
    gap_ref, spatial_ref = jax.jit(reference_forward)(x, params)
    np.testing.assert_allclose(np.asarray(gap), np.asarray(gap_ref),
                               rtol=2e-2, atol=2e-2)
    np.testing.assert_allclose(np.asarray(spatial), np.asarray(spatial_ref),
                               rtol=2e-2, atol=2e-2)

    print("KERNEL_OK")
</pallas_src>

<mosaic_0001>
module attributes {stable_mosaic.version = 11 : i64} {
  func.func @kernel(%arg0: i32, %arg1: i32, %arg2: memref<576x768xbf16, #tpu.memory_space<vmem>>, %arg3: memref<768x512xbf16, #tpu.memory_space<vmem>>, %arg4: memref<1x512xf32, #tpu.memory_space<vmem>>, %arg5: memref<1x512xf32, #tpu.memory_space<vmem>>, %arg6: memref<72x288xbf16, #tpu.memory_space<vmem>>, %arg7: memref<2x72x512xf32, #tpu.memory_space<vmem>>) attributes {dimension_semantics = [#tpu.dimension_semantics<parallel>, #tpu.dimension_semantics<arbitrary>], iteration_bounds = array<i64: 4, 1>, scalar_prefetch = 0 : i64, scratch_operands = 0 : i64, tpu.core_type = #tpu.core_type<tc>, window_params = [{transform_indices = @transform_0, window_bounds = array<i64: 576, 768>}, {transform_indices = @transform_1, window_bounds = array<i64: 768, 512>}, {transform_indices = @transform_2, window_bounds = array<i64: 1, 512>}, {transform_indices = @transform_3, window_bounds = array<i64: 1, 512>}, {pipeline_mode = #tpu.pipeline_mode<synchronous>, transform_indices = @transform_4, window_bounds = array<i64: 72, 288>}, {transform_indices = @transform_5, window_bounds = array<i64: 2, 72, 512>}]} {
    %c0 = arith.constant 0 : index
    %c0_0 = arith.constant 0 : index
    %0 = vector.load %arg2[%c0, %c0_0] : memref<576x768xbf16, #tpu.memory_space<vmem>>, vector<576x768xbf16>
    %c0_1 = arith.constant 0 : index
    %c0_2 = arith.constant 0 : index
    %1 = vector.load %arg3[%c0_1, %c0_2] : memref<768x512xbf16, #tpu.memory_space<vmem>>, vector<768x512xbf16>
    %cst = arith.constant dense<0.000000e+00> : vector<576x512xf32>
    %2 = tpu.matmul %0, %1, %cst {dimension_numbers = #tpu.dot_dimension_numbers<[1], [0], [0], [1], [0, 0, 1, 1], [], []>} : vector<576x768xbf16>, vector<768x512xbf16>, vector<576x512xf32> -> vector<576x512xf32>
    %c0_3 = arith.constant 0 : index
    %c0_4 = arith.constant 0 : index
    %3 = vector.load %arg4[%c0_3, %c0_4] : memref<1x512xf32, #tpu.memory_space<vmem>>, vector<1x512xf32>
    %4 = vector.broadcast %3 : vector<1x512xf32> to vector<576x512xf32>
    %5 = arith.mulf %2, %4 : vector<576x512xf32>
    %c0_5 = arith.constant 0 : index
    %c0_6 = arith.constant 0 : index
    %6 = vector.load %arg5[%c0_5, %c0_6] : memref<1x512xf32, #tpu.memory_space<vmem>>, vector<1x512xf32>
    %7 = vector.broadcast %6 : vector<1x512xf32> to vector<576x512xf32>
    %8 = arith.addf %5, %7 : vector<576x512xf32>
    %cst_7 = arith.constant 0.000000e+00 : f32
    %9 = vector.broadcast %cst_7 : f32 to vector<576x512xf32>
    %10 = arith.maximumf %8, %9 : vector<576x512xf32>
    %11 = arith.truncf %10 : vector<576x512xf32> to vector<576x512xbf16>
    %c0_8 = arith.constant 0 : index
    %c0_9 = arith.constant 0 : index
    %12 = vector.load %arg6[%c0_8, %c0_9] : memref<72x288xbf16, #tpu.memory_space<vmem>>, vector<72x288xbf16>
    %13 = vector.extract_strided_slice %11 {offsets = [0, 0], sizes = [288, 512], strides = [1, 1]} : vector<576x512xbf16> to vector<288x512xbf16>
    %cst_10 = arith.constant dense<0.000000e+00> : vector<72x512xf32>
    %14 = tpu.matmul %12, %13, %cst_10 {dimension_numbers = #tpu.dot_dimension_numbers<[1], [0], [0], [1], [0, 0, 1, 1], [], []>} : vector<72x288xbf16>, vector<288x512xbf16>, vector<72x512xf32> -> vector<72x512xf32>
    %c0_11 = arith.constant 0 : index
    %c0_12 = arith.constant 0 : index
    %c0_13 = arith.constant 0 : index
    %15 = vector.load %arg7[%c0_11, %c0_12, %c0_13] : memref<2x72x512xf32, #tpu.memory_space<vmem>>, vector<1x72x512xf32>
    %16 = vector.shape_cast %15 : vector<1x72x512xf32> to vector<72x512xf32>
    %17 = vector.shape_cast %14 : vector<72x512xf32> to vector<1x72x512xf32>
    tpu.vector_store %arg7[%c0_11, %c0_12, %c0_13], %17 {strides = array<i32>} : memref<2x72x512xf32, #tpu.memory_space<vmem>>, vector<1x72x512xf32>,
    %18 = vector.extract_strided_slice %11 {offsets = [288, 0], sizes = [288, 512], strides = [1, 1]} : vector<576x512xbf16> to vector<288x512xbf16>
    %cst_14 = arith.constant dense<0.000000e+00> : vector<72x512xf32>
    %19 = tpu.matmul %12, %18, %cst_14 {dimension_numbers = #tpu.dot_dimension_numbers<[1], [0], [0], [1], [0, 0, 1, 1], [], []>} : vector<72x288xbf16>, vector<288x512xbf16>, vector<72x512xf32> -> vector<72x512xf32>
    %c1 = arith.constant 1 : index
    %c0_15 = arith.constant 0 : index
    %c0_16 = arith.constant 0 : index
    %20 = vector.load %arg7[%c1, %c0_15, %c0_16] : memref<2x72x512xf32, #tpu.memory_space<vmem>>, vector<1x72x512xf32>
    %21 = vector.shape_cast %20 : vector<1x72x512xf32> to vector<72x512xf32>
    %22 = vector.shape_cast %19 : vector<72x512xf32> to vector<1x72x512xf32>
    tpu.vector_store %arg7[%c1, %c0_15, %c0_16], %22 {strides = array<i32>} : memref<2x72x512xf32, #tpu.memory_space<vmem>>, vector<1x72x512xf32>,
    return
  }
  func.func @transform_0(%arg0: i32, %arg1: i32) -> (i32, i32) {
    %c0_i32 = arith.constant 0 : i32
    %c0_i32_0 = arith.constant 0 : i32
    return %arg1, %c0_i32 : i32, i32
  }
  func.func @transform_1(%arg0: i32, %arg1: i32) -> (i32, i32) {
    %c0_i32 = arith.constant 0 : i32
    %c0_i32_0 = arith.constant 0 : i32
    return %c0_i32, %arg0 : i32, i32
  }
  func.func @transform_2(%arg0: i32, %arg1: i32) -> (i32, i32) {
    %c0_i32 = arith.constant 0 : i32
    %c0_i32_0 = arith.constant 0 : i32
    return %c0_i32, %arg0 : i32, i32
  }
  func.func @transform_3(%arg0: i32, %arg1: i32) -> (i32, i32) {
    %c0_i32 = arith.constant 0 : i32
    %c0_i32_0 = arith.constant 0 : i32
    return %c0_i32, %arg0 : i32, i32
  }
  func.func @transform_4(%arg0: i32, %arg1: i32) -> (i32, i32) {
    %c0_i32 = arith.constant 0 : i32
    %c0_i32_0 = arith.constant 0 : i32
    %c0_i32_1 = arith.constant 0 : i32
    return %c0_i32, %c0_i32_0 : i32, i32
  }
  func.func @transform_5(%arg0: i32, %arg1: i32) -> (i32, i32, i32) {
    %c0_i32 = arith.constant 0 : i32
    %c0_i32_0 = arith.constant 0 : i32
    return %arg1, %c0_i32, %arg0 : i32, i32, i32
  }
}

</mosaic_0001>

<llo_original>
// kernel: model_forward.1
$region0: #{model_forward.1}
  #allocation0 [shape = 'u32[]', space=smem, size = 0x4, offset = 0x4, fixed_abs, tag = 'smem constant byte address 0x4 - core index']
  #allocation1 [shape = 'u32[144,128]{1,0:T(1,128)}', space=vmem, size = 0x12000, scoped, tag = 'internal scratch']
  %s0 = inlined_call_operand.vmem [shape: bf16[576,768], index: 0, kind: input, shape index: {}]
  %s1 = inlined_call_operand.vmem [shape: bf16[768,2048], index: 1, kind: input, shape index: {}]
  %s2 = inlined_call_operand.vmem [shape: f32[1,2048], index: 2, kind: input, shape index: {}]
  %s3 = inlined_call_operand.vmem [shape: f32[1,2048], index: 3, kind: input, shape index: {}]
  %s4 = inlined_call_operand.vmem [shape: bf16[72,288], index: 4, kind: input, shape index: {}]
  %s5 = inlined_call_operand.vmem [shape: f32[2,72,2048], index: 5, kind: output, shape index: {}]
  %s6 = sld [smem:[#allocation0]]
  $region95: #{model_forward.1} parent=0
    _
  %s8 = ssub.s32 1, %s6
  %s9 = scalar_select 0, %s8, %s6
  $region1: #{model_forward.1} parent=0
    #allocation2 [shape = 'u8[1572864]{0}', space=vmem, size = 0x180000, scoped, tag = 'input window, operand 1']
    #allocation3 [shape = 'u8[589824]{0}', space=vmem, size = 0x90000, scoped, tag = 'output window, operand 0']
    loop: start=0, step=1, limit=6
    $region2: #{model_forward.1} parent=1 // loop_pre_header
      _
    $region3: #{model_forward.1} parent=1 // loop_header
      %s11 = sphi 0, %s15
      %p12 = scmp.ge.s32.totalorder %s11, 6
      %s18 = sphi 0, %s30
      %s19 = sphi 0, %s26
      %s20 = sphi 0, %s18
      %s21 = sphi 0, %s19
      %s22 = sphi 0, %s20
      %s23 = sphi 0, %s21
      %s33 = sphi 0, %s35
      %s36 = sphi 0, %s33
      %s37 = sphi 0, %s36
      %s53 = sphi 0, %s37
      %s59 = sphi 0, %s61
      %s62 = sphi 0, %s59
      %s63 = sphi 0, %s62
      %s79 = sphi 0, %s63
      %s85 = sphi 0, %s87
      %s88 = sphi 0, %s85
      %s89 = sphi 0, %s88
      %s105 = sphi 0, %s89
      %s111 = sphi 0, %s113
      %s114 = sphi 0, %s111
      %s115 = sphi 0, %s114
      %s131 = sphi 0, %s115
      %s135 = sphi 0, %s135
      %s137 = sphi 0, %s135
      %s138 = sphi 0, %s137
      %s152 = sphi 0, %s138
      %s160 = sphi 0, %s162
      %s163 = sphi 0, %s160
      %s164 = sphi 0, %s163
      %s180 = sphi 0, %s164
    $region4: #{model_forward.1} parent=1 // loop_header_branch
      %14 = sbr.rel (%p12) target = $region8
    $region5: #{model_forward.1} parent=1 // loop_body
      %s16 = ssub.s32 %s11, 1
      %s17 = ssub.s32 %s11, 2
      %s24 = sadd.s32 1, %s19
      %p25 = scmp.ge.s32.totalorder %s24, 1
      %s26 = scalar_select %p25, 0, %s24
      %s27 = sadd.s32 1, %s18
      %s28 = scalar_select %p25, %s27, %s18
      %p29 = scmp.ge.s32.totalorder %s28, 4
      %s30 = scalar_select %p29, 0, %s28
      %s31 = ssub.s32 %s19, %s26
      %p32 = scmp.eq.s32.totalorder %s31, 0
      %s34 = sadd.s32 %s33, 1
      %s35 = scalar_select %p32, %s33, %s34
      %p38 = pneg %p32
      %p39 = scmp.eq.s32.totalorder %s11, 3
      %p40 = por %p38, %p39
      %p41 = scmp.ne.s32.totalorder %s33, %s36
      %p42 = scmp.eq.s32.totalorder %s11, 0
      %p43 = por %p41, %p42
      %p44 = scmp.ne.s32.totalorder %s33, %s36
      %p45 = scmp.eq.s32.totalorder %s16, 3
      %p46 = por %p44, %p45
      %p47 = scmp.ne.s32.totalorder %s36, %s37
      %p48 = scmp.eq.s32.totalorder %s16, 0
      %p49 = por %p47, %p48
      %p50 = scmp.ne.s32.totalorder %s36, %s37
      %p51 = scmp.eq.s32.totalorder %s17, 3
      %p52 = por %p50, %p51
      %p54 = scmp.ne.s32.totalorder %s37, %s53
      %p55 = scmp.eq.s32.totalorder %s17, 0
      %p56 = por %p54, %p55
      %s57 = ssub.s32 %s18, %s30
      %p58 = scmp.eq.s32.totalorder %s57, 0
      %s60 = sadd.s32 %s59, 1
      %s61 = scalar_select %p58, %s59, %s60
      %p64 = pneg %p58
      %p65 = scmp.eq.s32.totalorder %s11, 3
      %p66 = por %p64, %p65
      %p67 = scmp.ne.s32.totalorder %s59, %s62
      %p68 = scmp.eq.s32.totalorder %s11, 0
      %p69 = por %p67, %p68
      %p70 = scmp.ne.s32.totalorder %s59, %s62
      %p71 = scmp.eq.s32.totalorder %s16, 3
      %p72 = por %p70, %p71
      %p73 = scmp.ne.s32.totalorder %s62, %s63
      %p74 = scmp.eq.s32.totalorder %s16, 0
      %p75 = por %p73, %p74
      %p76 = scmp.ne.s32.totalorder %s62, %s63
      %p77 = scmp.eq.s32.totalorder %s17, 3
      %p78 = por %p76, %p77
      %p80 = scmp.ne.s32.totalorder %s63, %s79
      %p81 = scmp.eq.s32.totalorder %s17, 0
      %p82 = por %p80, %p81
      %s83 = ssub.s32 %s18, %s30
      %p84 = scmp.eq.s32.totalorder %s83, 0
      %s86 = sadd.s32 %s85, 1
      %s87 = scalar_select %p84, %s85, %s86
      %p90 = pneg %p84
      %p91 = scmp.eq.s32.totalorder %s11, 3
      %p92 = por %p90, %p91
      %p93 = scmp.ne.s32.totalorder %s85, %s88
      %p94 = scmp.eq.s32.totalorder %s11, 0
      %p95 = por %p93, %p94
      %p96 = scmp.ne.s32.totalorder %s85, %s88
      %p97 = scmp.eq.s32.totalorder %s16, 3
      %p98 = por %p96, %p97
      %p99 = scmp.ne.s32.totalorder %s88, %s89
      %p100 = scmp.eq.s32.totalorder %s16, 0
      %p101 = por %p99, %p100
      %p102 = scmp.ne.s32.totalorder %s88, %s89
      %p103 = scmp.eq.s32.totalorder %s17, 3
      %p104 = por %p102, %p103
      %p106 = scmp.ne.s32.totalorder %s89, %s105
      %p107 = scmp.eq.s32.totalorder %s17, 0
      %p108 = por %p106, %p107
      %s109 = ssub.s32 %s18, %s30
      %p110 = scmp.eq.s32.totalorder %s109, 0
      %s112 = sadd.s32 %s111, 1
      %s113 = scalar_select %p110, %s111, %s112
      %p116 = pneg %p110
      %p117 = scmp.eq.s32.totalorder %s11, 3
      %p118 = por %p116, %p117
      %p119 = scmp.ne.s32.totalorder %s111, %s114
      %p120 = scmp.eq.s32.totalorder %s11, 0
      %p121 = por %p119, %p120
      %p122 = scmp.ne.s32.totalorder %s111, %s114
      %p123 = scmp.eq.s32.totalorder %s16, 3
      %p124 = por %p122, %p123
      %p125 = scmp.ne.s32.totalorder %s114, %s115
      %p126 = scmp.eq.s32.totalorder %s16, 0
      %p127 = por %p125, %p126
      %p128 = scmp.ne.s32.totalorder %s114, %s115
      %p129 = scmp.eq.s32.totalorder %s17, 3
      %p130 = por %p128, %p129
      %p132 = scmp.ne.s32.totalorder %s115, %s131
      %p133 = scmp.eq.s32.totalorder %s17, 0
      %p134 = por %p132, %p133
      %s136 = sadd.s32 %s135, 1
      %p139 = scmp.eq.s32.totalorder %s11, 3
      %p140 = scmp.ne.s32.totalorder %s135, %s137
      %p141 = scmp.eq.s32.totalorder %s11, 0
      %p142 = por %p140, %p141
      %p143 = scmp.ne.s32.totalorder %s135, %s137
      %p144 = scmp.eq.s32.totalorder %s16, 3
      %p145 = por %p143, %p144
      %p146 = scmp.ne.s32.totalorder %s137, %s138
      %p147 = scmp.eq.s32.totalorder %s16, 0
      %p148 = por %p146, %p147
      %p149 = scmp.ne.s32.totalorder %s137, %s138
      %p150 = scmp.eq.s32.totalorder %s17, 3
      %p151 = por %p149, %p150
      %p153 = scmp.ne.s32.totalorder %s138, %s152
      %p154 = scmp.eq.s32.totalorder %s17, 0
      %p155 = por %p153, %p154
      %s156 = ssub.s32 %s19, %s26
      %s157 = ssub.s32 %s18, %s30
      %s158 = sor.u32 %s156, %s157
      %p159 = scmp.eq.s32.totalorder %s158, 0
      %s161 = sadd.s32 %s160, 1
      %s162 = scalar_select %p159, %s160, %s161
      %p165 = pneg %p159
      %p166 = scmp.eq.s32.totalorder %s11, 3
      %p167 = por %p165, %p166
      %p168 = scmp.ne.s32.totalorder %s160, %s163
      %p169 = scmp.eq.s32.totalorder %s11, 0
      %p170 = por %p168, %p169
      %p171 = scmp.ne.s32.totalorder %s160, %s163
      %p172 = scmp.eq.s32.totalorder %s16, 3
      %p173 = por %p171, %p172
      %p174 = scmp.ne.s32.totalorder %s163, %s164
      %p175 = scmp.eq.s32.totalorder %s16, 0
      %p176 = por %p174, %p175
      %p177 = scmp.ne.s32.totalorder %s163, %s164
      %p178 = scmp.eq.s32.totalorder %s17, 3
      %p179 = por %p177, %p178
      %p181 = scmp.ne.s32.totalorder %s164, %s180
      %p182 = scmp.eq.s32.totalorder %s17, 0
      %p183 = por %p181, %p182
      %p184 = scmp.le.s32.totalorder 1, %s11
      %p185 = scmp.lt.s32.totalorder %s11, 5
      %p186 = pnand %p184, %p185
      %p187 = pneg %p186
      // Predicated region
      $region9: #{model_forward.1} parent=5 // pred_check
        _
      $region10: #{model_forward.1} parent=5 // pred_check_branch
        %189 = sbr.rel (%p186) target = $region12
      $region11: #{model_forward.1} parent=5 // pred_region
        %s190 = ssub.s32 %s11, 1
        // Predicated region
        $region13: #{model_forward.1} parent=11 // pred_check
          %p191 = pneg %p49
        $region14: #{model_forward.1} parent=11 // pred_check_branch
          %193 = sbr.rel (%p191) target = $region16
        $region15: #{model_forward.1} parent=11 // pred_region
          %s194 = smul.u32 72, %s21
          %p195 = scmp.lt.s32.totalorder %s194, 71
          %s196 = scalar_select %p195, %s194, 71
          %s197 = smul.addr %s196, 6
          %s198 = smul.addr %s197, 4
          %s199 = scalar_lea.vmem %s0, %s198
          %s200 = smul.u32 72, %s21
        $region16: #{model_forward.1} parent=11 // pred_fallthru
          _
        // Predicated region
        $region17: #{model_forward.1} parent=11 // pred_check
          %p201 = pneg %p148
        $region18: #{model_forward.1} parent=11 // pred_check_branch
          %203 = sbr.rel (%p201) target = $region20
        $region19: #{model_forward.1} parent=11 // pred_region
          _
        $region20: #{model_forward.1} parent=11 // pred_fallthru
          _
      $region12: #{model_forward.1} parent=5 // pred_fallthru
        _
      %p204 = scmp.lt.s32.totalorder %s11, 4
      // Predicated region
      $region21: #{model_forward.1} parent=5 // pred_check
        %p205 = pneg %p204
      $region22: #{model_forward.1} parent=5 // pred_check_branch
        %207 = sbr.rel (%p205) target = $region24
      $region23: #{model_forward.1} parent=5 // pred_region
        // Predicated region
        $region25: #{model_forward.1} parent=23 // pred_check
          %p208 = pneg %p69
        $region26: #{model_forward.1} parent=23 // pred_check_branch
          %210 = sbr.rel (%p208) target = $region28
        $region27: #{model_forward.1} parent=23 // pred_region
          %s211 = sand.u32 %s59, 1
          %s212 = sand.u32 %s59, 1
          %s213 = smul.addr %s212, 1536
          %s214 = scalar_lea.vmem [#allocation2], %s213
          %s215 = smul.u32 4, %s18
          %s216 = smul.addr %s215, 4
          %s217 = scalar_lea.vmem %s1, %s216
          // Predicated region
          $region29: #{model_forward.1} parent=27 // pred_check
            _
          $region30: #{model_forward.1} parent=27 // pred_check_branch
            %219 = sbr.rel (0) target = $region32
          $region31: #{model_forward.1} parent=27 // pred_region
            // Predicated region
            $region33: #{model_forward.1} parent=31 // pred_check
              _
            $region34: #{model_forward.1} parent=31 // pred_check_branch
              %221 = sbr.rel (0) target = $region36
            $region35: #{model_forward.1} parent=31 // pred_region
              loop: start=0, step=1, limit=1
              $region37: #{model_forward.1} parent=35 // loop_pre_header
                _
              $region38: #{model_forward.1} parent=35 // loop_header
                %s223 = sphi 0, %s227
                %p224 = scmp.ge.s32.totalorder %s223, 1
                %s228 = sphi %s217, %s217
                %s229 = sphi %s214, %s214
              $region39: #{model_forward.1} parent=35 // loop_header_branch
                %226 = sbr.rel (%p224) target = $region43
              $region40: #{model_forward.1} parent=35 // loop_body
                %v230 = vld [vmem:[%s228] sm:$0xff]
                %231 = vst [vmem:[%s229] sm:$0xff] %v230
                %v232 = vld [vmem:[%s228 + $0x8] sm:$0xff]
                %233 = vst [vmem:[%s229 + $0x8] sm:$0xff] %v232
                %v234 = vld [vmem:[%s228 + $0x40] sm:$0xff]
                %235 = vst [vmem:[%s229 + $0x10] sm:$0xff] %v234
                %v236 = vld [vmem:[%s228 + $0x48] sm:$0xff]
                %237 = vst [vmem:[%s229 + $0x18] sm:$0xff] %v236
                %v238 = vld [vmem:[%s228 + $0x80] sm:$0xff]
                %239 = vst [vmem:[%s229 + $0x20] sm:$0xff] %v238
                %v240 = vld [vmem:[%s228 + $0x88] sm:$0xff]
                %241 = vst [vmem:[%s229 + $0x28] sm:$0xff] %v240
                %v242 = vld [vmem:[%s228 + $0xc0] sm:$0xff]
                %243 = vst [vmem:[%s229 + $0x30] sm:$0xff] %v242
                %v244 = vld [vmem:[%s228 + $0xc8] sm:$0xff]
                %245 = vst [vmem:[%s229 + $0x38] sm:$0xff] %v244
                %v246 = vld [vmem:[%s228 + $0x100] sm:$0xff]
                %247 = vst [vmem:[%s229 + $0x40] sm:$0xff] %v246
                %v248 = vld [vmem:[%s228 + $0x108] sm:$0xff]
                %249 = vst [vmem:[%s229 + $0x48] sm:$0xff] %v248
                %v250 = vld [vmem:[%s228 + $0x140] sm:$0xff]
                %251 = vst [vmem:[%s229 + $0x50] sm:$0xff] %v250
                %v252 = vld [vmem:[%s228 + $0x148] sm:$0xff]
                %253 = vst [vmem:[%s229 + $0x58] sm:$0xff] %v252
                %v254 = vld [vmem:[%s228 + $0x180] sm:$0xff]
                %255 = vst [vmem:[%s229 + $0x60] sm:$0xff] %v254
                %v256 = vld [vmem:[%s228 + $0x188] sm:$0xff]
                %257 = vst [vmem:[%s229 + $0x68] sm:$0xff] %v256
                %v258 = vld [vmem:[%s228 + $0x1c0] sm:$0xff]
                %259 = vst [vmem:[%s229 + $0x70] sm:$0xff] %v258
                %v260 = vld [vmem:[%s228 + $0x1c8] sm:$0xff]
                %261 = vst [vmem:[%s229 + $0x78] sm:$0xff] %v260
                %v262 = vld [vmem:[%s228 + $0x200] sm:$0xff]
                %263 = vst [vmem:[%s229 + $0x80] sm:$0xff] %v262
                %v264 = vld [vmem:[%s228 + $0x208] sm:$0xff]
                %265 = vst [vmem:[%s229 + $0x88] sm:$0xff] %v264
                %v266 = vld [vmem:[%s228 + $0x240] sm:$0xff]
                %267 = vst [vmem:[%s229 + $0x90] sm:$0xff] %v266
                %v268 = vld [vmem:[%s228 + $0x248] sm:$0xff]
                %269 = vst [vmem:[%s229 + $0x98] sm:$0xff] %v268
                %v270 = vld [vmem:[%s228 + $0x280] sm:$0xff]
                %271 = vst [vmem:[%s229 + $0xa0] sm:$0xff] %v270
                %v272 = vld [vmem:[%s228 + $0x288] sm:$0xff]
                %273 = vst [vmem:[%s229 + $0xa8] sm:$0xff] %v272
                %v274 = vld [vmem:[%s228 + $0x2c0] sm:$0xff]
                %275 = vst [vmem:[%s229 + $0xb0] sm:$0xff] %v274
                %v276 = vld [vmem:[%s228 + $0x2c8] sm:$0xff]
                %277 = vst [vmem:[%s229 + $0xb8] sm:$0xff] %v276
                %v278 = vld [vmem:[%s228 + $0x300] sm:$0xff]
                %279 = vst [vmem:[%s229 + $0xc0] sm:$0xff] %v278
                %v280 = vld [vmem:[%s228 + $0x308] sm:$0xff]
                %281 = vst [vmem:[%s229 + $0xc8] sm:$0xff] %v280
                %v282 = vld [vmem:[%s228 + $0x340] sm:$0xff]
                %283 = vst [vmem:[%s229 + $0xd0] sm:$0xff] %v282
                %v284 = vld [vmem:[%s228 + $0x348] sm:$0xff]
                %285 = vst [vmem:[%s229 + $0xd8] sm:$0xff] %v284
                %v286 = vld [vmem:[%s228 + $0x380] sm:$0xff]
                %287 = vst [vmem:[%s229 + $0xe0] sm:$0xff] %v286
                %v288 = vld [vmem:[%s228 + $0x388] sm:$0xff]
                %289 = vst [vmem:[%s229 + $0xe8] sm:$0xff] %v288
                %v290 = vld [vmem:[%s228 + $0x3c0] sm:$0xff]
                %291 = vst [vmem:[%s229 + $0xf0] sm:$0xff] %v290
                %v292 = vld [vmem:[%s228 + $0x3c8] sm:$0xff]
                %293 = vst [vmem:[%s229 + $0xf8] sm:$0xff] %v292
                %v294 = vld [vmem:[%s228 + $0x400] sm:$0xff]
                %295 = vst [vmem:[%s229 + $0x100] sm:$0xff] %v294
                %v296 = vld [vmem:[%s228 + $0x408] sm:$0xff]
                %297 = vst [vmem:[%s229 + $0x108] sm:$0xff] %v296
                %v298 = vld [vmem:[%s228 + $0x440] sm:$0xff]
                %299 = vst [vmem:[%s229 + $0x110] sm:$0xff] %v298
                %v300 = vld [vmem:[%s228 + $0x448] sm:$0xff]
                %301 = vst [vmem:[%s229 + $0x118] sm:$0xff] %v300
                %v302 = vld [vmem:[%s228 + $0x480] sm:$0xff]
                %303 = vst [vmem:[%s229 + $0x120] sm:$0xff] %v302
                %v304 = vld [vmem:[%s228 + $0x488] sm:$0xff]
                %305 = vst [vmem:[%s229 + $0x128] sm:$0xff] %v304
                %v306 = vld [vmem:[%s228 + $0x4c0] sm:$0xff]
                %307 = vst [vmem:[%s229 + $0x130] sm:$0xff] %v306
                %v308 = vld [vmem:[%s228 + $0x4c8] sm:$0xff]
                %309 = vst [vmem:[%s229 + $0x138] sm:$0xff] %v308
                %v310 = vld [vmem:[%s228 + $0x500] sm:$0xff]
                %311 = vst [vmem:[%s229 + $0x140] sm:$0xff] %v310
                %v312 = vld [vmem:[%s228 + $0x508] sm:$0xff]
                %313 = vst [vmem:[%s229 + $0x148] sm:$0xff] %v312
                %v314 = vld [vmem:[%s228 + $0x540] sm:$0xff]
                %315 = vst [vmem:[%s229 + $0x150] sm:$0xff] %v314
                %v316 = vld [vmem:[%s228 + $0x548] sm:$0xff]
                %317 = vst [vmem:[%s229 + $0x158] sm:$0xff] %v316
                %v318 = vld [vmem:[%s228 + $0x580] sm:$0xff]
                %319 = vst [vmem:[%s229 + $0x160] sm:$0xff] %v318
                %v320 = vld [vmem:[%s228 + $0x588] sm:$0xff]
                %321 = vst [vmem:[%s229 + $0x168] sm:$0xff] %v320
                %v322 = vld [vmem:[%s228 + $0x5c0] sm:$0xff]
                %323 = vst [vmem:[%s229 + $0x170] sm:$0xff] %v322
                %v324 = vld [vmem:[%s228 + $0x5c8] sm:$0xff]
                %325 = vst [vmem:[%s229 + $0x178] sm:$0xff] %v324
                %v326 = vld [vmem:[%s228 + $0x600] sm:$0xff]
                %327 = vst [vmem:[%s229 + $0x180] sm:$0xff] %v326
                %v328 = vld [vmem:[%s228 + $0x608] sm:$0xff]
                %329 = vst [vmem:[%s229 + $0x188] sm:$0xff] %v328
                %v330 = vld [vmem:[%s228 + $0x640] sm:$0xff]
                %331 = vst [vmem:[%s229 + $0x190] sm:$0xff] %v330
                %v332 = vld [vmem:[%s228 + $0x648] sm:$0xff]
                %333 = vst [vmem:[%s229 + $0x198] sm:$0xff] %v332
                %v334 = vld [vmem:[%s228 + $0x680] sm:$0xff]
                %335 = vst [vmem:[%s229 + $0x1a0] sm:$0xff] %v334
                %v336 = vld [vmem:[%s228 + $0x688] sm:$0xff]
                %337 = vst [vmem:[%s229 + $0x1a8] sm:$0xff] %v336
                %v338 = vld [vmem:[%s228 + $0x6c0] sm:$0xff]
                %339 = vst [vmem:[%s229 + $0x1b0] sm:$0xff] %v338
                %v340 = vld [vmem:[%s228 + $0x6c8] sm:$0xff]
                %341 = vst [vmem:[%s229 + $0x1b8] sm:$0xff] %v340
                %v342 = vld [vmem:[%s228 + $0x700] sm:$0xff]
                %343 = vst [vmem:[%s229 + $0x1c0] sm:$0xff] %v342
                %v344 = vld [vmem:[%s228 + $0x708] sm:$0xff]
                %345 = vst [vmem:[%s229 + $0x1c8] sm:$0xff] %v344
                %v346 = vld [vmem:[%s228 + $0x740] sm:$0xff]
                %347 = vst [vmem:[%s229 + $0x1d0] sm:$0xff] %v346
                %v348 = vld [vmem:[%s228 + $0x748] sm:$0xff]
                %349 = vst [vmem:[%s229 + $0x1d8] sm:$0xff] %v348
                %v350 = vld [vmem:[%s228 + $0x780] sm:$0xff]
                %351 = vst [vmem:[%s229 + $0x1e0] sm:$0xff] %v350
                %v352 = vld [vmem:[%s228 + $0x788] sm:$0xff]
                %353 = vst [vmem:[%s229 + $0x1e8] sm:$0xff] %v352
                %v354 = vld [vmem:[%s228 + $0x7c0] sm:$0xff]
                %355 = vst [vmem:[%s229 + $0x1f0] sm:$0xff] %v354
                %v356 = vld [vmem:[%s228 + $0x7c8] sm:$0xff]
                %357 = vst [vmem:[%s229 + $0x1f8] sm:$0xff] %v356
                %v358 = vld [vmem:[%s228 + $0x800] sm:$0xff]
                %359 = vst [vmem:[%s229 + $0x200] sm:$0xff] %v358
                %v360 = vld [vmem:[%s228 + $0x808] sm:$0xff]
                %361 = vst [vmem:[%s229 + $0x208] sm:$0xff] %v360
                %v362 = vld [vmem:[%s228 + $0x840] sm:$0xff]
                %363 = vst [vmem:[%s229 + $0x210] sm:$0xff] %v362
                %v364 = vld [vmem:[%s228 + $0x848] sm:$0xff]
                %365 = vst [vmem:[%s229 + $0x218] sm:$0xff] %v364
                %v366 = vld [vmem:[%s228 + $0x880] sm:$0xff]
                %367 = vst [vmem:[%s229 + $0x220] sm:$0xff] %v366
                %v368 = vld [vmem:[%s228 + $0x888] sm:$0xff]
                %369 = vst [vmem:[%s229 + $0x228] sm:$0xff] %v368
                %v370 = vld [vmem:[%s228 + $0x8c0] sm:$0xff]
                %371 = vst [vmem:[%s229 + $0x230] sm:$0xff] %v370
                %v372 = vld [vmem:[%s228 + $0x8c8] sm:$0xff]
                %373 = vst [vmem:[%s229 + $0x238] sm:$0xff] %v372
                %v374 = vld [vmem:[%s228 + $0x900] sm:$0xff]
                %375 = vst [vmem:[%s229 + $0x240] sm:$0xff] %v374
                %v376 = vld [vmem:[%s228 + $0x908] sm:$0xff]
                %377 = vst [vmem:[%s229 + $0x248] sm:$0xff] %v376
                %v378 = vld [vmem:[%s228 + $0x940] sm:$0xff]
                %379 = vst [vmem:[%s229 + $0x250] sm:$0xff] %v378
                %v380 = vld [vmem:[%s228 + $0x948] sm:$0xff]
                %381 = vst [vmem:[%s229 + $0x258] sm:$0xff] %v380
                %v382 = vld [vmem:[%s228 + $0x980] sm:$0xff]
                %383 = vst [vmem:[%s229 + $0x260] sm:$0xff] %v382
                %v384 = vld [vmem:[%s228 + $0x988] sm:$0xff]
                %385 = vst [vmem:[%s229 + $0x268] sm:$0xff] %v384
                %v386 = vld [vmem:[%s228 + $0x9c0] sm:$0xff]
                %387 = vst [vmem:[%s229 + $0x270] sm:$0xff] %v386
                %v388 = vld [vmem:[%s228 + $0x9c8] sm:$0xff]
                %389 = vst [vmem:[%s229 + $0x278] sm:$0xff] %v388
                %v390 = vld [vmem:[%s228 + $0xa00] sm:$0xff]
                %391 = vst [vmem:[%s229 + $0x280] sm:$0xff] %v390
                %v392 = vld [vmem:[%s228 + $0xa08] sm:$0xff]
                %393 = vst [vmem:[%s229 + $0x288] sm:$0xff] %v392
                %v394 = vld [vmem:[%s228 + $0xa40] sm:$0xff]
                %395 = vst [vmem:[%s229 + $0x290] sm:$0xff] %v394
                %v396 = vld [vmem:[%s228 + $0xa48] sm:$0xff]
                %397 = vst [vmem:[%s229 + $0x298] sm:$0xff] %v396
                %v398 = vld [vmem:[%s228 + $0xa80] sm:$0xff]
                %399 = vst [vmem:[%s229 + $0x2a0] sm:$0xff] %v398
                %v400 = vld [vmem:[%s228 + $0xa88] sm:$0xff]
                %401 = vst [vmem:[%s229 + $0x2a8] sm:$0xff] %v400
                %v402 = vld [vmem:[%s228 + $0xac0] sm:$0xff]
                %403 = vst [vmem:[%s229 + $0x2b0] sm:$0xff] %v402
                %v404 = vld [vmem:[%s228 + $0xac8] sm:$0xff]
                %405 = vst [vmem:[%s229 + $0x2b8] sm:$0xff] %v404
                %v406 = vld [vmem:[%s228 + $0xb00] sm:$0xff]
                %407 = vst [vmem:[%s229 + $0x2c0] sm:$0xff] %v406
                %v408 = vld [vmem:[%s228 + $0xb08] sm:$0xff]
                %409 = vst [vmem:[%s229 + $0x2c8] sm:$0xff] %v408
                %v410 = vld [vmem:[%s228 + $0xb40] sm:$0xff]
                %411 = vst [vmem:[%s229 + $0x2d0] sm:$0xff] %v410
                %v412 = vld [vmem:[%s228 + $0xb48] sm:$0xff]
                %413 = vst [vmem:[%s229 + $0x2d8] sm:$0xff] %v412
                %v414 = vld [vmem:[%s228 + $0xb80] sm:$0xff]
                %415 = vst [vmem:[%s229 + $0x2e0] sm:$0xff] %v414
                %v416 = vld [vmem:[%s228 + $0xb88] sm:$0xff]
                %417 = vst [vmem:[%s229 + $0x2e8] sm:$0xff] %v416
                %v418 = vld [vmem:[%s228 + $0xbc0] sm:$0xff]
                %419 = vst [vmem:[%s229 + $0x2f0] sm:$0xff] %v418
                %v420 = vld [vmem:[%s228 + $0xbc8] sm:$0xff]
                %421 = vst [vmem:[%s229 + $0x2f8] sm:$0xff] %v420
                %v422 = vld [vmem:[%s228 + $0xc00] sm:$0xff]
                %423 = vst [vmem:[%s229 + $0x300] sm:$0xff] %v422
                %v424 = vld [vmem:[%s228 + $0xc08] sm:$0xff]
                %425 = vst [vmem:[%s229 + $0x308] sm:$0xff] %v424
                %v426 = vld [vmem:[%s228 + $0xc40] sm:$0xff]
                %427 = vst [vmem:[%s229 + $0x310] sm:$0xff] %v426
                %v428 = vld [vmem:[%s228 + $0xc48] sm:$0xff]
                %429 = vst [vmem:[%s229 + $0x318] sm:$0xff] %v428
                %v430 = vld [vmem:[%s228 + $0xc80] sm:$0xff]
                %431 = vst [vmem:[%s229 + $0x320] sm:$0xff] %v430
                %v432 = vld [vmem:[%s228 + $0xc88] sm:$0xff]
                %433 = vst [vmem:[%s229 + $0x328] sm:$0xff] %v432
                %v434 = vld [vmem:[%s228 + $0xcc0] sm:$0xff]
                %435 = vst [vmem:[%s229 + $0x330] sm:$0xff] %v434
                %v436 = vld [vmem:[%s228 + $0xcc8] sm:$0xff]
                %437 = vst [vmem:[%s229 + $0x338] sm:$0xff] %v436
                %v438 = vld [vmem:[%s228 + $0xd00] sm:$0xff]
                %439 = vst [vmem:[%s229 + $0x340] sm:$0xff] %v438
                %v440 = vld [vmem:[%s228 + $0xd08] sm:$0xff]
                %441 = vst [vmem:[%s229 + $0x348] sm:$0xff] %v440
                %v442 = vld [vmem:[%s228 + $0xd40] sm:$0xff]
                %443 = vst [vmem:[%s229 + $0x350] sm:$0xff] %v442
                %v444 = vld [vmem:[%s228 + $0xd48] sm:$0xff]
                %445 = vst [vmem:[%s229 + $0x358] sm:$0xff] %v444
                %v446 = vld [vmem:[%s228 + $0xd80] sm:$0xff]
                %447 = vst [vmem:[%s229 + $0x360] sm:$0xff] %v446
                %v448 = vld [vmem:[%s228 + $0xd88] sm:$0xff]
                %449 = vst [vmem:[%s229 + $0x368] sm:$0xff] %v448
                %v450 = vld [vmem:[%s228 + $0xdc0] sm:$0xff]
                %451 = vst [vmem:[%s229 + $0x370] sm:$0xff] %v450
                %v452 = vld [vmem:[%s228 + $0xdc8] sm:$0xff]
                %453 = vst [vmem:[%s229 + $0x378] sm:$0xff] %v452
                %v454 = vld [vmem:[%s228 + $0xe00] sm:$0xff]
                %455 = vst [vmem:[%s229 + $0x380] sm:$0xff] %v454
                %v456 = vld [vmem:[%s228 + $0xe08] sm:$0xff]
                %457 = vst [vmem:[%s229 + $0x388] sm:$0xff] %v456
                %v458 = vld [vmem:[%s228 + $0xe40] sm:$0xff]
                %459 = vst [vmem:[%s229 + $0x390] sm:$0xff] %v458
                %v460 = vld [vmem:[%s228 + $0xe48] sm:$0xff]
                %461 = vst [vmem:[%s229 + $0x398] sm:$0xff] %v460
                %v462 = vld [vmem:[%s228 + $0xe80] sm:$0xff]
                %463 = vst [vmem:[%s229 + $0x3a0] sm:$0xff] %v462
                %v464 = vld [vmem:[%s228 + $0xe88] sm:$0xff]
                %465 = vst [vmem:[%s229 + $0x3a8] sm:$0xff] %v464
                %v466 = vld [vmem:[%s228 + $0xec0] sm:$0xff]
                %467 = vst [vmem:[%s229 + $0x3b0] sm:$0xff] %v466
                %v468 = vld [vmem:[%s228 + $0xec8] sm:$0xff]
                %469 = vst [vmem:[%s229 + $0x3b8] sm:$0xff] %v468
                %v470 = vld [vmem:[%s228 + $0xf00] sm:$0xff]
                %471 = vst [vmem:[%s229 + $0x3c0] sm:$0xff] %v470
                %v472 = vld [vmem:[%s228 + $0xf08] sm:$0xff]
                %473 = vst [vmem:[%s229 + $0x3c8] sm:$0xff] %v472
                %v474 = vld [vmem:[%s228 + $0xf40] sm:$0xff]
                %475 = vst [vmem:[%s229 + $0x3d0] sm:$0xff] %v474
                %v476 = vld [vmem:[%s228 + $0xf48] sm:$0xff]
                %477 = vst [vmem:[%s229 + $0x3d8] sm:$0xff] %v476
                %v478 = vld [vmem:[%s228 + $0xf80] sm:$0xff]
                %479 = vst [vmem:[%s229 + $0x3e0] sm:$0xff] %v478
                %v480 = vld [vmem:[%s228 + $0xf88] sm:$0xff]
                %481 = vst [vmem:[%s229 + $0x3e8] sm:$0xff] %v480
                %v482 = vld [vmem:[%s228 + $0xfc0] sm:$0xff]
                %483 = vst [vmem:[%s229 + $0x3f0] sm:$0xff] %v482
                %v484 = vld [vmem:[%s228 + $0xfc8] sm:$0xff]
                %485 = vst [vmem:[%s229 + $0x3f8] sm:$0xff] %v484
                %v486 = vld [vmem:[%s228 + $0x1000] sm:$0xff]
                %487 = vst [vmem:[%s229 + $0x400] sm:$0xff] %v486
                %v488 = vld [vmem:[%s228 + $0x1008] sm:$0xff]
                %489 = vst [vmem:[%s229 + $0x408] sm:$0xff] %v488
                %v490 = vld [vmem:[%s228 + $0x1040] sm:$0xff]
                %491 = vst [vmem:[%s229 + $0x410] sm:$0xff] %v490
                %v492 = vld [vmem:[%s228 + $0x1048] sm:$0xff]
                %493 = vst [vmem:[%s229 + $0x418] sm:$0xff] %v492
                %v494 = vld [vmem:[%s228 + $0x1080] sm:$0xff]
                %495 = vst [vmem:[%s229 + $0x420] sm:$0xff] %v494
                %v496 = vld [vmem:[%s228 + $0x1088] sm:$0xff]
                %497 = vst [vmem:[%s229 + $0x428] sm:$0xff] %v496
                %v498 = vld [vmem:[%s228 + $0x10c0] sm:$0xff]
                %499 = vst [vmem:[%s229 + $0x430] sm:$0xff] %v498
                %v500 = vld [vmem:[%s228 + $0x10c8] sm:$0xff]
                %501 = vst [vmem:[%s229 + $0x438] sm:$0xff] %v500
                %v502 = vld [vmem:[%s228 + $0x1100] sm:$0xff]
                %503 = vst [vmem:[%s229 + $0x440] sm:$0xff] %v502
                %v504 = vld [vmem:[%s228 + $0x1108] sm:$0xff]
                %505 = vst [vmem:[%s229 + $0x448] sm:$0xff] %v504
                %v506 = vld [vmem:[%s228 + $0x1140] sm:$0xff]
                %507 = vst [vmem:[%s229 + $0x450] sm:$0xff] %v506
                %v508 = vld [vmem:[%s228 + $0x1148] sm:$0xff]
                %509 = vst [vmem:[%s229 + $0x458] sm:$0xff] %v508
                %v510 = vld [vmem:[%s228 + $0x1180] sm:$0xff]
                %511 = vst [vmem:[%s229 + $0x460] sm:$0xff] %v510
                %v512 = vld [vmem:[%s228 + $0x1188] sm:$0xff]
                %513 = vst [vmem:[%s229 + $0x468] sm:$0xff] %v512
                %v514 = vld [vmem:[%s228 + $0x11c0] sm:$0xff]
                %515 = vst [vmem:[%s229 + $0x470] sm:$0xff] %v514
                %v516 = vld [vmem:[%s228 + $0x11c8] sm:$0xff]
                %517 = vst [vmem:[%s229 + $0x478] sm:$0xff] %v516
                %v518 = vld [vmem:[%s228 + $0x1200] sm:$0xff]
                %519 = vst [vmem:[%s229 + $0x480] sm:$0xff] %v518
                %v520 = vld [vmem:[%s228 + $0x1208] sm:$0xff]
                %521 = vst [vmem:[%s229 + $0x488] sm:$0xff] %v520
                %v522 = vld [vmem:[%s228 + $0x1240] sm:$0xff]
                %523 = vst [vmem:[%s229 + $0x490] sm:$0xff] %v522
                %v524 = vld [vmem:[%s228 + $0x1248] sm:$0xff]
                %525 = vst [vmem:[%s229 + $0x498] sm:$0xff] %v524
                %v526 = vld [vmem:[%s228 + $0x1280] sm:$0xff]
                %527 = vst [vmem:[%s229 + $0x4a0] sm:$0xff] %v526
                %v528 = vld [vmem:[%s228 + $0x1288] sm:$0xff]
                %529 = vst [vmem:[%s229 + $0x4a8] sm:$0xff] %v528
                %v530 = vld [vmem:[%s228 + $0x12c0] sm:$0xff]
                %531 = vst [vmem:[%s229 + $0x4b0] sm:$0xff] %v530
                %v532 = vld [vmem:[%s228 + $0x12c8] sm:$0xff]
                %533 = vst [vmem:[%s229 + $0x4b8] sm:$0xff] %v532
                %v534 = vld [vmem:[%s228 + $0x1300] sm:$0xff]
                %535 = vst [vmem:[%s229 + $0x4c0] sm:$0xff] %v534
                %v536 = vld [vmem:[%s228 + $0x1308] sm:$0xff]
                %537 = vst [vmem:[%s229 + $0x4c8] sm:$0xff] %v536
                %v538 = vld [vmem:[%s228 + $0x1340] sm:$0xff]
                %539 = vst [vmem:[%s229 + $0x4d0] sm:$0xff] %v538
                %v540 = vld [vmem:[%s228 + $0x1348] sm:$0xff]
                %541 = vst [vmem:[%s229 + $0x4d8] sm:$0xff] %v540
                %v542 = vld [vmem:[%s228 + $0x1380] sm:$0xff]
                %543 = vst [vmem:[%s229 + $0x4e0] sm:$0xff] %v542
                %v544 = vld [vmem:[%s228 + $0x1388] sm:$0xff]
                %545 = vst [vmem:[%s229 + $0x4e8] sm:$0xff] %v544
                %v546 = vld [vmem:[%s228 + $0x13c0] sm:$0xff]
                %547 = vst [vmem:[%s229 + $0x4f0] sm:$0xff] %v546
                %v548 = vld [vmem:[%s228 + $0x13c8] sm:$0xff]
                %549 = vst [vmem:[%s229 + $0x4f8] sm:$0xff] %v548
                %v550 = vld [vmem:[%s228 + $0x1400] sm:$0xff]
                %551 = vst [vmem:[%s229 + $0x500] sm:$0xff] %v550
                %v552 = vld [vmem:[%s228 + $0x1408] sm:$0xff]
                %553 = vst [vmem:[%s229 + $0x508] sm:$0xff] %v552
                %v554 = vld [vmem:[%s228 + $0x1440] sm:$0xff]
                %555 = vst [vmem:[%s229 + $0x510] sm:$0xff] %v554
                %v556 = vld [vmem:[%s228 + $0x1448] sm:$0xff]
                %557 = vst [vmem:[%s229 + $0x518] sm:$0xff] %v556
                %v558 = vld [vmem:[%s228 + $0x1480] sm:$0xff]
                %559 = vst [vmem:[%s229 + $0x520] sm:$0xff] %v558
                %v560 = vld [vmem:[%s228 + $0x1488] sm:$0xff]
                %561 = vst [vmem:[%s229 + $0x528] sm:$0xff] %v560
                %v562 = vld [vmem:[%s228 + $0x14c0] sm:$0xff]
                %563 = vst [vmem:[%s229 + $0x530] sm:$0xff] %v562
                %v564 = vld [vmem:[%s228 + $0x14c8] sm:$0xff]
                %565 = vst [vmem:[%s229 + $0x538] sm:$0xff] %v564
                %v566 = vld [vmem:[%s228 + $0x1500] sm:$0xff]
                %567 = vst [vmem:[%s229 + $0x540] sm:$0xff] %v566
                %v568 = vld [vmem:[%s228 + $0x1508] sm:$0xff]
                %569 = vst [vmem:[%s229 + $0x548] sm:$0xff] %v568
                %v570 = vld [vmem:[%s228 + $0x1540] sm:$0xff]
                %571 = vst [vmem:[%s229 + $0x550] sm:$0xff] %v570
                %v572 = vld [vmem:[%s228 + $0x1548] sm:$0xff]
                %573 = vst [vmem:[%s229 + $0x558] sm:$0xff] %v572
                %v574 = vld [vmem:[%s228 + $0x1580] sm:$0xff]
                %575 = vst [vmem:[%s229 + $0x560] sm:$0xff] %v574
                %v576 = vld [vmem:[%s228 + $0x1588] sm:$0xff]
                %577 = vst [vmem:[%s229 + $0x568] sm:$0xff] %v576
                %v578 = vld [vmem:[%s228 + $0x15c0] sm:$0xff]
                %579 = vst [vmem:[%s229 + $0x570] sm:$0xff] %v578
                %v580 = vld [vmem:[%s228 + $0x15c8] sm:$0xff]
                %581 = vst [vmem:[%s229 + $0x578] sm:$0xff] %v580
                %v582 = vld [vmem:[%s228 + $0x1600] sm:$0xff]
                %583 = vst [vmem:[%s229 + $0x580] sm:$0xff] %v582
                %v584 = vld [vmem:[%s228 + $0x1608] sm:$0xff]
                %585 = vst [vmem:[%s229 + $0x588] sm:$0xff] %v584
                %v586 = vld [vmem:[%s228 + $0x1640] sm:$0xff]
                %587 = vst [vmem:[%s229 + $0x590] sm:$0xff] %v586
                %v588 = vld [vmem:[%s228 + $0x1648] sm:$0xff]
                %589 = vst [vmem:[%s229 + $0x598] sm:$0xff] %v588
                %v590 = vld [vmem:[%s228 + $0x1680] sm:$0xff]
                %591 = vst [vmem:[%s229 + $0x5a0] sm:$0xff] %v590
                %v592 = vld [vmem:[%s228 + $0x1688] sm:$0xff]
                %593 = vst [vmem:[%s229 + $0x5a8] sm:$0xff] %v592
                %v594 = vld [vmem:[%s228 + $0x16c0] sm:$0xff]
                %595 = vst [vmem:[%s229 + $0x5b0] sm:$0xff] %v594
                %v596 = vld [vmem:[%s228 + $0x16c8] sm:$0xff]
                %597 = vst [vmem:[%s229 + $0x5b8] sm:$0xff] %v596
                %v598 = vld [vmem:[%s228 + $0x1700] sm:$0xff]
                %599 = vst [vmem:[%s229 + $0x5c0] sm:$0xff] %v598
                %v600 = vld [vmem:[%s228 + $0x1708] sm:$0xff]
                %601 = vst [vmem:[%s229 + $0x5c8] sm:$0xff] %v600
                %v602 = vld [vmem:[%s228 + $0x1740] sm:$0xff]
                %603 = vst [vmem:[%s229 + $0x5d0] sm:$0xff] %v602
                %v604 = vld [vmem:[%s228 + $0x1748] sm:$0xff]
                %605 = vst [vmem:[%s229 + $0x5d8] sm:$0xff] %v604
                %v606 = vld [vmem:[%s228 + $0x1780] sm:$0xff]
                %607 = vst [vmem:[%s229 + $0x5e0] sm:$0xff] %v606
                %v608 = vld [vmem:[%s228 + $0x1788] sm:$0xff]
                %609 = vst [vmem:[%s229 + $0x5e8] sm:$0xff] %v608
                %v610 = vld [vmem:[%s228 + $0x17c0] sm:$0xff]
                %611 = vst [vmem:[%s229 + $0x5f0] sm:$0xff] %v610
                %v612 = vld [vmem:[%s228 + $0x17c8] sm:$0xff]
                %613 = vst [vmem:[%s229 + $0x5f8] sm:$0xff] %v612
              $region41: #{model_forward.1} parent=35 // loop_footer
                %s227 = sadd.s32 1, %s223
              $region42: #{model_forward.1} parent=35 // loop_footer_branch
                %222 = sbr.rel target = $region38
              $region43: #{model_forward.1} parent=35 // loop_exit
                _
            $region36: #{model_forward.1} parent=31 // pred_fallthru
              _
            // Predicated region
            $region44: #{model_forward.1} parent=31 // pred_check
              _
            $region45: #{model_forward.1} parent=31 // pred_check_branch
              %615 = sbr.rel target = $region47
            $region46: #{model_forward.1} parent=31 // pred_region
              _
            $region47: #{model_forward.1} parent=31 // pred_fallthru
              _
          $region32: #{model_forward.1} parent=27 // pred_fallthru
            _
          %616 = vnop
        $region28: #{model_forward.1} parent=23 // pred_fallthru
          _
        // Predicated region
        $region48: #{model_forward.1} parent=23 // pred_check
          %p617 = pneg %p95
        $region49: #{model_forward.1} parent=23 // pred_check_branch
          %619 = sbr.rel (%p617) target = $region51
        $region50: #{model_forward.1} parent=23 // pred_region
          %s620 = smul.u32 4, %s18
          %p621 = scmp.lt.s32.totalorder %s620, 15
          %s622 = scalar_select %p621, %s620, 15
          %s623 = scalar_lea.vmem %s2, %s622
          %s624 = smul.u32 4, %s18
        $region51: #{model_forward.1} parent=23 // pred_fallthru
          _
        // Predicated region
        $region52: #{model_forward.1} parent=23 // pred_check
          %p625 = pneg %p121
        $region53: #{model_forward.1} parent=23 // pred_check_branch
          %627 = sbr.rel (%p625) target = $region55
        $region54: #{model_forward.1} parent=23 // pred_region
          %s628 = smul.u32 4, %s18
          %p629 = scmp.lt.s32.totalorder %s628, 15
          %s630 = scalar_select %p629, %s628, 15
          %s631 = scalar_lea.vmem %s3, %s630
          %s632 = smul.u32 4, %s18
        $region55: #{model_forward.1} parent=23 // pred_fallthru
          _
      $region24: #{model_forward.1} parent=5 // pred_fallthru
        _
      %p633 = scmp.le.s32.totalorder 1, %s11
      %p634 = scmp.lt.s32.totalorder %s11, 5
      %p635 = pnand %p633, %p634
      %p636 = pneg %p635
      // Predicated region
      $region56: #{model_forward.1} parent=5 // pred_check
        _
      $region57: #{model_forward.1} parent=5 // pred_check_branch
        %638 = sbr.rel (%p635) target = $region59
      $region58: #{model_forward.1} parent=5 // pred_region
        %s639 = ssub.s32 %s11, 1
        %s640 = sand.u32 %s62, 1
        %s641 = sand.u32 %s62, 1
        %s642 = smul.addr %s641, 1536
        %s643 = scalar_lea.vmem [#allocation2], %s642
        // Predicated region
        $region60: #{model_forward.1} parent=58 // pred_check
          %p644 = pneg %p75
        $region61: #{model_forward.1} parent=58 // pred_check_branch
          %646 = sbr.rel (%p644) target = $region63
        $region62: #{model_forward.1} parent=58 // pred_region
          _
        $region63: #{model_forward.1} parent=58 // pred_fallthru
          _
        %s647 = smul.u32 72, %s21
        %p648 = scmp.lt.s32.totalorder %s647, 71
        %s649 = scalar_select %p648, %s647, 71
        %s650 = smul.addr %s649, 6
        %s651 = smul.addr %s650, 4
        %s652 = scalar_lea.vmem %s0, %s651
        %p653 = pneg %p49
        %p654 = pneg %p46
        %s655 = sand.u32 %s62, 1
        %s656 = sand.u32 %s62, 1
        %s657 = smul.addr %s656, 1536
        %s658 = scalar_lea.vmem [#allocation2], %s657
        %p659 = pneg %p75
        %p660 = pneg %p72
        %s661 = smul.u32 4, %s20
        %p662 = scmp.lt.s32.totalorder %s661, 15
        %s663 = scalar_select %p662, %s661, 15
        %s664 = scalar_lea.vmem %s2, %s663
        %p665 = pneg %p101
        %p666 = pneg %p98
        %s667 = smul.u32 4, %s20
        %p668 = scmp.lt.s32.totalorder %s667, 15
        %s669 = scalar_select %p668, %s667, 15
        %s670 = scalar_lea.vmem %s3, %s669
        %p671 = pneg %p127
        %p672 = pneg %p124
        %p673 = pneg %p148
        %p674 = pneg %p145
        %p675 = pneg %p176
        %p676 = pneg %p173
        %s677 = sand.u32 %s163, 1
        %s678 = sand.u32 %s163, 1
        %s679 = smul.addr %s678, 576
        %s680 = scalar_lea.vmem [#allocation3], %s679
        %s681 = smul.u32 72, %s21
        %p682 = scmp.lt.s32.totalorder %s681, 71
        %s683 = scalar_select %p682, %s681, 71
        %s684 = smul.addr %s683, 6
        %s685 = smul.addr %s684, 4
        %s686 = scalar_lea.vmem %s0, %s685
        %s687 = smul.u32 72, %s21
        %s688 = smul.u32 4, %s20
        %s689 = smul.u32 4, %s20
        %p690 = scmp.lt.s32.totalorder %s689, 15
        %s691 = scalar_select %p690, %s689, 15
        %s692 = scalar_lea.vmem %s2, %s691
        %s693 = smul.u32 4, %s20
        %s694 = smul.u32 4, %s20
        %p695 = scmp.lt.s32.totalorder %s694, 15
        %s696 = scalar_select %p695, %s694, 15
        %s697 = scalar_lea.vmem %s3, %s696
        %s698 = smul.u32 4, %s20
        %s699 = smul.u32 2, %s21
        %s700 = smul.u32 4, %s20
        %v702 = vld [vmem:[%s686] sm:$0xff]
        %v703 = vld [vmem:[%s686 + $0x8] sm:$0xff]
        %v704 = vld [vmem:[%s686 + $0x10] sm:$0xff]
        %v705 = vld [vmem:[%s686 + $0x18] sm:$0xff]
        %v706 = vld [vmem:[%s686 + $0x20] sm:$0xff]
        %v707 = vld [vmem:[%s686 + $0x28] sm:$0xff]
        %v708 = vld [vmem:[%s686 + $0x30] sm:$0xff]
        %v709 = vld [vmem:[%s686 + $0x38] sm:$0xff]
        %v710 = vld [vmem:[%s686 + $0x40] sm:$0xff]
        %v711 = vld [vmem:[%s686 + $0x48] sm:$0xff]
        %v712 = vld [vmem:[%s686 + $0x50] sm:$0xff]
        %v713 = vld [vmem:[%s686 + $0x58] sm:$0xff]
        %v714 = vld [vmem:[%s686 + $0x60] sm:$0xff]
        %v715 = vld [vmem:[%s686 + $0x68] sm:$0xff]
        %v716 = vld [vmem:[%s686 + $0x70] sm:$0xff]
        %v717 = vld [vmem:[%s686 + $0x78] sm:$0xff]
        %v718 = vld [vmem:[%s686 + $0x80] sm:$0xff]
        %v719 = vld [vmem:[%s686 + $0x88] sm:$0xff]
        %v720 = vld [vmem:[%s686 + $0x90] sm:$0xff]
        %v721 = vld [vmem:[%s686 + $0x98] sm:$0xff]
        %v722 = vld [vmem:[%s686 + $0xa0] sm:$0xff]
        %v723 = vld [vmem:[%s686 + $0xa8] sm:$0xff]
        %v724 = vld [vmem:[%s686 + $0xb0] sm:$0xff]
        %v725 = vld [vmem:[%s686 + $0xb8] sm:$0xff]
        %v726 = vld [vmem:[%s686 + $0xc0] sm:$0xff]
        %v727 = vld [vmem:[%s686 + $0xc8] sm:$0xff]
        %v728 = vld [vmem:[%s686 + $0xd0] sm:$0xff]
        %v729 = vld [vmem:[%s686 + $0xd8] sm:$0xff]
        %v730 = vld [vmem:[%s686 + $0xe0] sm:$0xff]
        %v731 = vld [vmem:[%s686 + $0xe8] sm:$0xff]
        %v732 = vld [vmem:[%s686 + $0xf0] sm:$0xff]
        %v733 = vld [vmem:[%s686 + $0xf8] sm:$0xff]
        %v734 = vld [vmem:[%s686 + $0x100] sm:$0xff]
        %v735 = vld [vmem:[%s686 + $0x108] sm:$0xff]
        %v736 = vld [vmem:[%s686 + $0x110] sm:$0xff]
        %v737 = vld [vmem:[%s686 + $0x118] sm:$0xff]
        %v738 = vld [vmem:[%s686 + $0x120] sm:$0xff]
        %v739 = vld [vmem:[%s686 + $0x128] sm:$0xff]
        %v740 = vld [vmem:[%s686 + $0x130] sm:$0xff]
        %v741 = vld [vmem:[%s686 + $0x138] sm:$0xff]
        %v742 = vld [vmem:[%s686 + $0x140] sm:$0xff]
        %v743 = vld [vmem:[%s686 + $0x148] sm:$0xff]
        %v744 = vld [vmem:[%s686 + $0x150] sm:$0xff]
        %v745 = vld [vmem:[%s686 + $0x158] sm:$0xff]
        %v746 = vld [vmem:[%s686 + $0x160] sm:$0xff]
        %v747 = vld [vmem:[%s686 + $0x168] sm:$0xff]
        %v748 = vld [vmem:[%s686 + $0x170] sm:$0xff]
        %v749 = vld [vmem:[%s686 + $0x178] sm:$0xff]
        %v750 = vld [vmem:[%s686 + $0x180] sm:$0xff]
        %v751 = vld [vmem:[%s686 + $0x188] sm:$0xff]
        %v752 = vld [vmem:[%s686 + $0x190] sm:$0xff]
        %v753 = vld [vmem:[%s686 + $0x198] sm:$0xff]
        %v754 = vld [vmem:[%s686 + $0x1a0] sm:$0xff]
        %v755 = vld [vmem:[%s686 + $0x1a8] sm:$0xff]
        %v756 = vld [vmem:[%s686 + $0x1b0] sm:$0xff]
        %v757 = vld [vmem:[%s686 + $0x1b8] sm:$0xff]
        %v758 = vld [vmem:[%s686 + $0x1c0] sm:$0xff]
        %v759 = vld [vmem:[%s686 + $0x1c8] sm:$0xff]
        %v760 = vld [vmem:[%s686 + $0x1d0] sm:$0xff]
        %v761 = vld [vmem:[%s686 + $0x1d8] sm:$0xff]
        %v762 = vld [vmem:[%s686 + $0x1e0] sm:$0xff]
        %v763 = vld [vmem:[%s686 + $0x1e8] sm:$0xff]
        %v764 = vld [vmem:[%s686 + $0x1f0] sm:$0xff]
        %v765 = vld [vmem:[%s686 + $0x1f8] sm:$0xff]
        %v766 = vld [vmem:[%s686 + $0x200] sm:$0xff]
        %v767 = vld [vmem:[%s686 + $0x208] sm:$0xff]
        %v768 = vld [vmem:[%s686 + $0x210] sm:$0xff]
        %v769 = vld [vmem:[%s686 + $0x218] sm:$0xff]
        %v770 = vld [vmem:[%s686 + $0x220] sm:$0xff]
        %v771 = vld [vmem:[%s686 + $0x228] sm:$0xff]
        %v772 = vld [vmem:[%s686 + $0x230] sm:$0xff]
        %v773 = vld [vmem:[%s686 + $0x238] sm:$0xff]
        %v774 = vld [vmem:[%s686 + $0x240] sm:$0xff]
        %v775 = vld [vmem:[%s686 + $0x248] sm:$0xff]
        %v776 = vld [vmem:[%s686 + $0x250] sm:$0xff]
        %v777 = vld [vmem:[%s686 + $0x258] sm:$0xff]
        %v778 = vld [vmem:[%s686 + $0x260] sm:$0xff]
        %v779 = vld [vmem:[%s686 + $0x268] sm:$0xff]
        %v780 = vld [vmem:[%s686 + $0x270] sm:$0xff]
        %v781 = vld [vmem:[%s686 + $0x278] sm:$0xff]
        %v782 = vld [vmem:[%s686 + $0x280] sm:$0xff]
        %v783 = vld [vmem:[%s686 + $0x288] sm:$0xff]
        %v784 = vld [vmem:[%s686 + $0x290] sm:$0xff]
        %v785 = vld [vmem:[%s686 + $0x298] sm:$0xff]
        %v786 = vld [vmem:[%s686 + $0x2a0] sm:$0xff]
        %v787 = vld [vmem:[%s686 + $0x2a8] sm:$0xff]
        %v788 = vld [vmem:[%s686 + $0x2b0] sm:$0xff]
        %v789 = vld [vmem:[%s686 + $0x2b8] sm:$0xff]
        %v790 = vld [vmem:[%s686 + $0x2c0] sm:$0xff]
        %v791 = vld [vmem:[%s686 + $0x2c8] sm:$0xff]
        %v792 = vld [vmem:[%s686 + $0x2d0] sm:$0xff]
        %v793 = vld [vmem:[%s686 + $0x2d8] sm:$0xff]
        %v794 = vld [vmem:[%s686 + $0x2e0] sm:$0xff]
        %v795 = vld [vmem:[%s686 + $0x2e8] sm:$0xff]
        %v796 = vld [vmem:[%s686 + $0x2f0] sm:$0xff]
        %v797 = vld [vmem:[%s686 + $0x2f8] sm:$0xff]
        %v798 = vld [vmem:[%s686 + $0x300] sm:$0xff]
        %v799 = vld [vmem:[%s686 + $0x308] sm:$0xff]
        %v800 = vld [vmem:[%s686 + $0x310] sm:$0xff]
        %v801 = vld [vmem:[%s686 + $0x318] sm:$0xff]
        %v802 = vld [vmem:[%s686 + $0x320] sm:$0xff]
        %v803 = vld [vmem:[%s686 + $0x328] sm:$0xff]
        %v804 = vld [vmem:[%s686 + $0x330] sm:$0xff]
        %v805 = vld [vmem:[%s686 + $0x338] sm:$0xff]
        %v806 = vld [vmem:[%s686 + $0x340] sm:$0xff]
        %v807 = vld [vmem:[%s686 + $0x348] sm:$0xff]
        %v808 = vld [vmem:[%s686 + $0x350] sm:$0xff]
        %v809 = vld [vmem:[%s686 + $0x358] sm:$0xff]
        %v810 = vld [vmem:[%s686 + $0x360] sm:$0xff]
        %v811 = vld [vmem:[%s686 + $0x368] sm:$0xff]
        %v812 = vld [vmem:[%s686 + $0x370] sm:$0xff]
        %v813 = vld [vmem:[%s686 + $0x378] sm:$0xff]
        %v814 = vld [vmem:[%s686 + $0x380] sm:$0xff]
        %v815 = vld [vmem:[%s686 + $0x388] sm:$0xff]
        %v816 = vld [vmem:[%s686 + $0x390] sm:$0xff]
        %v817 = vld [vmem:[%s686 + $0x398] sm:$0xff]
        %v818 = vld [vmem:[%s686 + $0x3a0] sm:$0xff]
        %v819 = vld [vmem:[%s686 + $0x3a8] sm:$0xff]
        %v820 = vld [vmem:[%s686 + $0x3b0] sm:$0xff]
        %v821 = vld [vmem:[%s686 + $0x3b8] sm:$0xff]
        %v822 = vld [vmem:[%s686 + $0x3c0] sm:$0xff]
        %v823 = vld [vmem:[%s686 + $0x3c8] sm:$0xff]
        %v824 = vld [vmem:[%s686 + $0x3d0] sm:$0xff]
        %v825 = vld [vmem:[%s686 + $0x3d8] sm:$0xff]
        %v826 = vld [vmem:[%s686 + $0x3e0] sm:$0xff]
        %v827 = vld [vmem:[%s686 + $0x3e8] sm:$0xff]
        %v828 = vld [vmem:[%s686 + $0x3f0] sm:$0xff]
        %v829 = vld [vmem:[%s686 + $0x3f8] sm:$0xff]
        %v830 = vld [vmem:[%s686 + $0x400] sm:$0xff]
        %v831 = vld [vmem:[%s686 + $0x408] sm:$0xff]
        %v832 = vld [vmem:[%s686 + $0x410] sm:$0xff]
        %v833 = vld [vmem:[%s686 + $0x418] sm:$0xff]
        %v834 = vld [vmem:[%s686 + $0x420] sm:$0xff]
        %v835 = vld [vmem:[%s686 + $0x428] sm:$0xff]
        %v836 = vld [vmem:[%s686 + $0x430] sm:$0xff]
        %v837 = vld [vmem:[%s686 + $0x438] sm:$0xff]
        %v838 = vld [vmem:[%s686 + $0x440] sm:$0xff]
        %v839 = vld [vmem:[%s686 + $0x448] sm:$0xff]
        %v840 = vld [vmem:[%s686 + $0x450] sm:$0xff]
        %v841 = vld [vmem:[%s686 + $0x458] sm:$0xff]
        %v842 = vld [vmem:[%s686 + $0x460] sm:$0xff]
        %v843 = vld [vmem:[%s686 + $0x468] sm:$0xff]
        %v844 = vld [vmem:[%s686 + $0x470] sm:$0xff]
        %v845 = vld [vmem:[%s686 + $0x478] sm:$0xff]
        %v846 = vld [vmem:[%s686 + $0x480] sm:$0xff]
        %v847 = vld [vmem:[%s686 + $0x488] sm:$0xff]
        %v848 = vld [vmem:[%s686 + $0x490] sm:$0xff]
        %v849 = vld [vmem:[%s686 + $0x498] sm:$0xff]
        %v850 = vld [vmem:[%s686 + $0x4a0] sm:$0xff]
        %v851 = vld [vmem:[%s686 + $0x4a8] sm:$0xff]
        %v852 = vld [vmem:[%s686 + $0x4b0] sm:$0xff]
        %v853 = vld [vmem:[%s686 + $0x4b8] sm:$0xff]
        %v854 = vld [vmem:[%s686 + $0x4c0] sm:$0xff]
        %v855 = vld [vmem:[%s686 + $0x4c8] sm:$0xff]
        %v856 = vld [vmem:[%s686 + $0x4d0] sm:$0xff]
        %v857 = vld [vmem:[%s686 + $0x4d8] sm:$0xff]
        %v858 = vld [vmem:[%s686 + $0x4e0] sm:$0xff]
        %v859 = vld [vmem:[%s686 + $0x4e8] sm:$0xff]
        %v860 = vld [vmem:[%s686 + $0x4f0] sm:$0xff]
        %v861 = vld [vmem:[%s686 + $0x4f8] sm:$0xff]
        %v862 = vld [vmem:[%s686 + $0x500] sm:$0xff]
        %v863 = vld [vmem:[%s686 + $0x508] sm:$0xff]
        %v864 = vld [vmem:[%s686 + $0x510] sm:$0xff]
        %v865 = vld [vmem:[%s686 + $0x518] sm:$0xff]
        %v866 = vld [vmem:[%s686 + $0x520] sm:$0xff]
        %v867 = vld [vmem:[%s686 + $0x528] sm:$0xff]
        %v868 = vld [vmem:[%s686 + $0x530] sm:$0xff]
        %v869 = vld [vmem:[%s686 + $0x538] sm:$0xff]
        %v870 = vld [vmem:[%s686 + $0x540] sm:$0xff]
        %v871 = vld [vmem:[%s686 + $0x548] sm:$0xff]
        %v872 = vld [vmem:[%s686 + $0x550] sm:$0xff]
        %v873 = vld [vmem:[%s686 + $0x558] sm:$0xff]
        %v874 = vld [vmem:[%s686 + $0x560] sm:$0xff]
        %v875 = vld [vmem:[%s686 + $0x568] sm:$0xff]
        %v876 = vld [vmem:[%s686 + $0x570] sm:$0xff]
        %v877 = vld [vmem:[%s686 + $0x578] sm:$0xff]
        %v878 = vld [vmem:[%s686 + $0x580] sm:$0xff]
        %v879 = vld [vmem:[%s686 + $0x588] sm:$0xff]
        %v880 = vld [vmem:[%s686 + $0x590] sm:$0xff]
        %v881 = vld [vmem:[%s686 + $0x598] sm:$0xff]
        %v882 = vld [vmem:[%s686 + $0x5a0] sm:$0xff]
        %v883 = vld [vmem:[%s686 + $0x5a8] sm:$0xff]
        %v884 = vld [vmem:[%s686 + $0x5b0] sm:$0xff]
        %v885 = vld [vmem:[%s686 + $0x5b8] sm:$0xff]
        %v886 = vld [vmem:[%s686 + $0x5c0] sm:$0xff]
        %v887 = vld [vmem:[%s686 + $0x5c8] sm:$0xff]
        %v888 = vld [vmem:[%s686 + $0x5d0] sm:$0xff]
        %v889 = vld [vmem:[%s686 + $0x5d8] sm:$0xff]
        %v890 = vld [vmem:[%s686 + $0x5e0] sm:$0xff]
        %v891 = vld [vmem:[%s686 + $0x5e8] sm:$0xff]
        %v892 = vld [vmem:[%s686 + $0x5f0] sm:$0xff]
        %v893 = vld [vmem:[%s686 + $0x5f8] sm:$0xff]
        %v894 = vld [vmem:[%s686 + $0x600] sm:$0xff]
        %v895 = vld [vmem:[%s686 + $0x608] sm:$0xff]
        %v896 = vld [vmem:[%s686 + $0x610] sm:$0xff]
        %v897 = vld [vmem:[%s686 + $0x618] sm:$0xff]
        %v898 = vld [vmem:[%s686 + $0x620] sm:$0xff]
        %v899 = vld [vmem:[%s686 + $0x628] sm:$0xff]
        %v900 = vld [vmem:[%s686 + $0x630] sm:$0xff]
        %v901 = vld [vmem:[%s686 + $0x638] sm:$0xff]
        %v902 = vld [vmem:[%s686 + $0x640] sm:$0xff]
        %v903 = vld [vmem:[%s686 + $0x648] sm:$0xff]
        %v904 = vld [vmem:[%s686 + $0x650] sm:$0xff]
        %v905 = vld [vmem:[%s686 + $0x658] sm:$0xff]
        %v906 = vld [vmem:[%s686 + $0x660] sm:$0xff]
        %v907 = vld [vmem:[%s686 + $0x668] sm:$0xff]
        %v908 = vld [vmem:[%s686 + $0x670] sm:$0xff]
        %v909 = vld [vmem:[%s686 + $0x678] sm:$0xff]
        %v910 = vld [vmem:[%s686 + $0x680] sm:$0xff]
        %v911 = vld [vmem:[%s686 + $0x688] sm:$0xff]
        %v912 = vld [vmem:[%s686 + $0x690] sm:$0xff]
        %v913 = vld [vmem:[%s686 + $0x698] sm:$0xff]
        %v914 = vld [vmem:[%s686 + $0x6a0] sm:$0xff]
        %v915 = vld [vmem:[%s686 + $0x6a8] sm:$0xff]
        %v916 = vld [vmem:[%s686 + $0x6b0] sm:$0xff]
        %v917 = vld [vmem:[%s686 + $0x6b8] sm:$0xff]
        %v918 = vld [vmem:[%s643] sm:$0xff]
        %v919 = vld [vmem:[%s643 + $0x8] sm:$0xff]
        %v920 = vld [vmem:[%s643 + $0x10] sm:$0xff]
        %v921 = vld [vmem:[%s643 + $0x18] sm:$0xff]
        %v922 = vld [vmem:[%s643 + $0x20] sm:$0xff]
        %v923 = vld [vmem:[%s643 + $0x28] sm:$0xff]
        %v924 = vld [vmem:[%s643 + $0x30] sm:$0xff]
        %v925 = vld [vmem:[%s643 + $0x38] sm:$0xff]
        %v926 = vld [vmem:[%s643 + $0x40] sm:$0xff]
        %v927 = vld [vmem:[%s643 + $0x48] sm:$0xff]
        %v928 = vld [vmem:[%s643 + $0x50] sm:$0xff]
        %v929 = vld [vmem:[%s643 + $0x58] sm:$0xff]
        %v930 = vld [vmem:[%s643 + $0x60] sm:$0xff]
        %v931 = vld [vmem:[%s643 + $0x68] sm:$0xff]
        %v932 = vld [vmem:[%s643 + $0x70] sm:$0xff]
        %v933 = vld [vmem:[%s643 + $0x78] sm:$0xff]
        %v934 = vld [vmem:[%s643 + $0x80] sm:$0xff]
        %v935 = vld [vmem:[%s643 + $0x88] sm:$0xff]
        %v936 = vld [vmem:[%s643 + $0x90] sm:$0xff]
        %v937 = vld [vmem:[%s643 + $0x98] sm:$0xff]
        %v938 = vld [vmem:[%s643 + $0xa0] sm:$0xff]
        %v939 = vld [vmem:[%s643 + $0xa8] sm:$0xff]
        %v940 = vld [vmem:[%s643 + $0xb0] sm:$0xff]
        %v941 = vld [vmem:[%s643 + $0xb8] sm:$0xff]
        %v942 = vld [vmem:[%s643 + $0xc0] sm:$0xff]
        %v943 = vld [vmem:[%s643 + $0xc8] sm:$0xff]
        %v944 = vld [vmem:[%s643 + $0xd0] sm:$0xff]
        %v945 = vld [vmem:[%s643 + $0xd8] sm:$0xff]
        %v946 = vld [vmem:[%s643 + $0xe0] sm:$0xff]
        %v947 = vld [vmem:[%s643 + $0xe8] sm:$0xff]
        %v948 = vld [vmem:[%s643 + $0xf0] sm:$0xff]
        %v949 = vld [vmem:[%s643 + $0xf8] sm:$0xff]
        %v950 = vld [vmem:[%s643 + $0x100] sm:$0xff]
        %v951 = vld [vmem:[%s643 + $0x108] sm:$0xff]
        %v952 = vld [vmem:[%s643 + $0x110] sm:$0xff]
        %v953 = vld [vmem:[%s643 + $0x118] sm:$0xff]
        %v954 = vld [vmem:[%s643 + $0x120] sm:$0xff]
        %v955 = vld [vmem:[%s643 + $0x128] sm:$0xff]
        %v956 = vld [vmem:[%s643 + $0x130] sm:$0xff]
        %v957 = vld [vmem:[%s643 + $0x138] sm:$0xff]
        %v958 = vld [vmem:[%s643 + $0x140] sm:$0xff]
        %v959 = vld [vmem:[%s643 + $0x148] sm:$0xff]
        %v960 = vld [vmem:[%s643 + $0x150] sm:$0xff]
        %v961 = vld [vmem:[%s643 + $0x158] sm:$0xff]
        %v962 = vld [vmem:[%s643 + $0x160] sm:$0xff]
        %v963 = vld [vmem:[%s643 + $0x168] sm:$0xff]
        %v964 = vld [vmem:[%s643 + $0x170] sm:$0xff]
        %v965 = vld [vmem:[%s643 + $0x178] sm:$0xff]
        %v966 = vld [vmem:[%s643 + $0x180] sm:$0xff]
        %v967 = vld [vmem:[%s643 + $0x188] sm:$0xff]
        %v968 = vld [vmem:[%s643 + $0x190] sm:$0xff]
        %v969 = vld [vmem:[%s643 + $0x198] sm:$0xff]
        %v970 = vld [vmem:[%s643 + $0x1a0] sm:$0xff]
        %v971 = vld [vmem:[%s643 + $0x1a8] sm:$0xff]
        %v972 = vld [vmem:[%s643 + $0x1b0] sm:$0xff]
        %v973 = vld [vmem:[%s643 + $0x1b8] sm:$0xff]
        %v974 = vld [vmem:[%s643 + $0x1c0] sm:$0xff]
        %v975 = vld [vmem:[%s643 + $0x1c8] sm:$0xff]
        %v976 = vld [vmem:[%s643 + $0x1d0] sm:$0xff]
        %v977 = vld [vmem:[%s643 + $0x1d8] sm:$0xff]
        %v978 = vld [vmem:[%s643 + $0x1e0] sm:$0xff]
        %v979 = vld [vmem:[%s643 + $0x1e8] sm:$0xff]
        %v980 = vld [vmem:[%s643 + $0x1f0] sm:$0xff]
        %v981 = vld [vmem:[%s643 + $0x1f8] sm:$0xff]
        %v982 = vld [vmem:[%s643 + $0x200] sm:$0xff]
        %v983 = vld [vmem:[%s643 + $0x208] sm:$0xff]
        %v984 = vld [vmem:[%s643 + $0x210] sm:$0xff]
        %v985 = vld [vmem:[%s643 + $0x218] sm:$0xff]
        %v986 = vld [vmem:[%s643 + $0x220] sm:$0xff]
        %v987 = vld [vmem:[%s643 + $0x228] sm:$0xff]
        %v988 = vld [vmem:[%s643 + $0x230] sm:$0xff]
        %v989 = vld [vmem:[%s643 + $0x238] sm:$0xff]
        %v990 = vld [vmem:[%s643 + $0x240] sm:$0xff]
        %v991 = vld [vmem:[%s643 + $0x248] sm:$0xff]
        %v992 = vld [vmem:[%s643 + $0x250] sm:$0xff]
        %v993 = vld [vmem:[%s643 + $0x258] sm:$0xff]
        %v994 = vld [vmem:[%s643 + $0x260] sm:$0xff]
        %v995 = vld [vmem:[%s643 + $0x268] sm:$0xff]
        %v996 = vld [vmem:[%s643 + $0x270] sm:$0xff]
        %v997 = vld [vmem:[%s643 + $0x278] sm:$0xff]
        %v998 = vld [vmem:[%s643 + $0x280] sm:$0xff]
        %v999 = vld [vmem:[%s643 + $0x288] sm:$0xff]
        %v1000 = vld [vmem:[%s643 + $0x290] sm:$0xff]
        %v1001 = vld [vmem:[%s643 + $0x298] sm:$0xff]
        %v1002 = vld [vmem:[%s643 + $0x2a0] sm:$0xff]
        %v1003 = vld [vmem:[%s643 + $0x2a8] sm:$0xff]
        %v1004 = vld [vmem:[%s643 + $0x2b0] sm:$0xff]
        %v1005 = vld [vmem:[%s643 + $0x2b8] sm:$0xff]
        %v1006 = vld [vmem:[%s643 + $0x2c0] sm:$0xff]
        %v1007 = vld [vmem:[%s643 + $0x2c8] sm:$0xff]
        %v1008 = vld [vmem:[%s643 + $0x2d0] sm:$0xff]
        %v1009 = vld [vmem:[%s643 + $0x2d8] sm:$0xff]
        %v1010 = vld [vmem:[%s643 + $0x2e0] sm:$0xff]
        %v1011 = vld [vmem:[%s643 + $0x2e8] sm:$0xff]
        %v1012 = vld [vmem:[%s643 + $0x2f0] sm:$0xff]
        %v1013 = vld [vmem:[%s643 + $0x2f8] sm:$0xff]
        %v1014 = vld [vmem:[%s643 + $0x300] sm:$0xff]
        %v1015 = vld [vmem:[%s643 + $0x308] sm:$0xff]
        %v1016 = vld [vmem:[%s643 + $0x310] sm:$0xff]
        %v1017 = vld [vmem:[%s643 + $0x318] sm:$0xff]
        %v1018 = vld [vmem:[%s643 + $0x320] sm:$0xff]
        %v1019 = vld [vmem:[%s643 + $0x328] sm:$0xff]
        %v1020 = vld [vmem:[%s643 + $0x330] sm:$0xff]
        %v1021 = vld [vmem:[%s643 + $0x338] sm:$0xff]
        %v1022 = vld [vmem:[%s643 + $0x340] sm:$0xff]
        %v1023 = vld [vmem:[%s643 + $0x348] sm:$0xff]
        %v1024 = vld [vmem:[%s643 + $0x350] sm:$0xff]
        %v1025 = vld [vmem:[%s643 + $0x358] sm:$0xff]
        %v1026 = vld [vmem:[%s643 + $0x360] sm:$0xff]
        %v1027 = vld [vmem:[%s643 + $0x368] sm:$0xff]
        %v1028 = vld [vmem:[%s643 + $0x370] sm:$0xff]
        %v1029 = vld [vmem:[%s643 + $0x378] sm:$0xff]
        %v1030 = vld [vmem:[%s643 + $0x380] sm:$0xff]
        %v1031 = vld [vmem:[%s643 + $0x388] sm:$0xff]
        %v1032 = vld [vmem:[%s643 + $0x390] sm:$0xff]
        %v1033 = vld [vmem:[%s643 + $0x398] sm:$0xff]
        %v1034 = vld [vmem:[%s643 + $0x3a0] sm:$0xff]
        %v1035 = vld [vmem:[%s643 + $0x3a8] sm:$0xff]
        %v1036 = vld [vmem:[%s643 + $0x3b0] sm:$0xff]
        %v1037 = vld [vmem:[%s643 + $0x3b8] sm:$0xff]
        %v1038 = vld [vmem:[%s643 + $0x3c0] sm:$0xff]
        %v1039 = vld [vmem:[%s643 + $0x3c8] sm:$0xff]
        %v1040 = vld [vmem:[%s643 + $0x3d0] sm:$0xff]
        %v1041 = vld [vmem:[%s643 + $0x3d8] sm:$0xff]
        %v1042 = vld [vmem:[%s643 + $0x3e0] sm:$0xff]
        %v1043 = vld [vmem:[%s643 + $0x3e8] sm:$0xff]
        %v1044 = vld [vmem:[%s643 + $0x3f0] sm:$0xff]
        %v1045 = vld [vmem:[%s643 + $0x3f8] sm:$0xff]
        %v1046 = vld [vmem:[%s643 + $0x400] sm:$0xff]
        %v1047 = vld [vmem:[%s643 + $0x408] sm:$0xff]
        %v1048 = vld [vmem:[%s643 + $0x410] sm:$0xff]
        %v1049 = vld [vmem:[%s643 + $0x418] sm:$0xff]
        %v1050 = vld [vmem:[%s643 + $0x420] sm:$0xff]
        %v1051 = vld [vmem:[%s643 + $0x428] sm:$0xff]
        %v1052 = vld [vmem:[%s643 + $0x430] sm:$0xff]
        %v1053 = vld [vmem:[%s643 + $0x438] sm:$0xff]
        %v1054 = vld [vmem:[%s643 + $0x440] sm:$0xff]
        %v1055 = vld [vmem:[%s643 + $0x448] sm:$0xff]
        %v1056 = vld [vmem:[%s643 + $0x450] sm:$0xff]
        %v1057 = vld [vmem:[%s643 + $0x458] sm:$0xff]
        %v1058 = vld [vmem:[%s643 + $0x460] sm:$0xff]
        %v1059 = vld [vmem:[%s643 + $0x468] sm:$0xff]
        %v1060 = vld [vmem:[%s643 + $0x470] sm:$0xff]
        %v1061 = vld [vmem:[%s643 + $0x478] sm:$0xff]
        %v1062 = vld [vmem:[%s643 + $0x480] sm:$0xff]
        %v1063 = vld [vmem:[%s643 + $0x488] sm:$0xff]
        %v1064 = vld [vmem:[%s643 + $0x490] sm:$0xff]
        %v1065 = vld [vmem:[%s643 + $0x498] sm:$0xff]
        %v1066 = vld [vmem:[%s643 + $0x4a0] sm:$0xff]
        %v1067 = vld [vmem:[%s643 + $0x4a8] sm:$0xff]
        %v1068 = vld [vmem:[%s643 + $0x4b0] sm:$0xff]
        %v1069 = vld [vmem:[%s643 + $0x4b8] sm:$0xff]
        %v1070 = vld [vmem:[%s643 + $0x4c0] sm:$0xff]
        %v1071 = vld [vmem:[%s643 + $0x4c8] sm:$0xff]
        %v1072 = vld [vmem:[%s643 + $0x4d0] sm:$0xff]
        %v1073 = vld [vmem:[%s643 + $0x4d8] sm:$0xff]
        %v1074 = vld [vmem:[%s643 + $0x4e0] sm:$0xff]
        %v1075 = vld [vmem:[%s643 + $0x4e8] sm:$0xff]
        %v1076 = vld [vmem:[%s643 + $0x4f0] sm:$0xff]
        %v1077 = vld [vmem:[%s643 + $0x4f8] sm:$0xff]
        %v1078 = vld [vmem:[%s643 + $0x500] sm:$0xff]
        %v1079 = vld [vmem:[%s643 + $0x508] sm:$0xff]
        %v1080 = vld [vmem:[%s643 + $0x510] sm:$0xff]
        %v1081 = vld [vmem:[%s643 + $0x518] sm:$0xff]
        %v1082 = vld [vmem:[%s643 + $0x520] sm:$0xff]
        %v1083 = vld [vmem:[%s643 + $0x528] sm:$0xff]
        %v1084 = vld [vmem:[%s643 + $0x530] sm:$0xff]
        %v1085 = vld [vmem:[%s643 + $0x538] sm:$0xff]
        %v1086 = vld [vmem:[%s643 + $0x540] sm:$0xff]
        %v1087 = vld [vmem:[%s643 + $0x548] sm:$0xff]
        %v1088 = vld [vmem:[%s643 + $0x550] sm:$0xff]
        %v1089 = vld [vmem:[%s643 + $0x558] sm:$0xff]
        %v1090 = vld [vmem:[%s643 + $0x560] sm:$0xff]
        %v1091 = vld [vmem:[%s643 + $0x568] sm:$0xff]
        %v1092 = vld [vmem:[%s643 + $0x570] sm:$0xff]
        %v1093 = vld [vmem:[%s643 + $0x578] sm:$0xff]
        %v1094 = vld [vmem:[%s643 + $0x580] sm:$0xff]
        %v1095 = vld [vmem:[%s643 + $0x588] sm:$0xff]
        %v1096 = vld [vmem:[%s643 + $0x590] sm:$0xff]
        %v1097 = vld [vmem:[%s643 + $0x598] sm:$0xff]
        %v1098 = vld [vmem:[%s643 + $0x5a0] sm:$0xff]
        %v1099 = vld [vmem:[%s643 + $0x5a8] sm:$0xff]
        %v1100 = vld [vmem:[%s643 + $0x5b0] sm:$0xff]
        %v1101 = vld [vmem:[%s643 + $0x5b8] sm:$0xff]
        %v1102 = vld [vmem:[%s643 + $0x5c0] sm:$0xff]
        %v1103 = vld [vmem:[%s643 + $0x5c8] sm:$0xff]
        %v1104 = vld [vmem:[%s643 + $0x5d0] sm:$0xff]
        %v1105 = vld [vmem:[%s643 + $0x5d8] sm:$0xff]
        %v1106 = vld [vmem:[%s643 + $0x5e0] sm:$0xff]
        %v1107 = vld [vmem:[%s643 + $0x5e8] sm:$0xff]
        %v1108 = vld [vmem:[%s643 + $0x5f0] sm:$0xff]
        %v1109 = vld [vmem:[%s643 + $0x5f8] sm:$0xff]
        %v1326 = vunpack.c.l.b16 %v702
        %v1327 = vunpack.c.h.b16 %v702
        %v1328 = vunpack.c.l.b16 %v703
        %v1329 = vunpack.c.h.b16 %v703
        %v1330 = vunpack.c.l.b16 %v704
        %v1331 = vunpack.c.h.b16 %v704
        %v1332 = vunpack.c.l.b16 %v705
        %v1333 = vunpack.c.h.b16 %v705
        %v1334 = vunpack.c.l.b16 %v706
        %v1335 = vunpack.c.h.b16 %v706
        %v1336 = vunpack.c.l.b16 %v707
        %v1337 = vunpack.c.h.b16 %v707
        %v1338 = vunpack.c.l.b16 %v708
        %v1339 = vunpack.c.h.b16 %v708
        %v1340 = vunpack.c.l.b16 %v709
        %v1341 = vunpack.c.h.b16 %v709
        %v1342 = vunpack.c.l.b16 %v710
        %v1343 = vunpack.c.h.b16 %v710
        %v1344 = vunpack.c.l.b16 %v711
        %v1345 = vunpack.c.h.b16 %v711
        %v1346 = vunpack.c.l.b16 %v712
        %v1347 = vunpack.c.h.b16 %v712
        %v1348 = vunpack.c.l.b16 %v713
        %v1349 = vunpack.c.h.b16 %v713
        %v1350 = vunpack.c.l.b16 %v714
        %v1351 = vunpack.c.h.b16 %v714
        %v1352 = vunpack.c.l.b16 %v715
        %v1353 = vunpack.c.h.b16 %v715
        %v1354 = vunpack.c.l.b16 %v716
        %v1355 = vunpack.c.h.b16 %v716
        %v1356 = vunpack.c.l.b16 %v717
        %v1357 = vunpack.c.h.b16 %v717
        %v1358 = vunpack.c.l.b16 %v718
        %v1359 = vunpack.c.h.b16 %v718
        %v1360 = vunpack.c.l.b16 %v719
        %v1361 = vunpack.c.h.b16 %v719
        %v1362 = vunpack.c.l.b16 %v720
        %v1363 = vunpack.c.h.b16 %v720
        %v1364 = vunpack.c.l.b16 %v721
        %v1365 = vunpack.c.h.b16 %v721
        %v1366 = vunpack.c.l.b16 %v722
        %v1367 = vunpack.c.h.b16 %v722
        %v1368 = vunpack.c.l.b16 %v723
        %v1369 = vunpack.c.h.b16 %v723
        %v1370 = vunpack.c.l.b16 %v724
        %v1371 = vunpack.c.h.b16 %v724
        %v1372 = vunpack.c.l.b16 %v725
        %v1373 = vunpack.c.h.b16 %v725
        %v1374 = vunpack.c.l.b16 %v726
        %v1375 = vunpack.c.h.b16 %v726
        %v1376 = vunpack.c.l.b16 %v727
        %v1377 = vunpack.c.h.b16 %v727
        %v1378 = vunpack.c.l.b16 %v728
        %v1379 = vunpack.c.h.b16 %v728
        %v1380 = vunpack.c.l.b16 %v729
        %v1381 = vunpack.c.h.b16 %v729
        %v1382 = vunpack.c.l.b16 %v730
        %v1383 = vunpack.c.h.b16 %v730
        %v1384 = vunpack.c.l.b16 %v731
        %v1385 = vunpack.c.h.b16 %v731
        %v1386 = vunpack.c.l.b16 %v732
        %v1387 = vunpack.c.h.b16 %v732
        %v1388 = vunpack.c.l.b16 %v733
        %v1389 = vunpack.c.h.b16 %v733
        %v1390 = vunpack.c.l.b16 %v734
        %v1391 = vunpack.c.h.b16 %v734
        %v1392 = vunpack.c.l.b16 %v735
        %v1393 = vunpack.c.h.b16 %v735
        %v1394 = vunpack.c.l.b16 %v736
        %v1395 = vunpack.c.h.b16 %v736
        %v1396 = vunpack.c.l.b16 %v737
        %v1397 = vunpack.c.h.b16 %v737
        %v1398 = vunpack.c.l.b16 %v738
        %v1399 = vunpack.c.h.b16 %v738
        %v1400 = vunpack.c.l.b16 %v739
        %v1401 = vunpack.c.h.b16 %v739
        %v1402 = vunpack.c.l.b16 %v740
        %v1403 = vunpack.c.h.b16 %v740
        %v1404 = vunpack.c.l.b16 %v741
        %v1405 = vunpack.c.h.b16 %v741
        %v1406 = vunpack.c.l.b16 %v742
        %v1407 = vunpack.c.h.b16 %v742
        %v1408 = vunpack.c.l.b16 %v743
        %v1409 = vunpack.c.h.b16 %v743
        %v1410 = vunpack.c.l.b16 %v744
        %v1411 = vunpack.c.h.b16 %v744
        %v1412 = vunpack.c.l.b16 %v745
        %v1413 = vunpack.c.h.b16 %v745
        %v1414 = vunpack.c.l.b16 %v746
        %v1415 = vunpack.c.h.b16 %v746
        %v1416 = vunpack.c.l.b16 %v747
        %v1417 = vunpack.c.h.b16 %v747
        %v1418 = vunpack.c.l.b16 %v748
        %v1419 = vunpack.c.h.b16 %v748
        %v1420 = vunpack.c.l.b16 %v749
        %v1421 = vunpack.c.h.b16 %v749
        %v1422 = vunpack.c.l.b16 %v750
        %v1423 = vunpack.c.h.b16 %v750
        %v1424 = vunpack.c.l.b16 %v751
        %v1425 = vunpack.c.h.b16 %v751
        %v1426 = vunpack.c.l.b16 %v752
        %v1427 = vunpack.c.h.b16 %v752
        %v1428 = vunpack.c.l.b16 %v753
        %v1429 = vunpack.c.h.b16 %v753
        %v1430 = vunpack.c.l.b16 %v754
        %v1431 = vunpack.c.h.b16 %v754
        %v1432 = vunpack.c.l.b16 %v755
        %v1433 = vunpack.c.h.b16 %v755
        %v1434 = vunpack.c.l.b16 %v756
        %v1435 = vunpack.c.h.b16 %v756
        %v1436 = vunpack.c.l.b16 %v757
        %v1437 = vunpack.c.h.b16 %v757
        %v1438 = vunpack.c.l.b16 %v758
        %v1439 = vunpack.c.h.b16 %v758
        %v1440 = vunpack.c.l.b16 %v759
        %v1441 = vunpack.c.h.b16 %v759
        %v1442 = vunpack.c.l.b16 %v760
        %v1443 = vunpack.c.h.b16 %v760
        %v1444 = vunpack.c.l.b16 %v761
        %v1445 = vunpack.c.h.b16 %v761
        %v1446 = vunpack.c.l.b16 %v762
        %v1447 = vunpack.c.h.b16 %v762
        %v1448 = vunpack.c.l.b16 %v763
        %v1449 = vunpack.c.h.b16 %v763
        %v1450 = vunpack.c.l.b16 %v764
        %v1451 = vunpack.c.h.b16 %v764
        %v1452 = vunpack.c.l.b16 %v765
        %v1453 = vunpack.c.h.b16 %v765
        %v1454 = vunpack.c.l.b16 %v766
        %v1455 = vunpack.c.h.b16 %v766
        %v1456 = vunpack.c.l.b16 %v767
        %v1457 = vunpack.c.h.b16 %v767
        %v1458 = vunpack.c.l.b16 %v768
        %v1459 = vunpack.c.h.b16 %v768
        %v1460 = vunpack.c.l.b16 %v769
        %v1461 = vunpack.c.h.b16 %v769
        %v1462 = vunpack.c.l.b16 %v770
        %v1463 = vunpack.c.h.b16 %v770
        %v1464 = vunpack.c.l.b16 %v771
        %v1465 = vunpack.c.h.b16 %v771
        %v1466 = vunpack.c.l.b16 %v772
        %v1467 = vunpack.c.h.b16 %v772
        %v1468 = vunpack.c.l.b16 %v773
        %v1469 = vunpack.c.h.b16 %v773
        %v1470 = vunpack.c.l.b16 %v774
        %v1471 = vunpack.c.h.b16 %v774
        %v1472 = vunpack.c.l.b16 %v775
        %v1473 = vunpack.c.h.b16 %v775
        %v1474 = vunpack.c.l.b16 %v776
        %v1475 = vunpack.c.h.b16 %v776
        %v1476 = vunpack.c.l.b16 %v777
        %v1477 = vunpack.c.h.b16 %v777
        %v1478 = vunpack.c.l.b16 %v778
        %v1479 = vunpack.c.h.b16 %v778
        %v1480 = vunpack.c.l.b16 %v779
        %v1481 = vunpack.c.h.b16 %v779
        %v1482 = vunpack.c.l.b16 %v780
        %v1483 = vunpack.c.h.b16 %v780
        %v1484 = vunpack.c.l.b16 %v781
        %v1485 = vunpack.c.h.b16 %v781
        %v1486 = vunpack.c.l.b16 %v782
        %v1487 = vunpack.c.h.b16 %v782
        %v1488 = vunpack.c.l.b16 %v783
        %v1489 = vunpack.c.h.b16 %v783
        %v1490 = vunpack.c.l.b16 %v784
        %v1491 = vunpack.c.h.b16 %v784
        %v1492 = vunpack.c.l.b16 %v785
        %v1493 = vunpack.c.h.b16 %v785
        %v1494 = vunpack.c.l.b16 %v786
        %v1495 = vunpack.c.h.b16 %v786
        %v1496 = vunpack.c.l.b16 %v787
        %v1497 = vunpack.c.h.b16 %v787
        %v1498 = vunpack.c.l.b16 %v788
        %v1499 = vunpack.c.h.b16 %v788
        %v1500 = vunpack.c.l.b16 %v789
        %v1501 = vunpack.c.h.b16 %v789
        %v1502 = vunpack.c.l.b16 %v790
        %v1503 = vunpack.c.h.b16 %v790
        %v1504 = vunpack.c.l.b16 %v791
        %v1505 = vunpack.c.h.b16 %v791
        %v1506 = vunpack.c.l.b16 %v792
        %v1507 = vunpack.c.h.b16 %v792
        %v1508 = vunpack.c.l.b16 %v793
        %v1509 = vunpack.c.h.b16 %v793
        %v1510 = vunpack.c.l.b16 %v794
        %v1511 = vunpack.c.h.b16 %v794
        %v1512 = vunpack.c.l.b16 %v795
        %v1513 = vunpack.c.h.b16 %v795
        %v1514 = vunpack.c.l.b16 %v796
        %v1515 = vunpack.c.h.b16 %v796
        %v1516 = vunpack.c.l.b16 %v797
        %v1517 = vunpack.c.h.b16 %v797
        %v1518 = vunpack.c.l.b16 %v798
        %v1519 = vunpack.c.h.b16 %v798
        %v1520 = vunpack.c.l.b16 %v799
        %v1521 = vunpack.c.h.b16 %v799
        %v1522 = vunpack.c.l.b16 %v800
        %v1523 = vunpack.c.h.b16 %v800
        %v1524 = vunpack.c.l.b16 %v801
        %v1525 = vunpack.c.h.b16 %v801
        %v1526 = vunpack.c.l.b16 %v802
        %v1527 = vunpack.c.h.b16 %v802
        %v1528 = vunpack.c.l.b16 %v803
        %v1529 = vunpack.c.h.b16 %v803
        %v1530 = vunpack.c.l.b16 %v804
        %v1531 = vunpack.c.h.b16 %v804
        %v1532 = vunpack.c.l.b16 %v805
        %v1533 = vunpack.c.h.b16 %v805
        %v1534 = vunpack.c.l.b16 %v806
        %v1535 = vunpack.c.h.b16 %v806
        %v1536 = vunpack.c.l.b16 %v807
        %v1537 = vunpack.c.h.b16 %v807
        %v1538 = vunpack.c.l.b16 %v808
        %v1539 = vunpack.c.h.b16 %v808
        %v1540 = vunpack.c.l.b16 %v809
        %v1541 = vunpack.c.h.b16 %v809
        %v1542 = vunpack.c.l.b16 %v810
        %v1543 = vunpack.c.h.b16 %v810
        %v1544 = vunpack.c.l.b16 %v811
        %v1545 = vunpack.c.h.b16 %v811
        %v1546 = vunpack.c.l.b16 %v812
        %v1547 = vunpack.c.h.b16 %v812
        %v1548 = vunpack.c.l.b16 %v813
        %v1549 = vunpack.c.h.b16 %v813
        %v1550 = vunpack.c.l.b16 %v814
        %v1551 = vunpack.c.h.b16 %v814
        %v1552 = vunpack.c.l.b16 %v815
        %v1553 = vunpack.c.h.b16 %v815
        %v1554 = vunpack.c.l.b16 %v816
        %v1555 = vunpack.c.h.b16 %v816
        %v1556 = vunpack.c.l.b16 %v817
        %v1557 = vunpack.c.h.b16 %v817
        %v1558 = vunpack.c.l.b16 %v818
        %v1559 = vunpack.c.h.b16 %v818
        %v1560 = vunpack.c.l.b16 %v819
        %v1561 = vunpack.c.h.b16 %v819
        %v1562 = vunpack.c.l.b16 %v820
        %v1563 = vunpack.c.h.b16 %v820
        %v1564 = vunpack.c.l.b16 %v821
        %v1565 = vunpack.c.h.b16 %v821
        %v1566 = vunpack.c.l.b16 %v822
        %v1567 = vunpack.c.h.b16 %v822
        %v1568 = vunpack.c.l.b16 %v823
        %v1569 = vunpack.c.h.b16 %v823
        %v1570 = vunpack.c.l.b16 %v824
        %v1571 = vunpack.c.h.b16 %v824
        %v1572 = vunpack.c.l.b16 %v825
        %v1573 = vunpack.c.h.b16 %v825
        %v1574 = vunpack.c.l.b16 %v826
        %v1575 = vunpack.c.h.b16 %v826
        %v1576 = vunpack.c.l.b16 %v827
        %v1577 = vunpack.c.h.b16 %v827
        %v1578 = vunpack.c.l.b16 %v828
        %v1579 = vunpack.c.h.b16 %v828
        %v1580 = vunpack.c.l.b16 %v829
        %v1581 = vunpack.c.h.b16 %v829
        %v1582 = vunpack.c.l.b16 %v830
        %v1583 = vunpack.c.h.b16 %v830
        %v1584 = vunpack.c.l.b16 %v831
        %v1585 = vunpack.c.h.b16 %v831
        %v1586 = vunpack.c.l.b16 %v832
        %v1587 = vunpack.c.h.b16 %v832
        %v1588 = vunpack.c.l.b16 %v833
        %v1589 = vunpack.c.h.b16 %v833
        %v1590 = vunpack.c.l.b16 %v834
        %v1591 = vunpack.c.h.b16 %v834
        %v1592 = vunpack.c.l.b16 %v835
        %v1593 = vunpack.c.h.b16 %v835
        %v1594 = vunpack.c.l.b16 %v836
        %v1595 = vunpack.c.h.b16 %v836
        %v1596 = vunpack.c.l.b16 %v837
        %v1597 = vunpack.c.h.b16 %v837
        %v1598 = vunpack.c.l.b16 %v838
        %v1599 = vunpack.c.h.b16 %v838
        %v1600 = vunpack.c.l.b16 %v839
        %v1601 = vunpack.c.h.b16 %v839
        %v1602 = vunpack.c.l.b16 %v840
        %v1603 = vunpack.c.h.b16 %v840
        %v1604 = vunpack.c.l.b16 %v841
        %v1605 = vunpack.c.h.b16 %v841
        %v1606 = vunpack.c.l.b16 %v842
        %v1607 = vunpack.c.h.b16 %v842
        %v1608 = vunpack.c.l.b16 %v843
        %v1609 = vunpack.c.h.b16 %v843
        %v1610 = vunpack.c.l.b16 %v844
        %v1611 = vunpack.c.h.b16 %v844
        %v1612 = vunpack.c.l.b16 %v845
        %v1613 = vunpack.c.h.b16 %v845
        %v1614 = vunpack.c.l.b16 %v846
        %v1615 = vunpack.c.h.b16 %v846
        %v1616 = vunpack.c.l.b16 %v847
        %v1617 = vunpack.c.h.b16 %v847
        %v1618 = vunpack.c.l.b16 %v848
        %v1619 = vunpack.c.h.b16 %v848
        %v1620 = vunpack.c.l.b16 %v849
        %v1621 = vunpack.c.h.b16 %v849
        %v1622 = vunpack.c.l.b16 %v850
        %v1623 = vunpack.c.h.b16 %v850
        %v1624 = vunpack.c.l.b16 %v851
        %v1625 = vunpack.c.h.b16 %v851
        %v1626 = vunpack.c.l.b16 %v852
        %v1627 = vunpack.c.h.b16 %v852
        %v1628 = vunpack.c.l.b16 %v853
        %v1629 = vunpack.c.h.b16 %v853
        %v1630 = vunpack.c.l.b16 %v854
        %v1631 = vunpack.c.h.b16 %v854
        %v1632 = vunpack.c.l.b16 %v855
        %v1633 = vunpack.c.h.b16 %v855
        %v1634 = vunpack.c.l.b16 %v856
        %v1635 = vunpack.c.h.b16 %v856
        %v1636 = vunpack.c.l.b16 %v857
        %v1637 = vunpack.c.h.b16 %v857
        %v1638 = vunpack.c.l.b16 %v858
        %v1639 = vunpack.c.h.b16 %v858
        %v1640 = vunpack.c.l.b16 %v859
        %v1641 = vunpack.c.h.b16 %v859
        %v1642 = vunpack.c.l.b16 %v860
        %v1643 = vunpack.c.h.b16 %v860
        %v1644 = vunpack.c.l.b16 %v861
        %v1645 = vunpack.c.h.b16 %v861
        %v1646 = vunpack.c.l.b16 %v862
        %v1647 = vunpack.c.h.b16 %v862
        %v1648 = vunpack.c.l.b16 %v863
        %v1649 = vunpack.c.h.b16 %v863
        %v1650 = vunpack.c.l.b16 %v864
        %v1651 = vunpack.c.h.b16 %v864
        %v1652 = vunpack.c.l.b16 %v865
        %v1653 = vunpack.c.h.b16 %v865
        %v1654 = vunpack.c.l.b16 %v866
        %v1655 = vunpack.c.h.b16 %v866
        %v1656 = vunpack.c.l.b16 %v867
        %v1657 = vunpack.c.h.b16 %v867
        %v1658 = vunpack.c.l.b16 %v868
        %v1659 = vunpack.c.h.b16 %v868
        %v1660 = vunpack.c.l.b16 %v869
        %v1661 = vunpack.c.h.b16 %v869
        %v1662 = vunpack.c.l.b16 %v870
        %v1663 = vunpack.c.h.b16 %v870
        %v1664 = vunpack.c.l.b16 %v871
        %v1665 = vunpack.c.h.b16 %v871
        %v1666 = vunpack.c.l.b16 %v872
        %v1667 = vunpack.c.h.b16 %v872
        %v1668 = vunpack.c.l.b16 %v873
        %v1669 = vunpack.c.h.b16 %v873
        %v1670 = vunpack.c.l.b16 %v874
        %v1671 = vunpack.c.h.b16 %v874
        %v1672 = vunpack.c.l.b16 %v875
        %v1673 = vunpack.c.h.b16 %v875
        %v1674 = vunpack.c.l.b16 %v876
        %v1675 = vunpack.c.h.b16 %v876
        %v1676 = vunpack.c.l.b16 %v877
        %v1677 = vunpack.c.h.b16 %v877
        %v1678 = vunpack.c.l.b16 %v878
        %v1679 = vunpack.c.h.b16 %v878
        %v1680 = vunpack.c.l.b16 %v879
        %v1681 = vunpack.c.h.b16 %v879
        %v1682 = vunpack.c.l.b16 %v880
        %v1683 = vunpack.c.h.b16 %v880
        %v1684 = vunpack.c.l.b16 %v881
        %v1685 = vunpack.c.h.b16 %v881
        %v1686 = vunpack.c.l.b16 %v882
        %v1687 = vunpack.c.h.b16 %v882
        %v1688 = vunpack.c.l.b16 %v883
        %v1689 = vunpack.c.h.b16 %v883
        %v1690 = vunpack.c.l.b16 %v884
        %v1691 = vunpack.c.h.b16 %v884
        %v1692 = vunpack.c.l.b16 %v885
        %v1693 = vunpack.c.h.b16 %v885
        %v1694 = vunpack.c.l.b16 %v886
        %v1695 = vunpack.c.h.b16 %v886
        %v1696 = vunpack.c.l.b16 %v887
        %v1697 = vunpack.c.h.b16 %v887
        %v1698 = vunpack.c.l.b16 %v888
        %v1699 = vunpack.c.h.b16 %v888
        %v1700 = vunpack.c.l.b16 %v889
        %v1701 = vunpack.c.h.b16 %v889
        %v1702 = vunpack.c.l.b16 %v890
        %v1703 = vunpack.c.h.b16 %v890
        %v1704 = vunpack.c.l.b16 %v891
        %v1705 = vunpack.c.h.b16 %v891
        %v1706 = vunpack.c.l.b16 %v892
        %v1707 = vunpack.c.h.b16 %v892
        %v1708 = vunpack.c.l.b16 %v893
        %v1709 = vunpack.c.h.b16 %v893
        %v1710 = vunpack.c.l.b16 %v894
        %v1711 = vunpack.c.h.b16 %v894
        %v1712 = vunpack.c.l.b16 %v895
        %v1713 = vunpack.c.h.b16 %v895
        %v1714 = vunpack.c.l.b16 %v896
        %v1715 = vunpack.c.h.b16 %v896
        %v1716 = vunpack.c.l.b16 %v897
        %v1717 = vunpack.c.h.b16 %v897
        %v1718 = vunpack.c.l.b16 %v898
        %v1719 = vunpack.c.h.b16 %v898
        %v1720 = vunpack.c.l.b16 %v899
        %v1721 = vunpack.c.h.b16 %v899
        %v1722 = vunpack.c.l.b16 %v900
        %v1723 = vunpack.c.h.b16 %v900
        %v1724 = vunpack.c.l.b16 %v901
        %v1725 = vunpack.c.h.b16 %v901
        %v1726 = vunpack.c.l.b16 %v902
        %v1727 = vunpack.c.h.b16 %v902
        %v1728 = vunpack.c.l.b16 %v903
        %v1729 = vunpack.c.h.b16 %v903
        %v1730 = vunpack.c.l.b16 %v904
        %v1731 = vunpack.c.h.b16 %v904
        %v1732 = vunpack.c.l.b16 %v905
        %v1733 = vunpack.c.h.b16 %v905
        %v1734 = vunpack.c.l.b16 %v906
        %v1735 = vunpack.c.h.b16 %v906
        %v1736 = vunpack.c.l.b16 %v907
        %v1737 = vunpack.c.h.b16 %v907
        %v1738 = vunpack.c.l.b16 %v908
        %v1739 = vunpack.c.h.b16 %v908
        %v1740 = vunpack.c.l.b16 %v909
        %v1741 = vunpack.c.h.b16 %v909
        %v1742 = vunpack.c.l.b16 %v910
        %v1743 = vunpack.c.h.b16 %v910
        %v1744 = vunpack.c.l.b16 %v911
        %v1745 = vunpack.c.h.b16 %v911
        %v1746 = vunpack.c.l.b16 %v912
        %v1747 = vunpack.c.h.b16 %v912
        %v1748 = vunpack.c.l.b16 %v913
        %v1749 = vunpack.c.h.b16 %v913
        %v1750 = vunpack.c.l.b16 %v914
        %v1751 = vunpack.c.h.b16 %v914
        %v1752 = vunpack.c.l.b16 %v915
        %v1753 = vunpack.c.h.b16 %v915
        %v1754 = vunpack.c.l.b16 %v916
        %v1755 = vunpack.c.h.b16 %v916
        %v1756 = vunpack.c.l.b16 %v917
        %v1757 = vunpack.c.h.b16 %v917
        %v1758 = vpack.c.b16 %v1332, %v1326
        %v1759 = vpack.c.b16 %v1333, %v1327
        %v1760 = vpack.c.b16 %v1334, %v1328
        %v1761 = vpack.c.b16 %v1335, %v1329
        %v1762 = vpack.c.b16 %v1336, %v1330
        %v1763 = vpack.c.b16 %v1337, %v1331
        %v1764 = vpack.c.b16 %v1344, %v1338
        %v1765 = vpack.c.b16 %v1345, %v1339
        %v1766 = vpack.c.b16 %v1346, %v1340
        %v1767 = vpack.c.b16 %v1347, %v1341
        %v1768 = vpack.c.b16 %v1348, %v1342
        %v1769 = vpack.c.b16 %v1349, %v1343
        %v1770 = vpack.c.b16 %v1356, %v1350
        %v1771 = vpack.c.b16 %v1357, %v1351
        %v1772 = vpack.c.b16 %v1358, %v1352
        %v1773 = vpack.c.b16 %v1359, %v1353
        %v1774 = vpack.c.b16 %v1360, %v1354
        %v1775 = vpack.c.b16 %v1361, %v1355
        %v1776 = vpack.c.b16 %v1368, %v1362
        %v1777 = vpack.c.b16 %v1369, %v1363
        %v1778 = vpack.c.b16 %v1370, %v1364
        %v1779 = vpack.c.b16 %v1371, %v1365
        %v1780 = vpack.c.b16 %v1372, %v1366
        %v1781 = vpack.c.b16 %v1373, %v1367
        %v1782 = vpack.c.b16 %v1380, %v1374
        %v1783 = vpack.c.b16 %v1381, %v1375
        %v1784 = vpack.c.b16 %v1382, %v1376
        %v1785 = vpack.c.b16 %v1383, %v1377
        %v1786 = vpack.c.b16 %v1384, %v1378
        %v1787 = vpack.c.b16 %v1385, %v1379
        %v1788 = vpack.c.b16 %v1392, %v1386
        %v1789 = vpack.c.b16 %v1393, %v1387
        %v1790 = vpack.c.b16 %v1394, %v1388
        %v1791 = vpack.c.b16 %v1395, %v1389
        %v1792 = vpack.c.b16 %v1396, %v1390
        %v1793 = vpack.c.b16 %v1397, %v1391
        %v1794 = vpack.c.b16 %v1404, %v1398
        %v1795 = vpack.c.b16 %v1405, %v1399
        %v1796 = vpack.c.b16 %v1406, %v1400
        %v1797 = vpack.c.b16 %v1407, %v1401
        %v1798 = vpack.c.b16 %v1408, %v1402
        %v1799 = vpack.c.b16 %v1409, %v1403
        %v1800 = vpack.c.b16 %v1416, %v1410
        %v1801 = vpack.c.b16 %v1417, %v1411
        %v1802 = vpack.c.b16 %v1418, %v1412
        %v1803 = vpack.c.b16 %v1419, %v1413
        %v1804 = vpack.c.b16 %v1420, %v1414
        %v1805 = vpack.c.b16 %v1421, %v1415
        %v1806 = vpack.c.b16 %v1428, %v1422
        %v1807 = vpack.c.b16 %v1429, %v1423
        %v1808 = vpack.c.b16 %v1430, %v1424
        %v1809 = vpack.c.b16 %v1431, %v1425
        %v1810 = vpack.c.b16 %v1432, %v1426
        %v1811 = vpack.c.b16 %v1433, %v1427
        %v1812 = vpack.c.b16 %v1440, %v1434
        %v1813 = vpack.c.b16 %v1441, %v1435
        %v1814 = vpack.c.b16 %v1442, %v1436
        %v1815 = vpack.c.b16 %v1443, %v1437
        %v1816 = vpack.c.b16 %v1444, %v1438
        %v1817 = vpack.c.b16 %v1445, %v1439
        %v1818 = vpack.c.b16 %v1452, %v1446
        %v1819 = vpack.c.b16 %v1453, %v1447
        %v1820 = vpack.c.b16 %v1454, %v1448
        %v1821 = vpack.c.b16 %v1455, %v1449
        %v1822 = vpack.c.b16 %v1456, %v1450
        %v1823 = vpack.c.b16 %v1457, %v1451
        %v1824 = vpack.c.b16 %v1464, %v1458
        %v1825 = vpack.c.b16 %v1465, %v1459
        %v1826 = vpack.c.b16 %v1466, %v1460
        %v1827 = vpack.c.b16 %v1467, %v1461
        %v1828 = vpack.c.b16 %v1468, %v1462
        %v1829 = vpack.c.b16 %v1469, %v1463
        %v1830 = vpack.c.b16 %v1476, %v1470
        %v1831 = vpack.c.b16 %v1477, %v1471
        %v1832 = vpack.c.b16 %v1478, %v1472
        %v1833 = vpack.c.b16 %v1479, %v1473
        %v1834 = vpack.c.b16 %v1480, %v1474
        %v1835 = vpack.c.b16 %v1481, %v1475
        %v1836 = vpack.c.b16 %v1488, %v1482
        %v1837 = vpack.c.b16 %v1489, %v1483
        %v1838 = vpack.c.b16 %v1490, %v1484
        %v1839 = vpack.c.b16 %v1491, %v1485
        %v1840 = vpack.c.b16 %v1492, %v1486
        %v1841 = vpack.c.b16 %v1493, %v1487
        %v1842 = vpack.c.b16 %v1500, %v1494
        %v1843 = vpack.c.b16 %v1501, %v1495
        %v1844 = vpack.c.b16 %v1502, %v1496
        %v1845 = vpack.c.b16 %v1503, %v1497
        %v1846 = vpack.c.b16 %v1504, %v1498
        %v1847 = vpack.c.b16 %v1505, %v1499
        %v1848 = vpack.c.b16 %v1512, %v1506
        %v1849 = vpack.c.b16 %v1513, %v1507
        %v1850 = vpack.c.b16 %v1514, %v1508
        %v1851 = vpack.c.b16 %v1515, %v1509
        %v1852 = vpack.c.b16 %v1516, %v1510
        %v1853 = vpack.c.b16 %v1517, %v1511
        %v1854 = vpack.c.b16 %v1524, %v1518
        %v1855 = vpack.c.b16 %v1525, %v1519
        %v1856 = vpack.c.b16 %v1526, %v1520
        %v1857 = vpack.c.b16 %v1527, %v1521
        %v1858 = vpack.c.b16 %v1528, %v1522
        %v1859 = vpack.c.b16 %v1529, %v1523
        %v1860 = vpack.c.b16 %v1536, %v1530
        %v1861 = vpack.c.b16 %v1537, %v1531
        %v1862 = vpack.c.b16 %v1538, %v1532
        %v1863 = vpack.c.b16 %v1539, %v1533
        %v1864 = vpack.c.b16 %v1540, %v1534
        %v1865 = vpack.c.b16 %v1541, %v1535
        %v1866 = vpack.c.b16 %v1548, %v1542
        %v1867 = vpack.c.b16 %v1549, %v1543
        %v1868 = vpack.c.b16 %v1550, %v1544
        %v1869 = vpack.c.b16 %v1551, %v1545
        %v1870 = vpack.c.b16 %v1552, %v1546
        %v1871 = vpack.c.b16 %v1553, %v1547
        %v1872 = vpack.c.b16 %v1560, %v1554
        %v1873 = vpack.c.b16 %v1561, %v1555
        %v1874 = vpack.c.b16 %v1562, %v1556
        %v1875 = vpack.c.b16 %v1563, %v1557
        %v1876 = vpack.c.b16 %v1564, %v1558
        %v1877 = vpack.c.b16 %v1565, %v1559
        %v1878 = vpack.c.b16 %v1572, %v1566
        %v1879 = vpack.c.b16 %v1573, %v1567
        %v1880 = vpack.c.b16 %v1574, %v1568
        %v1881 = vpack.c.b16 %v1575, %v1569
        %v1882 = vpack.c.b16 %v1576, %v1570
        %v1883 = vpack.c.b16 %v1577, %v1571
        %v1884 = vpack.c.b16 %v1584, %v1578
        %v1885 = vpack.c.b16 %v1585, %v1579
        %v1886 = vpack.c.b16 %v1586, %v1580
        %v1887 = vpack.c.b16 %v1587, %v1581
        %v1888 = vpack.c.b16 %v1588, %v1582
        %v1889 = vpack.c.b16 %v1589, %v1583
        %v1890 = vpack.c.b16 %v1596, %v1590
        %v1891 = vpack.c.b16 %v1597, %v1591
        %v1892 = vpack.c.b16 %v1598, %v1592
        %v1893 = vpack.c.b16 %v1599, %v1593
        %v1894 = vpack.c.b16 %v1600, %v1594
        %v1895 = vpack.c.b16 %v1601, %v1595
        %v1896 = vpack.c.b16 %v1608, %v1602
        %v1897 = vpack.c.b16 %v1609, %v1603
        %v1898 = vpack.c.b16 %v1610, %v1604
        %v1899 = vpack.c.b16 %v1611, %v1605
        %v1900 = vpack.c.b16 %v1612, %v1606
        %v1901 = vpack.c.b16 %v1613, %v1607
        %v1902 = vpack.c.b16 %v1620, %v1614
        %v1903 = vpack.c.b16 %v1621, %v1615
        %v1904 = vpack.c.b16 %v1622, %v1616
        %v1905 = vpack.c.b16 %v1623, %v1617
        %v1906 = vpack.c.b16 %v1624, %v1618
        %v1907 = vpack.c.b16 %v1625, %v1619
        %v1908 = vpack.c.b16 %v1632, %v1626
        %v1909 = vpack.c.b16 %v1633, %v1627
        %v1910 = vpack.c.b16 %v1634, %v1628
        %v1911 = vpack.c.b16 %v1635, %v1629
        %v1912 = vpack.c.b16 %v1636, %v1630
        %v1913 = vpack.c.b16 %v1637, %v1631
        %v1914 = vpack.c.b16 %v1644, %v1638
        %v1915 = vpack.c.b16 %v1645, %v1639
        %v1916 = vpack.c.b16 %v1646, %v1640
        %v1917 = vpack.c.b16 %v1647, %v1641
        %v1918 = vpack.c.b16 %v1648, %v1642
        %v1919 = vpack.c.b16 %v1649, %v1643
        %v1920 = vpack.c.b16 %v1656, %v1650
        %v1921 = vpack.c.b16 %v1657, %v1651
        %v1922 = vpack.c.b16 %v1658, %v1652
        %v1923 = vpack.c.b16 %v1659, %v1653
        %v1924 = vpack.c.b16 %v1660, %v1654
        %v1925 = vpack.c.b16 %v1661, %v1655
        %v1926 = vpack.c.b16 %v1668, %v1662
        %v1927 = vpack.c.b16 %v1669, %v1663
        %v1928 = vpack.c.b16 %v1670, %v1664
        %v1929 = vpack.c.b16 %v1671, %v1665
        %v1930 = vpack.c.b16 %v1672, %v1666
        %v1931 = vpack.c.b16 %v1673, %v1667
        %v1932 = vpack.c.b16 %v1680, %v1674
        %v1933 = vpack.c.b16 %v1681, %v1675
        %v1934 = vpack.c.b16 %v1682, %v1676
        %v1935 = vpack.c.b16 %v1683, %v1677
        %v1936 = vpack.c.b16 %v1684, %v1678
        %v1937 = vpack.c.b16 %v1685, %v1679
        %v1938 = vpack.c.b16 %v1692, %v1686
        %v1939 = vpack.c.b16 %v1693, %v1687
        %v1940 = vpack.c.b16 %v1694, %v1688
        %v1941 = vpack.c.b16 %v1695, %v1689
        %v1942 = vpack.c.b16 %v1696, %v1690
        %v1943 = vpack.c.b16 %v1697, %v1691
        %v1944 = vpack.c.b16 %v1704, %v1698
        %v1945 = vpack.c.b16 %v1705, %v1699
        %v1946 = vpack.c.b16 %v1706, %v1700
        %v1947 = vpack.c.b16 %v1707, %v1701
        %v1948 = vpack.c.b16 %v1708, %v1702
        %v1949 = vpack.c.b16 %v1709, %v1703
        %v1950 = vpack.c.b16 %v1716, %v1710
        %v1951 = vpack.c.b16 %v1717, %v1711
        %v1952 = vpack.c.b16 %v1718, %v1712
        %v1953 = vpack.c.b16 %v1719, %v1713
        %v1954 = vpack.c.b16 %v1720, %v1714
        %v1955 = vpack.c.b16 %v1721, %v1715
        %v1956 = vpack.c.b16 %v1728, %v1722
        %v1957 = vpack.c.b16 %v1729, %v1723
        %v1958 = vpack.c.b16 %v1730, %v1724
        %v1959 = vpack.c.b16 %v1731, %v1725
        %v1960 = vpack.c.b16 %v1732, %v1726
        %v1961 = vpack.c.b16 %v1733, %v1727
        %v1962 = vpack.c.b16 %v1740, %v1734
        %v1963 = vpack.c.b16 %v1741, %v1735
        %v1964 = vpack.c.b16 %v1742, %v1736
        %v1965 = vpack.c.b16 %v1743, %v1737
        %v1966 = vpack.c.b16 %v1744, %v1738
        %v1967 = vpack.c.b16 %v1745, %v1739
        %v1968 = vpack.c.b16 %v1752, %v1746
        %v1969 = vpack.c.b16 %v1753, %v1747
        %v1970 = vpack.c.b16 %v1754, %v1748
        %v1971 = vpack.c.b16 %v1755, %v1749
        %v1972 = vpack.c.b16 %v1756, %v1750
        %v1973 = vpack.c.b16 %v1757, %v1751
        %v2382 = vunpack.c.l.b16 %v918
        %v2383 = vunpack.c.h.b16 %v918
        %v2384 = vunpack.c.l.b16 %v919
        %v2385 = vunpack.c.h.b16 %v919
        %v2386 = vunpack.c.l.b16 %v920
        %v2387 = vunpack.c.h.b16 %v920
        %v2388 = vunpack.c.l.b16 %v921
        %v2389 = vunpack.c.h.b16 %v921
        %v2390 = vunpack.c.l.b16 %v922
        %v2391 = vunpack.c.h.b16 %v922
        %v2392 = vunpack.c.l.b16 %v923
        %v2393 = vunpack.c.h.b16 %v923
        %v2394 = vunpack.c.l.b16 %v924
        %v2395 = vunpack.c.h.b16 %v924
        %v2396 = vunpack.c.l.b16 %v925
        %v2397 = vunpack.c.h.b16 %v925
        %v2398 = vunpack.c.l.b16 %v926
        %v2399 = vunpack.c.h.b16 %v926
        %v2400 = vunpack.c.l.b16 %v927
        %v2401 = vunpack.c.h.b16 %v927
        %v2402 = vunpack.c.l.b16 %v928
        %v2403 = vunpack.c.h.b16 %v928
        %v2404 = vunpack.c.l.b16 %v929
        %v2405 = vunpack.c.h.b16 %v929
        %v2406 = vunpack.c.l.b16 %v930
        %v2407 = vunpack.c.h.b16 %v930
        %v2408 = vunpack.c.l.b16 %v931
        %v2409 = vunpack.c.h.b16 %v931
        %v2410 = vunpack.c.l.b16 %v932
        %v2411 = vunpack.c.h.b16 %v932
        %v2412 = vunpack.c.l.b16 %v933
        %v2413 = vunpack.c.h.b16 %v933
        %v2414 = vunpack.c.l.b16 %v934
        %v2415 = vunpack.c.h.b16 %v934
        %v2416 = vunpack.c.l.b16 %v935
        %v2417 = vunpack.c.h.b16 %v935
        %v2418 = vunpack.c.l.b16 %v936
        %v2419 = vunpack.c.h.b16 %v936
        %v2420 = vunpack.c.l.b16 %v937
        %v2421 = vunpack.c.h.b16 %v937
        %v2422 = vunpack.c.l.b16 %v938
        %v2423 = vunpack.c.h.b16 %v938
        %v2424 = vunpack.c.l.b16 %v939
        %v2425 = vunpack.c.h.b16 %v939
        %v2426 = vunpack.c.l.b16 %v940
        %v2427 = vunpack.c.h.b16 %v940
        %v2428 = vunpack.c.l.b16 %v941
        %v2429 = vunpack.c.h.b16 %v941
        %v2430 = vunpack.c.l.b16 %v942
        %v2431 = vunpack.c.h.b16 %v942
        %v2432 = vunpack.c.l.b16 %v943
        %v2433 = vunpack.c.h.b16 %v943
        %v2434 = vunpack.c.l.b16 %v944
        %v2435 = vunpack.c.h.b16 %v944
        %v2436 = vunpack.c.l.b16 %v945
        %v2437 = vunpack.c.h.b16 %v945
        %v2438 = vunpack.c.l.b16 %v946
        %v2439 = vunpack.c.h.b16 %v946
        %v2440 = vunpack.c.l.b16 %v947
        %v2441 = vunpack.c.h.b16 %v947
        %v2442 = vunpack.c.l.b16 %v948
        %v2443 = vunpack.c.h.b16 %v948
        %v2444 = vunpack.c.l.b16 %v949
        %v2445 = vunpack.c.h.b16 %v949
        %v2446 = vunpack.c.l.b16 %v950
        %v2447 = vunpack.c.h.b16 %v950
        %v2448 = vunpack.c.l.b16 %v951
        %v2449 = vunpack.c.h.b16 %v951
        %v2450 = vunpack.c.l.b16 %v952
        %v2451 = vunpack.c.h.b16 %v952
        %v2452 = vunpack.c.l.b16 %v953
        %v2453 = vunpack.c.h.b16 %v953
        %v2454 = vunpack.c.l.b16 %v954
        %v2455 = vunpack.c.h.b16 %v954
        %v2456 = vunpack.c.l.b16 %v955
        %v2457 = vunpack.c.h.b16 %v955
        %v2458 = vunpack.c.l.b16 %v956
        %v2459 = vunpack.c.h.b16 %v956
        %v2460 = vunpack.c.l.b16 %v957
        %v2461 = vunpack.c.h.b16 %v957
        %v2462 = vunpack.c.l.b16 %v958
        %v2463 = vunpack.c.h.b16 %v958
        %v2464 = vunpack.c.l.b16 %v959
        %v2465 = vunpack.c.h.b16 %v959
        %v2466 = vunpack.c.l.b16 %v960
        %v2467 = vunpack.c.h.b16 %v960
        %v2468 = vunpack.c.l.b16 %v961
        %v2469 = vunpack.c.h.b16 %v961
        %v2470 = vunpack.c.l.b16 %v962
        %v2471 = vunpack.c.h.b16 %v962
        %v2472 = vunpack.c.l.b16 %v963
        %v2473 = vunpack.c.h.b16 %v963
        %v2474 = vunpack.c.l.b16 %v964
        %v2475 = vunpack.c.h.b16 %v964
        %v2476 = vunpack.c.l.b16 %v965
        %v2477 = vunpack.c.h.b16 %v965
        %v2478 = vunpack.c.l.b16 %v966
        %v2479 = vunpack.c.h.b16 %v966
        %v2480 = vunpack.c.l.b16 %v967
        %v2481 = vunpack.c.h.b16 %v967
        %v2482 = vunpack.c.l.b16 %v968
        %v2483 = vunpack.c.h.b16 %v968
        %v2484 = vunpack.c.l.b16 %v969
        %v2485 = vunpack.c.h.b16 %v969
        %v2486 = vunpack.c.l.b16 %v970
        %v2487 = vunpack.c.h.b16 %v970
        %v2488 = vunpack.c.l.b16 %v971
        %v2489 = vunpack.c.h.b16 %v971
        %v2490 = vunpack.c.l.b16 %v972
        %v2491 = vunpack.c.h.b16 %v972
        %v2492 = vunpack.c.l.b16 %v973
        %v2493 = vunpack.c.h.b16 %v973
        %v2494 = vunpack.c.l.b16 %v974
        %v2495 = vunpack.c.h.b16 %v974
        %v2496 = vunpack.c.l.b16 %v975
        %v2497 = vunpack.c.h.b16 %v975
        %v2498 = vunpack.c.l.b16 %v976
        %v2499 = vunpack.c.h.b16 %v976
        %v2500 = vunpack.c.l.b16 %v977
        %v2501 = vunpack.c.h.b16 %v977
        %v2502 = vunpack.c.l.b16 %v978
        %v2503 = vunpack.c.h.b16 %v978
        %v2504 = vunpack.c.l.b16 %v979
        %v2505 = vunpack.c.h.b16 %v979
        %v2506 = vunpack.c.l.b16 %v980
        %v2507 = vunpack.c.h.b16 %v980
        %v2508 = vunpack.c.l.b16 %v981
        %v2509 = vunpack.c.h.b16 %v981
        %v2510 = vunpack.c.l.b16 %v982
        %v2511 = vunpack.c.h.b16 %v982
        %v2512 = vunpack.c.l.b16 %v983
        %v2513 = vunpack.c.h.b16 %v983
        %v2514 = vunpack.c.l.b16 %v984
        %v2515 = vunpack.c.h.b16 %v984
        %v2516 = vunpack.c.l.b16 %v985
        %v2517 = vunpack.c.h.b16 %v985
        %v2518 = vunpack.c.l.b16 %v986
        %v2519 = vunpack.c.h.b16 %v986
        %v2520 = vunpack.c.l.b16 %v987
        %v2521 = vunpack.c.h.b16 %v987
        %v2522 = vunpack.c.l.b16 %v988
        %v2523 = vunpack.c.h.b16 %v988
        %v2524 = vunpack.c.l.b16 %v989
        %v2525 = vunpack.c.h.b16 %v989
        %v2526 = vunpack.c.l.b16 %v990
        %v2527 = vunpack.c.h.b16 %v990
        %v2528 = vunpack.c.l.b16 %v991
        %v2529 = vunpack.c.h.b16 %v991
        %v2530 = vunpack.c.l.b16 %v992
        %v2531 = vunpack.c.h.b16 %v992
        %v2532 = vunpack.c.l.b16 %v993
        %v2533 = vunpack.c.h.b16 %v993
        %v2534 = vunpack.c.l.b16 %v994
        %v2535 = vunpack.c.h.b16 %v994
        %v2536 = vunpack.c.l.b16 %v995
        %v2537 = vunpack.c.h.b16 %v995
        %v2538 = vunpack.c.l.b16 %v996
        %v2539 = vunpack.c.h.b16 %v996
        %v2540 = vunpack.c.l.b16 %v997
        %v2541 = vunpack.c.h.b16 %v997
        %v2542 = vunpack.c.l.b16 %v998
        %v2543 = vunpack.c.h.b16 %v998
        %v2544 = vunpack.c.l.b16 %v999
        %v2545 = vunpack.c.h.b16 %v999
        %v2546 = vunpack.c.l.b16 %v1000
        %v2547 = vunpack.c.h.b16 %v1000
        %v2548 = vunpack.c.l.b16 %v1001
        %v2549 = vunpack.c.h.b16 %v1001
        %v2550 = vunpack.c.l.b16 %v1002
        %v2551 = vunpack.c.h.b16 %v1002
        %v2552 = vunpack.c.l.b16 %v1003
        %v2553 = vunpack.c.h.b16 %v1003
        %v2554 = vunpack.c.l.b16 %v1004
        %v2555 = vunpack.c.h.b16 %v1004
        %v2556 = vunpack.c.l.b16 %v1005
        %v2557 = vunpack.c.h.b16 %v1005
        %v2558 = vunpack.c.l.b16 %v1006
        %v2559 = vunpack.c.h.b16 %v1006
        %v2560 = vunpack.c.l.b16 %v1007
        %v2561 = vunpack.c.h.b16 %v1007
        %v2562 = vunpack.c.l.b16 %v1008
        %v2563 = vunpack.c.h.b16 %v1008
        %v2564 = vunpack.c.l.b16 %v1009
        %v2565 = vunpack.c.h.b16 %v1009
        %v2566 = vunpack.c.l.b16 %v1010
        %v2567 = vunpack.c.h.b16 %v1010
        %v2568 = vunpack.c.l.b16 %v1011
        %v2569 = vunpack.c.h.b16 %v1011
        %v2570 = vunpack.c.l.b16 %v1012
        %v2571 = vunpack.c.h.b16 %v1012
        %v2572 = vunpack.c.l.b16 %v1013
        %v2573 = vunpack.c.h.b16 %v1013
        %v2574 = vunpack.c.l.b16 %v1014
        %v2575 = vunpack.c.h.b16 %v1014
        %v2576 = vunpack.c.l.b16 %v1015
        %v2577 = vunpack.c.h.b16 %v1015
        %v2578 = vunpack.c.l.b16 %v1016
        %v2579 = vunpack.c.h.b16 %v1016
        %v2580 = vunpack.c.l.b16 %v1017
        %v2581 = vunpack.c.h.b16 %v1017
        %v2582 = vunpack.c.l.b16 %v1018
        %v2583 = vunpack.c.h.b16 %v1018
        %v2584 = vunpack.c.l.b16 %v1019
        %v2585 = vunpack.c.h.b16 %v1019
        %v2586 = vunpack.c.l.b16 %v1020
        %v2587 = vunpack.c.h.b16 %v1020
        %v2588 = vunpack.c.l.b16 %v1021
        %v2589 = vunpack.c.h.b16 %v1021
        %v2590 = vunpack.c.l.b16 %v1022
        %v2591 = vunpack.c.h.b16 %v1022
        %v2592 = vunpack.c.l.b16 %v1023
        %v2593 = vunpack.c.h.b16 %v1023
        %v2594 = vunpack.c.l.b16 %v1024
        %v2595 = vunpack.c.h.b16 %v1024
        %v2596 = vunpack.c.l.b16 %v1025
        %v2597 = vunpack.c.h.b16 %v1025
        %v2598 = vunpack.c.l.b16 %v1026
        %v2599 = vunpack.c.h.b16 %v1026
        %v2600 = vunpack.c.l.b16 %v1027
        %v2601 = vunpack.c.h.b16 %v1027
        %v2602 = vunpack.c.l.b16 %v1028
        %v2603 = vunpack.c.h.b16 %v1028
        %v2604 = vunpack.c.l.b16 %v1029
        %v2605 = vunpack.c.h.b16 %v1029
        %v2606 = vunpack.c.l.b16 %v1030
        %v2607 = vunpack.c.h.b16 %v1030
        %v2608 = vunpack.c.l.b16 %v1031
        %v2609 = vunpack.c.h.b16 %v1031
        %v2610 = vunpack.c.l.b16 %v1032
        %v2611 = vunpack.c.h.b16 %v1032
        %v2612 = vunpack.c.l.b16 %v1033
        %v2613 = vunpack.c.h.b16 %v1033
        %v2614 = vunpack.c.l.b16 %v1034
        %v2615 = vunpack.c.h.b16 %v1034
        %v2616 = vunpack.c.l.b16 %v1035
        %v2617 = vunpack.c.h.b16 %v1035
        %v2618 = vunpack.c.l.b16 %v1036
        %v2619 = vunpack.c.h.b16 %v1036
        %v2620 = vunpack.c.l.b16 %v1037
        %v2621 = vunpack.c.h.b16 %v1037
        %v2622 = vunpack.c.l.b16 %v1038
        %v2623 = vunpack.c.h.b16 %v1038
        %v2624 = vunpack.c.l.b16 %v1039
        %v2625 = vunpack.c.h.b16 %v1039
        %v2626 = vunpack.c.l.b16 %v1040
        %v2627 = vunpack.c.h.b16 %v1040
        %v2628 = vunpack.c.l.b16 %v1041
        %v2629 = vunpack.c.h.b16 %v1041
        %v2630 = vunpack.c.l.b16 %v1042
        %v2631 = vunpack.c.h.b16 %v1042
        %v2632 = vunpack.c.l.b16 %v1043
        %v2633 = vunpack.c.h.b16 %v1043
        %v2634 = vunpack.c.l.b16 %v1044
        %v2635 = vunpack.c.h.b16 %v1044
        %v2636 = vunpack.c.l.b16 %v1045
        %v2637 = vunpack.c.h.b16 %v1045
        %v2638 = vunpack.c.l.b16 %v1046
        %v2639 = vunpack.c.h.b16 %v1046
        %v2640 = vunpack.c.l.b16 %v1047
        %v2641 = vunpack.c.h.b16 %v1047
        %v2642 = vunpack.c.l.b16 %v1048
        %v2643 = vunpack.c.h.b16 %v1048
        %v2644 = vunpack.c.l.b16 %v1049
        %v2645 = vunpack.c.h.b16 %v1049
        %v2646 = vunpack.c.l.b16 %v1050
        %v2647 = vunpack.c.h.b16 %v1050
        %v2648 = vunpack.c.l.b16 %v1051
        %v2649 = vunpack.c.h.b16 %v1051
        %v2650 = vunpack.c.l.b16 %v1052
        %v2651 = vunpack.c.h.b16 %v1052
        %v2652 = vunpack.c.l.b16 %v1053
        %v2653 = vunpack.c.h.b16 %v1053
        %v2654 = vunpack.c.l.b16 %v1054
        %v2655 = vunpack.c.h.b16 %v1054
        %v2656 = vunpack.c.l.b16 %v1055
        %v2657 = vunpack.c.h.b16 %v1055
        %v2658 = vunpack.c.l.b16 %v1056
        %v2659 = vunpack.c.h.b16 %v1056
        %v2660 = vunpack.c.l.b16 %v1057
        %v2661 = vunpack.c.h.b16 %v1057
        %v2662 = vunpack.c.l.b16 %v1058
        %v2663 = vunpack.c.h.b16 %v1058
        %v2664 = vunpack.c.l.b16 %v1059
        %v2665 = vunpack.c.h.b16 %v1059
        %v2666 = vunpack.c.l.b16 %v1060
        %v2667 = vunpack.c.h.b16 %v1060
        %v2668 = vunpack.c.l.b16 %v1061
        %v2669 = vunpack.c.h.b16 %v1061
        %v2670 = vunpack.c.l.b16 %v1062
        %v2671 = vunpack.c.h.b16 %v1062
        %v2672 = vunpack.c.l.b16 %v1063
        %v2673 = vunpack.c.h.b16 %v1063
        %v2674 = vunpack.c.l.b16 %v1064
        %v2675 = vunpack.c.h.b16 %v1064
        %v2676 = vunpack.c.l.b16 %v1065
        %v2677 = vunpack.c.h.b16 %v1065
        %v2678 = vunpack.c.l.b16 %v1066
        %v2679 = vunpack.c.h.b16 %v1066
        %v2680 = vunpack.c.l.b16 %v1067
        %v2681 = vunpack.c.h.b16 %v1067
        %v2682 = vunpack.c.l.b16 %v1068
        %v2683 = vunpack.c.h.b16 %v1068
        %v2684 = vunpack.c.l.b16 %v1069
        %v2685 = vunpack.c.h.b16 %v1069
        %v2686 = vunpack.c.l.b16 %v1070
        %v2687 = vunpack.c.h.b16 %v1070
        %v2688 = vunpack.c.l.b16 %v1071
        %v2689 = vunpack.c.h.b16 %v1071
        %v2690 = vunpack.c.l.b16 %v1072
        %v2691 = vunpack.c.h.b16 %v1072
        %v2692 = vunpack.c.l.b16 %v1073
        %v2693 = vunpack.c.h.b16 %v1073
        %v2694 = vunpack.c.l.b16 %v1074
        %v2695 = vunpack.c.h.b16 %v1074
        %v2696 = vunpack.c.l.b16 %v1075
        %v2697 = vunpack.c.h.b16 %v1075
        %v2698 = vunpack.c.l.b16 %v1076
        %v2699 = vunpack.c.h.b16 %v1076
        %v2700 = vunpack.c.l.b16 %v1077
        %v2701 = vunpack.c.h.b16 %v1077
        %v2702 = vunpack.c.l.b16 %v1078
        %v2703 = vunpack.c.h.b16 %v1078
        %v2704 = vunpack.c.l.b16 %v1079
        %v2705 = vunpack.c.h.b16 %v1079
        %v2706 = vunpack.c.l.b16 %v1080
        %v2707 = vunpack.c.h.b16 %v1080
        %v2708 = vunpack.c.l.b16 %v1081
        %v2709 = vunpack.c.h.b16 %v1081
        %v2710 = vunpack.c.l.b16 %v1082
        %v2711 = vunpack.c.h.b16 %v1082
        %v2712 = vunpack.c.l.b16 %v1083
        %v2713 = vunpack.c.h.b16 %v1083
        %v2714 = vunpack.c.l.b16 %v1084
        %v2715 = vunpack.c.h.b16 %v1084
        %v2716 = vunpack.c.l.b16 %v1085
        %v2717 = vunpack.c.h.b16 %v1085
        %v2718 = vunpack.c.l.b16 %v1086
        %v2719 = vunpack.c.h.b16 %v1086
        %v2720 = vunpack.c.l.b16 %v1087
        %v2721 = vunpack.c.h.b16 %v1087
        %v2722 = vunpack.c.l.b16 %v1088
        %v2723 = vunpack.c.h.b16 %v1088
        %v2724 = vunpack.c.l.b16 %v1089
        %v2725 = vunpack.c.h.b16 %v1089
        %v2726 = vunpack.c.l.b16 %v1090
        %v2727 = vunpack.c.h.b16 %v1090
        %v2728 = vunpack.c.l.b16 %v1091
        %v2729 = vunpack.c.h.b16 %v1091
        %v2730 = vunpack.c.l.b16 %v1092
        %v2731 = vunpack.c.h.b16 %v1092
        %v2732 = vunpack.c.l.b16 %v1093
        %v2733 = vunpack.c.h.b16 %v1093
        %v2734 = vunpack.c.l.b16 %v1094
        %v2735 = vunpack.c.h.b16 %v1094
        %v2736 = vunpack.c.l.b16 %v1095
        %v2737 = vunpack.c.h.b16 %v1095
        %v2738 = vunpack.c.l.b16 %v1096
        %v2739 = vunpack.c.h.b16 %v1096
        %v2740 = vunpack.c.l.b16 %v1097
        %v2741 = vunpack.c.h.b16 %v1097
        %v2742 = vunpack.c.l.b16 %v1098
        %v2743 = vunpack.c.h.b16 %v1098
        %v2744 = vunpack.c.l.b16 %v1099
        %v2745 = vunpack.c.h.b16 %v1099
        %v2746 = vunpack.c.l.b16 %v1100
        %v2747 = vunpack.c.h.b16 %v1100
        %v2748 = vunpack.c.l.b16 %v1101
        %v2749 = vunpack.c.h.b16 %v1101
        %v2750 = vunpack.c.l.b16 %v1102
        %v2751 = vunpack.c.h.b16 %v1102
        %v2752 = vunpack.c.l.b16 %v1103
        %v2753 = vunpack.c.h.b16 %v1103
        %v2754 = vunpack.c.l.b16 %v1104
        %v2755 = vunpack.c.h.b16 %v1104
        %v2756 = vunpack.c.l.b16 %v1105
        %v2757 = vunpack.c.h.b16 %v1105
        %v2758 = vunpack.c.l.b16 %v1106
        %v2759 = vunpack.c.h.b16 %v1106
        %v2760 = vunpack.c.l.b16 %v1107
        %v2761 = vunpack.c.h.b16 %v1107
        %v2762 = vunpack.c.l.b16 %v1108
        %v2763 = vunpack.c.h.b16 %v1108
        %v2764 = vunpack.c.l.b16 %v1109
        %v2765 = vunpack.c.h.b16 %v1109
        %v2766 = vpack.c.b16 %v2386, %v2382
        %v2767 = vpack.c.b16 %v2387, %v2383
        %v2768 = vpack.c.b16 %v2388, %v2384
        %v2769 = vpack.c.b16 %v2389, %v2385
        %v2770 = vpack.c.b16 %v2394, %v2390
        %v2771 = vpack.c.b16 %v2395, %v2391
        %v2772 = vpack.c.b16 %v2396, %v2392
        %v2773 = vpack.c.b16 %v2397, %v2393
        %v2774 = vpack.c.b16 %v2402, %v2398
        %v2775 = vpack.c.b16 %v2403, %v2399
        %v2776 = vpack.c.b16 %v2404, %v2400
        %v2777 = vpack.c.b16 %v2405, %v2401
        %v2778 = vpack.c.b16 %v2410, %v2406
        %v2779 = vpack.c.b16 %v2411, %v2407
        %v2780 = vpack.c.b16 %v2412, %v2408
        %v2781 = vpack.c.b16 %v2413, %v2409
        %v2782 = vpack.c.b16 %v2418, %v2414
        %v2783 = vpack.c.b16 %v2419, %v2415
        %v2784 = vpack.c.b16 %v2420, %v2416
        %v2785 = vpack.c.b16 %v2421, %v2417
        %v2786 = vpack.c.b16 %v2426, %v2422
        %v2787 = vpack.c.b16 %v2427, %v2423
        %v2788 = vpack.c.b16 %v2428, %v2424
        %v2789 = vpack.c.b16 %v2429, %v2425
        %v2790 = vpack.c.b16 %v2434, %v2430
        %v2791 = vpack.c.b16 %v2435, %v2431
        %v2792 = vpack.c.b16 %v2436, %v2432
        %v2793 = vpack.c.b16 %v2437, %v2433
        %v2794 = vpack.c.b16 %v2442, %v2438
        %v2795 = vpack.c.b16 %v2443, %v2439
        %v2796 = vpack.c.b16 %v2444, %v2440
        %v2797 = vpack.c.b16 %v2445, %v2441
        %v2798 = vpack.c.b16 %v2450, %v2446
        %v2799 = vpack.c.b16 %v2451, %v2447
        %v2800 = vpack.c.b16 %v2452, %v2448
        %v2801 = vpack.c.b16 %v2453, %v2449
        %v2802 = vpack.c.b16 %v2458, %v2454
        %v2803 = vpack.c.b16 %v2459, %v2455
        %v2804 = vpack.c.b16 %v2460, %v2456
        %v2805 = vpack.c.b16 %v2461, %v2457
        %v2806 = vpack.c.b16 %v2466, %v2462
        %v2807 = vpack.c.b16 %v2467, %v2463
        %v2808 = vpack.c.b16 %v2468, %v2464
        %v2809 = vpack.c.b16 %v2469, %v2465
        %v2810 = vpack.c.b16 %v2474, %v2470
        %v2811 = vpack.c.b16 %v2475, %v2471
        %v2812 = vpack.c.b16 %v2476, %v2472
        %v2813 = vpack.c.b16 %v2477, %v2473
        %v2814 = vpack.c.b16 %v2482, %v2478
        %v2815 = vpack.c.b16 %v2483, %v2479
        %v2816 = vpack.c.b16 %v2484, %v2480
        %v2817 = vpack.c.b16 %v2485, %v2481
        %v2818 = vpack.c.b16 %v2490, %v2486
        %v2819 = vpack.c.b16 %v2491, %v2487
        %v2820 = vpack.c.b16 %v2492, %v2488
        %v2821 = vpack.c.b16 %v2493, %v2489
        %v2822 = vpack.c.b16 %v2498, %v2494
        %v2823 = vpack.c.b16 %v2499, %v2495
        %v2824 = vpack.c.b16 %v2500, %v2496
        %v2825 = vpack.c.b16 %v2501, %v2497
        %v2826 = vpack.c.b16 %v2506, %v2502
        %v2827 = vpack.c.b16 %v2507, %v2503
        %v2828 = vpack.c.b16 %v2508, %v2504
        %v2829 = vpack.c.b16 %v2509, %v2505
        %v2830 = vpack.c.b16 %v2514, %v2510
        %v2831 = vpack.c.b16 %v2515, %v2511
        %v2832 = vpack.c.b16 %v2516, %v2512
        %v2833 = vpack.c.b16 %v2517, %v2513
        %v2834 = vpack.c.b16 %v2522, %v2518
        %v2835 = vpack.c.b16 %v2523, %v2519
        %v2836 = vpack.c.b16 %v2524, %v2520
        %v2837 = vpack.c.b16 %v2525, %v2521
        %v2838 = vpack.c.b16 %v2530, %v2526
        %v2839 = vpack.c.b16 %v2531, %v2527
        %v2840 = vpack.c.b16 %v2532, %v2528
        %v2841 = vpack.c.b16 %v2533, %v2529
        %v2842 = vpack.c.b16 %v2538, %v2534
        %v2843 = vpack.c.b16 %v2539, %v2535
        %v2844 = vpack.c.b16 %v2540, %v2536
        %v2845 = vpack.c.b16 %v2541, %v2537
        %v2846 = vpack.c.b16 %v2546, %v2542
        %v2847 = vpack.c.b16 %v2547, %v2543
        %v2848 = vpack.c.b16 %v2548, %v2544
        %v2849 = vpack.c.b16 %v2549, %v2545
        %v2850 = vpack.c.b16 %v2554, %v2550
        %v2851 = vpack.c.b16 %v2555, %v2551
        %v2852 = vpack.c.b16 %v2556, %v2552
        %v2853 = vpack.c.b16 %v2557, %v2553
        %v2854 = vpack.c.b16 %v2562, %v2558
        %v2855 = vpack.c.b16 %v2563, %v2559
        %v2856 = vpack.c.b16 %v2564, %v2560
        %v2857 = vpack.c.b16 %v2565, %v2561
        %v2858 = vpack.c.b16 %v2570, %v2566
        %v2859 = vpack.c.b16 %v2571, %v2567
        %v2860 = vpack.c.b16 %v2572, %v2568
        %v2861 = vpack.c.b16 %v2573, %v2569
        %v2862 = vpack.c.b16 %v2578, %v2574
        %v2863 = vpack.c.b16 %v2579, %v2575
        %v2864 = vpack.c.b16 %v2580, %v2576
        %v2865 = vpack.c.b16 %v2581, %v2577
        %v2866 = vpack.c.b16 %v2586, %v2582
        %v2867 = vpack.c.b16 %v2587, %v2583
        %v2868 = vpack.c.b16 %v2588, %v2584
        %v2869 = vpack.c.b16 %v2589, %v2585
        %v2870 = vpack.c.b16 %v2594, %v2590
        %v2871 = vpack.c.b16 %v2595, %v2591
        %v2872 = vpack.c.b16 %v2596, %v2592
        %v2873 = vpack.c.b16 %v2597, %v2593
        %v2874 = vpack.c.b16 %v2602, %v2598
        %v2875 = vpack.c.b16 %v2603, %v2599
        %v2876 = vpack.c.b16 %v2604, %v2600
        %v2877 = vpack.c.b16 %v2605, %v2601
        %v2878 = vpack.c.b16 %v2610, %v2606
        %v2879 = vpack.c.b16 %v2611, %v2607
        %v2880 = vpack.c.b16 %v2612, %v2608
        %v2881 = vpack.c.b16 %v2613, %v2609
        %v2882 = vpack.c.b16 %v2618, %v2614
        %v2883 = vpack.c.b16 %v2619, %v2615
        %v2884 = vpack.c.b16 %v2620, %v2616
        %v2885 = vpack.c.b16 %v2621, %v2617
        %v2886 = vpack.c.b16 %v2626, %v2622
        %v2887 = vpack.c.b16 %v2627, %v2623
        %v2888 = vpack.c.b16 %v2628, %v2624
        %v2889 = vpack.c.b16 %v2629, %v2625
        %v2890 = vpack.c.b16 %v2634, %v2630
        %v2891 = vpack.c.b16 %v2635, %v2631
        %v2892 = vpack.c.b16 %v2636, %v2632
        %v2893 = vpack.c.b16 %v2637, %v2633
        %v2894 = vpack.c.b16 %v2642, %v2638
        %v2895 = vpack.c.b16 %v2643, %v2639
        %v2896 = vpack.c.b16 %v2644, %v2640
        %v2897 = vpack.c.b16 %v2645, %v2641
        %v2898 = vpack.c.b16 %v2650, %v2646
        %v2899 = vpack.c.b16 %v2651, %v2647
        %v2900 = vpack.c.b16 %v2652, %v2648
        %v2901 = vpack.c.b16 %v2653, %v2649
        %v2902 = vpack.c.b16 %v2658, %v2654
        %v2903 = vpack.c.b16 %v2659, %v2655
        %v2904 = vpack.c.b16 %v2660, %v2656
        %v2905 = vpack.c.b16 %v2661, %v2657
        %v2906 = vpack.c.b16 %v2666, %v2662
        %v2907 = vpack.c.b16 %v2667, %v2663
        %v2908 = vpack.c.b16 %v2668, %v2664
        %v2909 = vpack.c.b16 %v2669, %v2665
        %v2910 = vpack.c.b16 %v2674, %v2670
        %v2911 = vpack.c.b16 %v2675, %v2671
        %v2912 = vpack.c.b16 %v2676, %v2672
        %v2913 = vpack.c.b16 %v2677, %v2673
        %v2914 = vpack.c.b16 %v2682, %v2678
        %v2915 = vpack.c.b16 %v2683, %v2679
        %v2916 = vpack.c.b16 %v2684, %v2680
        %v2917 = vpack.c.b16 %v2685, %v2681
        %v2918 = vpack.c.b16 %v2690, %v2686
        %v2919 = vpack.c.b16 %v2691, %v2687
        %v2920 = vpack.c.b16 %v2692, %v2688
        %v2921 = vpack.c.b16 %v2693, %v2689
        %v2922 = vpack.c.b16 %v2698, %v2694
        %v2923 = vpack.c.b16 %v2699, %v2695
        %v2924 = vpack.c.b16 %v2700, %v2696
        %v2925 = vpack.c.b16 %v2701, %v2697
        %v2926 = vpack.c.b16 %v2706, %v2702
        %v2927 = vpack.c.b16 %v2707, %v2703
        %v2928 = vpack.c.b16 %v2708, %v2704
        %v2929 = vpack.c.b16 %v2709, %v2705
        %v2930 = vpack.c.b16 %v2714, %v2710
        %v2931 = vpack.c.b16 %v2715, %v2711
        %v2932 = vpack.c.b16 %v2716, %v2712
        %v2933 = vpack.c.b16 %v2717, %v2713
        %v2934 = vpack.c.b16 %v2722, %v2718
        %v2935 = vpack.c.b16 %v2723, %v2719
        %v2936 = vpack.c.b16 %v2724, %v2720
        %v2937 = vpack.c.b16 %v2725, %v2721
        %v2938 = vpack.c.b16 %v2730, %v2726
        %v2939 = vpack.c.b16 %v2731, %v2727
        %v2940 = vpack.c.b16 %v2732, %v2728
        %v2941 = vpack.c.b16 %v2733, %v2729
        %v2942 = vpack.c.b16 %v2738, %v2734
        %v2943 = vpack.c.b16 %v2739, %v2735
        %v2944 = vpack.c.b16 %v2740, %v2736
        %v2945 = vpack.c.b16 %v2741, %v2737
        %v2946 = vpack.c.b16 %v2746, %v2742
        %v2947 = vpack.c.b16 %v2747, %v2743
        %v2948 = vpack.c.b16 %v2748, %v2744
        %v2949 = vpack.c.b16 %v2749, %v2745
        %v2950 = vpack.c.b16 %v2754, %v2750
        %v2951 = vpack.c.b16 %v2755, %v2751
        %v2952 = vpack.c.b16 %v2756, %v2752
        %v2953 = vpack.c.b16 %v2757, %v2753
        %v2954 = vpack.c.b16 %v2762, %v2758
        %v2955 = vpack.c.b16 %v2763, %v2759
        %v2956 = vpack.c.b16 %v2764, %v2760
        %v2957 = vpack.c.b16 %v2765, %v2761
        %3150 = vmatprep.subr.bf16.mxu0 %v2767
        %3151 = vmatpush1.bf16.msra.mxu0 %v2766
        %3152 = vmatprep.subr.bf16.mxu0 %v2771
        %3153 = vmatpush1.bf16.msra.mxu0 %v2770
        %3154 = vmatprep.subr.bf16.mxu0 %v2775
        %3155 = vmatpush1.bf16.msra.mxu0 %v2774
        %3156 = vmatprep.subr.bf16.mxu0 %v2779
        %3157 = vmatpush1.bf16.msra.mxu0 %v2778
        %3158 = vmatprep.subr.bf16.mxu0 %v2783
        %3159 = vmatpush1.bf16.msra.mxu0 %v2782
        %3160 = vmatprep.subr.bf16.mxu0 %v2787
        %3161 = vmatpush1.bf16.msra.mxu0 %v2786
        %3162 = vmatprep.subr.bf16.mxu0 %v2791
        %3163 = vmatpush1.bf16.msra.mxu0 %v2790
        %3164 = vmatprep.subr.bf16.mxu0 %v2795
        %3165 = vmatpush1.bf16.msra.mxu0 %v2794
        %3166 = vmatprep.subr.bf16.mxu0 %v2799
        %3167 = vmatpush1.bf16.msra.mxu0 %v2798
        %3168 = vmatprep.subr.bf16.mxu0 %v2803
        %3169 = vmatpush1.bf16.msra.mxu0 %v2802
        %3170 = vmatprep.subr.bf16.mxu0 %v2807
        %3171 = vmatpush1.bf16.msra.mxu0 %v2806
        %3172 = vmatprep.subr.bf16.mxu0 %v2811
        %3173 = vmatpush1.bf16.msra.mxu0 %v2810
        %3174 = vmatprep.subr.bf16.mxu0 %v2815
        %3175 = vmatpush1.bf16.msra.mxu0 %v2814
        %3176 = vmatprep.subr.bf16.mxu0 %v2819
        %3177 = vmatpush1.bf16.msra.mxu0 %v2818
        %3178 = vmatprep.subr.bf16.mxu0 %v2823
        %3179 = vmatpush1.bf16.msra.mxu0 %v2822
        %3180 = vmatprep.subr.bf16.mxu0 %v2827
        %3181 = vmatpush1.bf16.msra.mxu0 %v2826
        %3182 = vmatprep.mubr.bf16.mxu0 %v1759
        %3183 = vmatmul.mubr.bf16.gmra.mrb[0].mxu0 %v1758
        %v3184 = vpop.f32.mrb[0].mxu0
        %v3185 = vadd.f32 0.0, %v3184
        %v3186 = vpop.f32.mrb[0].mxu0
        %v3187 = vadd.f32 0.0, %v3186
        %v3188 = vpop.f32.mrb[0].mxu0
        %v3189 = vadd.f32 0.0, %v3188
        %v3190 = vpop.f32.mrb[0].mxu0
        %v3191 = vadd.f32 0.0, %v3190
        %3192 = vmatprep.mubr.bf16.mxu0 %v1765
        %3193 = vmatmul.mubr.bf16.gmra.mrb[0].mxu0 %v1764
        %v3194 = vpop.f32.mrb[0].mxu0
        %v3195 = vadd.f32 0.0, %v3194
        %v3196 = vpop.f32.mrb[0].mxu0
        %v3197 = vadd.f32 0.0, %v3196
        %v3198 = vpop.f32.mrb[0].mxu0
        %v3199 = vadd.f32 0.0, %v3198
        %v3200 = vpop.f32.mrb[0].mxu0
        %v3201 = vadd.f32 0.0, %v3200
        %3202 = vmatprep.mubr.bf16.mxu0 %v1771
        %3203 = vmatmul.mubr.bf16.gmra.mrb[0].mxu0 %v1770
        %v3204 = vpop.f32.mrb[0].mxu0
        %v3205 = vadd.f32 0.0, %v3204
        %v3206 = vpop.f32.mrb[0].mxu0
        %v3207 = vadd.f32 0.0, %v3206
        %v3208 = vpop.f32.mrb[0].mxu0
        %v3209 = vadd.f32 0.0, %v3208
        %v3210 = vpop.f32.mrb[0].mxu0
        %v3211 = vadd.f32 0.0, %v3210
        %3212 = vmatprep.mubr.bf16.mxu0 %v1777
        %3213 = vmatmul.mubr.bf16.gmra.mrb[0].mxu0 %v1776
        %v3214 = vpop.f32.mrb[0].mxu0
        %v3215 = vadd.f32 0.0, %v3214
        %v3216 = vpop.f32.mrb[0].mxu0
        %v3217 = vadd.f32 0.0, %v3216
        %v3218 = vpop.f32.mrb[0].mxu0
        %v3219 = vadd.f32 0.0, %v3218
        %v3220 = vpop.f32.mrb[0].mxu0
        %v3221 = vadd.f32 0.0, %v3220
        %3222 = vmatprep.mubr.bf16.mxu0 %v1783
        %3223 = vmatmul.mubr.bf16.gmra.mrb[0].mxu0 %v1782
        %v3224 = vpop.f32.mrb[0].mxu0
        %v3225 = vadd.f32 0.0, %v3224
        %v3226 = vpop.f32.mrb[0].mxu0
        %v3227 = vadd.f32 0.0, %v3226
        %v3228 = vpop.f32.mrb[0].mxu0
        %v3229 = vadd.f32 0.0, %v3228
        %v3230 = vpop.f32.mrb[0].mxu0
        %v3231 = vadd.f32 0.0, %v3230
        %3232 = vmatprep.mubr.bf16.mxu0 %v1789
        %3233 = vmatmul.mubr.bf16.gmra.mrb[0].mxu0 %v1788
        %v3234 = vpop.f32.mrb[0].mxu0
        %v3235 = vadd.f32 0.0, %v3234
        %v3236 = vpop.f32.mrb[0].mxu0
        %v3237 = vadd.f32 0.0, %v3236
        %v3238 = vpop.f32.mrb[0].mxu0
        %v3239 = vadd.f32 0.0, %v3238
        %v3240 = vpop.f32.mrb[0].mxu0
        %v3241 = vadd.f32 0.0, %v3240
        %3242 = vmatprep.mubr.bf16.mxu0 %v1795
        %3243 = vmatmul.mubr.bf16.gmra.mrb[0].mxu0 %v1794
        %v3244 = vpop.f32.mrb[0].mxu0
        %v3245 = vadd.f32 0.0, %v3244
        %v3246 = vpop.f32.mrb[0].mxu0
        %v3247 = vadd.f32 0.0, %v3246
        %v3248 = vpop.f32.mrb[0].mxu0
        %v3249 = vadd.f32 0.0, %v3248
        %v3250 = vpop.f32.mrb[0].mxu0
        %v3251 = vadd.f32 0.0, %v3250
        %3252 = vmatprep.mubr.bf16.mxu0 %v1801
        %3253 = vmatmul.mubr.bf16.gmra.mrb[0].mxu0 %v1800
        %v3254 = vpop.f32.mrb[0].mxu0
        %v3255 = vadd.f32 0.0, %v3254
        %v3256 = vpop.f32.mrb[0].mxu0
        %v3257 = vadd.f32 0.0, %v3256
        %v3258 = vpop.f32.mrb[0].mxu0
        %v3259 = vadd.f32 0.0, %v3258
        %v3260 = vpop.f32.mrb[0].mxu0
        %v3261 = vadd.f32 0.0, %v3260
        %3262 = vmatprep.mubr.bf16.mxu0 %v1807
        %3263 = vmatmul.mubr.bf16.gmra.mrb[0].mxu0 %v1806
        %v3264 = vpop.f32.mrb[0].mxu0
        %v3265 = vadd.f32 0.0, %v3264
        %v3266 = vpop.f32.mrb[0].mxu0
        %v3267 = vadd.f32 0.0, %v3266
        %v3268 = vpop.f32.mrb[0].mxu0
        %v3269 = vadd.f32 0.0, %v3268
        %v3270 = vpop.f32.mrb[0].mxu0
        %v3271 = vadd.f32 0.0, %v3270
        %3272 = vmatprep.mubr.bf16.mxu0 %v1813
        %3273 = vmatmul.mubr.bf16.gmra.mrb[0].mxu0 %v1812
        %v3274 = vpop.f32.mrb[0].mxu0
        %v3275 = vadd.f32 0.0, %v3274
        %v3276 = vpop.f32.mrb[0].mxu0
        %v3277 = vadd.f32 0.0, %v3276
        %v3278 = vpop.f32.mrb[0].mxu0
        %v3279 = vadd.f32 0.0, %v3278
        %v3280 = vpop.f32.mrb[0].mxu0
        %v3281 = vadd.f32 0.0, %v3280
        %3282 = vmatprep.mubr.bf16.mxu0 %v1819
        %3283 = vmatmul.mubr.bf16.gmra.mrb[0].mxu0 %v1818
        %v3284 = vpop.f32.mrb[0].mxu0
        %v3285 = vadd.f32 0.0, %v3284
        %v3286 = vpop.f32.mrb[0].mxu0
        %v3287 = vadd.f32 0.0, %v3286
        %v3288 = vpop.f32.mrb[0].mxu0
        %v3289 = vadd.f32 0.0, %v3288
        %v3290 = vpop.f32.mrb[0].mxu0
        %v3291 = vadd.f32 0.0, %v3290
        %3292 = vmatprep.mubr.bf16.mxu0 %v1825
        %3293 = vmatmul.mubr.bf16.gmra.mrb[0].mxu0 %v1824
        %v3294 = vpop.f32.mrb[0].mxu0
        %v3295 = vadd.f32 0.0, %v3294
        %v3296 = vpop.f32.mrb[0].mxu0
        %v3297 = vadd.f32 0.0, %v3296
        %v3298 = vpop.f32.mrb[0].mxu0
        %v3299 = vadd.f32 0.0, %v3298
        %v3300 = vpop.f32.mrb[0].mxu0
        %v3301 = vadd.f32 0.0, %v3300
        %3302 = vmatprep.mubr.bf16.mxu0 %v1831
        %3303 = vmatmul.mubr.bf16.gmra.mrb[0].mxu0 %v1830
        %v3304 = vpop.f32.mrb[0].mxu0
        %v3305 = vadd.f32 0.0, %v3304
        %v3306 = vpop.f32.mrb[0].mxu0
        %v3307 = vadd.f32 0.0, %v3306
        %v3308 = vpop.f32.mrb[0].mxu0
        %v3309 = vadd.f32 0.0, %v3308
        %v3310 = vpop.f32.mrb[0].mxu0
        %v3311 = vadd.f32 0.0, %v3310
        %3312 = vmatprep.mubr.bf16.mxu0 %v1837
        %3313 = vmatmul.mubr.bf16.gmra.mrb[0].mxu0 %v1836
        %v3314 = vpop.f32.mrb[0].mxu0
        %v3315 = vadd.f32 0.0, %v3314
        %v3316 = vpop.f32.mrb[0].mxu0
        %v3317 = vadd.f32 0.0, %v3316
        %v3318 = vpop.f32.mrb[0].mxu0
        %v3319 = vadd.f32 0.0, %v3318
        %v3320 = vpop.f32.mrb[0].mxu0
        %v3321 = vadd.f32 0.0, %v3320
        %3322 = vmatprep.mubr.bf16.mxu0 %v1843
        %3323 = vmatmul.mubr.bf16.gmra.mrb[0].mxu0 %v1842
        %v3324 = vpop.f32.mrb[0].mxu0
        %v3325 = vadd.f32 0.0, %v3324
        %v3326 = vpop.f32.mrb[0].mxu0
        %v3327 = vadd.f32 0.0, %v3326
        %v3328 = vpop.f32.mrb[0].mxu0
        %v3329 = vadd.f32 0.0, %v3328
        %v3330 = vpop.f32.mrb[0].mxu0
        %v3331 = vadd.f32 0.0, %v3330
        %3332 = vmatprep.mubr.bf16.mxu0 %v1849
        %3333 = vmatmul.mubr.bf16.gmra.mrb[0].mxu0 %v1848
        %v3334 = vpop.f32.mrb[0].mxu0
        %v3335 = vadd.f32 0.0, %v3334
        %v3336 = vpop.f32.mrb[0].mxu0
        %v3337 = vadd.f32 0.0, %v3336
        %v3338 = vpop.f32.mrb[0].mxu0
        %v3339 = vadd.f32 0.0, %v3338
        %v3340 = vpop.f32.mrb[0].mxu0
        %v3341 = vadd.f32 0.0, %v3340
        %3342 = vmatprep.mubr.bf16.mxu0 %v1855
        %3343 = vmatmul.mubr.bf16.gmra.mrb[0].mxu0 %v1854
        %v3344 = vpop.f32.mrb[0].mxu0
        %v3345 = vadd.f32 0.0, %v3344
        %v3346 = vpop.f32.mrb[0].mxu0
        %v3347 = vadd.f32 0.0, %v3346
        %v3348 = vpop.f32.mrb[0].mxu0
        %v3349 = vadd.f32 0.0, %v3348
        %v3350 = vpop.f32.mrb[0].mxu0
        %v3351 = vadd.f32 0.0, %v3350
        %3352 = vmatprep.mubr.bf16.mxu0 %v1861
        %3353 = vmatmul.mubr.bf16.gmra.mrb[0].mxu0 %v1860
        %v3354 = vpop.f32.mrb[0].mxu0
        %v3355 = vadd.f32 0.0, %v3354
        %v3356 = vpop.f32.mrb[0].mxu0
        %v3357 = vadd.f32 0.0, %v3356
        %v3358 = vpop.f32.mrb[0].mxu0
        %v3359 = vadd.f32 0.0, %v3358
        %v3360 = vpop.f32.mrb[0].mxu0
        %v3361 = vadd.f32 0.0, %v3360
        %3362 = vmatprep.mubr.bf16.mxu0 %v1867
        %3363 = vmatmul.mubr.bf16.gmra.mrb[0].mxu0 %v1866
        %v3364 = vpop.f32.mrb[0].mxu0
        %v3365 = vadd.f32 0.0, %v3364
        %v3366 = vpop.f32.mrb[0].mxu0
        %v3367 = vadd.f32 0.0, %v3366
        %v3368 = vpop.f32.mrb[0].mxu0
        %v3369 = vadd.f32 0.0, %v3368
        %v3370 = vpop.f32.mrb[0].mxu0
        %v3371 = vadd.f32 0.0, %v3370
        %3372 = vmatprep.mubr.bf16.mxu0 %v1873
        %3373 = vmatmul.mubr.bf16.gmra.mrb[0].mxu0 %v1872
        %v3374 = vpop.f32.mrb[0].mxu0
        %v3375 = vadd.f32 0.0, %v3374
        %v3376 = vpop.f32.mrb[0].mxu0
        %v3377 = vadd.f32 0.0, %v3376
        %v3378 = vpop.f32.mrb[0].mxu0
        %v3379 = vadd.f32 0.0, %v3378
        %v3380 = vpop.f32.mrb[0].mxu0
        %v3381 = vadd.f32 0.0, %v3380
        %3382 = vmatprep.mubr.bf16.mxu0 %v1879
        %3383 = vmatmul.mubr.bf16.gmra.mrb[0].mxu0 %v1878
        %v3384 = vpop.f32.mrb[0].mxu0
        %v3385 = vadd.f32 0.0, %v3384
        %v3386 = vpop.f32.mrb[0].mxu0
        %v3387 = vadd.f32 0.0, %v3386
        %v3388 = vpop.f32.mrb[0].mxu0
        %v3389 = vadd.f32 0.0, %v3388
        %v3390 = vpop.f32.mrb[0].mxu0
        %v3391 = vadd.f32 0.0, %v3390
        %3392 = vmatprep.mubr.bf16.mxu0 %v1885
        %3393 = vmatmul.mubr.bf16.gmra.mrb[0].mxu0 %v1884
        %v3394 = vpop.f32.mrb[0].mxu0
        %v3395 = vadd.f32 0.0, %v3394
        %v3396 = vpop.f32.mrb[0].mxu0
        %v3397 = vadd.f32 0.0, %v3396
        %v3398 = vpop.f32.mrb[0].mxu0
        %v3399 = vadd.f32 0.0, %v3398
        %v3400 = vpop.f32.mrb[0].mxu0
        %v3401 = vadd.f32 0.0, %v3400
        %3402 = vmatprep.mubr.bf16.mxu0 %v1891
        %3403 = vmatmul.mubr.bf16.gmra.mrb[0].mxu0 %v1890
        %v3404 = vpop.f32.mrb[0].mxu0
        %v3405 = vadd.f32 0.0, %v3404
        %v3406 = vpop.f32.mrb[0].mxu0
        %v3407 = vadd.f32 0.0, %v3406
        %v3408 = vpop.f32.mrb[0].mxu0
        %v3409 = vadd.f32 0.0, %v3408
        %v3410 = vpop.f32.mrb[0].mxu0
        %v3411 = vadd.f32 0.0, %v3410
        %3412 = vmatprep.mubr.bf16.mxu0 %v1897
        %3413 = vmatmul.mubr.bf16.gmra.mrb[0].mxu0 %v1896
        %v3414 = vpop.f32.mrb[0].mxu0
        %v3415 = vadd.f32 0.0, %v3414
        %v3416 = vpop.f32.mrb[0].mxu0
        %v3417 = vadd.f32 0.0, %v3416
        %v3418 = vpop.f32.mrb[0].mxu0
        %v3419 = vadd.f32 0.0, %v3418
        %v3420 = vpop.f32.mrb[0].mxu0
        %v3421 = vadd.f32 0.0, %v3420
        %3422 = vmatprep.mubr.bf16.mxu0 %v1903
        %3423 = vmatmul.mubr.bf16.gmra.mrb[0].mxu0 %v1902
        %v3424 = vpop.f32.mrb[0].mxu0
        %v3425 = vadd.f32 0.0, %v3424
        %v3426 = vpop.f32.mrb[0].mxu0
        %v3427 = vadd.f32 0.0, %v3426
        %v3428 = vpop.f32.mrb[0].mxu0
        %v3429 = vadd.f32 0.0, %v3428
        %v3430 = vpop.f32.mrb[0].mxu0
        %v3431 = vadd.f32 0.0, %v3430
        %3432 = vmatprep.mubr.bf16.mxu0 %v1909
        %3433 = vmatmul.mubr.bf16.gmra.mrb[0].mxu0 %v1908
        %v3434 = vpop.f32.mrb[0].mxu0
        %v3435 = vadd.f32 0.0, %v3434
        %v3436 = vpop.f32.mrb[0].mxu0
        %v3437 = vadd.f32 0.0, %v3436
        %v3438 = vpop.f32.mrb[0].mxu0
        %v3439 = vadd.f32 0.0, %v3438
        %v3440 = vpop.f32.mrb[0].mxu0
        %v3441 = vadd.f32 0.0, %v3440
        %3442 = vmatprep.mubr.bf16.mxu0 %v1915
        %3443 = vmatmul.mubr.bf16.gmra.mrb[0].mxu0 %v1914
        %v3444 = vpop.f32.mrb[0].mxu0
        %v3445 = vadd.f32 0.0, %v3444
        %v3446 = vpop.f32.mrb[0].mxu0
        %v3447 = vadd.f32 0.0, %v3446
        %v3448 = vpop.f32.mrb[0].mxu0
        %v3449 = vadd.f32 0.0, %v3448
        %v3450 = vpop.f32.mrb[0].mxu0
        %v3451 = vadd.f32 0.0, %v3450
        %3452 = vmatprep.mubr.bf16.mxu0 %v1921
        %3453 = vmatmul.mubr.bf16.gmra.mrb[0].mxu0 %v1920
        %v3454 = vpop.f32.mrb[0].mxu0
        %v3455 = vadd.f32 0.0, %v3454
        %v3456 = vpop.f32.mrb[0].mxu0
        %v3457 = vadd.f32 0.0, %v3456
        %v3458 = vpop.f32.mrb[0].mxu0
        %v3459 = vadd.f32 0.0, %v3458
        %v3460 = vpop.f32.mrb[0].mxu0
        %v3461 = vadd.f32 0.0, %v3460
        %3462 = vmatprep.mubr.bf16.mxu0 %v1927
        %3463 = vmatmul.mubr.bf16.gmra.mrb[0].mxu0 %v1926
        %v3464 = vpop.f32.mrb[0].mxu0
        %v3465 = vadd.f32 0.0, %v3464
        %v3466 = vpop.f32.mrb[0].mxu0
        %v3467 = vadd.f32 0.0, %v3466
        %v3468 = vpop.f32.mrb[0].mxu0
        %v3469 = vadd.f32 0.0, %v3468
        %v3470 = vpop.f32.mrb[0].mxu0
        %v3471 = vadd.f32 0.0, %v3470
        %3472 = vmatprep.mubr.bf16.mxu0 %v1933
        %3473 = vmatmul.mubr.bf16.gmra.mrb[0].mxu0 %v1932
        %v3474 = vpop.f32.mrb[0].mxu0
        %v3475 = vadd.f32 0.0, %v3474
        %v3476 = vpop.f32.mrb[0].mxu0
        %v3477 = vadd.f32 0.0, %v3476
        %v3478 = vpop.f32.mrb[0].mxu0
        %v3479 = vadd.f32 0.0, %v3478
        %v3480 = vpop.f32.mrb[0].mxu0
        %v3481 = vadd.f32 0.0, %v3480
        %3482 = vmatprep.mubr.bf16.mxu0 %v1939
        %3483 = vmatmul.mubr.bf16.gmra.mrb[0].mxu0 %v1938
        %v3484 = vpop.f32.mrb[0].mxu0
        %v3485 = vadd.f32 0.0, %v3484
        %v3486 = vpop.f32.mrb[0].mxu0
        %v3487 = vadd.f32 0.0, %v3486
        %v3488 = vpop.f32.mrb[0].mxu0
        %v3489 = vadd.f32 0.0, %v3488
        %v3490 = vpop.f32.mrb[0].mxu0
        %v3491 = vadd.f32 0.0, %v3490
        %3492 = vmatprep.mubr.bf16.mxu0 %v1945
        %3493 = vmatmul.mubr.bf16.gmra.mrb[0].mxu0 %v1944
        %v3494 = vpop.f32.mrb[0].mxu0
        %v3495 = vadd.f32 0.0, %v3494
        %v3496 = vpop.f32.mrb[0].mxu0
        %v3497 = vadd.f32 0.0, %v3496
        %v3498 = vpop.f32.mrb[0].mxu0
        %v3499 = vadd.f32 0.0, %v3498
        %v3500 = vpop.f32.mrb[0].mxu0
        %v3501 = vadd.f32 0.0, %v3500
        %3502 = vmatprep.mubr.bf16.mxu0 %v1951
        %3503 = vmatmul.mubr.bf16.gmra.mrb[0].mxu0 %v1950
        %v3504 = vpop.f32.mrb[0].mxu0
        %v3505 = vadd.f32 0.0, %v3504
        %v3506 = vpop.f32.mrb[0].mxu0
        %v3507 = vadd.f32 0.0, %v3506
        %v3508 = vpop.f32.mrb[0].mxu0
        %v3509 = vadd.f32 0.0, %v3508
        %v3510 = vpop.f32.mrb[0].mxu0
        %v3511 = vadd.f32 0.0, %v3510
        %3512 = vmatprep.mubr.bf16.mxu0 %v1957
        %3513 = vmatmul.mubr.bf16.gmra.mrb[0].mxu0 %v1956
        %v3514 = vpop.f32.mrb[0].mxu0
        %v3515 = vadd.f32 0.0, %v3514
        %v3516 = vpop.f32.mrb[0].mxu0
        %v3517 = vadd.f32 0.0, %v3516
        %v3518 = vpop.f32.mrb[0].mxu0
        %v3519 = vadd.f32 0.0, %v3518
        %v3520 = vpop.f32.mrb[0].mxu0
        %v3521 = vadd.f32 0.0, %v3520
        %3522 = vmatprep.mubr.bf16.mxu0 %v1963
        %3523 = vmatmul.mubr.bf16.gmra.mrb[0].mxu0 %v1962
        %v3524 = vpop.f32.mrb[0].mxu0
        %v3525 = vadd.f32 0.0, %v3524
        %v3526 = vpop.f32.mrb[0].mxu0
        %v3527 = vadd.f32 0.0, %v3526
        %v3528 = vpop.f32.mrb[0].mxu0
        %v3529 = vadd.f32 0.0, %v3528
        %v3530 = vpop.f32.mrb[0].mxu0
        %v3531 = vadd.f32 0.0, %v3530
        %3532 = vmatprep.mubr.bf16.mxu0 %v1969
        %3533 = vmatmul.mubr.bf16.gmra.mrb[0].mxu0 %v1968
        %v3534 = vpop.f32.mrb[0].mxu0
        %v3535 = vadd.f32 0.0, %v3534
        %v3536 = vpop.f32.mrb[0].mxu0
        %v3537 = vadd.f32 0.0, %v3536
        %v3538 = vpop.f32.mrb[0].mxu0
        %v3539 = vadd.f32 0.0, %v3538
        %v3540 = vpop.f32.mrb[0].mxu0
        %v3541 = vadd.f32 0.0, %v3540
        %3542 = vdwg.mxu0
        %3543 = vmatprep.subr.bf16.mxu0 %v2831
        %3544 = vmatpush1.bf16.msra.mxu0 %v2830
        %3545 = vmatprep.subr.bf16.mxu0 %v2835
        %3546 = vmatpush1.bf16.msra.mxu0 %v2834
        %3547 = vmatprep.subr.bf16.mxu0 %v2839
        %3548 = vmatpush1.bf16.msra.mxu0 %v2838
        %3549 = vmatprep.subr.bf16.mxu0 %v2843
        %3550 = vmatpush1.bf16.msra.mxu0 %v2842
        %3551 = vmatprep.subr.bf16.mxu0 %v2847
        %3552 = vmatpush1.bf16.msra.mxu0 %v2846
        %3553 = vmatprep.subr.bf16.mxu0 %v2851
        %3554 = vmatpush1.bf16.msra.mxu0 %v2850
        %3555 = vmatprep.subr.bf16.mxu0 %v2855
        %3556 = vmatpush1.bf16.msra.mxu0 %v2854
        %3557 = vmatprep.subr.bf16.mxu0 %v2859
        %3558 = vmatpush1.bf16.msra.mxu0 %v2858
        %3559 = vmatprep.subr.bf16.mxu0 %v2863
        %3560 = vmatpush1.bf16.msra.mxu0 %v2862
        %3561 = vmatprep.subr.bf16.mxu0 %v2867
        %3562 = vmatpush1.bf16.msra.mxu0 %v2866
        %3563 = vmatprep.subr.bf16.mxu0 %v2871
        %3564 = vmatpush1.bf16.msra.mxu0 %v2870
        %3565 = vmatprep.subr.bf16.mxu0 %v2875
        %3566 = vmatpush1.bf16.msra.mxu0 %v2874
        %3567 = vmatprep.subr.bf16.mxu0 %v2879
        %3568 = vmatpush1.bf16.msra.mxu0 %v2878
        %3569 = vmatprep.subr.bf16.mxu0 %v2883
        %3570 = vmatpush1.bf16.msra.mxu0 %v2882
        %3571 = vmatprep.subr.bf16.mxu0 %v2887
        %3572 = vmatpush1.bf16.msra.mxu0 %v2886
        %3573 = vmatprep.subr.bf16.mxu0 %v2891
        %3574 = vmatpush1.bf16.msra.mxu0 %v2890
        %3575 = vmatprep.mubr.bf16.mxu0 %v1761
        %3576 = vmatmul.mubr.bf16.gmra.mrb[0].mxu0 %v1760
        %v3577 = vpop.f32.mrb[0].mxu0
        %v3578 = vadd.f32 %v3185, %v3577
        %v3579 = vpop.f32.mrb[0].mxu0
        %v3580 = vadd.f32 %v3187, %v3579
        %v3581 = vpop.f32.mrb[0].mxu0
        %v3582 = vadd.f32 %v3189, %v3581
        %v3583 = vpop.f32.mrb[0].mxu0
        %v3584 = vadd.f32 %v3191, %v3583
        %3585 = vmatprep.mubr.bf16.mxu0 %v1767
        %3586 = vmatmul.mubr.bf16.gmra.mrb[0].mxu0 %v1766
        %v3587 = vpop.f32.mrb[0].mxu0
        %v3588 = vadd.f32 %v3195, %v3587
        %v3589 = vpop.f32.mrb[0].mxu0
        %v3590 = vadd.f32 %v3197, %v3589
        %v3591 = vpop.f32.mrb[0].mxu0
        %v3592 = vadd.f32 %v3199, %v3591
        %v3593 = vpop.f32.mrb[0].mxu0
        %v3594 = vadd.f32 %v3201, %v3593
        %3595 = vmatprep.mubr.bf16.mxu0 %v1773
        %3596 = vmatmul.mubr.bf16.gmra.mrb[0].mxu0 %v1772
        %v3597 = vpop.f32.mrb[0].mxu0
        %v3598 = vadd.f32 %v3205, %v3597
        %v3599 = vpop.f32.mrb[0].mxu0
        %v3600 = vadd.f32 %v3207, %v3599
        %v3601 = vpop.f32.mrb[0].mxu0
        %v3602 = vadd.f32 %v3209, %v3601
        %v3603 = vpop.f32.mrb[0].mxu0
        %v3604 = vadd.f32 %v3211, %v3603
        %3605 = vmatprep.mubr.bf16.mxu0 %v1779
        %3606 = vmatmul.mubr.bf16.gmra.mrb[0].mxu0 %v1778
        %v3607 = vpop.f32.mrb[0].mxu0
        %v3608 = vadd.f32 %v3215, %v3607
        %v3609 = vpop.f32.mrb[0].mxu0
        %v3610 = vadd.f32 %v3217, %v3609
        %v3611 = vpop.f32.mrb[0].mxu0
        %v3612 = vadd.f32 %v3219, %v3611
        %v3613 = vpop.f32.mrb[0].mxu0
        %v3614 = vadd.f32 %v3221, %v3613
        %3615 = vmatprep.mubr.bf16.mxu0 %v1785
        %3616 = vmatmul.mubr.bf16.gmra.mrb[0].mxu0 %v1784
        %v3617 = vpop.f32.mrb[0].mxu0
        %v3618 = vadd.f32 %v3225, %v3617
        %v3619 = vpop.f32.mrb[0].mxu0
        %v3620 = vadd.f32 %v3227, %v3619
        %v3621 = vpop.f32.mrb[0].mxu0
        %v3622 = vadd.f32 %v3229, %v3621
        %v3623 = vpop.f32.mrb[0].mxu0
        %v3624 = vadd.f32 %v3231, %v3623
        %3625 = vmatprep.mubr.bf16.mxu0 %v1791
        %3626 = vmatmul.mubr.bf16.gmra.mrb[0].mxu0 %v1790
        %v3627 = vpop.f32.mrb[0].mxu0
        %v3628 = vadd.f32 %v3235, %v3627
        %v3629 = vpop.f32.mrb[0].mxu0
        %v3630 = vadd.f32 %v3237, %v3629
        %v3631 = vpop.f32.mrb[0].mxu0
        %v3632 = vadd.f32 %v3239, %v3631
        %v3633 = vpop.f32.mrb[0].mxu0
        %v3634 = vadd.f32 %v3241, %v3633
        %3635 = vmatprep.mubr.bf16.mxu0 %v1797
        %3636 = vmatmul.mubr.bf16.gmra.mrb[0].mxu0 %v1796
        %v3637 = vpop.f32.mrb[0].mxu0
        %v3638 = vadd.f32 %v3245, %v3637
        %v3639 = vpop.f32.mrb[0].mxu0
        %v3640 = vadd.f32 %v3247, %v3639
        %v3641 = vpop.f32.mrb[0].mxu0
        %v3642 = vadd.f32 %v3249, %v3641
        %v3643 = vpop.f32.mrb[0].mxu0
        %v3644 = vadd.f32 %v3251, %v3643
        %3645 = vmatprep.mubr.bf16.mxu0 %v1803
        %3646 = vmatmul.mubr.bf16.gmra.mrb[0].mxu0 %v1802
        %v3647 = vpop.f32.mrb[0].mxu0
        %v3648 = vadd.f32 %v3255, %v3647
        %v3649 = vpop.f32.mrb[0].mxu0
        %v3650 = vadd.f32 %v3257, %v3649
        %v3651 = vpop.f32.mrb[0].mxu0
        %v3652 = vadd.f32 %v3259, %v3651
        %v3653 = vpop.f32.mrb[0].mxu0
        %v3654 = vadd.f32 %v3261, %v3653
        %3655 = vmatprep.mubr.bf16.mxu0 %v1809
        %3656 = vmatmul.mubr.bf16.gmra.mrb[0].mxu0 %v1808
        %v3657 = vpop.f32.mrb[0].mxu0
        %v3658 = vadd.f32 %v3265, %v3657
        %v3659 = vpop.f32.mrb[0].mxu0
        %v3660 = vadd.f32 %v3267, %v3659
        %v3661 = vpop.f32.mrb[0].mxu0
        %v3662 = vadd.f32 %v3269, %v3661
        %v3663 = vpop.f32.mrb[0].mxu0
        %v3664 = vadd.f32 %v3271, %v3663
        %3665 = vmatprep.mubr.bf16.mxu0 %v1815
        %3666 = vmatmul.mubr.bf16.gmra.mrb[0].mxu0 %v1814
        %v3667 = vpop.f32.mrb[0].mxu0
        %v3668 = vadd.f32 %v3275, %v3667
        %v3669 = vpop.f32.mrb[0].mxu0
        %v3670 = vadd.f32 %v3277, %v3669
        %v3671 = vpop.f32.mrb[0].mxu0
        %v3672 = vadd.f32 %v3279, %v3671
        %v3673 = vpop.f32.mrb[0].mxu0
        %v3674 = vadd.f32 %v3281, %v3673
        %3675 = vmatprep.mubr.bf16.mxu0 %v1821
        %3676 = vmatmul.mubr.bf16.gmra.mrb[0].mxu0 %v1820
        %v3677 = vpop.f32.mrb[0].mxu0
        %v3678 = vadd.f32 %v3285, %v3677
        %v3679 = vpop.f32.mrb[0].mxu0
        %v3680 = vadd.f32 %v3287, %v3679
        %v3681 = vpop.f32.mrb[0].mxu0
        %v3682 = vadd.f32 %v3289, %v3681
        %v3683 = vpop.f32.mrb[0].mxu0
        %v3684 = vadd.f32 %v3291, %v3683
        %3685 = vmatprep.mubr.bf16.mxu0 %v1827
        %3686 = vmatmul.mubr.bf16.gmra.mrb[0].mxu0 %v1826
        %v3687 = vpop.f32.mrb[0].mxu0
        %v3688 = vadd.f32 %v3295, %v3687
        %v3689 = vpop.f32.mrb[0].mxu0
        %v3690 = vadd.f32 %v3297, %v3689
        %v3691 = vpop.f32.mrb[0].mxu0
        %v3692 = vadd.f32 %v3299, %v3691
        %v3693 = vpop.f32.mrb[0].mxu0
        %v3694 = vadd.f32 %v3301, %v3693
        %3695 = vmatprep.mubr.bf16.mxu0 %v1833
        %3696 = vmatmul.mubr.bf16.gmra.mrb[0].mxu0 %v1832
        %v3697 = vpop.f32.mrb[0].mxu0
        %v3698 = vadd.f32 %v3305, %v3697
        %v3699 = vpop.f32.mrb[0].mxu0
        %v3700 = vadd.f32 %v3307, %v3699
        %v3701 = vpop.f32.mrb[0].mxu0
        %v3702 = vadd.f32 %v3309, %v3701
        %v3703 = vpop.f32.mrb[0].mxu0
        %v3704 = vadd.f32 %v3311, %v3703
        %3705 = vmatprep.mubr.bf16.mxu0 %v1839
        %3706 = vmatmul.mubr.bf16.gmra.mrb[0].mxu0 %v1838
        %v3707 = vpop.f32.mrb[0].mxu0
        %v3708 = vadd.f32 %v3315, %v3707
        %v3709 = vpop.f32.mrb[0].mxu0
        %v3710 = vadd.f32 %v3317, %v3709
        %v3711 = vpop.f32.mrb[0].mxu0
        %v3712 = vadd.f32 %v3319, %v3711
        %v3713 = vpop.f32.mrb[0].mxu0
        %v3714 = vadd.f32 %v3321, %v3713
        %3715 = vmatprep.mubr.bf16.mxu0 %v1845
        %3716 = vmatmul.mubr.bf16.gmra.mrb[0].mxu0 %v1844
        %v3717 = vpop.f32.mrb[0].mxu0
        %v3718 = vadd.f32 %v3325, %v3717
        %v3719 = vpop.f32.mrb[0].mxu0
        %v3720 = vadd.f32 %v3327, %v3719
        %v3721 = vpop.f32.mrb[0].mxu0
        %v3722 = vadd.f32 %v3329, %v3721
        %v3723 = vpop.f32.mrb[0].mxu0
        %v3724 = vadd.f32 %v3331, %v3723
        %3725 = vmatprep.mubr.bf16.mxu0 %v1851
        %3726 = vmatmul.mubr.bf16.gmra.mrb[0].mxu0 %v1850
        %v3727 = vpop.f32.mrb[0].mxu0
        %v3728 = vadd.f32 %v3335, %v3727
        %v3729 = vpop.f32.mrb[0].mxu0
        %v3730 = vadd.f32 %v3337, %v3729
        %v3731 = vpop.f32.mrb[0].mxu0
        %v3732 = vadd.f32 %v3339, %v3731
        %v3733 = vpop.f32.mrb[0].mxu0
        %v3734 = vadd.f32 %v3341, %v3733
        %3735 = vmatprep.mubr.bf16.mxu0 %v1857
        %3736 = vmatmul.mubr.bf16.gmra.mrb[0].mxu0 %v1856
        %v3737 = vpop.f32.mrb[0].mxu0
        %v3738 = vadd.f32 %v3345, %v3737
        %v3739 = vpop.f32.mrb[0].mxu0
        %v3740 = vadd.f32 %v3347, %v3739
        %v3741 = vpop.f32.mrb[0].mxu0
        %v3742 = vadd.f32 %v3349, %v3741
        %v3743 = vpop.f32.mrb[0].mxu0
        %v3744 = vadd.f32 %v3351, %v3743
        %3745 = vmatprep.mubr.bf16.mxu0 %v1863
        %3746 = vmatmul.mubr.bf16.gmra.mrb[0].mxu0 %v1862
        %v3747 = vpop.f32.mrb[0].mxu0
        %v3748 = vadd.f32 %v3355, %v3747
        %v3749 = vpop.f32.mrb[0].mxu0
        %v3750 = vadd.f32 %v3357, %v3749
        %v3751 = vpop.f32.mrb[0].mxu0
        %v3752 = vadd.f32 %v3359, %v3751
        %v3753 = vpop.f32.mrb[0].mxu0
        %v3754 = vadd.f32 %v3361, %v3753
        %3755 = vmatprep.mubr.bf16.mxu0 %v1869
        %3756 = vmatmul.mubr.bf16.gmra.mrb[0].mxu0 %v1868
        %v3757 = vpop.f32.mrb[0].mxu0
        %v3758 = vadd.f32 %v3365, %v3757
        %v3759 = vpop.f32.mrb[0].mxu0
        %v3760 = vadd.f32 %v3367, %v3759
        %v3761 = vpop.f32.mrb[0].mxu0
        %v3762 = vadd.f32 %v3369, %v3761
        %v3763 = vpop.f32.mrb[0].mxu0
        %v3764 = vadd.f32 %v3371, %v3763
        %3765 = vmatprep.mubr.bf16.mxu0 %v1875
        %3766 = vmatmul.mubr.bf16.gmra.mrb[0].mxu0 %v1874
        %v3767 = vpop.f32.mrb[0].mxu0
        %v3768 = vadd.f32 %v3375, %v3767
        %v3769 = vpop.f32.mrb[0].mxu0
        %v3770 = vadd.f32 %v3377, %v3769
        %v3771 = vpop.f32.mrb[0].mxu0
        %v3772 = vadd.f32 %v3379, %v3771
        %v3773 = vpop.f32.mrb[0].mxu0
        %v3774 = vadd.f32 %v3381, %v3773
        %3775 = vmatprep.mubr.bf16.mxu0 %v1881
        %3776 = vmatmul.mubr.bf16.gmra.mrb[0].mxu0 %v1880
        %v3777 = vpop.f32.mrb[0].mxu0
        %v3778 = vadd.f32 %v3385, %v3777
        %v3779 = vpop.f32.mrb[0].mxu0
        %v3780 = vadd.f32 %v3387, %v3779
        %v3781 = vpop.f32.mrb[0].mxu0
        %v3782 = vadd.f32 %v3389, %v3781
        %v3783 = vpop.f32.mrb[0].mxu0
        %v3784 = vadd.f32 %v3391, %v3783
        %3785 = vmatprep.mubr.bf16.mxu0 %v1887
        %3786 = vmatmul.mubr.bf16.gmra.mrb[0].mxu0 %v1886
        %v3787 = vpop.f32.mrb[0].mxu0
        %v3788 = vadd.f32 %v3395, %v3787
        %v3789 = vpop.f32.mrb[0].mxu0
        %v3790 = vadd.f32 %v3397, %v3789
        %v3791 = vpop.f32.mrb[0].mxu0
        %v3792 = vadd.f32 %v3399, %v3791
        %v3793 = vpop.f32.mrb[0].mxu0
        %v3794 = vadd.f32 %v3401, %v3793
        %3795 = vmatprep.mubr.bf16.mxu0 %v1893
        %3796 = vmatmul.mubr.bf16.gmra.mrb[0].mxu0 %v1892
        %v3797 = vpop.f32.mrb[0].mxu0
        %v3798 = vadd.f32 %v3405, %v3797
        %v3799 = vpop.f32.mrb[0].mxu0
        %v3800 = vadd.f32 %v3407, %v3799
        %v3801 = vpop.f32.mrb[0].mxu0
        %v3802 = vadd.f32 %v3409, %v3801
        %v3803 = vpop.f32.mrb[0].mxu0
        %v3804 = vadd.f32 %v3411, %v3803
        %3805 = vmatprep.mubr.bf16.mxu0 %v1899
        %3806 = vmatmul.mubr.bf16.gmra.mrb[0].mxu0 %v1898
        %v3807 = vpop.f32.mrb[0].mxu0
        %v3808 = vadd.f32 %v3415, %v3807
        %v3809 = vpop.f32.mrb[0].mxu0
        %v3810 = vadd.f32 %v3417, %v3809
        %v3811 = vpop.f32.mrb[0].mxu0
        %v3812 = vadd.f32 %v3419, %v3811
        %v3813 = vpop.f32.mrb[0].mxu0
        %v3814 = vadd.f32 %v3421, %v3813
        %3815 = vmatprep.mubr.bf16.mxu0 %v1905
        %3816 = vmatmul.mubr.bf16.gmra.mrb[0].mxu0 %v1904
        %v3817 = vpop.f32.mrb[0].mxu0
        %v3818 = vadd.f32 %v3425, %v3817
        %v3819 = vpop.f32.mrb[0].mxu0
        %v3820 = vadd.f32 %v3427, %v3819
        %v3821 = vpop.f32.mrb[0].mxu0
        %v3822 = vadd.f32 %v3429, %v3821
        %v3823 = vpop.f32.mrb[0].mxu0
        %v3824 = vadd.f32 %v3431, %v3823
        %3825 = vmatprep.mubr.bf16.mxu0 %v1911
        %3826 = vmatmul.mubr.bf16.gmra.mrb[0].mxu0 %v1910
        %v3827 = vpop.f32.mrb[0].mxu0
        %v3828 = vadd.f32 %v3435, %v3827
        %v3829 = vpop.f32.mrb[0].mxu0
        %v3830 = vadd.f32 %v3437, %v3829
        %v3831 = vpop.f32.mrb[0].mxu0
        %v3832 = vadd.f32 %v3439, %v3831
        %v3833 = vpop.f32.mrb[0].mxu0
        %v3834 = vadd.f32 %v3441, %v3833
        %3835 = vmatprep.mubr.bf16.mxu0 %v1917
        %3836 = vmatmul.mubr.bf16.gmra.mrb[0].mxu0 %v1916
        %v3837 = vpop.f32.mrb[0].mxu0
        %v3838 = vadd.f32 %v3445, %v3837
        %v3839 = vpop.f32.mrb[0].mxu0
        %v3840 = vadd.f32 %v3447, %v3839
        %v3841 = vpop.f32.mrb[0].mxu0
        %v3842 = vadd.f32 %v3449, %v3841
        %v3843 = vpop.f32.mrb[0].mxu0
        %v3844 = vadd.f32 %v3451, %v3843
        %3845 = vmatprep.mubr.bf16.mxu0 %v1923
        %3846 = vmatmul.mubr.bf16.gmra.mrb[0].mxu0 %v1922
        %v3847 = vpop.f32.mrb[0].mxu0
        %v3848 = vadd.f32 %v3455, %v3847
        %v3849 = vpop.f32.mrb[0].mxu0
        %v3850 = vadd.f32 %v3457, %v3849
        %v3851 = vpop.f32.mrb[0].mxu0
        %v3852 = vadd.f32 %v3459, %v3851
        %v3853 = vpop.f32.mrb[0].mxu0
        %v3854 = vadd.f32 %v3461, %v3853
        %3855 = vmatprep.mubr.bf16.mxu0 %v1929
        %3856 = vmatmul.mubr.bf16.gmra.mrb[0].mxu0 %v1928
        %v3857 = vpop.f32.mrb[0].mxu0
        %v3858 = vadd.f32 %v3465, %v3857
        %v3859 = vpop.f32.mrb[0].mxu0
        %v3860 = vadd.f32 %v3467, %v3859
        %v3861 = vpop.f32.mrb[0].mxu0
        %v3862 = vadd.f32 %v3469, %v3861
        %v3863 = vpop.f32.mrb[0].mxu0
        %v3864 = vadd.f32 %v3471, %v3863
        %3865 = vmatprep.mubr.bf16.mxu0 %v1935
        %3866 = vmatmul.mubr.bf16.gmra.mrb[0].mxu0 %v1934
        %v3867 = vpop.f32.mrb[0].mxu0
        %v3868 = vadd.f32 %v3475, %v3867
        %v3869 = vpop.f32.mrb[0].mxu0
        %v3870 = vadd.f32 %v3477, %v3869
        %v3871 = vpop.f32.mrb[0].mxu0
        %v3872 = vadd.f32 %v3479, %v3871
        %v3873 = vpop.f32.mrb[0].mxu0
        %v3874 = vadd.f32 %v3481, %v3873
        %3875 = vmatprep.mubr.bf16.mxu0 %v1941
        %3876 = vmatmul.mubr.bf16.gmra.mrb[0].mxu0 %v1940
        %v3877 = vpop.f32.mrb[0].mxu0
        %v3878 = vadd.f32 %v3485, %v3877
        %v3879 = vpop.f32.mrb[0].mxu0
        %v3880 = vadd.f32 %v3487, %v3879
        %v3881 = vpop.f32.mrb[0].mxu0
        %v3882 = vadd.f32 %v3489, %v3881
        %v3883 = vpop.f32.mrb[0].mxu0
        %v3884 = vadd.f32 %v3491, %v3883
        %3885 = vmatprep.mubr.bf16.mxu0 %v1947
        %3886 = vmatmul.mubr.bf16.gmra.mrb[0].mxu0 %v1946
        %v3887 = vpop.f32.mrb[0].mxu0
        %v3888 = vadd.f32 %v3495, %v3887
        %v3889 = vpop.f32.mrb[0].mxu0
        %v3890 = vadd.f32 %v3497, %v3889
        %v3891 = vpop.f32.mrb[0].mxu0
        %v3892 = vadd.f32 %v3499, %v3891
        %v3893 = vpop.f32.mrb[0].mxu0
        %v3894 = vadd.f32 %v3501, %v3893
        %3895 = vmatprep.mubr.bf16.mxu0 %v1953
        %3896 = vmatmul.mubr.bf16.gmra.mrb[0].mxu0 %v1952
        %v3897 = vpop.f32.mrb[0].mxu0
        %v3898 = vadd.f32 %v3505, %v3897
        %v3899 = vpop.f32.mrb[0].mxu0
        %v3900 = vadd.f32 %v3507, %v3899
        %v3901 = vpop.f32.mrb[0].mxu0
        %v3902 = vadd.f32 %v3509, %v3901
        %v3903 = vpop.f32.mrb[0].mxu0
        %v3904 = vadd.f32 %v3511, %v3903
        %3905 = vmatprep.mubr.bf16.mxu0 %v1959
        %3906 = vmatmul.mubr.bf16.gmra.mrb[0].mxu0 %v1958
        %v3907 = vpop.f32.mrb[0].mxu0
        %v3908 = vadd.f32 %v3515, %v3907
        %v3909 = vpop.f32.mrb[0].mxu0
        %v3910 = vadd.f32 %v3517, %v3909
        %v3911 = vpop.f32.mrb[0].mxu0
        %v3912 = vadd.f32 %v3519, %v3911
        %v3913 = vpop.f32.mrb[0].mxu0
        %v3914 = vadd.f32 %v3521, %v3913
        %3915 = vmatprep.mubr.bf16.mxu0 %v1965
        %3916 = vmatmul.mubr.bf16.gmra.mrb[0].mxu0 %v1964
        %v3917 = vpop.f32.mrb[0].mxu0
        %v3918 = vadd.f32 %v3525, %v3917
        %v3919 = vpop.f32.mrb[0].mxu0
        %v3920 = vadd.f32 %v3527, %v3919
        %v3921 = vpop.f32.mrb[0].mxu0
        %v3922 = vadd.f32 %v3529, %v3921
        %v3923 = vpop.f32.mrb[0].mxu0
        %v3924 = vadd.f32 %v3531, %v3923
        %3925 = vmatprep.mubr.bf16.mxu0 %v1971
        %3926 = vmatmul.mubr.bf16.gmra.mrb[0].mxu0 %v1970
        %v3927 = vpop.f32.mrb[0].mxu0
        %v3928 = vadd.f32 %v3535, %v3927
        %v3929 = vpop.f32.mrb[0].mxu0
        %v3930 = vadd.f32 %v3537, %v3929
        %v3931 = vpop.f32.mrb[0].mxu0
        %v3932 = vadd.f32 %v3539, %v3931
        %v3933 = vpop.f32.mrb[0].mxu0
        %v3934 = vadd.f32 %v3541, %v3933
        %3935 = vdwg.mxu0
        %3936 = vmatprep.subr.bf16.mxu0 %v2895
        %3937 = vmatpush1.bf16.msra.mxu0 %v2894
        %3938 = vmatprep.subr.bf16.mxu0 %v2899
        %3939 = vmatpush1.bf16.msra.mxu0 %v2898
        %3940 = vmatprep.subr.bf16.mxu0 %v2903
        %3941 = vmatpush1.bf16.msra.mxu0 %v2902
        %3942 = vmatprep.subr.bf16.mxu0 %v2907
        %3943 = vmatpush1.bf16.msra.mxu0 %v2906
        %3944 = vmatprep.subr.bf16.mxu0 %v2911
        %3945 = vmatpush1.bf16.msra.mxu0 %v2910
        %3946 = vmatprep.subr.bf16.mxu0 %v2915
        %3947 = vmatpush1.bf16.msra.mxu0 %v2914
        %3948 = vmatprep.subr.bf16.mxu0 %v2919
        %3949 = vmatpush1.bf16.msra.mxu0 %v2918
        %3950 = vmatprep.subr.bf16.mxu0 %v2923
        %3951 = vmatpush1.bf16.msra.mxu0 %v2922
        %3952 = vmatprep.subr.bf16.mxu0 %v2927
        %3953 = vmatpush1.bf16.msra.mxu0 %v2926
        %3954 = vmatprep.subr.bf16.mxu0 %v2931
        %3955 = vmatpush1.bf16.msra.mxu0 %v2930
        %3956 = vmatprep.subr.bf16.mxu0 %v2935
        %3957 = vmatpush1.bf16.msra.mxu0 %v2934
        %3958 = vmatprep.subr.bf16.mxu0 %v2939
        %3959 = vmatpush1.bf16.msra.mxu0 %v2938
        %3960 = vmatprep.subr.bf16.mxu0 %v2943
        %3961 = vmatpush1.bf16.msra.mxu0 %v2942
        %3962 = vmatprep.subr.bf16.mxu0 %v2947
        %3963 = vmatpush1.bf16.msra.mxu0 %v2946
        %3964 = vmatprep.subr.bf16.mxu0 %v2951
        %3965 = vmatpush1.bf16.msra.mxu0 %v2950
        %3966 = vmatprep.subr.bf16.mxu0 %v2955
        %3967 = vmatpush1.bf16.msra.mxu0 %v2954
        %3968 = vmatprep.mubr.bf16.mxu0 %v1763
        %3969 = vmatmul.mubr.bf16.gmra.mrb[0].mxu0 %v1762
        %v3970 = vpop.f32.mrb[0].mxu0
        %v3971 = vadd.f32 %v3578, %v3970
        %v3972 = vpop.f32.mrb[0].mxu0
        %v3973 = vadd.f32 %v3580, %v3972
        %v3974 = vpop.f32.mrb[0].mxu0
        %v3975 = vadd.f32 %v3582, %v3974
        %v3976 = vpop.f32.mrb[0].mxu0
        %v3977 = vadd.f32 %v3584, %v3976
        %3978 = vmatprep.mubr.bf16.mxu0 %v1769
        %3979 = vmatmul.mubr.bf16.gmra.mrb[0].mxu0 %v1768
        %v3980 = vpop.f32.mrb[0].mxu0
        %v3981 = vadd.f32 %v3588, %v3980
        %v3982 = vpop.f32.mrb[0].mxu0
        %v3983 = vadd.f32 %v3590, %v3982
        %v3984 = vpop.f32.mrb[0].mxu0
        %v3985 = vadd.f32 %v3592, %v3984
        %v3986 = vpop.f32.mrb[0].mxu0
        %v3987 = vadd.f32 %v3594, %v3986
        %3988 = vmatprep.mubr.bf16.mxu0 %v1775
        %3989 = vmatmul.mubr.bf16.gmra.mrb[0].mxu0 %v1774
        %v3990 = vpop.f32.mrb[0].mxu0
        %v3991 = vadd.f32 %v3598, %v3990
        %v3992 = vpop.f32.mrb[0].mxu0
        %v3993 = vadd.f32 %v3600, %v3992
        %v3994 = vpop.f32.mrb[0].mxu0
        %v3995 = vadd.f32 %v3602, %v3994
        %v3996 = vpop.f32.mrb[0].mxu0
        %v3997 = vadd.f32 %v3604, %v3996
        %3998 = vmatprep.mubr.bf16.mxu0 %v1781
        %3999 = vmatmul.mubr.bf16.gmra.mrb[0].mxu0 %v1780
        %v4000 = vpop.f32.mrb[0].mxu0
        %v4001 = vadd.f32 %v3608, %v4000
        %v4002 = vpop.f32.mrb[0].mxu0
        %v4003 = vadd.f32 %v3610, %v4002
        %v4004 = vpop.f32.mrb[0].mxu0
        %v4005 = vadd.f32 %v3612, %v4004
        %v4006 = vpop.f32.mrb[0].mxu0
        %v4007 = vadd.f32 %v3614, %v4006
        %4008 = vmatprep.mubr.bf16.mxu0 %v1787
        %4009 = vmatmul.mubr.bf16.gmra.mrb[0].mxu0 %v1786
        %v4010 = vpop.f32.mrb[0].mxu0
        %v4011 = vadd.f32 %v3618, %v4010
        %v4012 = vpop.f32.mrb[0].mxu0
        %v4013 = vadd.f32 %v3620, %v4012
        %v4014 = vpop.f32.mrb[0].mxu0
        %v4015 = vadd.f32 %v3622, %v4014
        %v4016 = vpop.f32.mrb[0].mxu0
        %v4017 = vadd.f32 %v3624, %v4016
        %4018 = vmatprep.mubr.bf16.mxu0 %v1793
        %4019 = vmatmul.mubr.bf16.gmra.mrb[0].mxu0 %v1792
        %v4020 = vpop.f32.mrb[0].mxu0
        %v4021 = vadd.f32 %v3628, %v4020
        %v4022 = vpop.f32.mrb[0].mxu0
        %v4023 = vadd.f32 %v3630, %v4022
        %v4024 = vpop.f32.mrb[0].mxu0
        %v4025 = vadd.f32 %v3632, %v4024
        %v4026 = vpop.f32.mrb[0].mxu0
        %v4027 = vadd.f32 %v3634, %v4026
        %4028 = vmatprep.mubr.bf16.mxu0 %v1799
        %4029 = vmatmul.mubr.bf16.gmra.mrb[0].mxu0 %v1798
        %v4030 = vpop.f32.mrb[0].mxu0
        %v4031 = vadd.f32 %v3638, %v4030
        %v4032 = vpop.f32.mrb[0].mxu0
        %v4033 = vadd.f32 %v3640, %v4032
        %v4034 = vpop.f32.mrb[0].mxu0
        %v4035 = vadd.f32 %v3642, %v4034
        %v4036 = vpop.f32.mrb[0].mxu0
        %v4037 = vadd.f32 %v3644, %v4036
        %4038 = vmatprep.mubr.bf16.mxu0 %v1805
        %4039 = vmatmul.mubr.bf16.gmra.mrb[0].mxu0 %v1804
        %v4040 = vpop.f32.mrb[0].mxu0
        %v4041 = vadd.f32 %v3648, %v4040
        %v4042 = vpop.f32.mrb[0].mxu0
        %v4043 = vadd.f32 %v3650, %v4042
        %v4044 = vpop.f32.mrb[0].mxu0
        %v4045 = vadd.f32 %v3652, %v4044
        %v4046 = vpop.f32.mrb[0].mxu0
        %v4047 = vadd.f32 %v3654, %v4046
        %4048 = vmatprep.mubr.bf16.mxu0 %v1811
        %4049 = vmatmul.mubr.bf16.gmra.mrb[0].mxu0 %v1810
        %v4050 = vpop.f32.mrb[0].mxu0
        %v4051 = vadd.f32 %v3658, %v4050
        %v4052 = vpop.f32.mrb[0].mxu0
        %v4053 = vadd.f32 %v3660, %v4052
        %v4054 = vpop.f32.mrb[0].mxu0
        %v4055 = vadd.f32 %v3662, %v4054
        %v4056 = vpop.f32.mrb[0].mxu0
        %v4057 = vadd.f32 %v3664, %v4056
        %4058 = vmatprep.mubr.bf16.mxu0 %v1817
        %4059 = vmatmul.mubr.bf16.gmra.mrb[0].mxu0 %v1816
        %v4060 = vpop.f32.mrb[0].mxu0
        %v4061 = vadd.f32 %v3668, %v4060
        %v4062 = vpop.f32.mrb[0].mxu0
        %v4063 = vadd.f32 %v3670, %v4062
        %v4064 = vpop.f32.mrb[0].mxu0
        %v4065 = vadd.f32 %v3672, %v4064
        %v4066 = vpop.f32.mrb[0].mxu0
        %v4067 = vadd.f32 %v3674, %v4066
        %4068 = vmatprep.mubr.bf16.mxu0 %v1823
        %4069 = vmatmul.mubr.bf16.gmra.mrb[0].mxu0 %v1822
        %v4070 = vpop.f32.mrb[0].mxu0
        %v4071 = vadd.f32 %v3678, %v4070
        %v4072 = vpop.f32.mrb[0].mxu0
        %v4073 = vadd.f32 %v3680, %v4072
        %v4074 = vpop.f32.mrb[0].mxu0
        %v4075 = vadd.f32 %v3682, %v4074
        %v4076 = vpop.f32.mrb[0].mxu0
        %v4077 = vadd.f32 %v3684, %v4076
        %4078 = vmatprep.mubr.bf16.mxu0 %v1829
        %4079 = vmatmul.mubr.bf16.gmra.mrb[0].mxu0 %v1828
        %v4080 = vpop.f32.mrb[0].mxu0
        %v4081 = vadd.f32 %v3688, %v4080
        %v4082 = vpop.f32.mrb[0].mxu0
        %v4083 = vadd.f32 %v3690, %v4082
        %v4084 = vpop.f32.mrb[0].mxu0
        %v4085 = vadd.f32 %v3692, %v4084
        %v4086 = vpop.f32.mrb[0].mxu0
        %v4087 = vadd.f32 %v3694, %v4086
        %4088 = vmatprep.mubr.bf16.mxu0 %v1835
        %4089 = vmatmul.mubr.bf16.gmra.mrb[0].mxu0 %v1834
        %v4090 = vpop.f32.mrb[0].mxu0
        %v4091 = vadd.f32 %v3698, %v4090
        %v4092 = vpop.f32.mrb[0].mxu0
        %v4093 = vadd.f32 %v3700, %v4092
        %v4094 = vpop.f32.mrb[0].mxu0
        %v4095 = vadd.f32 %v3702, %v4094
        %v4096 = vpop.f32.mrb[0].mxu0
        %v4097 = vadd.f32 %v3704, %v4096
        %4098 = vmatprep.mubr.bf16.mxu0 %v1841
        %4099 = vmatmul.mubr.bf16.gmra.mrb[0].mxu0 %v1840
        %v4100 = vpop.f32.mrb[0].mxu0
        %v4101 = vadd.f32 %v3708, %v4100
        %v4102 = vpop.f32.mrb[0].mxu0
        %v4103 = vadd.f32 %v3710, %v4102
        %v4104 = vpop.f32.mrb[0].mxu0
        %v4105 = vadd.f32 %v3712, %v4104
        %v4106 = vpop.f32.mrb[0].mxu0
        %v4107 = vadd.f32 %v3714, %v4106
        %4108 = vmatprep.mubr.bf16.mxu0 %v1847
        %4109 = vmatmul.mubr.bf16.gmra.mrb[0].mxu0 %v1846
        %v4110 = vpop.f32.mrb[0].mxu0
        %v4111 = vadd.f32 %v3718, %v4110
        %v4112 = vpop.f32.mrb[0].mxu0
        %v4113 = vadd.f32 %v3720, %v4112
        %v4114 = vpop.f32.mrb[0].mxu0
        %v4115 = vadd.f32 %v3722, %v4114
        %v4116 = vpop.f32.mrb[0].mxu0
        %v4117 = vadd.f32 %v3724, %v4116
        %4118 = vmatprep.mubr.bf16.mxu0 %v1853
        %4119 = vmatmul.mubr.bf16.gmra.mrb[0].mxu0 %v1852
        %v4120 = vpop.f32.mrb[0].mxu0
        %v4121 = vadd.f32 %v3728, %v4120
        %v4122 = vpop.f32.mrb[0].mxu0
        %v4123 = vadd.f32 %v3730, %v4122
        %v4124 = vpop.f32.mrb[0].mxu0
        %v4125 = vadd.f32 %v3732, %v4124
        %v4126 = vpop.f32.mrb[0].mxu0
        %v4127 = vadd.f32 %v3734, %v4126
        %4128 = vmatprep.mubr.bf16.mxu0 %v1859
        %4129 = vmatmul.mubr.bf16.gmra.mrb[0].mxu0 %v1858
        %v4130 = vpop.f32.mrb[0].mxu0
        %v4131 = vadd.f32 %v3738, %v4130
        %v4132 = vpop.f32.mrb[0].mxu0
        %v4133 = vadd.f32 %v3740, %v4132
        %v4134 = vpop.f32.mrb[0].mxu0
        %v4135 = vadd.f32 %v3742, %v4134
        %v4136 = vpop.f32.mrb[0].mxu0
        %v4137 = vadd.f32 %v3744, %v4136
        %4138 = vmatprep.mubr.bf16.mxu0 %v1865
        %4139 = vmatmul.mubr.bf16.gmra.mrb[0].mxu0 %v1864
        %v4140 = vpop.f32.mrb[0].mxu0
        %v4141 = vadd.f32 %v3748, %v4140
        %v4142 = vpop.f32.mrb[0].mxu0
        %v4143 = vadd.f32 %v3750, %v4142
        %v4144 = vpop.f32.mrb[0].mxu0
        %v4145 = vadd.f32 %v3752, %v4144
        %v4146 = vpop.f32.mrb[0].mxu0
        %v4147 = vadd.f32 %v3754, %v4146
        %4148 = vmatprep.mubr.bf16.mxu0 %v1871
        %4149 = vmatmul.mubr.bf16.gmra.mrb[0].mxu0 %v1870
        %v4150 = vpop.f32.mrb[0].mxu0
        %v4151 = vadd.f32 %v3758, %v4150
        %v4152 = vpop.f32.mrb[0].mxu0
        %v4153 = vadd.f32 %v3760, %v4152
        %v4154 = vpop.f32.mrb[0].mxu0
        %v4155 = vadd.f32 %v3762, %v4154
        %v4156 = vpop.f32.mrb[0].mxu0
        %v4157 = vadd.f32 %v3764, %v4156
        %4158 = vmatprep.mubr.bf16.mxu0 %v1877
        %4159 = vmatmul.mubr.bf16.gmra.mrb[0].mxu0 %v1876
        %v4160 = vpop.f32.mrb[0].mxu0
        %v4161 = vadd.f32 %v3768, %v4160
        %v4162 = vpop.f32.mrb[0].mxu0
        %v4163 = vadd.f32 %v3770, %v4162
        %v4164 = vpop.f32.mrb[0].mxu0
        %v4165 = vadd.f32 %v3772, %v4164
        %v4166 = vpop.f32.mrb[0].mxu0
        %v4167 = vadd.f32 %v3774, %v4166
        %4168 = vmatprep.mubr.bf16.mxu0 %v1883
        %4169 = vmatmul.mubr.bf16.gmra.mrb[0].mxu0 %v1882
        %v4170 = vpop.f32.mrb[0].mxu0
        %v4171 = vadd.f32 %v3778, %v4170
        %v4172 = vpop.f32.mrb[0].mxu0
        %v4173 = vadd.f32 %v3780, %v4172
        %v4174 = vpop.f32.mrb[0].mxu0
        %v4175 = vadd.f32 %v3782, %v4174
        %v4176 = vpop.f32.mrb[0].mxu0
        %v4177 = vadd.f32 %v3784, %v4176
        %4178 = vmatprep.mubr.bf16.mxu0 %v1889
        %4179 = vmatmul.mubr.bf16.gmra.mrb[0].mxu0 %v1888
        %v4180 = vpop.f32.mrb[0].mxu0
        %v4181 = vadd.f32 %v3788, %v4180
        %v4182 = vpop.f32.mrb[0].mxu0
        %v4183 = vadd.f32 %v3790, %v4182
        %v4184 = vpop.f32.mrb[0].mxu0
        %v4185 = vadd.f32 %v3792, %v4184
        %v4186 = vpop.f32.mrb[0].mxu0
        %v4187 = vadd.f32 %v3794, %v4186
        %4188 = vmatprep.mubr.bf16.mxu0 %v1895
        %4189 = vmatmul.mubr.bf16.gmra.mrb[0].mxu0 %v1894
        %v4190 = vpop.f32.mrb[0].mxu0
        %v4191 = vadd.f32 %v3798, %v4190
        %v4192 = vpop.f32.mrb[0].mxu0
        %v4193 = vadd.f32 %v3800, %v4192
        %v4194 = vpop.f32.mrb[0].mxu0
        %v4195 = vadd.f32 %v3802, %v4194
        %v4196 = vpop.f32.mrb[0].mxu0
        %v4197 = vadd.f32 %v3804, %v4196
        %4198 = vmatprep.mubr.bf16.mxu0 %v1901
        %4199 = vmatmul.mubr.bf16.gmra.mrb[0].mxu0 %v1900
        %v4200 = vpop.f32.mrb[0].mxu0
        %v4201 = vadd.f32 %v3808, %v4200
        %v4202 = vpop.f32.mrb[0].mxu0
        %v4203 = vadd.f32 %v3810, %v4202
        %v4204 = vpop.f32.mrb[0].mxu0
        %v4205 = vadd.f32 %v3812, %v4204
        %v4206 = vpop.f32.mrb[0].mxu0
        %v4207 = vadd.f32 %v3814, %v4206
        %4208 = vmatprep.mubr.bf16.mxu0 %v1907
        %4209 = vmatmul.mubr.bf16.gmra.mrb[0].mxu0 %v1906
        %v4210 = vpop.f32.mrb[0].mxu0
        %v4211 = vadd.f32 %v3818, %v4210
        %v4212 = vpop.f32.mrb[0].mxu0
        %v4213 = vadd.f32 %v3820, %v4212
        %v4214 = vpop.f32.mrb[0].mxu0
        %v4215 = vadd.f32 %v3822, %v4214
        %v4216 = vpop.f32.mrb[0].mxu0
        %v4217 = vadd.f32 %v3824, %v4216
        %4218 = vmatprep.mubr.bf16.mxu0 %v1913
        %4219 = vmatmul.mubr.bf16.gmra.mrb[0].mxu0 %v1912
        %v4220 = vpop.f32.mrb[0].mxu0
        %v4221 = vadd.f32 %v3828, %v4220
        %v4222 = vpop.f32.mrb[0].mxu0
        %v4223 = vadd.f32 %v3830, %v4222
        %v4224 = vpop.f32.mrb[0].mxu0
        %v4225 = vadd.f32 %v3832, %v4224
        %v4226 = vpop.f32.mrb[0].mxu0
        %v4227 = vadd.f32 %v3834, %v4226
        %4228 = vmatprep.mubr.bf16.mxu0 %v1919
        %4229 = vmatmul.mubr.bf16.gmra.mrb[0].mxu0 %v1918
        %v4230 = vpop.f32.mrb[0].mxu0
        %v4231 = vadd.f32 %v3838, %v4230
        %v4232 = vpop.f32.mrb[0].mxu0
        %v4233 = vadd.f32 %v3840, %v4232
        %v4234 = vpop.f32.mrb[0].mxu0
        %v4235 = vadd.f32 %v3842, %v4234
        %v4236 = vpop.f32.mrb[0].mxu0
        %v4237 = vadd.f32 %v3844, %v4236
        %4238 = vmatprep.mubr.bf16.mxu0 %v1925
        %4239 = vmatmul.mubr.bf16.gmra.mrb[0].mxu0 %v1924
        %v4240 = vpop.f32.mrb[0].mxu0
        %v4241 = vadd.f32 %v3848, %v4240
        %v4242 = vpop.f32.mrb[0].mxu0
        %v4243 = vadd.f32 %v3850, %v4242
        %v4244 = vpop.f32.mrb[0].mxu0
        %v4245 = vadd.f32 %v3852, %v4244
        %v4246 = vpop.f32.mrb[0].mxu0
        %v4247 = vadd.f32 %v3854, %v4246
        %4248 = vmatprep.mubr.bf16.mxu0 %v1931
        %4249 = vmatmul.mubr.bf16.gmra.mrb[0].mxu0 %v1930
        %v4250 = vpop.f32.mrb[0].mxu0
        %v4251 = vadd.f32 %v3858, %v4250
        %v4252 = vpop.f32.mrb[0].mxu0
        %v4253 = vadd.f32 %v3860, %v4252
        %v4254 = vpop.f32.mrb[0].mxu0
        %v4255 = vadd.f32 %v3862, %v4254
        %v4256 = vpop.f32.mrb[0].mxu0
        %v4257 = vadd.f32 %v3864, %v4256
        %4258 = vmatprep.mubr.bf16.mxu0 %v1937
        %4259 = vmatmul.mubr.bf16.gmra.mrb[0].mxu0 %v1936
        %v4260 = vpop.f32.mrb[0].mxu0
        %v4261 = vadd.f32 %v3868, %v4260
        %v4262 = vpop.f32.mrb[0].mxu0
        %v4263 = vadd.f32 %v3870, %v4262
        %v4264 = vpop.f32.mrb[0].mxu0
        %v4265 = vadd.f32 %v3872, %v4264
        %v4266 = vpop.f32.mrb[0].mxu0
        %v4267 = vadd.f32 %v3874, %v4266
        %4268 = vmatprep.mubr.bf16.mxu0 %v1943
        %4269 = vmatmul.mubr.bf16.gmra.mrb[0].mxu0 %v1942
        %v4270 = vpop.f32.mrb[0].mxu0
        %v4271 = vadd.f32 %v3878, %v4270
        %v4272 = vpop.f32.mrb[0].mxu0
        %v4273 = vadd.f32 %v3880, %v4272
        %v4274 = vpop.f32.mrb[0].mxu0
        %v4275 = vadd.f32 %v3882, %v4274
        %v4276 = vpop.f32.mrb[0].mxu0
        %v4277 = vadd.f32 %v3884, %v4276
        %4278 = vmatprep.mubr.bf16.mxu0 %v1949
        %4279 = vmatmul.mubr.bf16.gmra.mrb[0].mxu0 %v1948
        %v4280 = vpop.f32.mrb[0].mxu0
        %v4281 = vadd.f32 %v3888, %v4280
        %v4282 = vpop.f32.mrb[0].mxu0
        %v4283 = vadd.f32 %v3890, %v4282
        %v4284 = vpop.f32.mrb[0].mxu0
        %v4285 = vadd.f32 %v3892, %v4284
        %v4286 = vpop.f32.mrb[0].mxu0
        %v4287 = vadd.f32 %v3894, %v4286
        %4288 = vmatprep.mubr.bf16.mxu0 %v1955
        %4289 = vmatmul.mubr.bf16.gmra.mrb[0].mxu0 %v1954
        %v4290 = vpop.f32.mrb[0].mxu0
        %v4291 = vadd.f32 %v3898, %v4290
        %v4292 = vpop.f32.mrb[0].mxu0
        %v4293 = vadd.f32 %v3900, %v4292
        %v4294 = vpop.f32.mrb[0].mxu0
        %v4295 = vadd.f32 %v3902, %v4294
        %v4296 = vpop.f32.mrb[0].mxu0
        %v4297 = vadd.f32 %v3904, %v4296
        %4298 = vmatprep.mubr.bf16.mxu0 %v1961
        %4299 = vmatmul.mubr.bf16.gmra.mrb[0].mxu0 %v1960
        %v4300 = vpop.f32.mrb[0].mxu0
        %v4301 = vadd.f32 %v3908, %v4300
        %v4302 = vpop.f32.mrb[0].mxu0
        %v4303 = vadd.f32 %v3910, %v4302
        %v4304 = vpop.f32.mrb[0].mxu0
        %v4305 = vadd.f32 %v3912, %v4304
        %v4306 = vpop.f32.mrb[0].mxu0
        %v4307 = vadd.f32 %v3914, %v4306
        %4308 = vmatprep.mubr.bf16.mxu0 %v1967
        %4309 = vmatmul.mubr.bf16.gmra.mrb[0].mxu0 %v1966
        %v4310 = vpop.f32.mrb[0].mxu0
        %v4311 = vadd.f32 %v3918, %v4310
        %v4312 = vpop.f32.mrb[0].mxu0
        %v4313 = vadd.f32 %v3920, %v4312
        %v4314 = vpop.f32.mrb[0].mxu0
        %v4315 = vadd.f32 %v3922, %v4314
        %v4316 = vpop.f32.mrb[0].mxu0
        %v4317 = vadd.f32 %v3924, %v4316
        %4318 = vmatprep.mubr.bf16.mxu0 %v1973
        %4319 = vmatmul.mubr.bf16.gmra.mrb[0].mxu0 %v1972
        %v4320 = vpop.f32.mrb[0].mxu0
        %v4321 = vadd.f32 %v3928, %v4320
        %v4322 = vpop.f32.mrb[0].mxu0
        %v4323 = vadd.f32 %v3930, %v4322
        %v4324 = vpop.f32.mrb[0].mxu0
        %v4325 = vadd.f32 %v3932, %v4324
        %v4326 = vpop.f32.mrb[0].mxu0
        %v4327 = vadd.f32 %v3934, %v4326
        %4328 = vdwg.mxu0
        %4329 = vmatprep.subr.bf16.mxu0 %v2769
        %4330 = vmatpush1.bf16.msra.mxu0 %v2768
        %4331 = vmatprep.subr.bf16.mxu0 %v2773
        %4332 = vmatpush1.bf16.msra.mxu0 %v2772
        %4333 = vmatprep.subr.bf16.mxu0 %v2777
        %4334 = vmatpush1.bf16.msra.mxu0 %v2776
        %4335 = vmatprep.subr.bf16.mxu0 %v2781
        %4336 = vmatpush1.bf16.msra.mxu0 %v2780
        %4337 = vmatprep.subr.bf16.mxu0 %v2785
        %4338 = vmatpush1.bf16.msra.mxu0 %v2784
        %4339 = vmatprep.subr.bf16.mxu0 %v2789
        %4340 = vmatpush1.bf16.msra.mxu0 %v2788
        %4341 = vmatprep.subr.bf16.mxu0 %v2793
        %4342 = vmatpush1.bf16.msra.mxu0 %v2792
        %4343 = vmatprep.subr.bf16.mxu0 %v2797
        %4344 = vmatpush1.bf16.msra.mxu0 %v2796
        %4345 = vmatprep.subr.bf16.mxu0 %v2801
        %4346 = vmatpush1.bf16.msra.mxu0 %v2800
        %4347 = vmatprep.subr.bf16.mxu0 %v2805
        %4348 = vmatpush1.bf16.msra.mxu0 %v2804
        %4349 = vmatprep.subr.bf16.mxu0 %v2809
        %4350 = vmatpush1.bf16.msra.mxu0 %v2808
        %4351 = vmatprep.subr.bf16.mxu0 %v2813
        %4352 = vmatpush1.bf16.msra.mxu0 %v2812
        %4353 = vmatprep.subr.bf16.mxu0 %v2817
        %4354 = vmatpush1.bf16.msra.mxu0 %v2816
        %4355 = vmatprep.subr.bf16.mxu0 %v2821
        %4356 = vmatpush1.bf16.msra.mxu0 %v2820
        %4357 = vmatprep.subr.bf16.mxu0 %v2825
        %4358 = vmatpush1.bf16.msra.mxu0 %v2824
        %4359 = vmatprep.subr.bf16.mxu0 %v2829
        %4360 = vmatpush1.bf16.msra.mxu0 %v2828
        %4361 = vmatprep.mubr.bf16.mxu0 %v1759
        %4362 = vmatmul.mubr.bf16.gmra.mrb[0].mxu0 %v1758
        %v4363 = vpop.f32.mrb[0].mxu0
        %v4364 = vadd.f32 0.0, %v4363
        %v4365 = vpop.f32.mrb[0].mxu0
        %v4366 = vadd.f32 0.0, %v4365
        %v4367 = vpop.f32.mrb[0].mxu0
        %v4368 = vadd.f32 0.0, %v4367
        %v4369 = vpop.f32.mrb[0].mxu0
        %v4370 = vadd.f32 0.0, %v4369
        %4371 = vmatprep.mubr.bf16.mxu0 %v1765
        %4372 = vmatmul.mubr.bf16.gmra.mrb[0].mxu0 %v1764
        %v4373 = vpop.f32.mrb[0].mxu0
        %v4374 = vadd.f32 0.0, %v4373
        %v4375 = vpop.f32.mrb[0].mxu0
        %v4376 = vadd.f32 0.0, %v4375
        %v4377 = vpop.f32.mrb[0].mxu0
        %v4378 = vadd.f32 0.0, %v4377
        %v4379 = vpop.f32.mrb[0].mxu0
        %v4380 = vadd.f32 0.0, %v4379
        %4381 = vmatprep.mubr.bf16.mxu0 %v1771
        %4382 = vmatmul.mubr.bf16.gmra.mrb[0].mxu0 %v1770
        %v4383 = vpop.f32.mrb[0].mxu0
        %v4384 = vadd.f32 0.0, %v4383
        %v4385 = vpop.f32.mrb[0].mxu0
        %v4386 = vadd.f32 0.0, %v4385
        %v4387 = vpop.f32.mrb[0].mxu0
        %v4388 = vadd.f32 0.0, %v4387
        %v4389 = vpop.f32.mrb[0].mxu0
        %v4390 = vadd.f32 0.0, %v4389
        %4391 = vmatprep.mubr.bf16.mxu0 %v1777
        %4392 = vmatmul.mubr.bf16.gmra.mrb[0].mxu0 %v1776
        %v4393 = vpop.f32.mrb[0].mxu0
        %v4394 = vadd.f32 0.0, %v4393
        %v4395 = vpop.f32.mrb[0].mxu0
        %v4396 = vadd.f32 0.0, %v4395
        %v4397 = vpop.f32.mrb[0].mxu0
        %v4398 = vadd.f32 0.0, %v4397
        %v4399 = vpop.f32.mrb[0].mxu0
        %v4400 = vadd.f32 0.0, %v4399
        %4401 = vmatprep.mubr.bf16.mxu0 %v1783
        %4402 = vmatmul.mubr.bf16.gmra.mrb[0].mxu0 %v1782
        %v4403 = vpop.f32.mrb[0].mxu0
        %v4404 = vadd.f32 0.0, %v4403
        %v4405 = vpop.f32.mrb[0].mxu0
        %v4406 = vadd.f32 0.0, %v4405
        %v4407 = vpop.f32.mrb[0].mxu0
        %v4408 = vadd.f32 0.0, %v4407
        %v4409 = vpop.f32.mrb[0].mxu0
        %v4410 = vadd.f32 0.0, %v4409
        %4411 = vmatprep.mubr.bf16.mxu0 %v1789
        %4412 = vmatmul.mubr.bf16.gmra.mrb[0].mxu0 %v1788
        %v4413 = vpop.f32.mrb[0].mxu0
        %v4414 = vadd.f32 0.0, %v4413
        %v4415 = vpop.f32.mrb[0].mxu0
        %v4416 = vadd.f32 0.0, %v4415
        %v4417 = vpop.f32.mrb[0].mxu0
        %v4418 = vadd.f32 0.0, %v4417
        %v4419 = vpop.f32.mrb[0].mxu0
        %v4420 = vadd.f32 0.0, %v4419
        %4421 = vmatprep.mubr.bf16.mxu0 %v1795
        %4422 = vmatmul.mubr.bf16.gmra.mrb[0].mxu0 %v1794
        %v4423 = vpop.f32.mrb[0].mxu0
        %v4424 = vadd.f32 0.0, %v4423
        %v4425 = vpop.f32.mrb[0].mxu0
        %v4426 = vadd.f32 0.0, %v4425
        %v4427 = vpop.f32.mrb[0].mxu0
        %v4428 = vadd.f32 0.0, %v4427
        %v4429 = vpop.f32.mrb[0].mxu0
        %v4430 = vadd.f32 0.0, %v4429
        %4431 = vmatprep.mubr.bf16.mxu0 %v1801
        %4432 = vmatmul.mubr.bf16.gmra.mrb[0].mxu0 %v1800
        %v4433 = vpop.f32.mrb[0].mxu0
        %v4434 = vadd.f32 0.0, %v4433
        %v4435 = vpop.f32.mrb[0].mxu0
        %v4436 = vadd.f32 0.0, %v4435
        %v4437 = vpop.f32.mrb[0].mxu0
        %v4438 = vadd.f32 0.0, %v4437
        %v4439 = vpop.f32.mrb[0].mxu0
        %v4440 = vadd.f32 0.0, %v4439
        %4441 = vmatprep.mubr.bf16.mxu0 %v1807
        %4442 = vmatmul.mubr.bf16.gmra.mrb[0].mxu0 %v1806
        %v4443 = vpop.f32.mrb[0].mxu0
        %v4444 = vadd.f32 0.0, %v4443
        %v4445 = vpop.f32.mrb[0].mxu0
        %v4446 = vadd.f32 0.0, %v4445
        %v4447 = vpop.f32.mrb[0].mxu0
        %v4448 = vadd.f32 0.0, %v4447
        %v4449 = vpop.f32.mrb[0].mxu0
        %v4450 = vadd.f32 0.0, %v4449
        %4451 = vmatprep.mubr.bf16.mxu0 %v1813
        %4452 = vmatmul.mubr.bf16.gmra.mrb[0].mxu0 %v1812
        %v4453 = vpop.f32.mrb[0].mxu0
        %v4454 = vadd.f32 0.0, %v4453
        %v4455 = vpop.f32.mrb[0].mxu0
        %v4456 = vadd.f32 0.0, %v4455
        %v4457 = vpop.f32.mrb[0].mxu0
        %v4458 = vadd.f32 0.0, %v4457
        %v4459 = vpop.f32.mrb[0].mxu0
        %v4460 = vadd.f32 0.0, %v4459
        %4461 = vmatprep.mubr.bf16.mxu0 %v1819
        %4462 = vmatmul.mubr.bf16.gmra.mrb[0].mxu0 %v1818
        %v4463 = vpop.f32.mrb[0].mxu0
        %v4464 = vadd.f32 0.0, %v4463
        %v4465 = vpop.f32.mrb[0].mxu0
        %v4466 = vadd.f32 0.0, %v4465
        %v4467 = vpop.f32.mrb[0].mxu0
        %v4468 = vadd.f32 0.0, %v4467
        %v4469 = vpop.f32.mrb[0].mxu0
        %v4470 = vadd.f32 0.0, %v4469
        %4471 = vmatprep.mubr.bf16.mxu0 %v1825
        %4472 = vmatmul.mubr.bf16.gmra.mrb[0].mxu0 %v1824
        %v4473 = vpop.f32.mrb[0].mxu0
        %v4474 = vadd.f32 0.0, %v4473
        %v4475 = vpop.f32.mrb[0].mxu0
        %v4476 = vadd.f32 0.0, %v4475
        %v4477 = vpop.f32.mrb[0].mxu0
        %v4478 = vadd.f32 0.0, %v4477
        %v4479 = vpop.f32.mrb[0].mxu0
        %v4480 = vadd.f32 0.0, %v4479
        %4481 = vmatprep.mubr.bf16.mxu0 %v1831
        %4482 = vmatmul.mubr.bf16.gmra.mrb[0].mxu0 %v1830
        %v4483 = vpop.f32.mrb[0].mxu0
        %v4484 = vadd.f32 0.0, %v4483
        %v4485 = vpop.f32.mrb[0].mxu0
        %v4486 = vadd.f32 0.0, %v4485
        %v4487 = vpop.f32.mrb[0].mxu0
        %v4488 = vadd.f32 0.0, %v4487
        %v4489 = vpop.f32.mrb[0].mxu0
        %v4490 = vadd.f32 0.0, %v4489
        %4491 = vmatprep.mubr.bf16.mxu0 %v1837
        %4492 = vmatmul.mubr.bf16.gmra.mrb[0].mxu0 %v1836
        %v4493 = vpop.f32.mrb[0].mxu0
        %v4494 = vadd.f32 0.0, %v4493
        %v4495 = vpop.f32.mrb[0].mxu0
        %v4496 = vadd.f32 0.0, %v4495
        %v4497 = vpop.f32.mrb[0].mxu0
        %v4498 = vadd.f32 0.0, %v4497
        %v4499 = vpop.f32.mrb[0].mxu0
        %v4500 = vadd.f32 0.0, %v4499
        %4501 = vmatprep.mubr.bf16.mxu0 %v1843
        %4502 = vmatmul.mubr.bf16.gmra.mrb[0].mxu0 %v1842
        %v4503 = vpop.f32.mrb[0].mxu0
        %v4504 = vadd.f32 0.0, %v4503
        %v4505 = vpop.f32.mrb[0].mxu0
        %v4506 = vadd.f32 0.0, %v4505
        %v4507 = vpop.f32.mrb[0].mxu0
        %v4508 = vadd.f32 0.0, %v4507
        %v4509 = vpop.f32.mrb[0].mxu0
        %v4510 = vadd.f32 0.0, %v4509
        %4511 = vmatprep.mubr.bf16.mxu0 %v1849
        %4512 = vmatmul.mubr.bf16.gmra.mrb[0].mxu0 %v1848
        %v4513 = vpop.f32.mrb[0].mxu0
        %v4514 = vadd.f32 0.0, %v4513
        %v4515 = vpop.f32.mrb[0].mxu0
        %v4516 = vadd.f32 0.0, %v4515
        %v4517 = vpop.f32.mrb[0].mxu0
        %v4518 = vadd.f32 0.0, %v4517
        %v4519 = vpop.f32.mrb[0].mxu0
        %v4520 = vadd.f32 0.0, %v4519
        %4521 = vmatprep.mubr.bf16.mxu0 %v1855
        %4522 = vmatmul.mubr.bf16.gmra.mrb[0].mxu0 %v1854
        %v4523 = vpop.f32.mrb[0].mxu0
        %v4524 = vadd.f32 0.0, %v4523
        %v4525 = vpop.f32.mrb[0].mxu0
        %v4526 = vadd.f32 0.0, %v4525
        %v4527 = vpop.f32.mrb[0].mxu0
        %v4528 = vadd.f32 0.0, %v4527
        %v4529 = vpop.f32.mrb[0].mxu0
        %v4530 = vadd.f32 0.0, %v4529
        %4531 = vmatprep.mubr.bf16.mxu0 %v1861
        %4532 = vmatmul.mubr.bf16.gmra.mrb[0].mxu0 %v1860
        %v4533 = vpop.f32.mrb[0].mxu0
        %v4534 = vadd.f32 0.0, %v4533
        %v4535 = vpop.f32.mrb[0].mxu0
        %v4536 = vadd.f32 0.0, %v4535
        %v4537 = vpop.f32.mrb[0].mxu0
        %v4538 = vadd.f32 0.0, %v4537
        %v4539 = vpop.f32.mrb[0].mxu0
        %v4540 = vadd.f32 0.0, %v4539
        %4541 = vmatprep.mubr.bf16.mxu0 %v1867
        %4542 = vmatmul.mubr.bf16.gmra.mrb[0].mxu0 %v1866
        %v4543 = vpop.f32.mrb[0].mxu0
        %v4544 = vadd.f32 0.0, %v4543
        %v4545 = vpop.f32.mrb[0].mxu0
        %v4546 = vadd.f32 0.0, %v4545
        %v4547 = vpop.f32.mrb[0].mxu0
        %v4548 = vadd.f32 0.0, %v4547
        %v4549 = vpop.f32.mrb[0].mxu0
        %v4550 = vadd.f32 0.0, %v4549
        %4551 = vmatprep.mubr.bf16.mxu0 %v1873
        %4552 = vmatmul.mubr.bf16.gmra.mrb[0].mxu0 %v1872
        %v4553 = vpop.f32.mrb[0].mxu0
        %v4554 = vadd.f32 0.0, %v4553
        %v4555 = vpop.f32.mrb[0].mxu0
        %v4556 = vadd.f32 0.0, %v4555
        %v4557 = vpop.f32.mrb[0].mxu0
        %v4558 = vadd.f32 0.0, %v4557
        %v4559 = vpop.f32.mrb[0].mxu0
        %v4560 = vadd.f32 0.0, %v4559
        %4561 = vmatprep.mubr.bf16.mxu0 %v1879
        %4562 = vmatmul.mubr.bf16.gmra.mrb[0].mxu0 %v1878
        %v4563 = vpop.f32.mrb[0].mxu0
        %v4564 = vadd.f32 0.0, %v4563
        %v4565 = vpop.f32.mrb[0].mxu0
        %v4566 = vadd.f32 0.0, %v4565
        %v4567 = vpop.f32.mrb[0].mxu0
        %v4568 = vadd.f32 0.0, %v4567
        %v4569 = vpop.f32.mrb[0].mxu0
        %v4570 = vadd.f32 0.0, %v4569
        %4571 = vmatprep.mubr.bf16.mxu0 %v1885
        %4572 = vmatmul.mubr.bf16.gmra.mrb[0].mxu0 %v1884
        %v4573 = vpop.f32.mrb[0].mxu0
        %v4574 = vadd.f32 0.0, %v4573
        %v4575 = vpop.f32.mrb[0].mxu0
        %v4576 = vadd.f32 0.0, %v4575
        %v4577 = vpop.f32.mrb[0].mxu0
        %v4578 = vadd.f32 0.0, %v4577
        %v4579 = vpop.f32.mrb[0].mxu0
        %v4580 = vadd.f32 0.0, %v4579
        %4581 = vmatprep.mubr.bf16.mxu0 %v1891
        %4582 = vmatmul.mubr.bf16.gmra.mrb[0].mxu0 %v1890
        %v4583 = vpop.f32.mrb[0].mxu0
        %v4584 = vadd.f32 0.0, %v4583
        %v4585 = vpop.f32.mrb[0].mxu0
        %v4586 = vadd.f32 0.0, %v4585
        %v4587 = vpop.f32.mrb[0].mxu0
        %v4588 = vadd.f32 0.0, %v4587
        %v4589 = vpop.f32.mrb[0].mxu0
        %v4590 = vadd.f32 0.0, %v4589
        %4591 = vmatprep.mubr.bf16.mxu0 %v1897
        %4592 = vmatmul.mubr.bf16.gmra.mrb[0].mxu0 %v1896
        %v4593 = vpop.f32.mrb[0].mxu0
        %v4594 = vadd.f32 0.0, %v4593
        %v4595 = vpop.f32.mrb[0].mxu0
        %v4596 = vadd.f32 0.0, %v4595
        %v4597 = vpop.f32.mrb[0].mxu0
        %v4598 = vadd.f32 0.0, %v4597
        %v4599 = vpop.f32.mrb[0].mxu0
        %v4600 = vadd.f32 0.0, %v4599
        %4601 = vmatprep.mubr.bf16.mxu0 %v1903
        %4602 = vmatmul.mubr.bf16.gmra.mrb[0].mxu0 %v1902
        %v4603 = vpop.f32.mrb[0].mxu0
        %v4604 = vadd.f32 0.0, %v4603
        %v4605 = vpop.f32.mrb[0].mxu0
        %v4606 = vadd.f32 0.0, %v4605
        %v4607 = vpop.f32.mrb[0].mxu0
        %v4608 = vadd.f32 0.0, %v4607
        %v4609 = vpop.f32.mrb[0].mxu0
        %v4610 = vadd.f32 0.0, %v4609
        %4611 = vmatprep.mubr.bf16.mxu0 %v1909
        %4612 = vmatmul.mubr.bf16.gmra.mrb[0].mxu0 %v1908
        %v4613 = vpop.f32.mrb[0].mxu0
        %v4614 = vadd.f32 0.0, %v4613
        %v4615 = vpop.f32.mrb[0].mxu0
        %v4616 = vadd.f32 0.0, %v4615
        %v4617 = vpop.f32.mrb[0].mxu0
        %v4618 = vadd.f32 0.0, %v4617
        %v4619 = vpop.f32.mrb[0].mxu0
        %v4620 = vadd.f32 0.0, %v4619
        %4621 = vmatprep.mubr.bf16.mxu0 %v1915
        %4622 = vmatmul.mubr.bf16.gmra.mrb[0].mxu0 %v1914
        %v4623 = vpop.f32.mrb[0].mxu0
        %v4624 = vadd.f32 0.0, %v4623
        %v4625 = vpop.f32.mrb[0].mxu0
        %v4626 = vadd.f32 0.0, %v4625
        %v4627 = vpop.f32.mrb[0].mxu0
        %v4628 = vadd.f32 0.0, %v4627
        %v4629 = vpop.f32.mrb[0].mxu0
        %v4630 = vadd.f32 0.0, %v4629
        %4631 = vmatprep.mubr.bf16.mxu0 %v1921
        %4632 = vmatmul.mubr.bf16.gmra.mrb[0].mxu0 %v1920
        %v4633 = vpop.f32.mrb[0].mxu0
        %v4634 = vadd.f32 0.0, %v4633
        %v4635 = vpop.f32.mrb[0].mxu0
        %v4636 = vadd.f32 0.0, %v4635
        %v4637 = vpop.f32.mrb[0].mxu0
        %v4638 = vadd.f32 0.0, %v4637
        %v4639 = vpop.f32.mrb[0].mxu0
        %v4640 = vadd.f32 0.0, %v4639
        %4641 = vmatprep.mubr.bf16.mxu0 %v1927
        %4642 = vmatmul.mubr.bf16.gmra.mrb[0].mxu0 %v1926
        %v4643 = vpop.f32.mrb[0].mxu0
        %v4644 = vadd.f32 0.0, %v4643
        %v4645 = vpop.f32.mrb[0].mxu0
        %v4646 = vadd.f32 0.0, %v4645
        %v4647 = vpop.f32.mrb[0].mxu0
        %v4648 = vadd.f32 0.0, %v4647
        %v4649 = vpop.f32.mrb[0].mxu0
        %v4650 = vadd.f32 0.0, %v4649
        %4651 = vmatprep.mubr.bf16.mxu0 %v1933
        %4652 = vmatmul.mubr.bf16.gmra.mrb[0].mxu0 %v1932
        %v4653 = vpop.f32.mrb[0].mxu0
        %v4654 = vadd.f32 0.0, %v4653
        %v4655 = vpop.f32.mrb[0].mxu0
        %v4656 = vadd.f32 0.0, %v4655
        %v4657 = vpop.f32.mrb[0].mxu0
        %v4658 = vadd.f32 0.0, %v4657
        %v4659 = vpop.f32.mrb[0].mxu0
        %v4660 = vadd.f32 0.0, %v4659
        %4661 = vmatprep.mubr.bf16.mxu0 %v1939
        %4662 = vmatmul.mubr.bf16.gmra.mrb[0].mxu0 %v1938
        %v4663 = vpop.f32.mrb[0].mxu0
        %v4664 = vadd.f32 0.0, %v4663
        %v4665 = vpop.f32.mrb[0].mxu0
        %v4666 = vadd.f32 0.0, %v4665
        %v4667 = vpop.f32.mrb[0].mxu0
        %v4668 = vadd.f32 0.0, %v4667
        %v4669 = vpop.f32.mrb[0].mxu0
        %v4670 = vadd.f32 0.0, %v4669
        %4671 = vmatprep.mubr.bf16.mxu0 %v1945
        %4672 = vmatmul.mubr.bf16.gmra.mrb[0].mxu0 %v1944
        %v4673 = vpop.f32.mrb[0].mxu0
        %v4674 = vadd.f32 0.0, %v4673
        %v4675 = vpop.f32.mrb[0].mxu0
        %v4676 = vadd.f32 0.0, %v4675
        %v4677 = vpop.f32.mrb[0].mxu0
        %v4678 = vadd.f32 0.0, %v4677
        %v4679 = vpop.f32.mrb[0].mxu0
        %v4680 = vadd.f32 0.0, %v4679
        %4681 = vmatprep.mubr.bf16.mxu0 %v1951
        %4682 = vmatmul.mubr.bf16.gmra.mrb[0].mxu0 %v1950
        %v4683 = vpop.f32.mrb[0].mxu0
        %v4684 = vadd.f32 0.0, %v4683
        %v4685 = vpop.f32.mrb[0].mxu0
        %v4686 = vadd.f32 0.0, %v4685
        %v4687 = vpop.f32.mrb[0].mxu0
        %v4688 = vadd.f32 0.0, %v4687
        %v4689 = vpop.f32.mrb[0].mxu0
        %v4690 = vadd.f32 0.0, %v4689
        %4691 = vmatprep.mubr.bf16.mxu0 %v1957
        %4692 = vmatmul.mubr.bf16.gmra.mrb[0].mxu0 %v1956
        %v4693 = vpop.f32.mrb[0].mxu0
        %v4694 = vadd.f32 0.0, %v4693
        %v4695 = vpop.f32.mrb[0].mxu0
        %v4696 = vadd.f32 0.0, %v4695
        %v4697 = vpop.f32.mrb[0].mxu0
        %v4698 = vadd.f32 0.0, %v4697
        %v4699 = vpop.f32.mrb[0].mxu0
        %v4700 = vadd.f32 0.0, %v4699
        %4701 = vmatprep.mubr.bf16.mxu0 %v1963
        %4702 = vmatmul.mubr.bf16.gmra.mrb[0].mxu0 %v1962
        %v4703 = vpop.f32.mrb[0].mxu0
        %v4704 = vadd.f32 0.0, %v4703
        %v4705 = vpop.f32.mrb[0].mxu0
        %v4706 = vadd.f32 0.0, %v4705
        %v4707 = vpop.f32.mrb[0].mxu0
        %v4708 = vadd.f32 0.0, %v4707
        %v4709 = vpop.f32.mrb[0].mxu0
        %v4710 = vadd.f32 0.0, %v4709
        %4711 = vmatprep.mubr.bf16.mxu0 %v1969
        %4712 = vmatmul.mubr.bf16.gmra.mrb[0].mxu0 %v1968
        %v4713 = vpop.f32.mrb[0].mxu0
        %v4714 = vadd.f32 0.0, %v4713
        %v4715 = vpop.f32.mrb[0].mxu0
        %v4716 = vadd.f32 0.0, %v4715
        %v4717 = vpop.f32.mrb[0].mxu0
        %v4718 = vadd.f32 0.0, %v4717
        %v4719 = vpop.f32.mrb[0].mxu0
        %v4720 = vadd.f32 0.0, %v4719
        %4721 = vdwg.mxu0
        %4722 = vmatprep.subr.bf16.mxu0 %v2833
        %4723 = vmatpush1.bf16.msra.mxu0 %v2832
        %4724 = vmatprep.subr.bf16.mxu0 %v2837
        %4725 = vmatpush1.bf16.msra.mxu0 %v2836
        %4726 = vmatprep.subr.bf16.mxu0 %v2841
        %4727 = vmatpush1.bf16.msra.mxu0 %v2840
        %4728 = vmatprep.subr.bf16.mxu0 %v2845
        %4729 = vmatpush1.bf16.msra.mxu0 %v2844
        %4730 = vmatprep.subr.bf16.mxu0 %v2849
        %4731 = vmatpush1.bf16.msra.mxu0 %v2848
        %4732 = vmatprep.subr.bf16.mxu0 %v2853
        %4733 = vmatpush1.bf16.msra.mxu0 %v2852
        %4734 = vmatprep.subr.bf16.mxu0 %v2857
        %4735 = vmatpush1.bf16.msra.mxu0 %v2856
        %4736 = vmatprep.subr.bf16.mxu0 %v2861
        %4737 = vmatpush1.bf16.msra.mxu0 %v2860
        %4738 = vmatprep.subr.bf16.mxu0 %v2865
        %4739 = vmatpush1.bf16.msra.mxu0 %v2864
        %4740 = vmatprep.subr.bf16.mxu0 %v2869
        %4741 = vmatpush1.bf16.msra.mxu0 %v2868
        %4742 = vmatprep.subr.bf16.mxu0 %v2873
        %4743 = vmatpush1.bf16.msra.mxu0 %v2872
        %4744 = vmatprep.subr.bf16.mxu0 %v2877
        %4745 = vmatpush1.bf16.msra.mxu0 %v2876
        %4746 = vmatprep.subr.bf16.mxu0 %v2881
        %4747 = vmatpush1.bf16.msra.mxu0 %v2880
        %4748 = vmatprep.subr.bf16.mxu0 %v2885
        %4749 = vmatpush1.bf16.msra.mxu0 %v2884
        %4750 = vmatprep.subr.bf16.mxu0 %v2889
        %4751 = vmatpush1.bf16.msra.mxu0 %v2888
        %4752 = vmatprep.subr.bf16.mxu0 %v2893
        %4753 = vmatpush1.bf16.msra.mxu0 %v2892
        %4754 = vmatprep.mubr.bf16.mxu0 %v1761
        %4755 = vmatmul.mubr.bf16.gmra.mrb[0].mxu0 %v1760
        %v4756 = vpop.f32.mrb[0].mxu0
        %v4757 = vadd.f32 %v4364, %v4756
        %v4758 = vpop.f32.mrb[0].mxu0
        %v4759 = vadd.f32 %v4366, %v4758
        %v4760 = vpop.f32.mrb[0].mxu0
        %v4761 = vadd.f32 %v4368, %v4760
        %v4762 = vpop.f32.mrb[0].mxu0
        %v4763 = vadd.f32 %v4370, %v4762
        %4764 = vmatprep.mubr.bf16.mxu0 %v1767
        %4765 = vmatmul.mubr.bf16.gmra.mrb[0].mxu0 %v1766
        %v4766 = vpop.f32.mrb[0].mxu0
        %v4767 = vadd.f32 %v4374, %v4766
        %v4768 = vpop.f32.mrb[0].mxu0
        %v4769 = vadd.f32 %v4376, %v4768
        %v4770 = vpop.f32.mrb[0].mxu0
        %v4771 = vadd.f32 %v4378, %v4770
        %v4772 = vpop.f32.mrb[0].mxu0
        %v4773 = vadd.f32 %v4380, %v4772
        %4774 = vmatprep.mubr.bf16.mxu0 %v1773
        %4775 = vmatmul.mubr.bf16.gmra.mrb[0].mxu0 %v1772
        %v4776 = vpop.f32.mrb[0].mxu0
        %v4777 = vadd.f32 %v4384, %v4776
        %v4778 = vpop.f32.mrb[0].mxu0
        %v4779 = vadd.f32 %v4386, %v4778
        %v4780 = vpop.f32.mrb[0].mxu0
        %v4781 = vadd.f32 %v4388, %v4780
        %v4782 = vpop.f32.mrb[0].mxu0
        %v4783 = vadd.f32 %v4390, %v4782
        %4784 = vmatprep.mubr.bf16.mxu0 %v1779
        %4785 = vmatmul.mubr.bf16.gmra.mrb[0].mxu0 %v1778
        %v4786 = vpop.f32.mrb[0].mxu0
        %v4787 = vadd.f32 %v4394, %v4786
        %v4788 = vpop.f32.mrb[0].mxu0
        %v4789 = vadd.f32 %v4396, %v4788
        %v4790 = vpop.f32.mrb[0].mxu0
        %v4791 = vadd.f32 %v4398, %v4790
        %v4792 = vpop.f32.mrb[0].mxu0
        %v4793 = vadd.f32 %v4400, %v4792
        %4794 = vmatprep.mubr.bf16.mxu0 %v1785
        %4795 = vmatmul.mubr.bf16.gmra.mrb[0].mxu0 %v1784
        %v4796 = vpop.f32.mrb[0].mxu0
        %v4797 = vadd.f32 %v4404, %v4796
        %v4798 = vpop.f32.mrb[0].mxu0
        %v4799 = vadd.f32 %v4406, %v4798
        %v4800 = vpop.f32.mrb[0].mxu0
        %v4801 = vadd.f32 %v4408, %v4800
        %v4802 = vpop.f32.mrb[0].mxu0
        %v4803 = vadd.f32 %v4410, %v4802
        %4804 = vmatprep.mubr.bf16.mxu0 %v1791
        %4805 = vmatmul.mubr.bf16.gmra.mrb[0].mxu0 %v1790
        %v4806 = vpop.f32.mrb[0].mxu0
        %v4807 = vadd.f32 %v4414, %v4806
        %v4808 = vpop.f32.mrb[0].mxu0
        %v4809 = vadd.f32 %v4416, %v4808
        %v4810 = vpop.f32.mrb[0].mxu0
        %v4811 = vadd.f32 %v4418, %v4810
        %v4812 = vpop.f32.mrb[0].mxu0
        %v4813 = vadd.f32 %v4420, %v4812
        %4814 = vmatprep.mubr.bf16.mxu0 %v1797
        %4815 = vmatmul.mubr.bf16.gmra.mrb[0].mxu0 %v1796
        %v4816 = vpop.f32.mrb[0].mxu0
        %v4817 = vadd.f32 %v4424, %v4816
        %v4818 = vpop.f32.mrb[0].mxu0
        %v4819 = vadd.f32 %v4426, %v4818
        %v4820 = vpop.f32.mrb[0].mxu0
        %v4821 = vadd.f32 %v4428, %v4820
        %v4822 = vpop.f32.mrb[0].mxu0
        %v4823 = vadd.f32 %v4430, %v4822
        %4824 = vmatprep.mubr.bf16.mxu0 %v1803
        %4825 = vmatmul.mubr.bf16.gmra.mrb[0].mxu0 %v1802
        %v4826 = vpop.f32.mrb[0].mxu0
        %v4827 = vadd.f32 %v4434, %v4826
        %v4828 = vpop.f32.mrb[0].mxu0
        %v4829 = vadd.f32 %v4436, %v4828
        %v4830 = vpop.f32.mrb[0].mxu0
        %v4831 = vadd.f32 %v4438, %v4830
        %v4832 = vpop.f32.mrb[0].mxu0
        %v4833 = vadd.f32 %v4440, %v4832
        %4834 = vmatprep.mubr.bf16.mxu0 %v1809
        %4835 = vmatmul.mubr.bf16.gmra.mrb[0].mxu0 %v1808
        %v4836 = vpop.f32.mrb[0].mxu0
        %v4837 = vadd.f32 %v4444, %v4836
        %v4838 = vpop.f32.mrb[0].mxu0
        %v4839 = vadd.f32 %v4446, %v4838
        %v4840 = vpop.f32.mrb[0].mxu0
        %v4841 = vadd.f32 %v4448, %v4840
        %v4842 = vpop.f32.mrb[0].mxu0
        %v4843 = vadd.f32 %v4450, %v4842
        %4844 = vmatprep.mubr.bf16.mxu0 %v1815
        %4845 = vmatmul.mubr.bf16.gmra.mrb[0].mxu0 %v1814
        %v4846 = vpop.f32.mrb[0].mxu0
        %v4847 = vadd.f32 %v4454, %v4846
        %v4848 = vpop.f32.mrb[0].mxu0
        %v4849 = vadd.f32 %v4456, %v4848
        %v4850 = vpop.f32.mrb[0].mxu0
        %v4851 = vadd.f32 %v4458, %v4850
        %v4852 = vpop.f32.mrb[0].mxu0
        %v4853 = vadd.f32 %v4460, %v4852
        %4854 = vmatprep.mubr.bf16.mxu0 %v1821
        %4855 = vmatmul.mubr.bf16.gmra.mrb[0].mxu0 %v1820
        %v4856 = vpop.f32.mrb[0].mxu0
        %v4857 = vadd.f32 %v4464, %v4856
        %v4858 = vpop.f32.mrb[0].mxu0
        %v4859 = vadd.f32 %v4466, %v4858
        %v4860 = vpop.f32.mrb[0].mxu0
        %v4861 = vadd.f32 %v4468, %v4860
        %v4862 = vpop.f32.mrb[0].mxu0
        %v4863 = vadd.f32 %v4470, %v4862
        %4864 = vmatprep.mubr.bf16.mxu0 %v1827
        %4865 = vmatmul.mubr.bf16.gmra.mrb[0].mxu0 %v1826
        %v4866 = vpop.f32.mrb[0].mxu0
        %v4867 = vadd.f32 %v4474, %v4866
        %v4868 = vpop.f32.mrb[0].mxu0
        %v4869 = vadd.f32 %v4476, %v4868
        %v4870 = vpop.f32.mrb[0].mxu0
        %v4871 = vadd.f32 %v4478, %v4870
        %v4872 = vpop.f32.mrb[0].mxu0
        %v4873 = vadd.f32 %v4480, %v4872
        %4874 = vmatprep.mubr.bf16.mxu0 %v1833
        %4875 = vmatmul.mubr.bf16.gmra.mrb[0].mxu0 %v1832
        %v4876 = vpop.f32.mrb[0].mxu0
        %v4877 = vadd.f32 %v4484, %v4876
        %v4878 = vpop.f32.mrb[0].mxu0
        %v4879 = vadd.f32 %v4486, %v4878
        %v4880 = vpop.f32.mrb[0].mxu0
        %v4881 = vadd.f32 %v4488, %v4880
        %v4882 = vpop.f32.mrb[0].mxu0
        %v4883 = vadd.f32 %v4490, %v4882
        %4884 = vmatprep.mubr.bf16.mxu0 %v1839
        %4885 = vmatmul.mubr.bf16.gmra.mrb[0].mxu0 %v1838
        %v4886 = vpop.f32.mrb[0].mxu0
        %v4887 = vadd.f32 %v4494, %v4886
        %v4888 = vpop.f32.mrb[0].mxu0
        %v4889 = vadd.f32 %v4496, %v4888
        %v4890 = vpop.f32.mrb[0].mxu0
        %v4891 = vadd.f32 %v4498, %v4890
        %v4892 = vpop.f32.mrb[0].mxu0
        %v4893 = vadd.f32 %v4500, %v4892
        %4894 = vmatprep.mubr.bf16.mxu0 %v1845
        %4895 = vmatmul.mubr.bf16.gmra.mrb[0].mxu0 %v1844
        %v4896 = vpop.f32.mrb[0].mxu0
        %v4897 = vadd.f32 %v4504, %v4896
        %v4898 = vpop.f32.mrb[0].mxu0
        %v4899 = vadd.f32 %v4506, %v4898
        %v4900 = vpop.f32.mrb[0].mxu0
        %v4901 = vadd.f32 %v4508, %v4900
        %v4902 = vpop.f32.mrb[0].mxu0
        %v4903 = vadd.f32 %v4510, %v4902
        %4904 = vmatprep.mubr.bf16.mxu0 %v1851
        %4905 = vmatmul.mubr.bf16.gmra.mrb[0].mxu0 %v1850
        %v4906 = vpop.f32.mrb[0].mxu0
        %v4907 = vadd.f32 %v4514, %v4906
        %v4908 = vpop.f32.mrb[0].mxu0
        %v4909 = vadd.f32 %v4516, %v4908
        %v4910 = vpop.f32.mrb[0].mxu0
        %v4911 = vadd.f32 %v4518, %v4910
        %v4912 = vpop.f32.mrb[0].mxu0
        %v4913 = vadd.f32 %v4520, %v4912
        %4914 = vmatprep.mubr.bf16.mxu0 %v1857
        %4915 = vmatmul.mubr.bf16.gmra.mrb[0].mxu0 %v1856
        %v4916 = vpop.f32.mrb[0].mxu0
        %v4917 = vadd.f32 %v4524, %v4916
        %v4918 = vpop.f32.mrb[0].mxu0
        %v4919 = vadd.f32 %v4526, %v4918
        %v4920 = vpop.f32.mrb[0].mxu0
        %v4921 = vadd.f32 %v4528, %v4920
        %v4922 = vpop.f32.mrb[0].mxu0
        %v4923 = vadd.f32 %v4530, %v4922
        %4924 = vmatprep.mubr.bf16.mxu0 %v1863
        %4925 = vmatmul.mubr.bf16.gmra.mrb[0].mxu0 %v1862
        %v4926 = vpop.f32.mrb[0].mxu0
        %v4927 = vadd.f32 %v4534, %v4926
        %v4928 = vpop.f32.mrb[0].mxu0
        %v4929 = vadd.f32 %v4536, %v4928
        %v4930 = vpop.f32.mrb[0].mxu0
        %v4931 = vadd.f32 %v4538, %v4930
        %v4932 = vpop.f32.mrb[0].mxu0
        %v4933 = vadd.f32 %v4540, %v4932
        %4934 = vmatprep.mubr.bf16.mxu0 %v1869
        %4935 = vmatmul.mubr.bf16.gmra.mrb[0].mxu0 %v1868
        %v4936 = vpop.f32.mrb[0].mxu0
        %v4937 = vadd.f32 %v4544, %v4936
        %v4938 = vpop.f32.mrb[0].mxu0
        %v4939 = vadd.f32 %v4546, %v4938
        %v4940 = vpop.f32.mrb[0].mxu0
        %v4941 = vadd.f32 %v4548, %v4940
        %v4942 = vpop.f32.mrb[0].mxu0
        %v4943 = vadd.f32 %v4550, %v4942
        %4944 = vmatprep.mubr.bf16.mxu0 %v1875
        %4945 = vmatmul.mubr.bf16.gmra.mrb[0].mxu0 %v1874
        %v4946 = vpop.f32.mrb[0].mxu0
        %v4947 = vadd.f32 %v4554, %v4946
        %v4948 = vpop.f32.mrb[0].mxu0
        %v4949 = vadd.f32 %v4556, %v4948
        %v4950 = vpop.f32.mrb[0].mxu0
        %v4951 = vadd.f32 %v4558, %v4950
        %v4952 = vpop.f32.mrb[0].mxu0
        %v4953 = vadd.f32 %v4560, %v4952
        %4954 = vmatprep.mubr.bf16.mxu0 %v1881
        %4955 = vmatmul.mubr.bf16.gmra.mrb[0].mxu0 %v1880
        %v4956 = vpop.f32.mrb[0].mxu0
        %v4957 = vadd.f32 %v4564, %v4956
        %v4958 = vpop.f32.mrb[0].mxu0
        %v4959 = vadd.f32 %v4566, %v4958
        %v4960 = vpop.f32.mrb[0].mxu0
        %v4961 = vadd.f32 %v4568, %v4960
        %v4962 = vpop.f32.mrb[0].mxu0
        %v4963 = vadd.f32 %v4570, %v4962
        %4964 = vmatprep.mubr.bf16.mxu0 %v1887
        %4965 = vmatmul.mubr.bf16.gmra.mrb[0].mxu0 %v1886
        %v4966 = vpop.f32.mrb[0].mxu0
        %v4967 = vadd.f32 %v4574, %v4966
        %v4968 = vpop.f32.mrb[0].mxu0
        %v4969 = vadd.f32 %v4576, %v4968
        %v4970 = vpop.f32.mrb[0].mxu0
        %v4971 = vadd.f32 %v4578, %v4970
        %v4972 = vpop.f32.mrb[0].mxu0
        %v4973 = vadd.f32 %v4580, %v4972
        %4974 = vmatprep.mubr.bf16.mxu0 %v1893
        %4975 = vmatmul.mubr.bf16.gmra.mrb[0].mxu0 %v1892
        %v4976 = vpop.f32.mrb[0].mxu0
        %v4977 = vadd.f32 %v4584, %v4976
        %v4978 = vpop.f32.mrb[0].mxu0
        %v4979 = vadd.f32 %v4586, %v4978
        %v4980 = vpop.f32.mrb[0].mxu0
        %v4981 = vadd.f32 %v4588, %v4980
        %v4982 = vpop.f32.mrb[0].mxu0
        %v4983 = vadd.f32 %v4590, %v4982
        %4984 = vmatprep.mubr.bf16.mxu0 %v1899
        %4985 = vmatmul.mubr.bf16.gmra.mrb[0].mxu0 %v1898
        %v4986 = vpop.f32.mrb[0].mxu0
        %v4987 = vadd.f32 %v4594, %v4986
        %v4988 = vpop.f32.mrb[0].mxu0
        %v4989 = vadd.f32 %v4596, %v4988
        %v4990 = vpop.f32.mrb[0].mxu0
        %v4991 = vadd.f32 %v4598, %v4990
        %v4992 = vpop.f32.mrb[0].mxu0
        %v4993 = vadd.f32 %v4600, %v4992
        %4994 = vmatprep.mubr.bf16.mxu0 %v1905
        %4995 = vmatmul.mubr.bf16.gmra.mrb[0].mxu0 %v1904
        %v4996 = vpop.f32.mrb[0].mxu0
        %v4997 = vadd.f32 %v4604, %v4996
        %v4998 = vpop.f32.mrb[0].mxu0
        %v4999 = vadd.f32 %v4606, %v4998
        %v5000 = vpop.f32.mrb[0].mxu0
        %v5001 = vadd.f32 %v4608, %v5000
        %v5002 = vpop.f32.mrb[0].mxu0
        %v5003 = vadd.f32 %v4610, %v5002
        %5004 = vmatprep.mubr.bf16.mxu0 %v1911
        %5005 = vmatmul.mubr.bf16.gmra.mrb[0].mxu0 %v1910
        %v5006 = vpop.f32.mrb[0].mxu0
        %v5007 = vadd.f32 %v4614, %v5006
        %v5008 = vpop.f32.mrb[0].mxu0
        %v5009 = vadd.f32 %v4616, %v5008
        %v5010 = vpop.f32.mrb[0].mxu0
        %v5011 = vadd.f32 %v4618, %v5010
        %v5012 = vpop.f32.mrb[0].mxu0
        %v5013 = vadd.f32 %v4620, %v5012
        %5014 = vmatprep.mubr.bf16.mxu0 %v1917
        %5015 = vmatmul.mubr.bf16.gmra.mrb[0].mxu0 %v1916
        %v5016 = vpop.f32.mrb[0].mxu0
        %v5017 = vadd.f32 %v4624, %v5016
        %v5018 = vpop.f32.mrb[0].mxu0
        %v5019 = vadd.f32 %v4626, %v5018
        %v5020 = vpop.f32.mrb[0].mxu0
        %v5021 = vadd.f32 %v4628, %v5020
        %v5022 = vpop.f32.mrb[0].mxu0
        %v5023 = vadd.f32 %v4630, %v5022
        %5024 = vmatprep.mubr.bf16.mxu0 %v1923
        %5025 = vmatmul.mubr.bf16.gmra.mrb[0].mxu0 %v1922
        %v5026 = vpop.f32.mrb[0].mxu0
        %v5027 = vadd.f32 %v4634, %v5026
        %v5028 = vpop.f32.mrb[0].mxu0
        %v5029 = vadd.f32 %v4636, %v5028
        %v5030 = vpop.f32.mrb[0].mxu0
        %v5031 = vadd.f32 %v4638, %v5030
        %v5032 = vpop.f32.mrb[0].mxu0
        %v5033 = vadd.f32 %v4640, %v5032
        %5034 = vmatprep.mubr.bf16.mxu0 %v1929
        %5035 = vmatmul.mubr.bf16.gmra.mrb[0].mxu0 %v1928
        %v5036 = vpop.f32.mrb[0].mxu0
        %v5037 = vadd.f32 %v4644, %v5036
        %v5038 = vpop.f32.mrb[0].mxu0
        %v5039 = vadd.f32 %v4646, %v5038
        %v5040 = vpop.f32.mrb[0].mxu0
        %v5041 = vadd.f32 %v4648, %v5040
        %v5042 = vpop.f32.mrb[0].mxu0
        %v5043 = vadd.f32 %v4650, %v5042
        %5044 = vmatprep.mubr.bf16.mxu0 %v1935
        %5045 = vmatmul.mubr.bf16.gmra.mrb[0].mxu0 %v1934
        %v5046 = vpop.f32.mrb[0].mxu0
        %v5047 = vadd.f32 %v4654, %v5046
        %v5048 = vpop.f32.mrb[0].mxu0
        %v5049 = vadd.f32 %v4656, %v5048
        %v5050 = vpop.f32.mrb[0].mxu0
        %v5051 = vadd.f32 %v4658, %v5050
        %v5052 = vpop.f32.mrb[0].mxu0
        %v5053 = vadd.f32 %v4660, %v5052
        %5054 = vmatprep.mubr.bf16.mxu0 %v1941
        %5055 = vmatmul.mubr.bf16.gmra.mrb[0].mxu0 %v1940
        %v5056 = vpop.f32.mrb[0].mxu0
        %v5057 = vadd.f32 %v4664, %v5056
        %v5058 = vpop.f32.mrb[0].mxu0
        %v5059 = vadd.f32 %v4666, %v5058
        %v5060 = vpop.f32.mrb[0].mxu0
        %v5061 = vadd.f32 %v4668, %v5060
        %v5062 = vpop.f32.mrb[0].mxu0
        %v5063 = vadd.f32 %v4670, %v5062
        %5064 = vmatprep.mubr.bf16.mxu0 %v1947
        %5065 = vmatmul.mubr.bf16.gmra.mrb[0].mxu0 %v1946
        %v5066 = vpop.f32.mrb[0].mxu0
        %v5067 = vadd.f32 %v4674, %v5066
        %v5068 = vpop.f32.mrb[0].mxu0
        %v5069 = vadd.f32 %v4676, %v5068
        %v5070 = vpop.f32.mrb[0].mxu0
        %v5071 = vadd.f32 %v4678, %v5070
        %v5072 = vpop.f32.mrb[0].mxu0
        %v5073 = vadd.f32 %v4680, %v5072
        %5074 = vmatprep.mubr.bf16.mxu0 %v1953
        %5075 = vmatmul.mubr.bf16.gmra.mrb[0].mxu0 %v1952
        %v5076 = vpop.f32.mrb[0].mxu0
        %v5077 = vadd.f32 %v4684, %v5076
        %v5078 = vpop.f32.mrb[0].mxu0
        %v5079 = vadd.f32 %v4686, %v5078
        %v5080 = vpop.f32.mrb[0].mxu0
        %v5081 = vadd.f32 %v4688, %v5080
        %v5082 = vpop.f32.mrb[0].mxu0
        %v5083 = vadd.f32 %v4690, %v5082
        %5084 = vmatprep.mubr.bf16.mxu0 %v1959
        %5085 = vmatmul.mubr.bf16.gmra.mrb[0].mxu0 %v1958
        %v5086 = vpop.f32.mrb[0].mxu0
        %v5087 = vadd.f32 %v4694, %v5086
        %v5088 = vpop.f32.mrb[0].mxu0
        %v5089 = vadd.f32 %v4696, %v5088
        %v5090 = vpop.f32.mrb[0].mxu0
        %v5091 = vadd.f32 %v4698, %v5090
        %v5092 = vpop.f32.mrb[0].mxu0
        %v5093 = vadd.f32 %v4700, %v5092
        %5094 = vmatprep.mubr.bf16.mxu0 %v1965
        %5095 = vmatmul.mubr.bf16.gmra.mrb[0].mxu0 %v1964
        %v5096 = vpop.f32.mrb[0].mxu0
        %v5097 = vadd.f32 %v4704, %v5096
        %v5098 = vpop.f32.mrb[0].mxu0
        %v5099 = vadd.f32 %v4706, %v5098
        %v5100 = vpop.f32.mrb[0].mxu0
        %v5101 = vadd.f32 %v4708, %v5100
        %v5102 = vpop.f32.mrb[0].mxu0
        %v5103 = vadd.f32 %v4710, %v5102
        %5104 = vmatprep.mubr.bf16.mxu0 %v1971
        %5105 = vmatmul.mubr.bf16.gmra.mrb[0].mxu0 %v1970
        %v5106 = vpop.f32.mrb[0].mxu0
        %v5107 = vadd.f32 %v4714, %v5106
        %v5108 = vpop.f32.mrb[0].mxu0
        %v5109 = vadd.f32 %v4716, %v5108
        %v5110 = vpop.f32.mrb[0].mxu0
        %v5111 = vadd.f32 %v4718, %v5110
        %v5112 = vpop.f32.mrb[0].mxu0
        %v5113 = vadd.f32 %v4720, %v5112
        %5114 = vdwg.mxu0
        %5115 = vmatprep.subr.bf16.mxu0 %v2897
        %5116 = vmatpush1.bf16.msra.mxu0 %v2896
        %5117 = vmatprep.subr.bf16.mxu0 %v2901
        %5118 = vmatpush1.bf16.msra.mxu0 %v2900
        %5119 = vmatprep.subr.bf16.mxu0 %v2905
        %5120 = vmatpush1.bf16.msra.mxu0 %v2904
        %5121 = vmatprep.subr.bf16.mxu0 %v2909
        %5122 = vmatpush1.bf16.msra.mxu0 %v2908
        %5123 = vmatprep.subr.bf16.mxu0 %v2913
        %5124 = vmatpush1.bf16.msra.mxu0 %v2912
        %5125 = vmatprep.subr.bf16.mxu0 %v2917
        %5126 = vmatpush1.bf16.msra.mxu0 %v2916
        %5127 = vmatprep.subr.bf16.mxu0 %v2921
        %5128 = vmatpush1.bf16.msra.mxu0 %v2920
        %5129 = vmatprep.subr.bf16.mxu0 %v2925
        %5130 = vmatpush1.bf16.msra.mxu0 %v2924
        %5131 = vmatprep.subr.bf16.mxu0 %v2929
        %5132 = vmatpush1.bf16.msra.mxu0 %v2928
        %5133 = vmatprep.subr.bf16.mxu0 %v2933
        %5134 = vmatpush1.bf16.msra.mxu0 %v2932
        %5135 = vmatprep.subr.bf16.mxu0 %v2937
        %5136 = vmatpush1.bf16.msra.mxu0 %v2936
        %5137 = vmatprep.subr.bf16.mxu0 %v2941
        %5138 = vmatpush1.bf16.msra.mxu0 %v2940
        %5139 = vmatprep.subr.bf16.mxu0 %v2945
        %5140 = vmatpush1.bf16.msra.mxu0 %v2944
        %5141 = vmatprep.subr.bf16.mxu0 %v2949
        %5142 = vmatpush1.bf16.msra.mxu0 %v2948
        %5143 = vmatprep.subr.bf16.mxu0 %v2953
        %5144 = vmatpush1.bf16.msra.mxu0 %v2952
        %5145 = vmatprep.subr.bf16.mxu0 %v2957
        %5146 = vmatpush1.bf16.msra.mxu0 %v2956
        %5147 = vmatprep.mubr.bf16.mxu0 %v1763
        %5148 = vmatmul.mubr.bf16.gmra.mrb[0].mxu0 %v1762
        %v5149 = vpop.f32.mrb[0].mxu0
        %v5150 = vadd.f32 %v4757, %v5149
        %v5151 = vpop.f32.mrb[0].mxu0
        %v5152 = vadd.f32 %v4759, %v5151
        %v5153 = vpop.f32.mrb[0].mxu0
        %v5154 = vadd.f32 %v4761, %v5153
        %v5155 = vpop.f32.mrb[0].mxu0
        %v5156 = vadd.f32 %v4763, %v5155
        %5157 = vmatprep.mubr.bf16.mxu0 %v1769
        %5158 = vmatmul.mubr.bf16.gmra.mrb[0].mxu0 %v1768
        %v5159 = vpop.f32.mrb[0].mxu0
        %v5160 = vadd.f32 %v4767, %v5159
        %v5161 = vpop.f32.mrb[0].mxu0
        %v5162 = vadd.f32 %v4769, %v5161
        %v5163 = vpop.f32.mrb[0].mxu0
        %v5164 = vadd.f32 %v4771, %v5163
        %v5165 = vpop.f32.mrb[0].mxu0
        %v5166 = vadd.f32 %v4773, %v5165
        %5167 = vmatprep.mubr.bf16.mxu0 %v1775
        %5168 = vmatmul.mubr.bf16.gmra.mrb[0].mxu0 %v1774
        %v5169 = vpop.f32.mrb[0].mxu0
        %v5170 = vadd.f32 %v4777, %v5169
        %v5171 = vpop.f32.mrb[0].mxu0
        %v5172 = vadd.f32 %v4779, %v5171
        %v5173 = vpop.f32.mrb[0].mxu0
        %v5174 = vadd.f32 %v4781, %v5173
        %v5175 = vpop.f32.mrb[0].mxu0
        %v5176 = vadd.f32 %v4783, %v5175
        %5177 = vmatprep.mubr.bf16.mxu0 %v1781
        %5178 = vmatmul.mubr.bf16.gmra.mrb[0].mxu0 %v1780
        %v5179 = vpop.f32.mrb[0].mxu0
        %v5180 = vadd.f32 %v4787, %v5179
        %v5181 = vpop.f32.mrb[0].mxu0
        %v5182 = vadd.f32 %v4789, %v5181
        %v5183 = vpop.f32.mrb[0].mxu0
        %v5184 = vadd.f32 %v4791, %v5183
        %v5185 = vpop.f32.mrb[0].mxu0
        %v5186 = vadd.f32 %v4793, %v5185
        %5187 = vmatprep.mubr.bf16.mxu0 %v1787
        %5188 = vmatmul.mubr.bf16.gmra.mrb[0].mxu0 %v1786
        %v5189 = vpop.f32.mrb[0].mxu0
        %v5190 = vadd.f32 %v4797, %v5189
        %v5191 = vpop.f32.mrb[0].mxu0
        %v5192 = vadd.f32 %v4799, %v5191
        %v5193 = vpop.f32.mrb[0].mxu0
        %v5194 = vadd.f32 %v4801, %v5193
        %v5195 = vpop.f32.mrb[0].mxu0
        %v5196 = vadd.f32 %v4803, %v5195
        %5197 = vmatprep.mubr.bf16.mxu0 %v1793
        %5198 = vmatmul.mubr.bf16.gmra.mrb[0].mxu0 %v1792
        %v5199 = vpop.f32.mrb[0].mxu0
        %v5200 = vadd.f32 %v4807, %v5199
        %v5201 = vpop.f32.mrb[0].mxu0
        %v5202 = vadd.f32 %v4809, %v5201
        %v5203 = vpop.f32.mrb[0].mxu0
        %v5204 = vadd.f32 %v4811, %v5203
        %v5205 = vpop.f32.mrb[0].mxu0
        %v5206 = vadd.f32 %v4813, %v5205
        %5207 = vmatprep.mubr.bf16.mxu0 %v1799
        %5208 = vmatmul.mubr.bf16.gmra.mrb[0].mxu0 %v1798
        %v5209 = vpop.f32.mrb[0].mxu0
        %v5210 = vadd.f32 %v4817, %v5209
        %v5211 = vpop.f32.mrb[0].mxu0
        %v5212 = vadd.f32 %v4819, %v5211
        %v5213 = vpop.f32.mrb[0].mxu0
        %v5214 = vadd.f32 %v4821, %v5213
        %v5215 = vpop.f32.mrb[0].mxu0
        %v5216 = vadd.f32 %v4823, %v5215
        %5217 = vmatprep.mubr.bf16.mxu0 %v1805
        %5218 = vmatmul.mubr.bf16.gmra.mrb[0].mxu0 %v1804
        %v5219 = vpop.f32.mrb[0].mxu0
        %v5220 = vadd.f32 %v4827, %v5219
        %v5221 = vpop.f32.mrb[0].mxu0
        %v5222 = vadd.f32 %v4829, %v5221
        %v5223 = vpop.f32.mrb[0].mxu0
        %v5224 = vadd.f32 %v4831, %v5223
        %v5225 = vpop.f32.mrb[0].mxu0
        %v5226 = vadd.f32 %v4833, %v5225
        %5227 = vmatprep.mubr.bf16.mxu0 %v1811
        %5228 = vmatmul.mubr.bf16.gmra.mrb[0].mxu0 %v1810
        %v5229 = vpop.f32.mrb[0].mxu0
        %v5230 = vadd.f32 %v4837, %v5229
        %v5231 = vpop.f32.mrb[0].mxu0
        %v5232 = vadd.f32 %v4839, %v5231
        %v5233 = vpop.f32.mrb[0].mxu0
        %v5234 = vadd.f32 %v4841, %v5233
        %v5235 = vpop.f32.mrb[0].mxu0
        %v5236 = vadd.f32 %v4843, %v5235
        %5237 = vmatprep.mubr.bf16.mxu0 %v1817
        %5238 = vmatmul.mubr.bf16.gmra.mrb[0].mxu0 %v1816
        %v5239 = vpop.f32.mrb[0].mxu0
        %v5240 = vadd.f32 %v4847, %v5239
        %v5241 = vpop.f32.mrb[0].mxu0
        %v5242 = vadd.f32 %v4849, %v5241
        %v5243 = vpop.f32.mrb[0].mxu0
        %v5244 = vadd.f32 %v4851, %v5243
        %v5245 = vpop.f32.mrb[0].mxu0
        %v5246 = vadd.f32 %v4853, %v5245
        %5247 = vmatprep.mubr.bf16.mxu0 %v1823
        %5248 = vmatmul.mubr.bf16.gmra.mrb[0].mxu0 %v1822
        %v5249 = vpop.f32.mrb[0].mxu0
        %v5250 = vadd.f32 %v4857, %v5249
        %v5251 = vpop.f32.mrb[0].mxu0
        %v5252 = vadd.f32 %v4859, %v5251
        %v5253 = vpop.f32.mrb[0].mxu0
        %v5254 = vadd.f32 %v4861, %v5253
        %v5255 = vpop.f32.mrb[0].mxu0
        %v5256 = vadd.f32 %v4863, %v5255
        %5257 = vmatprep.mubr.bf16.mxu0 %v1829
        %5258 = vmatmul.mubr.bf16.gmra.mrb[0].mxu0 %v1828
        %v5259 = vpop.f32.mrb[0].mxu0
        %v5260 = vadd.f32 %v4867, %v5259
        %v5261 = vpop.f32.mrb[0].mxu0
        %v5262 = vadd.f32 %v4869, %v5261
        %v5263 = vpop.f32.mrb[0].mxu0
        %v5264 = vadd.f32 %v4871, %v5263
        %v5265 = vpop.f32.mrb[0].mxu0
        %v5266 = vadd.f32 %v4873, %v5265
        %5267 = vmatprep.mubr.bf16.mxu0 %v1835
        %5268 = vmatmul.mubr.bf16.gmra.mrb[0].mxu0 %v1834
        %v5269 = vpop.f32.mrb[0].mxu0
        %v5270 = vadd.f32 %v4877, %v5269
        %v5271 = vpop.f32.mrb[0].mxu0
        %v5272 = vadd.f32 %v4879, %v5271
        %v5273 = vpop.f32.mrb[0].mxu0
        %v5274 = vadd.f32 %v4881, %v5273
        %v5275 = vpop.f32.mrb[0].mxu0
        %v5276 = vadd.f32 %v4883, %v5275
        %5277 = vmatprep.mubr.bf16.mxu0 %v1841
        %5278 = vmatmul.mubr.bf16.gmra.mrb[0].mxu0 %v1840
        %v5279 = vpop.f32.mrb[0].mxu0
        %v5280 = vadd.f32 %v4887, %v5279
        %v5281 = vpop.f32.mrb[0].mxu0
        %v5282 = vadd.f32 %v4889, %v5281
        %v5283 = vpop.f32.mrb[0].mxu0
        %v5284 = vadd.f32 %v4891, %v5283
        %v5285 = vpop.f32.mrb[0].mxu0
        %v5286 = vadd.f32 %v4893, %v5285
        %5287 = vmatprep.mubr.bf16.mxu0 %v1847
        %5288 = vmatmul.mubr.bf16.gmra.mrb[0].mxu0 %v1846
        %v5289 = vpop.f32.mrb[0].mxu0
        %v5290 = vadd.f32 %v4897, %v5289
        %v5291 = vpop.f32.mrb[0].mxu0
        %v5292 = vadd.f32 %v4899, %v5291
        %v5293 = vpop.f32.mrb[0].mxu0
        %v5294 = vadd.f32 %v4901, %v5293
        %v5295 = vpop.f32.mrb[0].mxu0
        %v5296 = vadd.f32 %v4903, %v5295
        %5297 = vmatprep.mubr.bf16.mxu0 %v1853
        %5298 = vmatmul.mubr.bf16.gmra.mrb[0].mxu0 %v1852
        %v5299 = vpop.f32.mrb[0].mxu0
        %v5300 = vadd.f32 %v4907, %v5299
        %v5301 = vpop.f32.mrb[0].mxu0
        %v5302 = vadd.f32 %v4909, %v5301
        %v5303 = vpop.f32.mrb[0].mxu0
        %v5304 = vadd.f32 %v4911, %v5303
        %v5305 = vpop.f32.mrb[0].mxu0
        %v5306 = vadd.f32 %v4913, %v5305
        %5307 = vmatprep.mubr.bf16.mxu0 %v1859
        %5308 = vmatmul.mubr.bf16.gmra.mrb[0].mxu0 %v1858
        %v5309 = vpop.f32.mrb[0].mxu0
        %v5310 = vadd.f32 %v4917, %v5309
        %v5311 = vpop.f32.mrb[0].mxu0
        %v5312 = vadd.f32 %v4919, %v5311
        %v5313 = vpop.f32.mrb[0].mxu0
        %v5314 = vadd.f32 %v4921, %v5313
        %v5315 = vpop.f32.mrb[0].mxu0
        %v5316 = vadd.f32 %v4923, %v5315
        %5317 = vmatprep.mubr.bf16.mxu0 %v1865
        %5318 = vmatmul.mubr.bf16.gmra.mrb[0].mxu0 %v1864
        %v5319 = vpop.f32.mrb[0].mxu0
        %v5320 = vadd.f32 %v4927, %v5319
        %v5321 = vpop.f32.mrb[0].mxu0
        %v5322 = vadd.f32 %v4929, %v5321
        %v5323 = vpop.f32.mrb[0].mxu0
        %v5324 = vadd.f32 %v4931, %v5323
        %v5325 = vpop.f32.mrb[0].mxu0
        %v5326 = vadd.f32 %v4933, %v5325
        %5327 = vmatprep.mubr.bf16.mxu0 %v1871
        %5328 = vmatmul.mubr.bf16.gmra.mrb[0].mxu0 %v1870
        %v5329 = vpop.f32.mrb[0].mxu0
        %v5330 = vadd.f32 %v4937, %v5329
        %v5331 = vpop.f32.mrb[0].mxu0
        %v5332 = vadd.f32 %v4939, %v5331
        %v5333 = vpop.f32.mrb[0].mxu0
        %v5334 = vadd.f32 %v4941, %v5333
        %v5335 = vpop.f32.mrb[0].mxu0
        %v5336 = vadd.f32 %v4943, %v5335
        %5337 = vmatprep.mubr.bf16.mxu0 %v1877
        %5338 = vmatmul.mubr.bf16.gmra.mrb[0].mxu0 %v1876
        %v5339 = vpop.f32.mrb[0].mxu0
        %v5340 = vadd.f32 %v4947, %v5339
        %v5341 = vpop.f32.mrb[0].mxu0
        %v5342 = vadd.f32 %v4949, %v5341
        %v5343 = vpop.f32.mrb[0].mxu0
        %v5344 = vadd.f32 %v4951, %v5343
        %v5345 = vpop.f32.mrb[0].mxu0
        %v5346 = vadd.f32 %v4953, %v5345
        %5347 = vmatprep.mubr.bf16.mxu0 %v1883
        %5348 = vmatmul.mubr.bf16.gmra.mrb[0].mxu0 %v1882
        %v5349 = vpop.f32.mrb[0].mxu0
        %v5350 = vadd.f32 %v4957, %v5349
        %v5351 = vpop.f32.mrb[0].mxu0
        %v5352 = vadd.f32 %v4959, %v5351
        %v5353 = vpop.f32.mrb[0].mxu0
        %v5354 = vadd.f32 %v4961, %v5353
        %v5355 = vpop.f32.mrb[0].mxu0
        %v5356 = vadd.f32 %v4963, %v5355
        %5357 = vmatprep.mubr.bf16.mxu0 %v1889
        %5358 = vmatmul.mubr.bf16.gmra.mrb[0].mxu0 %v1888
        %v5359 = vpop.f32.mrb[0].mxu0
        %v5360 = vadd.f32 %v4967, %v5359
        %v5361 = vpop.f32.mrb[0].mxu0
        %v5362 = vadd.f32 %v4969, %v5361
        %v5363 = vpop.f32.mrb[0].mxu0
        %v5364 = vadd.f32 %v4971, %v5363
        %v5365 = vpop.f32.mrb[0].mxu0
        %v5366 = vadd.f32 %v4973, %v5365
        %5367 = vmatprep.mubr.bf16.mxu0 %v1895
        %5368 = vmatmul.mubr.bf16.gmra.mrb[0].mxu0 %v1894
        %v5369 = vpop.f32.mrb[0].mxu0
        %v5370 = vadd.f32 %v4977, %v5369
        %v5371 = vpop.f32.mrb[0].mxu0
        %v5372 = vadd.f32 %v4979, %v5371
        %v5373 = vpop.f32.mrb[0].mxu0
        %v5374 = vadd.f32 %v4981, %v5373
        %v5375 = vpop.f32.mrb[0].mxu0
        %v5376 = vadd.f32 %v4983, %v5375
        %5377 = vmatprep.mubr.bf16.mxu0 %v1901
        %5378 = vmatmul.mubr.bf16.gmra.mrb[0].mxu0 %v1900
        %v5379 = vpop.f32.mrb[0].mxu0
        %v5380 = vadd.f32 %v4987, %v5379
        %v5381 = vpop.f32.mrb[0].mxu0
        %v5382 = vadd.f32 %v4989, %v5381
        %v5383 = vpop.f32.mrb[0].mxu0
        %v5384 = vadd.f32 %v4991, %v5383
        %v5385 = vpop.f32.mrb[0].mxu0
        %v5386 = vadd.f32 %v4993, %v5385
        %5387 = vmatprep.mubr.bf16.mxu0 %v1907
        %5388 = vmatmul.mubr.bf16.gmra.mrb[0].mxu0 %v1906
        %v5389 = vpop.f32.mrb[0].mxu0
        %v5390 = vadd.f32 %v4997, %v5389
        %v5391 = vpop.f32.mrb[0].mxu0
        %v5392 = vadd.f32 %v4999, %v5391
        %v5393 = vpop.f32.mrb[0].mxu0
        %v5394 = vadd.f32 %v5001, %v5393
        %v5395 = vpop.f32.mrb[0].mxu0
        %v5396 = vadd.f32 %v5003, %v5395
        %5397 = vmatprep.mubr.bf16.mxu0 %v1913
        %5398 = vmatmul.mubr.bf16.gmra.mrb[0].mxu0 %v1912
        %v5399 = vpop.f32.mrb[0].mxu0
        %v5400 = vadd.f32 %v5007, %v5399
        %v5401 = vpop.f32.mrb[0].mxu0
        %v5402 = vadd.f32 %v5009, %v5401
        %v5403 = vpop.f32.mrb[0].mxu0
        %v5404 = vadd.f32 %v5011, %v5403
        %v5405 = vpop.f32.mrb[0].mxu0
        %v5406 = vadd.f32 %v5013, %v5405
        %5407 = vmatprep.mubr.bf16.mxu0 %v1919
        %5408 = vmatmul.mubr.bf16.gmra.mrb[0].mxu0 %v1918
        %v5409 = vpop.f32.mrb[0].mxu0
        %v5410 = vadd.f32 %v5017, %v5409
        %v5411 = vpop.f32.mrb[0].mxu0
        %v5412 = vadd.f32 %v5019, %v5411
        %v5413 = vpop.f32.mrb[0].mxu0
        %v5414 = vadd.f32 %v5021, %v5413
        %v5415 = vpop.f32.mrb[0].mxu0
        %v5416 = vadd.f32 %v5023, %v5415
        %5417 = vmatprep.mubr.bf16.mxu0 %v1925
        %5418 = vmatmul.mubr.bf16.gmra.mrb[0].mxu0 %v1924
        %v5419 = vpop.f32.mrb[0].mxu0
        %v5420 = vadd.f32 %v5027, %v5419
        %v5421 = vpop.f32.mrb[0].mxu0
        %v5422 = vadd.f32 %v5029, %v5421
        %v5423 = vpop.f32.mrb[0].mxu0
        %v5424 = vadd.f32 %v5031, %v5423
        %v5425 = vpop.f32.mrb[0].mxu0
        %v5426 = vadd.f32 %v5033, %v5425
        %5427 = vmatprep.mubr.bf16.mxu0 %v1931
        %5428 = vmatmul.mubr.bf16.gmra.mrb[0].mxu0 %v1930
        %v5429 = vpop.f32.mrb[0].mxu0
        %v5430 = vadd.f32 %v5037, %v5429
        %v5431 = vpop.f32.mrb[0].mxu0
        %v5432 = vadd.f32 %v5039, %v5431
        %v5433 = vpop.f32.mrb[0].mxu0
        %v5434 = vadd.f32 %v5041, %v5433
        %v5435 = vpop.f32.mrb[0].mxu0
        %v5436 = vadd.f32 %v5043, %v5435
        %5437 = vmatprep.mubr.bf16.mxu0 %v1937
        %5438 = vmatmul.mubr.bf16.gmra.mrb[0].mxu0 %v1936
        %v5439 = vpop.f32.mrb[0].mxu0
        %v5440 = vadd.f32 %v5047, %v5439
        %v5441 = vpop.f32.mrb[0].mxu0
        %v5442 = vadd.f32 %v5049, %v5441
        %v5443 = vpop.f32.mrb[0].mxu0
        %v5444 = vadd.f32 %v5051, %v5443
        %v5445 = vpop.f32.mrb[0].mxu0
        %v5446 = vadd.f32 %v5053, %v5445
        %5447 = vmatprep.mubr.bf16.mxu0 %v1943
        %5448 = vmatmul.mubr.bf16.gmra.mrb[0].mxu0 %v1942
        %v5449 = vpop.f32.mrb[0].mxu0
        %v5450 = vadd.f32 %v5057, %v5449
        %v5451 = vpop.f32.mrb[0].mxu0
        %v5452 = vadd.f32 %v5059, %v5451
        %v5453 = vpop.f32.mrb[0].mxu0
        %v5454 = vadd.f32 %v5061, %v5453
        %v5455 = vpop.f32.mrb[0].mxu0
        %v5456 = vadd.f32 %v5063, %v5455
        %5457 = vmatprep.mubr.bf16.mxu0 %v1949
        %5458 = vmatmul.mubr.bf16.gmra.mrb[0].mxu0 %v1948
        %v5459 = vpop.f32.mrb[0].mxu0
        %v5460 = vadd.f32 %v5067, %v5459
        %v5461 = vpop.f32.mrb[0].mxu0
        %v5462 = vadd.f32 %v5069, %v5461
        %v5463 = vpop.f32.mrb[0].mxu0
        %v5464 = vadd.f32 %v5071, %v5463
        %v5465 = vpop.f32.mrb[0].mxu0
        %v5466 = vadd.f32 %v5073, %v5465
        %5467 = vmatprep.mubr.bf16.mxu0 %v1955
        %5468 = vmatmul.mubr.bf16.gmra.mrb[0].mxu0 %v1954
        %v5469 = vpop.f32.mrb[0].mxu0
        %v5470 = vadd.f32 %v5077, %v5469
        %v5471 = vpop.f32.mrb[0].mxu0
        %v5472 = vadd.f32 %v5079, %v5471
        %v5473 = vpop.f32.mrb[0].mxu0
        %v5474 = vadd.f32 %v5081, %v5473
        %v5475 = vpop.f32.mrb[0].mxu0
        %v5476 = vadd.f32 %v5083, %v5475
        %5477 = vmatprep.mubr.bf16.mxu0 %v1961
        %5478 = vmatmul.mubr.bf16.gmra.mrb[0].mxu0 %v1960
        %v5479 = vpop.f32.mrb[0].mxu0
        %v5480 = vadd.f32 %v5087, %v5479
        %v5481 = vpop.f32.mrb[0].mxu0
        %v5482 = vadd.f32 %v5089, %v5481
        %v5483 = vpop.f32.mrb[0].mxu0
        %v5484 = vadd.f32 %v5091, %v5483
        %v5485 = vpop.f32.mrb[0].mxu0
        %v5486 = vadd.f32 %v5093, %v5485
        %5487 = vmatprep.mubr.bf16.mxu0 %v1967
        %5488 = vmatmul.mubr.bf16.gmra.mrb[0].mxu0 %v1966
        %v5489 = vpop.f32.mrb[0].mxu0
        %v5490 = vadd.f32 %v5097, %v5489
        %v5491 = vpop.f32.mrb[0].mxu0
        %v5492 = vadd.f32 %v5099, %v5491
        %v5493 = vpop.f32.mrb[0].mxu0
        %v5494 = vadd.f32 %v5101, %v5493
        %v5495 = vpop.f32.mrb[0].mxu0
        %v5496 = vadd.f32 %v5103, %v5495
        %5497 = vmatprep.mubr.bf16.mxu0 %v1973
        %5498 = vmatmul.mubr.bf16.gmra.mrb[0].mxu0 %v1972
        %v5499 = vpop.f32.mrb[0].mxu0
        %v5500 = vadd.f32 %v5107, %v5499
        %v5501 = vpop.f32.mrb[0].mxu0
        %v5502 = vadd.f32 %v5109, %v5501
        %v5503 = vpop.f32.mrb[0].mxu0
        %v5504 = vadd.f32 %v5111, %v5503
        %v5505 = vpop.f32.mrb[0].mxu0
        %v5506 = vadd.f32 %v5113, %v5505
        %5507 = vdwg.mxu0
        %v5508 = vld [vmem:[%s692] sm:$0xf]
        %v5510 = vlaneseq
        %v5511 = vshrl.u32 %v5510, 7
        %v5512 = vsub.s32 0, %v5511
        %v5513 = vrot.slane %v5508, %v5512
        %v5514 = vlaneseq
        %v5515 = vshrl.u32 %v5514, 7
        %v5516 = vsub.s32 1, %v5515
        %v5517 = vrot.slane %v5508, %v5516
        %v5518 = vlaneseq
        %v5519 = vshrl.u32 %v5518, 7
        %v5520 = vsub.s32 2, %v5519
        %v5521 = vrot.slane %v5508, %v5520
        %v5522 = vlaneseq
        %v5523 = vshrl.u32 %v5522, 7
        %v5524 = vsub.s32 3, %v5523
        %v5525 = vrot.slane %v5508, %v5524
        %v5530 = vmul.f32 %v3971, %v5513
        %v5531 = vmul.f32 %v3973, %v5517
        %v5532 = vmul.f32 %v5150, %v5521
        %v5533 = vmul.f32 %v5152, %v5525
        %v5534 = vmul.f32 %v3975, %v5513
        %v5535 = vmul.f32 %v3977, %v5517
        %v5536 = vmul.f32 %v5154, %v5521
        %v5537 = vmul.f32 %v5156, %v5525
        %v5538 = vmul.f32 %v3981, %v5513
        %v5539 = vmul.f32 %v3983, %v5517
        %v5540 = vmul.f32 %v5160, %v5521
        %v5541 = vmul.f32 %v5162, %v5525
        %v5542 = vmul.f32 %v3985, %v5513
        %v5543 = vmul.f32 %v3987, %v5517
        %v5544 = vmul.f32 %v5164, %v5521
        %v5545 = vmul.f32 %v5166, %v5525
        %v5546 = vmul.f32 %v3991, %v5513
        %v5547 = vmul.f32 %v3993, %v5517
        %v5548 = vmul.f32 %v5170, %v5521
        %v5549 = vmul.f32 %v5172, %v5525
        %v5550 = vmul.f32 %v3995, %v5513
        %v5551 = vmul.f32 %v3997, %v5517
        %v5552 = vmul.f32 %v5174, %v5521
        %v5553 = vmul.f32 %v5176, %v5525
        %v5554 = vmul.f32 %v4001, %v5513
        %v5555 = vmul.f32 %v4003, %v5517
        %v5556 = vmul.f32 %v5180, %v5521
        %v5557 = vmul.f32 %v5182, %v5525
        %v5558 = vmul.f32 %v4005, %v5513
        %v5559 = vmul.f32 %v4007, %v5517
        %v5560 = vmul.f32 %v5184, %v5521
        %v5561 = vmul.f32 %v5186, %v5525
        %v5562 = vmul.f32 %v4011, %v5513
        %v5563 = vmul.f32 %v4013, %v5517
        %v5564 = vmul.f32 %v5190, %v5521
        %v5565 = vmul.f32 %v5192, %v5525
        %v5566 = vmul.f32 %v4015, %v5513
        %v5567 = vmul.f32 %v4017, %v5517
        %v5568 = vmul.f32 %v5194, %v5521
        %v5569 = vmul.f32 %v5196, %v5525
        %v5570 = vmul.f32 %v4021, %v5513
        %v5571 = vmul.f32 %v4023, %v5517
        %v5572 = vmul.f32 %v5200, %v5521
        %v5573 = vmul.f32 %v5202, %v5525
        %v5574 = vmul.f32 %v4025, %v5513
        %v5575 = vmul.f32 %v4027, %v5517
        %v5576 = vmul.f32 %v5204, %v5521
        %v5577 = vmul.f32 %v5206, %v5525
        %v5578 = vmul.f32 %v4031, %v5513
        %v5579 = vmul.f32 %v4033, %v5517
        %v5580 = vmul.f32 %v5210, %v5521
        %v5581 = vmul.f32 %v5212, %v5525
        %v5582 = vmul.f32 %v4035, %v5513
        %v5583 = vmul.f32 %v4037, %v5517
        %v5584 = vmul.f32 %v5214, %v5521
        %v5585 = vmul.f32 %v5216, %v5525
        %v5586 = vmul.f32 %v4041, %v5513
        %v5587 = vmul.f32 %v4043, %v5517
        %v5588 = vmul.f32 %v5220, %v5521
        %v5589 = vmul.f32 %v5222, %v5525
        %v5590 = vmul.f32 %v4045, %v5513
        %v5591 = vmul.f32 %v4047, %v5517
        %v5592 = vmul.f32 %v5224, %v5521
        %v5593 = vmul.f32 %v5226, %v5525
        %v5594 = vmul.f32 %v4051, %v5513
        %v5595 = vmul.f32 %v4053, %v5517
        %v5596 = vmul.f32 %v5230, %v5521
        %v5597 = vmul.f32 %v5232, %v5525
        %v5598 = vmul.f32 %v4055, %v5513
        %v5599 = vmul.f32 %v4057, %v5517
        %v5600 = vmul.f32 %v5234, %v5521
        %v5601 = vmul.f32 %v5236, %v5525
        %v5602 = vmul.f32 %v4061, %v5513
        %v5603 = vmul.f32 %v4063, %v5517
        %v5604 = vmul.f32 %v5240, %v5521
        %v5605 = vmul.f32 %v5242, %v5525
        %v5606 = vmul.f32 %v4065, %v5513
        %v5607 = vmul.f32 %v4067, %v5517
        %v5608 = vmul.f32 %v5244, %v5521
        %v5609 = vmul.f32 %v5246, %v5525
        %v5610 = vmul.f32 %v4071, %v5513
        %v5611 = vmul.f32 %v4073, %v5517
        %v5612 = vmul.f32 %v5250, %v5521
        %v5613 = vmul.f32 %v5252, %v5525
        %v5614 = vmul.f32 %v4075, %v5513
        %v5615 = vmul.f32 %v4077, %v5517
        %v5616 = vmul.f32 %v5254, %v5521
        %v5617 = vmul.f32 %v5256, %v5525
        %v5618 = vmul.f32 %v4081, %v5513
        %v5619 = vmul.f32 %v4083, %v5517
        %v5620 = vmul.f32 %v5260, %v5521
        %v5621 = vmul.f32 %v5262, %v5525
        %v5622 = vmul.f32 %v4085, %v5513
        %v5623 = vmul.f32 %v4087, %v5517
        %v5624 = vmul.f32 %v5264, %v5521
        %v5625 = vmul.f32 %v5266, %v5525
        %v5626 = vmul.f32 %v4091, %v5513
        %v5627 = vmul.f32 %v4093, %v5517
        %v5628 = vmul.f32 %v5270, %v5521
        %v5629 = vmul.f32 %v5272, %v5525
        %v5630 = vmul.f32 %v4095, %v5513
        %v5631 = vmul.f32 %v4097, %v5517
        %v5632 = vmul.f32 %v5274, %v5521
        %v5633 = vmul.f32 %v5276, %v5525
        %v5634 = vmul.f32 %v4101, %v5513
        %v5635 = vmul.f32 %v4103, %v5517
        %v5636 = vmul.f32 %v5280, %v5521
        %v5637 = vmul.f32 %v5282, %v5525
        %v5638 = vmul.f32 %v4105, %v5513
        %v5639 = vmul.f32 %v4107, %v5517
        %v5640 = vmul.f32 %v5284, %v5521
        %v5641 = vmul.f32 %v5286, %v5525
        %v5642 = vmul.f32 %v4111, %v5513
        %v5643 = vmul.f32 %v4113, %v5517
        %v5644 = vmul.f32 %v5290, %v5521
        %v5645 = vmul.f32 %v5292, %v5525
        %v5646 = vmul.f32 %v4115, %v5513
        %v5647 = vmul.f32 %v4117, %v5517
        %v5648 = vmul.f32 %v5294, %v5521
        %v5649 = vmul.f32 %v5296, %v5525
        %v5650 = vmul.f32 %v4121, %v5513
        %v5651 = vmul.f32 %v4123, %v5517
        %v5652 = vmul.f32 %v5300, %v5521
        %v5653 = vmul.f32 %v5302, %v5525
        %v5654 = vmul.f32 %v4125, %v5513
        %v5655 = vmul.f32 %v4127, %v5517
        %v5656 = vmul.f32 %v5304, %v5521
        %v5657 = vmul.f32 %v5306, %v5525
        %v5658 = vmul.f32 %v4131, %v5513
        %v5659 = vmul.f32 %v4133, %v5517
        %v5660 = vmul.f32 %v5310, %v5521
        %v5661 = vmul.f32 %v5312, %v5525
        %v5662 = vmul.f32 %v4135, %v5513
        %v5663 = vmul.f32 %v4137, %v5517
        %v5664 = vmul.f32 %v5314, %v5521
        %v5665 = vmul.f32 %v5316, %v5525
        %v5666 = vmul.f32 %v4141, %v5513
        %v5667 = vmul.f32 %v4143, %v5517
        %v5668 = vmul.f32 %v5320, %v5521
        %v5669 = vmul.f32 %v5322, %v5525
        %v5670 = vmul.f32 %v4145, %v5513
        %v5671 = vmul.f32 %v4147, %v5517
        %v5672 = vmul.f32 %v5324, %v5521
        %v5673 = vmul.f32 %v5326, %v5525
        %v5674 = vmul.f32 %v4151, %v5513
        %v5675 = vmul.f32 %v4153, %v5517
        %v5676 = vmul.f32 %v5330, %v5521
        %v5677 = vmul.f32 %v5332, %v5525
        %v5678 = vmul.f32 %v4155, %v5513
        %v5679 = vmul.f32 %v4157, %v5517
        %v5680 = vmul.f32 %v5334, %v5521
        %v5681 = vmul.f32 %v5336, %v5525
        %v5682 = vmul.f32 %v4161, %v5513
        %v5683 = vmul.f32 %v4163, %v5517
        %v5684 = vmul.f32 %v5340, %v5521
        %v5685 = vmul.f32 %v5342, %v5525
        %v5686 = vmul.f32 %v4165, %v5513
        %v5687 = vmul.f32 %v4167, %v5517
        %v5688 = vmul.f32 %v5344, %v5521
        %v5689 = vmul.f32 %v5346, %v5525
        %v5690 = vmul.f32 %v4171, %v5513
        %v5691 = vmul.f32 %v4173, %v5517
        %v5692 = vmul.f32 %v5350, %v5521
        %v5693 = vmul.f32 %v5352, %v5525
        %v5694 = vmul.f32 %v4175, %v5513
        %v5695 = vmul.f32 %v4177, %v5517
        %v5696 = vmul.f32 %v5354, %v5521
        %v5697 = vmul.f32 %v5356, %v5525
        %v5698 = vmul.f32 %v4181, %v5513
        %v5699 = vmul.f32 %v4183, %v5517
        %v5700 = vmul.f32 %v5360, %v5521
        %v5701 = vmul.f32 %v5362, %v5525
        %v5702 = vmul.f32 %v4185, %v5513
        %v5703 = vmul.f32 %v4187, %v5517
        %v5704 = vmul.f32 %v5364, %v5521
        %v5705 = vmul.f32 %v5366, %v5525
        %v5706 = vmul.f32 %v4191, %v5513
        %v5707 = vmul.f32 %v4193, %v5517
        %v5708 = vmul.f32 %v5370, %v5521
        %v5709 = vmul.f32 %v5372, %v5525
        %v5710 = vmul.f32 %v4195, %v5513
        %v5711 = vmul.f32 %v4197, %v5517
        %v5712 = vmul.f32 %v5374, %v5521
        %v5713 = vmul.f32 %v5376, %v5525
        %v5714 = vmul.f32 %v4201, %v5513
        %v5715 = vmul.f32 %v4203, %v5517
        %v5716 = vmul.f32 %v5380, %v5521
        %v5717 = vmul.f32 %v5382, %v5525
        %v5718 = vmul.f32 %v4205, %v5513
        %v5719 = vmul.f32 %v4207, %v5517
        %v5720 = vmul.f32 %v5384, %v5521
        %v5721 = vmul.f32 %v5386, %v5525
        %v5722 = vmul.f32 %v4211, %v5513
        %v5723 = vmul.f32 %v4213, %v5517
        %v5724 = vmul.f32 %v5390, %v5521
        %v5725 = vmul.f32 %v5392, %v5525
        %v5726 = vmul.f32 %v4215, %v5513
        %v5727 = vmul.f32 %v4217, %v5517
        %v5728 = vmul.f32 %v5394, %v5521
        %v5729 = vmul.f32 %v5396, %v5525
        %v5730 = vmul.f32 %v4221, %v5513
        %v5731 = vmul.f32 %v4223, %v5517
        %v5732 = vmul.f32 %v5400, %v5521
        %v5733 = vmul.f32 %v5402, %v5525
        %v5734 = vmul.f32 %v4225, %v5513
        %v5735 = vmul.f32 %v4227, %v5517
        %v5736 = vmul.f32 %v5404, %v5521
        %v5737 = vmul.f32 %v5406, %v5525
        %v5738 = vmul.f32 %v4231, %v5513
        %v5739 = vmul.f32 %v4233, %v5517
        %v5740 = vmul.f32 %v5410, %v5521
        %v5741 = vmul.f32 %v5412, %v5525
        %v5742 = vmul.f32 %v4235, %v5513
        %v5743 = vmul.f32 %v4237, %v5517
        %v5744 = vmul.f32 %v5414, %v5521
        %v5745 = vmul.f32 %v5416, %v5525
        %v5746 = vmul.f32 %v4241, %v5513
        %v5747 = vmul.f32 %v4243, %v5517
        %v5748 = vmul.f32 %v5420, %v5521
        %v5749 = vmul.f32 %v5422, %v5525
        %v5750 = vmul.f32 %v4245, %v5513
        %v5751 = vmul.f32 %v4247, %v5517
        %v5752 = vmul.f32 %v5424, %v5521
        %v5753 = vmul.f32 %v5426, %v5525
        %v5754 = vmul.f32 %v4251, %v5513
        %v5755 = vmul.f32 %v4253, %v5517
        %v5756 = vmul.f32 %v5430, %v5521
        %v5757 = vmul.f32 %v5432, %v5525
        %v5758 = vmul.f32 %v4255, %v5513
        %v5759 = vmul.f32 %v4257, %v5517
        %v5760 = vmul.f32 %v5434, %v5521
        %v5761 = vmul.f32 %v5436, %v5525
        %v5762 = vmul.f32 %v4261, %v5513
        %v5763 = vmul.f32 %v4263, %v5517
        %v5764 = vmul.f32 %v5440, %v5521
        %v5765 = vmul.f32 %v5442, %v5525
        %v5766 = vmul.f32 %v4265, %v5513
        %v5767 = vmul.f32 %v4267, %v5517
        %v5768 = vmul.f32 %v5444, %v5521
        %v5769 = vmul.f32 %v5446, %v5525
        %v5770 = vmul.f32 %v4271, %v5513
        %v5771 = vmul.f32 %v4273, %v5517
        %v5772 = vmul.f32 %v5450, %v5521
        %v5773 = vmul.f32 %v5452, %v5525
        %v5774 = vmul.f32 %v4275, %v5513
        %v5775 = vmul.f32 %v4277, %v5517
        %v5776 = vmul.f32 %v5454, %v5521
        %v5777 = vmul.f32 %v5456, %v5525
        %v5778 = vmul.f32 %v4281, %v5513
        %v5779 = vmul.f32 %v4283, %v5517
        %v5780 = vmul.f32 %v5460, %v5521
        %v5781 = vmul.f32 %v5462, %v5525
        %v5782 = vmul.f32 %v4285, %v5513
        %v5783 = vmul.f32 %v4287, %v5517
        %v5784 = vmul.f32 %v5464, %v5521
        %v5785 = vmul.f32 %v5466, %v5525
        %v5786 = vmul.f32 %v4291, %v5513
        %v5787 = vmul.f32 %v4293, %v5517
        %v5788 = vmul.f32 %v5470, %v5521
        %v5789 = vmul.f32 %v5472, %v5525
        %v5790 = vmul.f32 %v4295, %v5513
        %v5791 = vmul.f32 %v4297, %v5517
        %v5792 = vmul.f32 %v5474, %v5521
        %v5793 = vmul.f32 %v5476, %v5525
        %v5794 = vmul.f32 %v4301, %v5513
        %v5795 = vmul.f32 %v4303, %v5517
        %v5796 = vmul.f32 %v5480, %v5521
        %v5797 = vmul.f32 %v5482, %v5525
        %v5798 = vmul.f32 %v4305, %v5513
        %v5799 = vmul.f32 %v4307, %v5517
        %v5800 = vmul.f32 %v5484, %v5521
        %v5801 = vmul.f32 %v5486, %v5525
        %v5802 = vmul.f32 %v4311, %v5513
        %v5803 = vmul.f32 %v4313, %v5517
        %v5804 = vmul.f32 %v5490, %v5521
        %v5805 = vmul.f32 %v5492, %v5525
        %v5806 = vmul.f32 %v4315, %v5513
        %v5807 = vmul.f32 %v4317, %v5517
        %v5808 = vmul.f32 %v5494, %v5521
        %v5809 = vmul.f32 %v5496, %v5525
        %v5810 = vmul.f32 %v4321, %v5513
        %v5811 = vmul.f32 %v4323, %v5517
        %v5812 = vmul.f32 %v5500, %v5521
        %v5813 = vmul.f32 %v5502, %v5525
        %v5814 = vmul.f32 %v4325, %v5513
        %v5815 = vmul.f32 %v4327, %v5517
        %v5816 = vmul.f32 %v5504, %v5521
        %v5817 = vmul.f32 %v5506, %v5525
        %v5818 = vld [vmem:[%s697] sm:$0xf]
        %v5820 = vlaneseq
        %v5821 = vshrl.u32 %v5820, 7
        %v5822 = vsub.s32 0, %v5821
        %v5823 = vrot.slane %v5818, %v5822
        %v5824 = vlaneseq
        %v5825 = vshrl.u32 %v5824, 7
        %v5826 = vsub.s32 1, %v5825
        %v5827 = vrot.slane %v5818, %v5826
        %v5828 = vlaneseq
        %v5829 = vshrl.u32 %v5828, 7
        %v5830 = vsub.s32 2, %v5829
        %v5831 = vrot.slane %v5818, %v5830
        %v5832 = vlaneseq
        %v5833 = vshrl.u32 %v5832, 7
        %v5834 = vsub.s32 3, %v5833
        %v5835 = vrot.slane %v5818, %v5834
        %v5840 = vadd.f32 %v5530, %v5823
        %v5841 = vadd.f32 %v5531, %v5827
        %v5842 = vadd.f32 %v5532, %v5831
        %v5843 = vadd.f32 %v5533, %v5835
        %v5844 = vadd.f32 %v5534, %v5823
        %v5845 = vadd.f32 %v5535, %v5827
        %v5846 = vadd.f32 %v5536, %v5831
        %v5847 = vadd.f32 %v5537, %v5835
        %v5848 = vadd.f32 %v5538, %v5823
        %v5849 = vadd.f32 %v5539, %v5827
        %v5850 = vadd.f32 %v5540, %v5831
        %v5851 = vadd.f32 %v5541, %v5835
        %v5852 = vadd.f32 %v5542, %v5823
        %v5853 = vadd.f32 %v5543, %v5827
        %v5854 = vadd.f32 %v5544, %v5831
        %v5855 = vadd.f32 %v5545, %v5835
        %v5856 = vadd.f32 %v5546, %v5823
        %v5857 = vadd.f32 %v5547, %v5827
        %v5858 = vadd.f32 %v5548, %v5831
        %v5859 = vadd.f32 %v5549, %v5835
        %v5860 = vadd.f32 %v5550, %v5823
        %v5861 = vadd.f32 %v5551, %v5827
        %v5862 = vadd.f32 %v5552, %v5831
        %v5863 = vadd.f32 %v5553, %v5835
        %v5864 = vadd.f32 %v5554, %v5823
        %v5865 = vadd.f32 %v5555, %v5827
        %v5866 = vadd.f32 %v5556, %v5831
        %v5867 = vadd.f32 %v5557, %v5835
        %v5868 = vadd.f32 %v5558, %v5823
        %v5869 = vadd.f32 %v5559, %v5827
        %v5870 = vadd.f32 %v5560, %v5831
        %v5871 = vadd.f32 %v5561, %v5835
        %v5872 = vadd.f32 %v5562, %v5823
        %v5873 = vadd.f32 %v5563, %v5827
        %v5874 = vadd.f32 %v5564, %v5831
        %v5875 = vadd.f32 %v5565, %v5835
        %v5876 = vadd.f32 %v5566, %v5823
        %v5877 = vadd.f32 %v5567, %v5827
        %v5878 = vadd.f32 %v5568, %v5831
        %v5879 = vadd.f32 %v5569, %v5835
        %v5880 = vadd.f32 %v5570, %v5823
        %v5881 = vadd.f32 %v5571, %v5827
        %v5882 = vadd.f32 %v5572, %v5831
        %v5883 = vadd.f32 %v5573, %v5835
        %v5884 = vadd.f32 %v5574, %v5823
        %v5885 = vadd.f32 %v5575, %v5827
        %v5886 = vadd.f32 %v5576, %v5831
        %v5887 = vadd.f32 %v5577, %v5835
        %v5888 = vadd.f32 %v5578, %v5823
        %v5889 = vadd.f32 %v5579, %v5827
        %v5890 = vadd.f32 %v5580, %v5831
        %v5891 = vadd.f32 %v5581, %v5835
        %v5892 = vadd.f32 %v5582, %v5823
        %v5893 = vadd.f32 %v5583, %v5827
        %v5894 = vadd.f32 %v5584, %v5831
        %v5895 = vadd.f32 %v5585, %v5835
        %v5896 = vadd.f32 %v5586, %v5823
        %v5897 = vadd.f32 %v5587, %v5827
        %v5898 = vadd.f32 %v5588, %v5831
        %v5899 = vadd.f32 %v5589, %v5835
        %v5900 = vadd.f32 %v5590, %v5823
        %v5901 = vadd.f32 %v5591, %v5827
        %v5902 = vadd.f32 %v5592, %v5831
        %v5903 = vadd.f32 %v5593, %v5835
        %v5904 = vadd.f32 %v5594, %v5823
        %v5905 = vadd.f32 %v5595, %v5827
        %v5906 = vadd.f32 %v5596, %v5831
        %v5907 = vadd.f32 %v5597, %v5835
        %v5908 = vadd.f32 %v5598, %v5823
        %v5909 = vadd.f32 %v5599, %v5827
        %v5910 = vadd.f32 %v5600, %v5831
        %v5911 = vadd.f32 %v5601, %v5835
        %v5912 = vadd.f32 %v5602, %v5823
        %v5913 = vadd.f32 %v5603, %v5827
        %v5914 = vadd.f32 %v5604, %v5831
        %v5915 = vadd.f32 %v5605, %v5835
        %v5916 = vadd.f32 %v5606, %v5823
        %v5917 = vadd.f32 %v5607, %v5827
        %v5918 = vadd.f32 %v5608, %v5831
        %v5919 = vadd.f32 %v5609, %v5835
        %v5920 = vadd.f32 %v5610, %v5823
        %v5921 = vadd.f32 %v5611, %v5827
        %v5922 = vadd.f32 %v5612, %v5831
        %v5923 = vadd.f32 %v5613, %v5835
        %v5924 = vadd.f32 %v5614, %v5823
        %v5925 = vadd.f32 %v5615, %v5827
        %v5926 = vadd.f32 %v5616, %v5831
        %v5927 = vadd.f32 %v5617, %v5835
        %v5928 = vadd.f32 %v5618, %v5823
        %v5929 = vadd.f32 %v5619, %v5827
        %v5930 = vadd.f32 %v5620, %v5831
        %v5931 = vadd.f32 %v5621, %v5835
        %v5932 = vadd.f32 %v5622, %v5823
        %v5933 = vadd.f32 %v5623, %v5827
        %v5934 = vadd.f32 %v5624, %v5831
        %v5935 = vadd.f32 %v5625, %v5835
        %v5936 = vadd.f32 %v5626, %v5823
        %v5937 = vadd.f32 %v5627, %v5827
        %v5938 = vadd.f32 %v5628, %v5831
        %v5939 = vadd.f32 %v5629, %v5835
        %v5940 = vadd.f32 %v5630, %v5823
        %v5941 = vadd.f32 %v5631, %v5827
        %v5942 = vadd.f32 %v5632, %v5831
        %v5943 = vadd.f32 %v5633, %v5835
        %v5944 = vadd.f32 %v5634, %v5823
        %v5945 = vadd.f32 %v5635, %v5827
        %v5946 = vadd.f32 %v5636, %v5831
        %v5947 = vadd.f32 %v5637, %v5835
        %v5948 = vadd.f32 %v5638, %v5823
        %v5949 = vadd.f32 %v5639, %v5827
        %v5950 = vadd.f32 %v5640, %v5831
        %v5951 = vadd.f32 %v5641, %v5835
        %v5952 = vadd.f32 %v5642, %v5823
        %v5953 = vadd.f32 %v5643, %v5827
        %v5954 = vadd.f32 %v5644, %v5831
        %v5955 = vadd.f32 %v5645, %v5835
        %v5956 = vadd.f32 %v5646, %v5823
        %v5957 = vadd.f32 %v5647, %v5827
        %v5958 = vadd.f32 %v5648, %v5831
        %v5959 = vadd.f32 %v5649, %v5835
        %v5960 = vadd.f32 %v5650, %v5823
        %v5961 = vadd.f32 %v5651, %v5827
        %v5962 = vadd.f32 %v5652, %v5831
        %v5963 = vadd.f32 %v5653, %v5835
        %v5964 = vadd.f32 %v5654, %v5823
        %v5965 = vadd.f32 %v5655, %v5827
        %v5966 = vadd.f32 %v5656, %v5831
        %v5967 = vadd.f32 %v5657, %v5835
        %v5968 = vadd.f32 %v5658, %v5823
        %v5969 = vadd.f32 %v5659, %v5827
        %v5970 = vadd.f32 %v5660, %v5831
        %v5971 = vadd.f32 %v5661, %v5835
        %v5972 = vadd.f32 %v5662, %v5823
        %v5973 = vadd.f32 %v5663, %v5827
        %v5974 = vadd.f32 %v5664, %v5831
        %v5975 = vadd.f32 %v5665, %v5835
        %v5976 = vadd.f32 %v5666, %v5823
        %v5977 = vadd.f32 %v5667, %v5827
        %v5978 = vadd.f32 %v5668, %v5831
        %v5979 = vadd.f32 %v5669, %v5835
        %v5980 = vadd.f32 %v5670, %v5823
        %v5981 = vadd.f32 %v5671, %v5827
        %v5982 = vadd.f32 %v5672, %v5831
        %v5983 = vadd.f32 %v5673, %v5835
        %v5984 = vadd.f32 %v5674, %v5823
        %v5985 = vadd.f32 %v5675, %v5827
        %v5986 = vadd.f32 %v5676, %v5831
        %v5987 = vadd.f32 %v5677, %v5835
        %v5988 = vadd.f32 %v5678, %v5823
        %v5989 = vadd.f32 %v5679, %v5827
        %v5990 = vadd.f32 %v5680, %v5831
        %v5991 = vadd.f32 %v5681, %v5835
        %v5992 = vadd.f32 %v5682, %v5823
        %v5993 = vadd.f32 %v5683, %v5827
        %v5994 = vadd.f32 %v5684, %v5831
        %v5995 = vadd.f32 %v5685, %v5835
        %v5996 = vadd.f32 %v5686, %v5823
        %v5997 = vadd.f32 %v5687, %v5827
        %v5998 = vadd.f32 %v5688, %v5831
        %v5999 = vadd.f32 %v5689, %v5835
        %v6000 = vadd.f32 %v5690, %v5823
        %v6001 = vadd.f32 %v5691, %v5827
        %v6002 = vadd.f32 %v5692, %v5831
        %v6003 = vadd.f32 %v5693, %v5835
        %v6004 = vadd.f32 %v5694, %v5823
        %v6005 = vadd.f32 %v5695, %v5827
        %v6006 = vadd.f32 %v5696, %v5831
        %v6007 = vadd.f32 %v5697, %v5835
        %v6008 = vadd.f32 %v5698, %v5823
        %v6009 = vadd.f32 %v5699, %v5827
        %v6010 = vadd.f32 %v5700, %v5831
        %v6011 = vadd.f32 %v5701, %v5835
        %v6012 = vadd.f32 %v5702, %v5823
        %v6013 = vadd.f32 %v5703, %v5827
        %v6014 = vadd.f32 %v5704, %v5831
        %v6015 = vadd.f32 %v5705, %v5835
        %v6016 = vadd.f32 %v5706, %v5823
        %v6017 = vadd.f32 %v5707, %v5827
        %v6018 = vadd.f32 %v5708, %v5831
        %v6019 = vadd.f32 %v5709, %v5835
        %v6020 = vadd.f32 %v5710, %v5823
        %v6021 = vadd.f32 %v5711, %v5827
        %v6022 = vadd.f32 %v5712, %v5831
        %v6023 = vadd.f32 %v5713, %v5835
        %v6024 = vadd.f32 %v5714, %v5823
        %v6025 = vadd.f32 %v5715, %v5827
        %v6026 = vadd.f32 %v5716, %v5831
        %v6027 = vadd.f32 %v5717, %v5835
        %v6028 = vadd.f32 %v5718, %v5823
        %v6029 = vadd.f32 %v5719, %v5827
        %v6030 = vadd.f32 %v5720, %v5831
        %v6031 = vadd.f32 %v5721, %v5835
        %v6032 = vadd.f32 %v5722, %v5823
        %v6033 = vadd.f32 %v5723, %v5827
        %v6034 = vadd.f32 %v5724, %v5831
        %v6035 = vadd.f32 %v5725, %v5835
        %v6036 = vadd.f32 %v5726, %v5823
        %v6037 = vadd.f32 %v5727, %v5827
        %v6038 = vadd.f32 %v5728, %v5831
        %v6039 = vadd.f32 %v5729, %v5835
        %v6040 = vadd.f32 %v5730, %v5823
        %v6041 = vadd.f32 %v5731, %v5827
        %v6042 = vadd.f32 %v5732, %v5831
        %v6043 = vadd.f32 %v5733, %v5835
        %v6044 = vadd.f32 %v5734, %v5823
        %v6045 = vadd.f32 %v5735, %v5827
        %v6046 = vadd.f32 %v5736, %v5831
        %v6047 = vadd.f32 %v5737, %v5835
        %v6048 = vadd.f32 %v5738, %v5823
        %v6049 = vadd.f32 %v5739, %v5827
        %v6050 = vadd.f32 %v5740, %v5831
        %v6051 = vadd.f32 %v5741, %v5835
        %v6052 = vadd.f32 %v5742, %v5823
        %v6053 = vadd.f32 %v5743, %v5827
        %v6054 = vadd.f32 %v5744, %v5831
        %v6055 = vadd.f32 %v5745, %v5835
        %v6056 = vadd.f32 %v5746, %v5823
        %v6057 = vadd.f32 %v5747, %v5827
        %v6058 = vadd.f32 %v5748, %v5831
        %v6059 = vadd.f32 %v5749, %v5835
        %v6060 = vadd.f32 %v5750, %v5823
        %v6061 = vadd.f32 %v5751, %v5827
        %v6062 = vadd.f32 %v5752, %v5831
        %v6063 = vadd.f32 %v5753, %v5835
        %v6064 = vadd.f32 %v5754, %v5823
        %v6065 = vadd.f32 %v5755, %v5827
        %v6066 = vadd.f32 %v5756, %v5831
        %v6067 = vadd.f32 %v5757, %v5835
        %v6068 = vadd.f32 %v5758, %v5823
        %v6069 = vadd.f32 %v5759, %v5827
        %v6070 = vadd.f32 %v5760, %v5831
        %v6071 = vadd.f32 %v5761, %v5835
        %v6072 = vadd.f32 %v5762, %v5823
        %v6073 = vadd.f32 %v5763, %v5827
        %v6074 = vadd.f32 %v5764, %v5831
        %v6075 = vadd.f32 %v5765, %v5835
        %v6076 = vadd.f32 %v5766, %v5823
        %v6077 = vadd.f32 %v5767, %v5827
        %v6078 = vadd.f32 %v5768, %v5831
        %v6079 = vadd.f32 %v5769, %v5835
        %v6080 = vadd.f32 %v5770, %v5823
        %v6081 = vadd.f32 %v5771, %v5827
        %v6082 = vadd.f32 %v5772, %v5831
        %v6083 = vadd.f32 %v5773, %v5835
        %v6084 = vadd.f32 %v5774, %v5823
        %v6085 = vadd.f32 %v5775, %v5827
        %v6086 = vadd.f32 %v5776, %v5831
        %v6087 = vadd.f32 %v5777, %v5835
        %v6088 = vadd.f32 %v5778, %v5823
        %v6089 = vadd.f32 %v5779, %v5827
        %v6090 = vadd.f32 %v5780, %v5831
        %v6091 = vadd.f32 %v5781, %v5835
        %v6092 = vadd.f32 %v5782, %v5823
        %v6093 = vadd.f32 %v5783, %v5827
        %v6094 = vadd.f32 %v5784, %v5831
        %v6095 = vadd.f32 %v5785, %v5835
        %v6096 = vadd.f32 %v5786, %v5823
        %v6097 = vadd.f32 %v5787, %v5827
        %v6098 = vadd.f32 %v5788, %v5831
        %v6099 = vadd.f32 %v5789, %v5835
        %v6100 = vadd.f32 %v5790, %v5823
        %v6101 = vadd.f32 %v5791, %v5827
        %v6102 = vadd.f32 %v5792, %v5831
        %v6103 = vadd.f32 %v5793, %v5835
        %v6104 = vadd.f32 %v5794, %v5823
        %v6105 = vadd.f32 %v5795, %v5827
        %v6106 = vadd.f32 %v5796, %v5831
        %v6107 = vadd.f32 %v5797, %v5835
        %v6108 = vadd.f32 %v5798, %v5823
        %v6109 = vadd.f32 %v5799, %v5827
        %v6110 = vadd.f32 %v5800, %v5831
        %v6111 = vadd.f32 %v5801, %v5835
        %v6112 = vadd.f32 %v5802, %v5823
        %v6113 = vadd.f32 %v5803, %v5827
        %v6114 = vadd.f32 %v5804, %v5831
        %v6115 = vadd.f32 %v5805, %v5835
        %v6116 = vadd.f32 %v5806, %v5823
        %v6117 = vadd.f32 %v5807, %v5827
        %v6118 = vadd.f32 %v5808, %v5831
        %v6119 = vadd.f32 %v5809, %v5835
        %v6120 = vadd.f32 %v5810, %v5823
        %v6121 = vadd.f32 %v5811, %v5827
        %v6122 = vadd.f32 %v5812, %v5831
        %v6123 = vadd.f32 %v5813, %v5835
        %v6124 = vadd.f32 %v5814, %v5823
        %v6125 = vadd.f32 %v5815, %v5827
        %v6126 = vadd.f32 %v5816, %v5831
        %v6127 = vadd.f32 %v5817, %v5835
        %v6128 = vmax.f32 %v5840, 0.0
        %v6129 = vmax.f32 %v5841, 0.0
        %v6130 = vmax.f32 %v5842, 0.0
        %v6131 = vmax.f32 %v5843, 0.0
        %v6132 = vmax.f32 %v5844, 0.0
        %v6133 = vmax.f32 %v5845, 0.0
        %v6134 = vmax.f32 %v5846, 0.0
        %v6135 = vmax.f32 %v5847, 0.0
        %v6136 = vmax.f32 %v5848, 0.0
        %v6137 = vmax.f32 %v5849, 0.0
        %v6138 = vmax.f32 %v5850, 0.0
        %v6139 = vmax.f32 %v5851, 0.0
        %v6140 = vmax.f32 %v5852, 0.0
        %v6141 = vmax.f32 %v5853, 0.0
        %v6142 = vmax.f32 %v5854, 0.0
        %v6143 = vmax.f32 %v5855, 0.0
        %v6144 = vmax.f32 %v5856, 0.0
        %v6145 = vmax.f32 %v5857, 0.0
        %v6146 = vmax.f32 %v5858, 0.0
        %v6147 = vmax.f32 %v5859, 0.0
        %v6148 = vmax.f32 %v5860, 0.0
        %v6149 = vmax.f32 %v5861, 0.0
        %v6150 = vmax.f32 %v5862, 0.0
        %v6151 = vmax.f32 %v5863, 0.0
        %v6152 = vmax.f32 %v5864, 0.0
        %v6153 = vmax.f32 %v5865, 0.0
        %v6154 = vmax.f32 %v5866, 0.0
        %v6155 = vmax.f32 %v5867, 0.0
        %v6156 = vmax.f32 %v5868, 0.0
        %v6157 = vmax.f32 %v5869, 0.0
        %v6158 = vmax.f32 %v5870, 0.0
        %v6159 = vmax.f32 %v5871, 0.0
        %v6160 = vmax.f32 %v5872, 0.0
        %v6161 = vmax.f32 %v5873, 0.0
        %v6162 = vmax.f32 %v5874, 0.0
        %v6163 = vmax.f32 %v5875, 0.0
        %v6164 = vmax.f32 %v5876, 0.0
        %v6165 = vmax.f32 %v5877, 0.0
        %v6166 = vmax.f32 %v5878, 0.0
        %v6167 = vmax.f32 %v5879, 0.0
        %v6168 = vmax.f32 %v5880, 0.0
        %v6169 = vmax.f32 %v5881, 0.0
        %v6170 = vmax.f32 %v5882, 0.0
        %v6171 = vmax.f32 %v5883, 0.0
        %v6172 = vmax.f32 %v5884, 0.0
        %v6173 = vmax.f32 %v5885, 0.0
        %v6174 = vmax.f32 %v5886, 0.0
        %v6175 = vmax.f32 %v5887, 0.0
        %v6176 = vmax.f32 %v5888, 0.0
        %v6177 = vmax.f32 %v5889, 0.0
        %v6178 = vmax.f32 %v5890, 0.0
        %v6179 = vmax.f32 %v5891, 0.0
        %v6180 = vmax.f32 %v5892, 0.0
        %v6181 = vmax.f32 %v5893, 0.0
        %v6182 = vmax.f32 %v5894, 0.0
        %v6183 = vmax.f32 %v5895, 0.0
        %v6184 = vmax.f32 %v5896, 0.0
        %v6185 = vmax.f32 %v5897, 0.0
        %v6186 = vmax.f32 %v5898, 0.0
        %v6187 = vmax.f32 %v5899, 0.0
        %v6188 = vmax.f32 %v5900, 0.0
        %v6189 = vmax.f32 %v5901, 0.0
        %v6190 = vmax.f32 %v5902, 0.0
        %v6191 = vmax.f32 %v5903, 0.0
        %v6192 = vmax.f32 %v5904, 0.0
        %v6193 = vmax.f32 %v5905, 0.0
        %v6194 = vmax.f32 %v5906, 0.0
        %v6195 = vmax.f32 %v5907, 0.0
        %v6196 = vmax.f32 %v5908, 0.0
        %v6197 = vmax.f32 %v5909, 0.0
        %v6198 = vmax.f32 %v5910, 0.0
        %v6199 = vmax.f32 %v5911, 0.0
        %v6200 = vmax.f32 %v5912, 0.0
        %v6201 = vmax.f32 %v5913, 0.0
        %v6202 = vmax.f32 %v5914, 0.0
        %v6203 = vmax.f32 %v5915, 0.0
        %v6204 = vmax.f32 %v5916, 0.0
        %v6205 = vmax.f32 %v5917, 0.0
        %v6206 = vmax.f32 %v5918, 0.0
        %v6207 = vmax.f32 %v5919, 0.0
        %v6208 = vmax.f32 %v5920, 0.0
        %v6209 = vmax.f32 %v5921, 0.0
        %v6210 = vmax.f32 %v5922, 0.0
        %v6211 = vmax.f32 %v5923, 0.0
        %v6212 = vmax.f32 %v5924, 0.0
        %v6213 = vmax.f32 %v5925, 0.0
        %v6214 = vmax.f32 %v5926, 0.0
        %v6215 = vmax.f32 %v5927, 0.0
        %v6216 = vmax.f32 %v5928, 0.0
        %v6217 = vmax.f32 %v5929, 0.0
        %v6218 = vmax.f32 %v5930, 0.0
        %v6219 = vmax.f32 %v5931, 0.0
        %v6220 = vmax.f32 %v5932, 0.0
        %v6221 = vmax.f32 %v5933, 0.0
        %v6222 = vmax.f32 %v5934, 0.0
        %v6223 = vmax.f32 %v5935, 0.0
        %v6224 = vmax.f32 %v5936, 0.0
        %v6225 = vmax.f32 %v5937, 0.0
        %v6226 = vmax.f32 %v5938, 0.0
        %v6227 = vmax.f32 %v5939, 0.0
        %v6228 = vmax.f32 %v5940, 0.0
        %v6229 = vmax.f32 %v5941, 0.0
        %v6230 = vmax.f32 %v5942, 0.0
        %v6231 = vmax.f32 %v5943, 0.0
        %v6232 = vmax.f32 %v5944, 0.0
        %v6233 = vmax.f32 %v5945, 0.0
        %v6234 = vmax.f32 %v5946, 0.0
        %v6235 = vmax.f32 %v5947, 0.0
        %v6236 = vmax.f32 %v5948, 0.0
        %v6237 = vmax.f32 %v5949, 0.0
        %v6238 = vmax.f32 %v5950, 0.0
        %v6239 = vmax.f32 %v5951, 0.0
        %v6240 = vmax.f32 %v5952, 0.0
        %v6241 = vmax.f32 %v5953, 0.0
        %v6242 = vmax.f32 %v5954, 0.0
        %v6243 = vmax.f32 %v5955, 0.0
        %v6244 = vmax.f32 %v5956, 0.0
        %v6245 = vmax.f32 %v5957, 0.0
        %v6246 = vmax.f32 %v5958, 0.0
        %v6247 = vmax.f32 %v5959, 0.0
        %v6248 = vmax.f32 %v5960, 0.0
        %v6249 = vmax.f32 %v5961, 0.0
        %v6250 = vmax.f32 %v5962, 0.0
        %v6251 = vmax.f32 %v5963, 0.0
        %v6252 = vmax.f32 %v5964, 0.0
        %v6253 = vmax.f32 %v5965, 0.0
        %v6254 = vmax.f32 %v5966, 0.0
        %v6255 = vmax.f32 %v5967, 0.0
        %v6256 = vmax.f32 %v5968, 0.0
        %v6257 = vmax.f32 %v5969, 0.0
        %v6258 = vmax.f32 %v5970, 0.0
        %v6259 = vmax.f32 %v5971, 0.0
        %v6260 = vmax.f32 %v5972, 0.0
        %v6261 = vmax.f32 %v5973, 0.0
        %v6262 = vmax.f32 %v5974, 0.0
        %v6263 = vmax.f32 %v5975, 0.0
        %v6264 = vmax.f32 %v5976, 0.0
        %v6265 = vmax.f32 %v5977, 0.0
        %v6266 = vmax.f32 %v5978, 0.0
        %v6267 = vmax.f32 %v5979, 0.0
        %v6268 = vmax.f32 %v5980, 0.0
        %v6269 = vmax.f32 %v5981, 0.0
        %v6270 = vmax.f32 %v5982, 0.0
        %v6271 = vmax.f32 %v5983, 0.0
        %v6272 = vmax.f32 %v5984, 0.0
        %v6273 = vmax.f32 %v5985, 0.0
        %v6274 = vmax.f32 %v5986, 0.0
        %v6275 = vmax.f32 %v5987, 0.0
        %v6276 = vmax.f32 %v5988, 0.0
        %v6277 = vmax.f32 %v5989, 0.0
        %v6278 = vmax.f32 %v5990, 0.0
        %v6279 = vmax.f32 %v5991, 0.0
        %v6280 = vmax.f32 %v5992, 0.0
        %v6281 = vmax.f32 %v5993, 0.0
        %v6282 = vmax.f32 %v5994, 0.0
        %v6283 = vmax.f32 %v5995, 0.0
        %v6284 = vmax.f32 %v5996, 0.0
        %v6285 = vmax.f32 %v5997, 0.0
        %v6286 = vmax.f32 %v5998, 0.0
        %v6287 = vmax.f32 %v5999, 0.0
        %v6288 = vmax.f32 %v6000, 0.0
        %v6289 = vmax.f32 %v6001, 0.0
        %v6290 = vmax.f32 %v6002, 0.0
        %v6291 = vmax.f32 %v6003, 0.0
        %v6292 = vmax.f32 %v6004, 0.0
        %v6293 = vmax.f32 %v6005, 0.0
        %v6294 = vmax.f32 %v6006, 0.0
        %v6295 = vmax.f32 %v6007, 0.0
        %v6296 = vmax.f32 %v6008, 0.0
        %v6297 = vmax.f32 %v6009, 0.0
        %v6298 = vmax.f32 %v6010, 0.0
        %v6299 = vmax.f32 %v6011, 0.0
        %v6300 = vmax.f32 %v6012, 0.0
        %v6301 = vmax.f32 %v6013, 0.0
        %v6302 = vmax.f32 %v6014, 0.0
        %v6303 = vmax.f32 %v6015, 0.0
        %v6304 = vmax.f32 %v6016, 0.0
        %v6305 = vmax.f32 %v6017, 0.0
        %v6306 = vmax.f32 %v6018, 0.0
        %v6307 = vmax.f32 %v6019, 0.0
        %v6308 = vmax.f32 %v6020, 0.0
        %v6309 = vmax.f32 %v6021, 0.0
        %v6310 = vmax.f32 %v6022, 0.0
        %v6311 = vmax.f32 %v6023, 0.0
        %v6312 = vmax.f32 %v6024, 0.0
        %v6313 = vmax.f32 %v6025, 0.0
        %v6314 = vmax.f32 %v6026, 0.0
        %v6315 = vmax.f32 %v6027, 0.0
        %v6316 = vmax.f32 %v6028, 0.0
        %v6317 = vmax.f32 %v6029, 0.0
        %v6318 = vmax.f32 %v6030, 0.0
        %v6319 = vmax.f32 %v6031, 0.0
        %v6320 = vmax.f32 %v6032, 0.0
        %v6321 = vmax.f32 %v6033, 0.0
        %v6322 = vmax.f32 %v6034, 0.0
        %v6323 = vmax.f32 %v6035, 0.0
        %v6324 = vmax.f32 %v6036, 0.0
        %v6325 = vmax.f32 %v6037, 0.0
        %v6326 = vmax.f32 %v6038, 0.0
        %v6327 = vmax.f32 %v6039, 0.0
        %v6328 = vmax.f32 %v6040, 0.0
        %v6329 = vmax.f32 %v6041, 0.0
        %v6330 = vmax.f32 %v6042, 0.0
        %v6331 = vmax.f32 %v6043, 0.0
        %v6332 = vmax.f32 %v6044, 0.0
        %v6333 = vmax.f32 %v6045, 0.0
        %v6334 = vmax.f32 %v6046, 0.0
        %v6335 = vmax.f32 %v6047, 0.0
        %v6336 = vmax.f32 %v6048, 0.0
        %v6337 = vmax.f32 %v6049, 0.0
        %v6338 = vmax.f32 %v6050, 0.0
        %v6339 = vmax.f32 %v6051, 0.0
        %v6340 = vmax.f32 %v6052, 0.0
        %v6341 = vmax.f32 %v6053, 0.0
        %v6342 = vmax.f32 %v6054, 0.0
        %v6343 = vmax.f32 %v6055, 0.0
        %v6344 = vmax.f32 %v6056, 0.0
        %v6345 = vmax.f32 %v6057, 0.0
        %v6346 = vmax.f32 %v6058, 0.0
        %v6347 = vmax.f32 %v6059, 0.0
        %v6348 = vmax.f32 %v6060, 0.0
        %v6349 = vmax.f32 %v6061, 0.0
        %v6350 = vmax.f32 %v6062, 0.0
        %v6351 = vmax.f32 %v6063, 0.0
        %v6352 = vmax.f32 %v6064, 0.0
        %v6353 = vmax.f32 %v6065, 0.0
        %v6354 = vmax.f32 %v6066, 0.0
        %v6355 = vmax.f32 %v6067, 0.0
        %v6356 = vmax.f32 %v6068, 0.0
        %v6357 = vmax.f32 %v6069, 0.0
        %v6358 = vmax.f32 %v6070, 0.0
        %v6359 = vmax.f32 %v6071, 0.0
        %v6360 = vmax.f32 %v6072, 0.0
        %v6361 = vmax.f32 %v6073, 0.0
        %v6362 = vmax.f32 %v6074, 0.0
        %v6363 = vmax.f32 %v6075, 0.0
        %v6364 = vmax.f32 %v6076, 0.0
        %v6365 = vmax.f32 %v6077, 0.0
        %v6366 = vmax.f32 %v6078, 0.0
        %v6367 = vmax.f32 %v6079, 0.0
        %v6368 = vmax.f32 %v6080, 0.0
        %v6369 = vmax.f32 %v6081, 0.0
        %v6370 = vmax.f32 %v6082, 0.0
        %v6371 = vmax.f32 %v6083, 0.0
        %v6372 = vmax.f32 %v6084, 0.0
        %v6373 = vmax.f32 %v6085, 0.0
        %v6374 = vmax.f32 %v6086, 0.0
        %v6375 = vmax.f32 %v6087, 0.0
        %v6376 = vmax.f32 %v6088, 0.0
        %v6377 = vmax.f32 %v6089, 0.0
        %v6378 = vmax.f32 %v6090, 0.0
        %v6379 = vmax.f32 %v6091, 0.0
        %v6380 = vmax.f32 %v6092, 0.0
        %v6381 = vmax.f32 %v6093, 0.0
        %v6382 = vmax.f32 %v6094, 0.0
        %v6383 = vmax.f32 %v6095, 0.0
        %v6384 = vmax.f32 %v6096, 0.0
        %v6385 = vmax.f32 %v6097, 0.0
        %v6386 = vmax.f32 %v6098, 0.0
        %v6387 = vmax.f32 %v6099, 0.0
        %v6388 = vmax.f32 %v6100, 0.0
        %v6389 = vmax.f32 %v6101, 0.0
        %v6390 = vmax.f32 %v6102, 0.0
        %v6391 = vmax.f32 %v6103, 0.0
        %v6392 = vmax.f32 %v6104, 0.0
        %v6393 = vmax.f32 %v6105, 0.0
        %v6394 = vmax.f32 %v6106, 0.0
        %v6395 = vmax.f32 %v6107, 0.0
        %v6396 = vmax.f32 %v6108, 0.0
        %v6397 = vmax.f32 %v6109, 0.0
        %v6398 = vmax.f32 %v6110, 0.0
        %v6399 = vmax.f32 %v6111, 0.0
        %v6400 = vmax.f32 %v6112, 0.0
        %v6401 = vmax.f32 %v6113, 0.0
        %v6402 = vmax.f32 %v6114, 0.0
        %v6403 = vmax.f32 %v6115, 0.0
        %v6404 = vmax.f32 %v6116, 0.0
        %v6405 = vmax.f32 %v6117, 0.0
        %v6406 = vmax.f32 %v6118, 0.0
        %v6407 = vmax.f32 %v6119, 0.0
        %v6408 = vmax.f32 %v6120, 0.0
        %v6409 = vmax.f32 %v6121, 0.0
        %v6410 = vmax.f32 %v6122, 0.0
        %v6411 = vmax.f32 %v6123, 0.0
        %v6412 = vmax.f32 %v6124, 0.0
        %v6413 = vmax.f32 %v6125, 0.0
        %v6414 = vmax.f32 %v6126, 0.0
        %v6415 = vmax.f32 %v6127, 0.0
        %v6416 = vpack.c.bf16 %v6132, %v6128
        %v6417 = vpack.c.bf16 %v6133, %v6129
        %v6418 = vpack.c.bf16 %v6134, %v6130
        %v6419 = vpack.c.bf16 %v6135, %v6131
        %v6420 = vpack.c.bf16 %v6140, %v6136
        %v6421 = vpack.c.bf16 %v6141, %v6137
        %v6422 = vpack.c.bf16 %v6142, %v6138
        %v6423 = vpack.c.bf16 %v6143, %v6139
        %v6424 = vpack.c.bf16 %v6148, %v6144
        %v6425 = vpack.c.bf16 %v6149, %v6145
        %v6426 = vpack.c.bf16 %v6150, %v6146
        %v6427 = vpack.c.bf16 %v6151, %v6147
        %v6428 = vpack.c.bf16 %v6156, %v6152
        %v6429 = vpack.c.bf16 %v6157, %v6153
        %v6430 = vpack.c.bf16 %v6158, %v6154
        %v6431 = vpack.c.bf16 %v6159, %v6155
        %v6432 = vpack.c.bf16 %v6164, %v6160
        %v6433 = vpack.c.bf16 %v6165, %v6161
        %v6434 = vpack.c.bf16 %v6166, %v6162
        %v6435 = vpack.c.bf16 %v6167, %v6163
        %v6436 = vpack.c.bf16 %v6172, %v6168
        %v6437 = vpack.c.bf16 %v6173, %v6169
        %v6438 = vpack.c.bf16 %v6174, %v6170
        %v6439 = vpack.c.bf16 %v6175, %v6171
        %v6440 = vpack.c.bf16 %v6180, %v6176
        %v6441 = vpack.c.bf16 %v6181, %v6177
        %v6442 = vpack.c.bf16 %v6182, %v6178
        %v6443 = vpack.c.bf16 %v6183, %v6179
        %v6444 = vpack.c.bf16 %v6188, %v6184
        %v6445 = vpack.c.bf16 %v6189, %v6185
        %v6446 = vpack.c.bf16 %v6190, %v6186
        %v6447 = vpack.c.bf16 %v6191, %v6187
        %v6448 = vpack.c.bf16 %v6196, %v6192
        %v6449 = vpack.c.bf16 %v6197, %v6193
        %v6450 = vpack.c.bf16 %v6198, %v6194
        %v6451 = vpack.c.bf16 %v6199, %v6195
        %v6452 = vpack.c.bf16 %v6204, %v6200
        %v6453 = vpack.c.bf16 %v6205, %v6201
        %v6454 = vpack.c.bf16 %v6206, %v6202
        %v6455 = vpack.c.bf16 %v6207, %v6203
        %v6456 = vpack.c.bf16 %v6212, %v6208
        %v6457 = vpack.c.bf16 %v6213, %v6209
        %v6458 = vpack.c.bf16 %v6214, %v6210
        %v6459 = vpack.c.bf16 %v6215, %v6211
        %v6460 = vpack.c.bf16 %v6220, %v6216
        %v6461 = vpack.c.bf16 %v6221, %v6217
        %v6462 = vpack.c.bf16 %v6222, %v6218
        %v6463 = vpack.c.bf16 %v6223, %v6219
        %v6464 = vpack.c.bf16 %v6228, %v6224
        %v6465 = vpack.c.bf16 %v6229, %v6225
        %v6466 = vpack.c.bf16 %v6230, %v6226
        %v6467 = vpack.c.bf16 %v6231, %v6227
        %v6468 = vpack.c.bf16 %v6236, %v6232
        %v6469 = vpack.c.bf16 %v6237, %v6233
        %v6470 = vpack.c.bf16 %v6238, %v6234
        %v6471 = vpack.c.bf16 %v6239, %v6235
        %v6472 = vpack.c.bf16 %v6244, %v6240
        %v6473 = vpack.c.bf16 %v6245, %v6241
        %v6474 = vpack.c.bf16 %v6246, %v6242
        %v6475 = vpack.c.bf16 %v6247, %v6243
        %v6476 = vpack.c.bf16 %v6252, %v6248
        %v6477 = vpack.c.bf16 %v6253, %v6249
        %v6478 = vpack.c.bf16 %v6254, %v6250
        %v6479 = vpack.c.bf16 %v6255, %v6251
        %v6480 = vpack.c.bf16 %v6260, %v6256
        %v6481 = vpack.c.bf16 %v6261, %v6257
        %v6482 = vpack.c.bf16 %v6262, %v6258
        %v6483 = vpack.c.bf16 %v6263, %v6259
        %v6484 = vpack.c.bf16 %v6268, %v6264
        %v6485 = vpack.c.bf16 %v6269, %v6265
        %v6486 = vpack.c.bf16 %v6270, %v6266
        %v6487 = vpack.c.bf16 %v6271, %v6267
        %v6488 = vpack.c.bf16 %v6276, %v6272
        %v6489 = vpack.c.bf16 %v6277, %v6273
        %v6490 = vpack.c.bf16 %v6278, %v6274
        %v6491 = vpack.c.bf16 %v6279, %v6275
        %v6492 = vpack.c.bf16 %v6284, %v6280
        %v6493 = vpack.c.bf16 %v6285, %v6281
        %v6494 = vpack.c.bf16 %v6286, %v6282
        %v6495 = vpack.c.bf16 %v6287, %v6283
        %v6496 = vpack.c.bf16 %v6292, %v6288
        %v6497 = vpack.c.bf16 %v6293, %v6289
        %v6498 = vpack.c.bf16 %v6294, %v6290
        %v6499 = vpack.c.bf16 %v6295, %v6291
        %v6500 = vpack.c.bf16 %v6300, %v6296
        %v6501 = vpack.c.bf16 %v6301, %v6297
        %v6502 = vpack.c.bf16 %v6302, %v6298
        %v6503 = vpack.c.bf16 %v6303, %v6299
        %v6504 = vpack.c.bf16 %v6308, %v6304
        %v6505 = vpack.c.bf16 %v6309, %v6305
        %v6506 = vpack.c.bf16 %v6310, %v6306
        %v6507 = vpack.c.bf16 %v6311, %v6307
        %v6508 = vpack.c.bf16 %v6316, %v6312
        %v6509 = vpack.c.bf16 %v6317, %v6313
        %v6510 = vpack.c.bf16 %v6318, %v6314
        %v6511 = vpack.c.bf16 %v6319, %v6315
        %v6512 = vpack.c.bf16 %v6324, %v6320
        %v6513 = vpack.c.bf16 %v6325, %v6321
        %v6514 = vpack.c.bf16 %v6326, %v6322
        %v6515 = vpack.c.bf16 %v6327, %v6323
        %v6516 = vpack.c.bf16 %v6332, %v6328
        %v6517 = vpack.c.bf16 %v6333, %v6329
        %v6518 = vpack.c.bf16 %v6334, %v6330
        %v6519 = vpack.c.bf16 %v6335, %v6331
        %v6520 = vpack.c.bf16 %v6340, %v6336
        %v6521 = vpack.c.bf16 %v6341, %v6337
        %v6522 = vpack.c.bf16 %v6342, %v6338
        %v6523 = vpack.c.bf16 %v6343, %v6339
        %v6524 = vpack.c.bf16 %v6348, %v6344
        %v6525 = vpack.c.bf16 %v6349, %v6345
        %v6526 = vpack.c.bf16 %v6350, %v6346
        %v6527 = vpack.c.bf16 %v6351, %v6347
        %v6528 = vpack.c.bf16 %v6356, %v6352
        %v6529 = vpack.c.bf16 %v6357, %v6353
        %v6530 = vpack.c.bf16 %v6358, %v6354
        %v6531 = vpack.c.bf16 %v6359, %v6355
        %v6532 = vpack.c.bf16 %v6364, %v6360
        %v6533 = vpack.c.bf16 %v6365, %v6361
        %v6534 = vpack.c.bf16 %v6366, %v6362
        %v6535 = vpack.c.bf16 %v6367, %v6363
        %v6536 = vpack.c.bf16 %v6372, %v6368
        %v6537 = vpack.c.bf16 %v6373, %v6369
        %v6538 = vpack.c.bf16 %v6374, %v6370
        %v6539 = vpack.c.bf16 %v6375, %v6371
        %v6540 = vpack.c.bf16 %v6380, %v6376
        %v6541 = vpack.c.bf16 %v6381, %v6377
        %v6542 = vpack.c.bf16 %v6382, %v6378
        %v6543 = vpack.c.bf16 %v6383, %v6379
        %v6544 = vpack.c.bf16 %v6388, %v6384
        %v6545 = vpack.c.bf16 %v6389, %v6385
        %v6546 = vpack.c.bf16 %v6390, %v6386
        %v6547 = vpack.c.bf16 %v6391, %v6387
        %v6548 = vpack.c.bf16 %v6396, %v6392
        %v6549 = vpack.c.bf16 %v6397, %v6393
        %v6550 = vpack.c.bf16 %v6398, %v6394
        %v6551 = vpack.c.bf16 %v6399, %v6395
        %v6552 = vpack.c.bf16 %v6404, %v6400
        %v6553 = vpack.c.bf16 %v6405, %v6401
        %v6554 = vpack.c.bf16 %v6406, %v6402
        %v6555 = vpack.c.bf16 %v6407, %v6403
        %v6556 = vpack.c.bf16 %v6412, %v6408
        %v6557 = vpack.c.bf16 %v6413, %v6409
        %v6558 = vpack.c.bf16 %v6414, %v6410
        %v6559 = vpack.c.bf16 %v6415, %v6411
        %v6560 = vld [vmem:[%s4] sm:$0xff]
        %v6561 = vld [vmem:[%s4 + $0x8] sm:$0xf]
        %v6562 = vld [vmem:[%s4 + $0xc] sm:$0xff]
        %v6563 = vld [vmem:[%s4 + $0x14] sm:$0xf]
        %v6564 = vld [vmem:[%s4 + $0x18] sm:$0xff]
        %v6565 = vld [vmem:[%s4 + $0x20] sm:$0xf]
        %v6566 = vld [vmem:[%s4 + $0x24] sm:$0xff]
        %v6567 = vld [vmem:[%s4 + $0x2c] sm:$0xf]
        %v6568 = vld [vmem:[%s4 + $0x30] sm:$0xff]
        %v6569 = vld [vmem:[%s4 + $0x38] sm:$0xf]
        %v6570 = vld [vmem:[%s4 + $0x3c] sm:$0xff]
        %v6571 = vld [vmem:[%s4 + $0x44] sm:$0xf]
        %v6572 = vld [vmem:[%s4 + $0x48] sm:$0xff]
        %v6573 = vld [vmem:[%s4 + $0x50] sm:$0xf]
        %v6574 = vld [vmem:[%s4 + $0x54] sm:$0xff]
        %v6575 = vld [vmem:[%s4 + $0x5c] sm:$0xf]
        %v6576 = vld [vmem:[%s4 + $0x60] sm:$0xff]
        %v6577 = vld [vmem:[%s4 + $0x68] sm:$0xf]
        %v6596 = vunpack.c.l.b16 %v6560
        %v6597 = vunpack.c.h.b16 %v6560
        %v6598 = vunpack.c.l.b16 %v6561
        %v6599 = vunpack.c.l.b16 %v6562
        %v6600 = vunpack.c.h.b16 %v6562
        %v6601 = vunpack.c.l.b16 %v6563
        %v6602 = vunpack.c.l.b16 %v6564
        %v6603 = vunpack.c.h.b16 %v6564
        %v6604 = vunpack.c.l.b16 %v6565
        %v6605 = vunpack.c.l.b16 %v6566
        %v6606 = vunpack.c.h.b16 %v6566
        %v6607 = vunpack.c.l.b16 %v6567
        %v6608 = vunpack.c.l.b16 %v6568
        %v6609 = vunpack.c.h.b16 %v6568
        %v6610 = vunpack.c.l.b16 %v6569
        %v6611 = vunpack.c.l.b16 %v6570
        %v6612 = vunpack.c.h.b16 %v6570
        %v6613 = vunpack.c.l.b16 %v6571
        %v6614 = vunpack.c.l.b16 %v6572
        %v6615 = vunpack.c.h.b16 %v6572
        %v6616 = vunpack.c.l.b16 %v6573
        %v6617 = vunpack.c.l.b16 %v6574
        %v6618 = vunpack.c.h.b16 %v6574
        %v6619 = vunpack.c.l.b16 %v6575
        %v6620 = vunpack.c.l.b16 %v6576
        %v6621 = vunpack.c.h.b16 %v6576
        %v6622 = vunpack.c.l.b16 %v6577
        %v6623 = vpack.c.b16 %v6599, %v6596
        %v6624 = vpack.c.b16 %v6600, %v6597
        %v6625 = vpack.c.b16 %v6601, %v6598
        %v6626 = vpack.c.b16 %v6605, %v6602
        %v6627 = vpack.c.b16 %v6606, %v6603
        %v6628 = vpack.c.b16 %v6607, %v6604
        %v6629 = vpack.c.b16 %v6611, %v6608
        %v6630 = vpack.c.b16 %v6612, %v6609
        %v6631 = vpack.c.b16 %v6613, %v6610
        %v6632 = vpack.c.b16 %v6617, %v6614
        %v6633 = vpack.c.b16 %v6618, %v6615
        %v6634 = vpack.c.b16 %v6619, %v6616
        %v6635 = vpack.c.b16 %v6620, %v6620
        %v6636 = vpack.c.b16 %v6621, %v6621
        %v6637 = vpack.c.b16 %v6622, %v6622
        %vm6648 = vcmask 261120
        %v6650 = vsel %vm6648, %v6625, 0
        %v6653 = vsel %vm6648, %v6628, 0
        %v6656 = vsel %vm6648, %v6631, 0
        %v6659 = vsel %vm6648, %v6634, 0
        %v6662 = vsel %vm6648, %v6637, 0
        %6664 = vmatprep.subr.bf16.mxu0 %v6417
        %6665 = vmatpush1.bf16.msra.mxu0 %v6416
        %6666 = vmatprep.subr.bf16.mxu0 %v6421
        %6667 = vmatpush1.bf16.msra.mxu0 %v6420
        %6668 = vmatprep.subr.bf16.mxu0 %v6425
        %6669 = vmatpush1.bf16.msra.mxu0 %v6424
        %6670 = vmatprep.subr.bf16.mxu0 %v6429
        %6671 = vmatpush1.bf16.msra.mxu0 %v6428
        %6672 = vmatprep.subr.bf16.mxu0 %v6433
        %6673 = vmatpush1.bf16.msra.mxu0 %v6432
        %6674 = vmatprep.subr.bf16.mxu0 %v6437
        %6675 = vmatpush1.bf16.msra.mxu0 %v6436
        %6676 = vmatprep.subr.bf16.mxu0 %v6441
        %6677 = vmatpush1.bf16.msra.mxu0 %v6440
        %6678 = vmatprep.subr.bf16.mxu0 %v6445
        %6679 = vmatpush1.bf16.msra.mxu0 %v6444
        %6680 = vmatprep.subr.bf16.mxu0 %v6449
        %6681 = vmatpush1.bf16.msra.mxu0 %v6448
        %6682 = vmatprep.subr.bf16.mxu0 %v6453
        %6683 = vmatpush1.bf16.msra.mxu0 %v6452
        %6684 = vmatprep.subr.bf16.mxu0 %v6457
        %6685 = vmatpush1.bf16.msra.mxu0 %v6456
        %6686 = vmatprep.subr.bf16.mxu0 %v6461
        %6687 = vmatpush1.bf16.msra.mxu0 %v6460
        %6688 = vmatprep.subr.bf16.mxu0 %v6465
        %6689 = vmatpush1.bf16.msra.mxu0 %v6464
        %6690 = vmatprep.subr.bf16.mxu0 %v6469
        %6691 = vmatpush1.bf16.msra.mxu0 %v6468
        %6692 = vmatprep.subr.bf16.mxu0 %v6473
        %6693 = vmatpush1.bf16.msra.mxu0 %v6472
        %6694 = vmatprep.subr.bf16.mxu0 %v6477
        %6695 = vmatpush1.bf16.msra.mxu0 %v6476
        %6696 = vmatprep.mubr.bf16.mxu0 %v6624
        %6697 = vmatmul.mubr.bf16.gmra.mrb[0].mxu0 %v6623
        %v6698 = vpop.f32.mrb[0].mxu0
        %v6699 = vadd.f32 0.0, %v6698
        %v6700 = vpop.f32.mrb[0].mxu0
        %v6701 = vadd.f32 0.0, %v6700
        %v6702 = vpop.f32.mrb[0].mxu0
        %v6703 = vadd.f32 0.0, %v6702
        %v6704 = vpop.f32.mrb[0].mxu0
        %v6705 = vadd.f32 0.0, %v6704
        %6706 = vmatprep.mubr.bf16.mxu0 %v6627
        %6707 = vmatmul.mubr.bf16.gmra.mrb[0].mxu0 %v6626
        %v6708 = vpop.f32.mrb[0].mxu0
        %v6709 = vadd.f32 0.0, %v6708
        %v6710 = vpop.f32.mrb[0].mxu0
        %v6711 = vadd.f32 0.0, %v6710
        %v6712 = vpop.f32.mrb[0].mxu0
        %v6713 = vadd.f32 0.0, %v6712
        %v6714 = vpop.f32.mrb[0].mxu0
        %v6715 = vadd.f32 0.0, %v6714
        %6716 = vmatprep.mubr.bf16.mxu0 %v6630
        %6717 = vmatmul.mubr.bf16.gmra.mrb[0].mxu0 %v6629
        %v6718 = vpop.f32.mrb[0].mxu0
        %v6719 = vadd.f32 0.0, %v6718
        %v6720 = vpop.f32.mrb[0].mxu0
        %v6721 = vadd.f32 0.0, %v6720
        %v6722 = vpop.f32.mrb[0].mxu0
        %v6723 = vadd.f32 0.0, %v6722
        %v6724 = vpop.f32.mrb[0].mxu0
        %v6725 = vadd.f32 0.0, %v6724
        %6726 = vmatprep.mubr.bf16.mxu0 %v6633
        %6727 = vmatmul.mubr.bf16.gmra.mrb[0].mxu0 %v6632
        %v6728 = vpop.f32.mrb[0].mxu0
        %v6729 = vadd.f32 0.0, %v6728
        %v6730 = vpop.f32.mrb[0].mxu0
        %v6731 = vadd.f32 0.0, %v6730
        %v6732 = vpop.f32.mrb[0].mxu0
        %v6733 = vadd.f32 0.0, %v6732
        %v6734 = vpop.f32.mrb[0].mxu0
        %v6735 = vadd.f32 0.0, %v6734
        %6736 = vmatprep.mubr.bf16.mxu0 %v6636
        %6737 = vmatmul.mubr.bf16.gmra.mrb[0].mxu0 %v6635
        %v6738 = vpop.f32.mrb[0].mxu0
        %v6739 = vadd.f32 0.0, %v6738
        %v6740 = vpop.f32.mrb[0].mxu0
        %v6741 = vadd.f32 0.0, %v6740
        %v6742 = vpop.f32.mrb[0].mxu0
        %v6743 = vpop.f32.mrb[0].mxu0
        %6744 = vdwg.mxu0
        %6745 = vmatprep.subr.bf16.mxu0 %v6481
        %6746 = vmatpush1.bf16.msra.mxu0 %v6480
        %6747 = vmatprep.subr.bf16.mxu0 %v6485
        %6748 = vmatpush1.bf16.msra.mxu0 %v6484
        %6749 = vmatprep.subr.bf16.mxu0 0
        %6750 = vmatpush1.bf16.msra.mxu0 0
        %6751 = vmatprep.subr.bf16.mxu0 0
        %6752 = vmatpush1.bf16.msra.mxu0 0
        %6753 = vmatprep.subr.bf16.mxu0 0
        %6754 = vmatpush1.bf16.msra.mxu0 0
        %6755 = vmatprep.subr.bf16.mxu0 0
        %6756 = vmatpush1.bf16.msra.mxu0 0
        %6757 = vmatprep.subr.bf16.mxu0 0
        %6758 = vmatpush1.bf16.msra.mxu0 0
        %6759 = vmatprep.subr.bf16.mxu0 0
        %6760 = vmatpush1.bf16.msra.mxu0 0
        %6761 = vmatprep.subr.bf16.mxu0 0
        %6762 = vmatpush1.bf16.msra.mxu0 0
        %6763 = vmatprep.subr.bf16.mxu0 0
        %6764 = vmatpush1.bf16.msra.mxu0 0
        %6765 = vmatprep.subr.bf16.mxu0 0
        %6766 = vmatpush1.bf16.msra.mxu0 0
        %6767 = vmatprep.subr.bf16.mxu0 0
        %6768 = vmatpush1.bf16.msra.mxu0 0
        %6769 = vmatprep.subr.bf16.mxu0 0
        %6770 = vmatpush1.bf16.msra.mxu0 0
        %6771 = vmatprep.subr.bf16.mxu0 0
        %6772 = vmatpush1.bf16.msra.mxu0 0
        %6773 = vmatprep.subr.bf16.mxu0 0
        %6774 = vmatpush1.bf16.msra.mxu0 0
        %6775 = vmatprep.subr.bf16.mxu0 0
        %6776 = vmatpush1.bf16.msra.mxu0 0
        %6777 = vmatprep.mubr.bf16.mxu0 0
        %6778 = vmatmul.mubr.bf16.gmra.mrb[0].mxu0 %v6650
        %v6779 = vpop.f32.mrb[0].mxu0
        %v6780 = vadd.f32 %v6699, %v6779
        %v6781 = vpop.f32.mrb[0].mxu0
        %v6782 = vadd.f32 %v6701, %v6781
        %v6783 = vpop.f32.mrb[0].mxu0
        %v6784 = vadd.f32 %v6703, %v6783
        %v6785 = vpop.f32.mrb[0].mxu0
        %v6786 = vadd.f32 %v6705, %v6785
        %6787 = vmatprep.mubr.bf16.mxu0 0
        %6788 = vmatmul.mubr.bf16.gmra.mrb[0].mxu0 %v6653
        %v6789 = vpop.f32.mrb[0].mxu0
        %v6790 = vadd.f32 %v6709, %v6789
        %v6791 = vpop.f32.mrb[0].mxu0
        %v6792 = vadd.f32 %v6711, %v6791
        %v6793 = vpop.f32.mrb[0].mxu0
        %v6794 = vadd.f32 %v6713, %v6793
        %v6795 = vpop.f32.mrb[0].mxu0
        %v6796 = vadd.f32 %v6715, %v6795
        %6797 = vmatprep.mubr.bf16.mxu0 0
        %6798 = vmatmul.mubr.bf16.gmra.mrb[0].mxu0 %v6656
        %v6799 = vpop.f32.mrb[0].mxu0
        %v6800 = vadd.f32 %v6719, %v6799
        %v6801 = vpop.f32.mrb[0].mxu0
        %v6802 = vadd.f32 %v6721, %v6801
        %v6803 = vpop.f32.mrb[0].mxu0
        %v6804 = vadd.f32 %v6723, %v6803
        %v6805 = vpop.f32.mrb[0].mxu0
        %v6806 = vadd.f32 %v6725, %v6805
        %6807 = vmatprep.mubr.bf16.mxu0 0
        %6808 = vmatmul.mubr.bf16.gmra.mrb[0].mxu0 %v6659
        %v6809 = vpop.f32.mrb[0].mxu0
        %v6810 = vadd.f32 %v6729, %v6809
        %v6811 = vpop.f32.mrb[0].mxu0
        %v6812 = vadd.f32 %v6731, %v6811
        %v6813 = vpop.f32.mrb[0].mxu0
        %v6814 = vadd.f32 %v6733, %v6813
        %v6815 = vpop.f32.mrb[0].mxu0
        %v6816 = vadd.f32 %v6735, %v6815
        %6817 = vmatprep.mubr.bf16.mxu0 0
        %6818 = vmatmul.mubr.bf16.gmra.mrb[0].mxu0 %v6662
        %v6819 = vpop.f32.mrb[0].mxu0
        %v6820 = vadd.f32 %v6739, %v6819
        %v6821 = vpop.f32.mrb[0].mxu0
        %v6822 = vadd.f32 %v6741, %v6821
        %v6823 = vpop.f32.mrb[0].mxu0
        %v6824 = vpop.f32.mrb[0].mxu0
        %6825 = vdwg.mxu0
        %6826 = vmatprep.subr.bf16.mxu0 %v6419
        %6827 = vmatpush1.bf16.msra.mxu0 %v6418
        %6828 = vmatprep.subr.bf16.mxu0 %v6423
        %6829 = vmatpush1.bf16.msra.mxu0 %v6422
        %6830 = vmatprep.subr.bf16.mxu0 %v6427
        %6831 = vmatpush1.bf16.msra.mxu0 %v6426
        %6832 = vmatprep.subr.bf16.mxu0 %v6431
        %6833 = vmatpush1.bf16.msra.mxu0 %v6430
        %6834 = vmatprep.subr.bf16.mxu0 %v6435
        %6835 = vmatpush1.bf16.msra.mxu0 %v6434
        %6836 = vmatprep.subr.bf16.mxu0 %v6439
        %6837 = vmatpush1.bf16.msra.mxu0 %v6438
        %6838 = vmatprep.subr.bf16.mxu0 %v6443
        %6839 = vmatpush1.bf16.msra.mxu0 %v6442
        %6840 = vmatprep.subr.bf16.mxu0 %v6447
        %6841 = vmatpush1.bf16.msra.mxu0 %v6446
        %6842 = vmatprep.subr.bf16.mxu0 %v6451
        %6843 = vmatpush1.bf16.msra.mxu0 %v6450
        %6844 = vmatprep.subr.bf16.mxu0 %v6455
        %6845 = vmatpush1.bf16.msra.mxu0 %v6454
        %6846 = vmatprep.subr.bf16.mxu0 %v6459
        %6847 = vmatpush1.bf16.msra.mxu0 %v6458
        %6848 = vmatprep.subr.bf16.mxu0 %v6463
        %6849 = vmatpush1.bf16.msra.mxu0 %v6462
        %6850 = vmatprep.subr.bf16.mxu0 %v6467
        %6851 = vmatpush1.bf16.msra.mxu0 %v6466
        %6852 = vmatprep.subr.bf16.mxu0 %v6471
        %6853 = vmatpush1.bf16.msra.mxu0 %v6470
        %6854 = vmatprep.subr.bf16.mxu0 %v6475
        %6855 = vmatpush1.bf16.msra.mxu0 %v6474
        %6856 = vmatprep.subr.bf16.mxu0 %v6479
        %6857 = vmatpush1.bf16.msra.mxu0 %v6478
        %6858 = vmatprep.mubr.bf16.mxu0 %v6624
        %6859 = vmatmul.mubr.bf16.gmra.mrb[0].mxu0 %v6623
        %v6860 = vpop.f32.mrb[0].mxu0
        %v6861 = vadd.f32 0.0, %v6860
        %v6862 = vpop.f32.mrb[0].mxu0
        %v6863 = vadd.f32 0.0, %v6862
        %v6864 = vpop.f32.mrb[0].mxu0
        %v6865 = vadd.f32 0.0, %v6864
        %v6866 = vpop.f32.mrb[0].mxu0
        %v6867 = vadd.f32 0.0, %v6866
        %6868 = vmatprep.mubr.bf16.mxu0 %v6627
        %6869 = vmatmul.mubr.bf16.gmra.mrb[0].mxu0 %v6626
        %v6870 = vpop.f32.mrb[0].mxu0
        %v6871 = vadd.f32 0.0, %v6870
        %v6872 = vpop.f32.mrb[0].mxu0
        %v6873 = vadd.f32 0.0, %v6872
        %v6874 = vpop.f32.mrb[0].mxu0
        %v6875 = vadd.f32 0.0, %v6874
        %v6876 = vpop.f32.mrb[0].mxu0
        %v6877 = vadd.f32 0.0, %v6876
        %6878 = vmatprep.mubr.bf16.mxu0 %v6630
        %6879 = vmatmul.mubr.bf16.gmra.mrb[0].mxu0 %v6629
        %v6880 = vpop.f32.mrb[0].mxu0
        %v6881 = vadd.f32 0.0, %v6880
        %v6882 = vpop.f32.mrb[0].mxu0
        %v6883 = vadd.f32 0.0, %v6882
        %v6884 = vpop.f32.mrb[0].mxu0
        %v6885 = vadd.f32 0.0, %v6884
        %v6886 = vpop.f32.mrb[0].mxu0
        %v6887 = vadd.f32 0.0, %v6886
        %6888 = vmatprep.mubr.bf16.mxu0 %v6633
        %6889 = vmatmul.mubr.bf16.gmra.mrb[0].mxu0 %v6632
        %v6890 = vpop.f32.mrb[0].mxu0
        %v6891 = vadd.f32 0.0, %v6890
        %v6892 = vpop.f32.mrb[0].mxu0
        %v6893 = vadd.f32 0.0, %v6892
        %v6894 = vpop.f32.mrb[0].mxu0
        %v6895 = vadd.f32 0.0, %v6894
        %v6896 = vpop.f32.mrb[0].mxu0
        %v6897 = vadd.f32 0.0, %v6896
        %6898 = vmatprep.mubr.bf16.mxu0 %v6636
        %6899 = vmatmul.mubr.bf16.gmra.mrb[0].mxu0 %v6635
        %v6900 = vpop.f32.mrb[0].mxu0
        %v6901 = vadd.f32 0.0, %v6900
        %v6902 = vpop.f32.mrb[0].mxu0
        %v6903 = vadd.f32 0.0, %v6902
        %v6904 = vpop.f32.mrb[0].mxu0
        %v6905 = vpop.f32.mrb[0].mxu0
        %6906 = vdwg.mxu0
        %6907 = vmatprep.subr.bf16.mxu0 %v6483
        %6908 = vmatpush1.bf16.msra.mxu0 %v6482
        %6909 = vmatprep.subr.bf16.mxu0 %v6487
        %6910 = vmatpush1.bf16.msra.mxu0 %v6486
        %6911 = vmatprep.subr.bf16.mxu0 0
        %6912 = vmatpush1.bf16.msra.mxu0 0
        %6913 = vmatprep.subr.bf16.mxu0 0
        %6914 = vmatpush1.bf16.msra.mxu0 0
        %6915 = vmatprep.subr.bf16.mxu0 0
        %6916 = vmatpush1.bf16.msra.mxu0 0
        %6917 = vmatprep.subr.bf16.mxu0 0
        %6918 = vmatpush1.bf16.msra.mxu0 0
        %6919 = vmatprep.subr.bf16.mxu0 0
        %6920 = vmatpush1.bf16.msra.mxu0 0
        %6921 = vmatprep.subr.bf16.mxu0 0
        %6922 = vmatpush1.bf16.msra.mxu0 0
        %6923 = vmatprep.subr.bf16.mxu0 0
        %6924 = vmatpush1.bf16.msra.mxu0 0
        %6925 = vmatprep.subr.bf16.mxu0 0
        %6926 = vmatpush1.bf16.msra.mxu0 0
        %6927 = vmatprep.subr.bf16.mxu0 0
        %6928 = vmatpush1.bf16.msra.mxu0 0
        %6929 = vmatprep.subr.bf16.mxu0 0
        %6930 = vmatpush1.bf16.msra.mxu0 0
        %6931 = vmatprep.subr.bf16.mxu0 0
        %6932 = vmatpush1.bf16.msra.mxu0 0
        %6933 = vmatprep.subr.bf16.mxu0 0
        %6934 = vmatpush1.bf16.msra.mxu0 0
        %6935 = vmatprep.subr.bf16.mxu0 0
        %6936 = vmatpush1.bf16.msra.mxu0 0
        %6937 = vmatprep.subr.bf16.mxu0 0
        %6938 = vmatpush1.bf16.msra.mxu0 0
        %6939 = vmatprep.mubr.bf16.mxu0 0
        %6940 = vmatmul.mubr.bf16.gmra.mrb[0].mxu0 %v6650
        %v6941 = vpop.f32.mrb[0].mxu0
        %v6942 = vadd.f32 %v6861, %v6941
        %v6943 = vpop.f32.mrb[0].mxu0
        %v6944 = vadd.f32 %v6863, %v6943
        %v6945 = vpop.f32.mrb[0].mxu0
        %v6946 = vadd.f32 %v6865, %v6945
        %v6947 = vpop.f32.mrb[0].mxu0
        %v6948 = vadd.f32 %v6867, %v6947
        %6949 = vmatprep.mubr.bf16.mxu0 0
        %6950 = vmatmul.mubr.bf16.gmra.mrb[0].mxu0 %v6653
        %v6951 = vpop.f32.mrb[0].mxu0
        %v6952 = vadd.f32 %v6871, %v6951
        %v6953 = vpop.f32.mrb[0].mxu0
        %v6954 = vadd.f32 %v6873, %v6953
        %v6955 = vpop.f32.mrb[0].mxu0
        %v6956 = vadd.f32 %v6875, %v6955
        %v6957 = vpop.f32.mrb[0].mxu0
        %v6958 = vadd.f32 %v6877, %v6957
        %6959 = vmatprep.mubr.bf16.mxu0 0
        %6960 = vmatmul.mubr.bf16.gmra.mrb[0].mxu0 %v6656
        %v6961 = vpop.f32.mrb[0].mxu0
        %v6962 = vadd.f32 %v6881, %v6961
        %v6963 = vpop.f32.mrb[0].mxu0
        %v6964 = vadd.f32 %v6883, %v6963
        %v6965 = vpop.f32.mrb[0].mxu0
        %v6966 = vadd.f32 %v6885, %v6965
        %v6967 = vpop.f32.mrb[0].mxu0
        %v6968 = vadd.f32 %v6887, %v6967
        %6969 = vmatprep.mubr.bf16.mxu0 0
        %6970 = vmatmul.mubr.bf16.gmra.mrb[0].mxu0 %v6659
        %v6971 = vpop.f32.mrb[0].mxu0
        %v6972 = vadd.f32 %v6891, %v6971
        %v6973 = vpop.f32.mrb[0].mxu0
        %v6974 = vadd.f32 %v6893, %v6973
        %v6975 = vpop.f32.mrb[0].mxu0
        %v6976 = vadd.f32 %v6895, %v6975
        %v6977 = vpop.f32.mrb[0].mxu0
        %v6978 = vadd.f32 %v6897, %v6977
        %6979 = vmatprep.mubr.bf16.mxu0 0
        %6980 = vmatmul.mubr.bf16.gmra.mrb[0].mxu0 %v6662
        %v6981 = vpop.f32.mrb[0].mxu0
        %v6982 = vadd.f32 %v6901, %v6981
        %v6983 = vpop.f32.mrb[0].mxu0
        %v6984 = vadd.f32 %v6903, %v6983
        %v6985 = vpop.f32.mrb[0].mxu0
        %v6986 = vpop.f32.mrb[0].mxu0
        %6987 = vdwg.mxu0
        %6988 = vst [vmem:[%s680] sm:$0xff] %v6780
        %6989 = vst [vmem:[%s680 + $0x8] sm:$0xff] %v6782
        %6990 = vst [vmem:[%s680 + $0x10] sm:$0xff] %v6942
        %6991 = vst [vmem:[%s680 + $0x18] sm:$0xff] %v6944
        %6992 = vst [vmem:[%s680 + $0x20] sm:$0xff] %v6784
        %6993 = vst [vmem:[%s680 + $0x28] sm:$0xff] %v6786
        %6994 = vst [vmem:[%s680 + $0x30] sm:$0xff] %v6946
        %6995 = vst [vmem:[%s680 + $0x38] sm:$0xff] %v6948
        %6996 = vst [vmem:[%s680 + $0x40] sm:$0xff] %v6790
        %6997 = vst [vmem:[%s680 + $0x48] sm:$0xff] %v6792
        %6998 = vst [vmem:[%s680 + $0x50] sm:$0xff] %v6952
        %6999 = vst [vmem:[%s680 + $0x58] sm:$0xff] %v6954
        %7000 = vst [vmem:[%s680 + $0x60] sm:$0xff] %v6794
        %7001 = vst [vmem:[%s680 + $0x68] sm:$0xff] %v6796
        %7002 = vst [vmem:[%s680 + $0x70] sm:$0xff] %v6956
        %7003 = vst [vmem:[%s680 + $0x78] sm:$0xff] %v6958
        %7004 = vst [vmem:[%s680 + $0x80] sm:$0xff] %v6800
        %7005 = vst [vmem:[%s680 + $0x88] sm:$0xff] %v6802
        %7006 = vst [vmem:[%s680 + $0x90] sm:$0xff] %v6962
        %7007 = vst [vmem:[%s680 + $0x98] sm:$0xff] %v6964
        %7008 = vst [vmem:[%s680 + $0xa0] sm:$0xff] %v6804
        %7009 = vst [vmem:[%s680 + $0xa8] sm:$0xff] %v6806
        %7010 = vst [vmem:[%s680 + $0xb0] sm:$0xff] %v6966
        %7011 = vst [vmem:[%s680 + $0xb8] sm:$0xff] %v6968
        %7012 = vst [vmem:[%s680 + $0xc0] sm:$0xff] %v6810
        %7013 = vst [vmem:[%s680 + $0xc8] sm:$0xff] %v6812
        %7014 = vst [vmem:[%s680 + $0xd0] sm:$0xff] %v6972
        %7015 = vst [vmem:[%s680 + $0xd8] sm:$0xff] %v6974
        %7016 = vst [vmem:[%s680 + $0xe0] sm:$0xff] %v6814
        %7017 = vst [vmem:[%s680 + $0xe8] sm:$0xff] %v6816
        %7018 = vst [vmem:[%s680 + $0xf0] sm:$0xff] %v6976
        %7019 = vst [vmem:[%s680 + $0xf8] sm:$0xff] %v6978
        %7020 = vst [vmem:[%s680 + $0x100] sm:$0xff] %v6820
        %7021 = vst [vmem:[%s680 + $0x108] sm:$0xff] %v6822
        %7022 = vst [vmem:[%s680 + $0x110] sm:$0xff] %v6982
        %7023 = vst [vmem:[%s680 + $0x118] sm:$0xff] %v6984
        %7024 = vmatprep.subr.bf16.mxu0 %v6489
        %7025 = vmatpush1.bf16.msra.mxu0 %v6488
        %7026 = vmatprep.subr.bf16.mxu0 %v6493
        %7027 = vmatpush1.bf16.msra.mxu0 %v6492
        %7028 = vmatprep.subr.bf16.mxu0 %v6497
        %7029 = vmatpush1.bf16.msra.mxu0 %v6496
        %7030 = vmatprep.subr.bf16.mxu0 %v6501
        %7031 = vmatpush1.bf16.msra.mxu0 %v6500
        %7032 = vmatprep.subr.bf16.mxu0 %v6505
        %7033 = vmatpush1.bf16.msra.mxu0 %v6504
        %7034 = vmatprep.subr.bf16.mxu0 %v6509
        %7035 = vmatpush1.bf16.msra.mxu0 %v6508
        %7036 = vmatprep.subr.bf16.mxu0 %v6513
        %7037 = vmatpush1.bf16.msra.mxu0 %v6512
        %7038 = vmatprep.subr.bf16.mxu0 %v6517
        %7039 = vmatpush1.bf16.msra.mxu0 %v6516
        %7040 = vmatprep.subr.bf16.mxu0 %v6521
        %7041 = vmatpush1.bf16.msra.mxu0 %v6520
        %7042 = vmatprep.subr.bf16.mxu0 %v6525
        %7043 = vmatpush1.bf16.msra.mxu0 %v6524
        %7044 = vmatprep.subr.bf16.mxu0 %v6529
        %7045 = vmatpush1.bf16.msra.mxu0 %v6528
        %7046 = vmatprep.subr.bf16.mxu0 %v6533
        %7047 = vmatpush1.bf16.msra.mxu0 %v6532
        %7048 = vmatprep.subr.bf16.mxu0 %v6537
        %7049 = vmatpush1.bf16.msra.mxu0 %v6536
        %7050 = vmatprep.subr.bf16.mxu0 %v6541
        %7051 = vmatpush1.bf16.msra.mxu0 %v6540
        %7052 = vmatprep.subr.bf16.mxu0 %v6545
        %7053 = vmatpush1.bf16.msra.mxu0 %v6544
        %7054 = vmatprep.subr.bf16.mxu0 %v6549
        %7055 = vmatpush1.bf16.msra.mxu0 %v6548
        %7056 = vmatprep.mubr.bf16.mxu0 %v6624
        %7057 = vmatmul.mubr.bf16.gmra.mrb[0].mxu0 %v6623
        %v7058 = vpop.f32.mrb[0].mxu0
        %v7059 = vadd.f32 0.0, %v7058
        %v7060 = vpop.f32.mrb[0].mxu0
        %v7061 = vadd.f32 0.0, %v7060
        %v7062 = vpop.f32.mrb[0].mxu0
        %v7063 = vadd.f32 0.0, %v7062
        %v7064 = vpop.f32.mrb[0].mxu0
        %v7065 = vadd.f32 0.0, %v7064
        %7066 = vmatprep.mubr.bf16.mxu0 %v6627
        %7067 = vmatmul.mubr.bf16.gmra.mrb[0].mxu0 %v6626
        %v7068 = vpop.f32.mrb[0].mxu0
        %v7069 = vadd.f32 0.0, %v7068
        %v7070 = vpop.f32.mrb[0].mxu0
        %v7071 = vadd.f32 0.0, %v7070
        %v7072 = vpop.f32.mrb[0].mxu0
        %v7073 = vadd.f32 0.0, %v7072
        %v7074 = vpop.f32.mrb[0].mxu0
        %v7075 = vadd.f32 0.0, %v7074
        %7076 = vmatprep.mubr.bf16.mxu0 %v6630
        %7077 = vmatmul.mubr.bf16.gmra.mrb[0].mxu0 %v6629
        %v7078 = vpop.f32.mrb[0].mxu0
        %v7079 = vadd.f32 0.0, %v7078
        %v7080 = vpop.f32.mrb[0].mxu0
        %v7081 = vadd.f32 0.0, %v7080
        %v7082 = vpop.f32.mrb[0].mxu0
        %v7083 = vadd.f32 0.0, %v7082
        %v7084 = vpop.f32.mrb[0].mxu0
        %v7085 = vadd.f32 0.0, %v7084
        %7086 = vmatprep.mubr.bf16.mxu0 %v6633
        %7087 = vmatmul.mubr.bf16.gmra.mrb[0].mxu0 %v6632
        %v7088 = vpop.f32.mrb[0].mxu0
        %v7089 = vadd.f32 0.0, %v7088
        %v7090 = vpop.f32.mrb[0].mxu0
        %v7091 = vadd.f32 0.0, %v7090
        %v7092 = vpop.f32.mrb[0].mxu0
        %v7093 = vadd.f32 0.0, %v7092
        %v7094 = vpop.f32.mrb[0].mxu0
        %v7095 = vadd.f32 0.0, %v7094
        %7096 = vmatprep.mubr.bf16.mxu0 %v6636
        %7097 = vmatmul.mubr.bf16.gmra.mrb[0].mxu0 %v6635
        %v7098 = vpop.f32.mrb[0].mxu0
        %v7099 = vadd.f32 0.0, %v7098
        %v7100 = vpop.f32.mrb[0].mxu0
        %v7101 = vadd.f32 0.0, %v7100
        %v7102 = vpop.f32.mrb[0].mxu0
        %v7103 = vpop.f32.mrb[0].mxu0
        %7104 = vdwg.mxu0
        %7105 = vmatprep.subr.bf16.mxu0 %v6553
        %7106 = vmatpush1.bf16.msra.mxu0 %v6552
        %7107 = vmatprep.subr.bf16.mxu0 %v6557
        %7108 = vmatpush1.bf16.msra.mxu0 %v6556
        %7109 = vmatprep.subr.bf16.mxu0 0
        %7110 = vmatpush1.bf16.msra.mxu0 0
        %7111 = vmatprep.subr.bf16.mxu0 0
        %7112 = vmatpush1.bf16.msra.mxu0 0
        %7113 = vmatprep.subr.bf16.mxu0 0
        %7114 = vmatpush1.bf16.msra.mxu0 0
        %7115 = vmatprep.subr.bf16.mxu0 0
        %7116 = vmatpush1.bf16.msra.mxu0 0
        %7117 = vmatprep.subr.bf16.mxu0 0
        %7118 = vmatpush1.bf16.msra.mxu0 0
        %7119 = vmatprep.subr.bf16.mxu0 0
        %7120 = vmatpush1.bf16.msra.mxu0 0
        %7121 = vmatprep.subr.bf16.mxu0 0
        %7122 = vmatpush1.bf16.msra.mxu0 0
        %7123 = vmatprep.subr.bf16.mxu0 0
        %7124 = vmatpush1.bf16.msra.mxu0 0
        %7125 = vmatprep.subr.bf16.mxu0 0
        %7126 = vmatpush1.bf16.msra.mxu0 0
        %7127 = vmatprep.subr.bf16.mxu0 0
        %7128 = vmatpush1.bf16.msra.mxu0 0
        %7129 = vmatprep.subr.bf16.mxu0 0
        %7130 = vmatpush1.bf16.msra.mxu0 0
        %7131 = vmatprep.subr.bf16.mxu0 0
        %7132 = vmatpush1.bf16.msra.mxu0 0
        %7133 = vmatprep.subr.bf16.mxu0 0
        %7134 = vmatpush1.bf16.msra.mxu0 0
        %7135 = vmatprep.subr.bf16.mxu0 0
        %7136 = vmatpush1.bf16.msra.mxu0 0
        %7137 = vmatprep.mubr.bf16.mxu0 0
        %7138 = vmatmul.mubr.bf16.gmra.mrb[0].mxu0 %v6650
        %v7139 = vpop.f32.mrb[0].mxu0
        %v7140 = vadd.f32 %v7059, %v7139
        %v7141 = vpop.f32.mrb[0].mxu0
        %v7142 = vadd.f32 %v7061, %v7141
        %v7143 = vpop.f32.mrb[0].mxu0
        %v7144 = vadd.f32 %v7063, %v7143
        %v7145 = vpop.f32.mrb[0].mxu0
        %v7146 = vadd.f32 %v7065, %v7145
        %7147 = vmatprep.mubr.bf16.mxu0 0
        %7148 = vmatmul.mubr.bf16.gmra.mrb[0].mxu0 %v6653
        %v7149 = vpop.f32.mrb[0].mxu0
        %v7150 = vadd.f32 %v7069, %v7149
        %v7151 = vpop.f32.mrb[0].mxu0
        %v7152 = vadd.f32 %v7071, %v7151
        %v7153 = vpop.f32.mrb[0].mxu0
        %v7154 = vadd.f32 %v7073, %v7153
        %v7155 = vpop.f32.mrb[0].mxu0
        %v7156 = vadd.f32 %v7075, %v7155
        %7157 = vmatprep.mubr.bf16.mxu0 0
        %7158 = vmatmul.mubr.bf16.gmra.mrb[0].mxu0 %v6656
        %v7159 = vpop.f32.mrb[0].mxu0
        %v7160 = vadd.f32 %v7079, %v7159
        %v7161 = vpop.f32.mrb[0].mxu0
        %v7162 = vadd.f32 %v7081, %v7161
        %v7163 = vpop.f32.mrb[0].mxu0
        %v7164 = vadd.f32 %v7083, %v7163
        %v7165 = vpop.f32.mrb[0].mxu0
        %v7166 = vadd.f32 %v7085, %v7165
        %7167 = vmatprep.mubr.bf16.mxu0 0
        %7168 = vmatmul.mubr.bf16.gmra.mrb[0].mxu0 %v6659
        %v7169 = vpop.f32.mrb[0].mxu0
        %v7170 = vadd.f32 %v7089, %v7169
        %v7171 = vpop.f32.mrb[0].mxu0
        %v7172 = vadd.f32 %v7091, %v7171
        %v7173 = vpop.f32.mrb[0].mxu0
        %v7174 = vadd.f32 %v7093, %v7173
        %v7175 = vpop.f32.mrb[0].mxu0
        %v7176 = vadd.f32 %v7095, %v7175
        %7177 = vmatprep.mubr.bf16.mxu0 0
        %7178 = vmatmul.mubr.bf16.gmra.mrb[0].mxu0 %v6662
        %v7179 = vpop.f32.mrb[0].mxu0
        %v7180 = vadd.f32 %v7099, %v7179
        %v7181 = vpop.f32.mrb[0].mxu0
        %v7182 = vadd.f32 %v7101, %v7181
        %v7183 = vpop.f32.mrb[0].mxu0
        %v7184 = vpop.f32.mrb[0].mxu0
        %7185 = vdwg.mxu0
        %7186 = vmatprep.subr.bf16.mxu0 %v6491
        %7187 = vmatpush1.bf16.msra.mxu0 %v6490
        %7188 = vmatprep.subr.bf16.mxu0 %v6495
        %7189 = vmatpush1.bf16.msra.mxu0 %v6494
        %7190 = vmatprep.subr.bf16.mxu0 %v6499
        %7191 = vmatpush1.bf16.msra.mxu0 %v6498
        %7192 = vmatprep.subr.bf16.mxu0 %v6503
        %7193 = vmatpush1.bf16.msra.mxu0 %v6502
        %7194 = vmatprep.subr.bf16.mxu0 %v6507
        %7195 = vmatpush1.bf16.msra.mxu0 %v6506
        %7196 = vmatprep.subr.bf16.mxu0 %v6511
        %7197 = vmatpush1.bf16.msra.mxu0 %v6510
        %7198 = vmatprep.subr.bf16.mxu0 %v6515
        %7199 = vmatpush1.bf16.msra.mxu0 %v6514
        %7200 = vmatprep.subr.bf16.mxu0 %v6519
        %7201 = vmatpush1.bf16.msra.mxu0 %v6518
        %7202 = vmatprep.subr.bf16.mxu0 %v6523
        %7203 = vmatpush1.bf16.msra.mxu0 %v6522
        %7204 = vmatprep.subr.bf16.mxu0 %v6527
        %7205 = vmatpush1.bf16.msra.mxu0 %v6526
        %7206 = vmatprep.subr.bf16.mxu0 %v6531
        %7207 = vmatpush1.bf16.msra.mxu0 %v6530
        %7208 = vmatprep.subr.bf16.mxu0 %v6535
        %7209 = vmatpush1.bf16.msra.mxu0 %v6534
        %7210 = vmatprep.subr.bf16.mxu0 %v6539
        %7211 = vmatpush1.bf16.msra.mxu0 %v6538
        %7212 = vmatprep.subr.bf16.mxu0 %v6543
        %7213 = vmatpush1.bf16.msra.mxu0 %v6542
        %7214 = vmatprep.subr.bf16.mxu0 %v6547
        %7215 = vmatpush1.bf16.msra.mxu0 %v6546
        %7216 = vmatprep.subr.bf16.mxu0 %v6551
        %7217 = vmatpush1.bf16.msra.mxu0 %v6550
        %7218 = vmatprep.mubr.bf16.mxu0 %v6624
        %7219 = vmatmul.mubr.bf16.gmra.mrb[0].mxu0 %v6623
        %v7220 = vpop.f32.mrb[0].mxu0
        %v7221 = vadd.f32 0.0, %v7220
        %v7222 = vpop.f32.mrb[0].mxu0
        %v7223 = vadd.f32 0.0, %v7222
        %v7224 = vpop.f32.mrb[0].mxu0
        %v7225 = vadd.f32 0.0, %v7224
        %v7226 = vpop.f32.mrb[0].mxu0
        %v7227 = vadd.f32 0.0, %v7226
        %7228 = vmatprep.mubr.bf16.mxu0 %v6627
        %7229 = vmatmul.mubr.bf16.gmra.mrb[0].mxu0 %v6626
        %v7230 = vpop.f32.mrb[0].mxu0
        %v7231 = vadd.f32 0.0, %v7230
        %v7232 = vpop.f32.mrb[0].mxu0
        %v7233 = vadd.f32 0.0, %v7232
        %v7234 = vpop.f32.mrb[0].mxu0
        %v7235 = vadd.f32 0.0, %v7234
        %v7236 = vpop.f32.mrb[0].mxu0
        %v7237 = vadd.f32 0.0, %v7236
        %7238 = vmatprep.mubr.bf16.mxu0 %v6630
        %7239 = vmatmul.mubr.bf16.gmra.mrb[0].mxu0 %v6629
        %v7240 = vpop.f32.mrb[0].mxu0
        %v7241 = vadd.f32 0.0, %v7240
        %v7242 = vpop.f32.mrb[0].mxu0
        %v7243 = vadd.f32 0.0, %v7242
        %v7244 = vpop.f32.mrb[0].mxu0
        %v7245 = vadd.f32 0.0, %v7244
        %v7246 = vpop.f32.mrb[0].mxu0
        %v7247 = vadd.f32 0.0, %v7246
        %7248 = vmatprep.mubr.bf16.mxu0 %v6633
        %7249 = vmatmul.mubr.bf16.gmra.mrb[0].mxu0 %v6632
        %v7250 = vpop.f32.mrb[0].mxu0
        %v7251 = vadd.f32 0.0, %v7250
        %v7252 = vpop.f32.mrb[0].mxu0
        %v7253 = vadd.f32 0.0, %v7252
        %v7254 = vpop.f32.mrb[0].mxu0
        %v7255 = vadd.f32 0.0, %v7254
        %v7256 = vpop.f32.mrb[0].mxu0
        %v7257 = vadd.f32 0.0, %v7256
        %7258 = vmatprep.mubr.bf16.mxu0 %v6636
        %7259 = vmatmul.mubr.bf16.gmra.mrb[0].mxu0 %v6635
        %v7260 = vpop.f32.mrb[0].mxu0
        %v7261 = vadd.f32 0.0, %v7260
        %v7262 = vpop.f32.mrb[0].mxu0
        %v7263 = vadd.f32 0.0, %v7262
        %v7264 = vpop.f32.mrb[0].mxu0
        %v7265 = vpop.f32.mrb[0].mxu0
        %7266 = vdwg.mxu0
        %7267 = vmatprep.subr.bf16.mxu0 %v6555
        %7268 = vmatpush1.bf16.msra.mxu0 %v6554
        %7269 = vmatprep.subr.bf16.mxu0 %v6559
        %7270 = vmatpush1.bf16.msra.mxu0 %v6558
        %7271 = vmatprep.subr.bf16.mxu0 0
        %7272 = vmatpush1.bf16.msra.mxu0 0
        %7273 = vmatprep.subr.bf16.mxu0 0
        %7274 = vmatpush1.bf16.msra.mxu0 0
        %7275 = vmatprep.subr.bf16.mxu0 0
        %7276 = vmatpush1.bf16.msra.mxu0 0
        %7277 = vmatprep.subr.bf16.mxu0 0
        %7278 = vmatpush1.bf16.msra.mxu0 0
        %7279 = vmatprep.subr.bf16.mxu0 0
        %7280 = vmatpush1.bf16.msra.mxu0 0
        %7281 = vmatprep.subr.bf16.mxu0 0
        %7282 = vmatpush1.bf16.msra.mxu0 0
        %7283 = vmatprep.subr.bf16.mxu0 0
        %7284 = vmatpush1.bf16.msra.mxu0 0
        %7285 = vmatprep.subr.bf16.mxu0 0
        %7286 = vmatpush1.bf16.msra.mxu0 0
        %7287 = vmatprep.subr.bf16.mxu0 0
        %7288 = vmatpush1.bf16.msra.mxu0 0
        %7289 = vmatprep.subr.bf16.mxu0 0
        %7290 = vmatpush1.bf16.msra.mxu0 0
        %7291 = vmatprep.subr.bf16.mxu0 0
        %7292 = vmatpush1.bf16.msra.mxu0 0
        %7293 = vmatprep.subr.bf16.mxu0 0
        %7294 = vmatpush1.bf16.msra.mxu0 0
        %7295 = vmatprep.subr.bf16.mxu0 0
        %7296 = vmatpush1.bf16.msra.mxu0 0
        %7297 = vmatprep.subr.bf16.mxu0 0
        %7298 = vmatpush1.bf16.msra.mxu0 0
        %7299 = vmatprep.mubr.bf16.mxu0 0
        %7300 = vmatmul.mubr.bf16.gmra.mrb[0].mxu0 %v6650
        %v7301 = vpop.f32.mrb[0].mxu0
        %v7302 = vadd.f32 %v7221, %v7301
        %v7303 = vpop.f32.mrb[0].mxu0
        %v7304 = vadd.f32 %v7223, %v7303
        %v7305 = vpop.f32.mrb[0].mxu0
        %v7306 = vadd.f32 %v7225, %v7305
        %v7307 = vpop.f32.mrb[0].mxu0
        %v7308 = vadd.f32 %v7227, %v7307
        %7309 = vmatprep.mubr.bf16.mxu0 0
        %7310 = vmatmul.mubr.bf16.gmra.mrb[0].mxu0 %v6653
        %v7311 = vpop.f32.mrb[0].mxu0
        %v7312 = vadd.f32 %v7231, %v7311
        %v7313 = vpop.f32.mrb[0].mxu0
        %v7314 = vadd.f32 %v7233, %v7313
        %v7315 = vpop.f32.mrb[0].mxu0
        %v7316 = vadd.f32 %v7235, %v7315
        %v7317 = vpop.f32.mrb[0].mxu0
        %v7318 = vadd.f32 %v7237, %v7317
        %7319 = vmatprep.mubr.bf16.mxu0 0
        %7320 = vmatmul.mubr.bf16.gmra.mrb[0].mxu0 %v6656
        %v7321 = vpop.f32.mrb[0].mxu0
        %v7322 = vadd.f32 %v7241, %v7321
        %v7323 = vpop.f32.mrb[0].mxu0
        %v7324 = vadd.f32 %v7243, %v7323
        %v7325 = vpop.f32.mrb[0].mxu0
        %v7326 = vadd.f32 %v7245, %v7325
        %v7327 = vpop.f32.mrb[0].mxu0
        %v7328 = vadd.f32 %v7247, %v7327
        %7329 = vmatprep.mubr.bf16.mxu0 0
        %7330 = vmatmul.mubr.bf16.gmra.mrb[0].mxu0 %v6659
        %v7331 = vpop.f32.mrb[0].mxu0
        %v7332 = vadd.f32 %v7251, %v7331
        %v7333 = vpop.f32.mrb[0].mxu0
        %v7334 = vadd.f32 %v7253, %v7333
        %v7335 = vpop.f32.mrb[0].mxu0
        %v7336 = vadd.f32 %v7255, %v7335
        %v7337 = vpop.f32.mrb[0].mxu0
        %v7338 = vadd.f32 %v7257, %v7337
        %7339 = vmatprep.mubr.bf16.mxu0 0
        %7340 = vmatmul.mubr.bf16.gmra.mrb[0].mxu0 %v6662
        %v7341 = vpop.f32.mrb[0].mxu0
        %v7342 = vadd.f32 %v7261, %v7341
        %v7343 = vpop.f32.mrb[0].mxu0
        %v7344 = vadd.f32 %v7263, %v7343
        %v7345 = vpop.f32.mrb[0].mxu0
        %v7346 = vpop.f32.mrb[0].mxu0
        %7347 = vdwg.mxu0
        %s7348 = scalar_lea.vmem %s680, 288 [#allocation3]
        %7349 = vst [vmem:[%s7348] sm:$0xff] %v7140
        %7350 = vst [vmem:[%s7348 + $0x8] sm:$0xff] %v7142
        %7351 = vst [vmem:[%s7348 + $0x10] sm:$0xff] %v7302
        %7352 = vst [vmem:[%s7348 + $0x18] sm:$0xff] %v7304
        %7353 = vst [vmem:[%s7348 + $0x20] sm:$0xff] %v7144
        %7354 = vst [vmem:[%s7348 + $0x28] sm:$0xff] %v7146
        %7355 = vst [vmem:[%s7348 + $0x30] sm:$0xff] %v7306
        %7356 = vst [vmem:[%s7348 + $0x38] sm:$0xff] %v7308
        %7357 = vst [vmem:[%s7348 + $0x40] sm:$0xff] %v7150
        %7358 = vst [vmem:[%s7348 + $0x48] sm:$0xff] %v7152
        %7359 = vst [vmem:[%s7348 + $0x50] sm:$0xff] %v7312
        %7360 = vst [vmem:[%s7348 + $0x58] sm:$0xff] %v7314
        %7361 = vst [vmem:[%s7348 + $0x60] sm:$0xff] %v7154
        %7362 = vst [vmem:[%s7348 + $0x68] sm:$0xff] %v7156
        %7363 = vst [vmem:[%s7348 + $0x70] sm:$0xff] %v7316
        %7364 = vst [vmem:[%s7348 + $0x78] sm:$0xff] %v7318
        %7365 = vst [vmem:[%s7348 + $0x80] sm:$0xff] %v7160
        %7366 = vst [vmem:[%s7348 + $0x88] sm:$0xff] %v7162
        %7367 = vst [vmem:[%s7348 + $0x90] sm:$0xff] %v7322
        %7368 = vst [vmem:[%s7348 + $0x98] sm:$0xff] %v7324
        %7369 = vst [vmem:[%s7348 + $0xa0] sm:$0xff] %v7164
        %7370 = vst [vmem:[%s7348 + $0xa8] sm:$0xff] %v7166
        %7371 = vst [vmem:[%s7348 + $0xb0] sm:$0xff] %v7326
        %7372 = vst [vmem:[%s7348 + $0xb8] sm:$0xff] %v7328
        %7373 = vst [vmem:[%s7348 + $0xc0] sm:$0xff] %v7170
        %7374 = vst [vmem:[%s7348 + $0xc8] sm:$0xff] %v7172
        %7375 = vst [vmem:[%s7348 + $0xd0] sm:$0xff] %v7332
        %7376 = vst [vmem:[%s7348 + $0xd8] sm:$0xff] %v7334
        %7377 = vst [vmem:[%s7348 + $0xe0] sm:$0xff] %v7174
        %7378 = vst [vmem:[%s7348 + $0xe8] sm:$0xff] %v7176
        %7379 = vst [vmem:[%s7348 + $0xf0] sm:$0xff] %v7336
        %7380 = vst [vmem:[%s7348 + $0xf8] sm:$0xff] %v7338
        %7381 = vst [vmem:[%s7348 + $0x100] sm:$0xff] %v7180
        %7382 = vst [vmem:[%s7348 + $0x108] sm:$0xff] %v7182
        %7383 = vst [vmem:[%s7348 + $0x110] sm:$0xff] %v7342
        %7384 = vst [vmem:[%s7348 + $0x118] sm:$0xff] %v7344
        %s7385 = sand.u32 %s163, 1
        %s7386 = sand.u32 %s163, 1
        %s7387 = smul.addr %s7386, 576
        %s7388 = scalar_lea.vmem [#allocation3], %s7387
        // Predicated region
        $region64: #{model_forward.1} parent=58 // pred_check
          %p7389 = pneg %p173
        $region65: #{model_forward.1} parent=58 // pred_check_branch
          %7391 = sbr.rel (%p7389) target = $region67
        $region66: #{model_forward.1} parent=58 // pred_region
          %s7392 = smul.u32 2, %s21
          %s7393 = smul.u32 4, %s20
          %s7394 = smul.addr %s7392, 144
          %s7395 = sadd.s32 %s7393, %s7394
          %s7396 = smul.addr %s7395, 8
          %s7397 = scalar_lea.vmem %s5, %s7396
          // Predicated region
          $region68: #{model_forward.1} parent=66 // pred_check
            _
          $region69: #{model_forward.1} parent=66 // pred_check_branch
            %7399 = sbr.rel (0) target = $region71
          $region70: #{model_forward.1} parent=66 // pred_region
            // Predicated region
            $region72: #{model_forward.1} parent=70 // pred_check
              _
            $region73: #{model_forward.1} parent=70 // pred_check_branch
              %7401 = sbr.rel (0) target = $region75
            $region74: #{model_forward.1} parent=70 // pred_region
              loop: start=0, step=1, limit=1
              $region76: #{model_forward.1} parent=74 // loop_pre_header
                _
              $region77: #{model_forward.1} parent=74 // loop_header
                %s7403 = sphi 0, %s7407
                %p7404 = scmp.ge.s32.totalorder %s7403, 1
                %s7408 = sphi %s7388, %s7388
                %s7409 = sphi %s7397, %s7397
              $region78: #{model_forward.1} parent=74 // loop_header_branch
                %7406 = sbr.rel (%p7404) target = $region82
              $region79: #{model_forward.1} parent=74 // loop_body
                %v7410 = vld [vmem:[%s7408] sm:$0xff]
                %7411 = vst [vmem:[%s7409] sm:$0xff] %v7410
                %v7412 = vld [vmem:[%s7408 + $0x8] sm:$0xff]
                %7413 = vst [vmem:[%s7409 + $0x8] sm:$0xff] %v7412
                %v7414 = vld [vmem:[%s7408 + $0x10] sm:$0xff]
                %7415 = vst [vmem:[%s7409 + $0x10] sm:$0xff] %v7414
                %v7416 = vld [vmem:[%s7408 + $0x18] sm:$0xff]
                %7417 = vst [vmem:[%s7409 + $0x18] sm:$0xff] %v7416
                %v7418 = vld [vmem:[%s7408 + $0x20] sm:$0xff]
                %7419 = vst [vmem:[%s7409 + $0x80] sm:$0xff] %v7418
                %v7420 = vld [vmem:[%s7408 + $0x28] sm:$0xff]
                %7421 = vst [vmem:[%s7409 + $0x88] sm:$0xff] %v7420
                %v7422 = vld [vmem:[%s7408 + $0x30] sm:$0xff]
                %7423 = vst [vmem:[%s7409 + $0x90] sm:$0xff] %v7422
                %v7424 = vld [vmem:[%s7408 + $0x38] sm:$0xff]
                %7425 = vst [vmem:[%s7409 + $0x98] sm:$0xff] %v7424
                %v7426 = vld [vmem:[%s7408 + $0x40] sm:$0xff]
                %7427 = vst [vmem:[%s7409 + $0x100] sm:$0xff] %v7426
                %v7428 = vld [vmem:[%s7408 + $0x48] sm:$0xff]
                %7429 = vst [vmem:[%s7409 + $0x108] sm:$0xff] %v7428
                %v7430 = vld [vmem:[%s7408 + $0x50] sm:$0xff]
                %7431 = vst [vmem:[%s7409 + $0x110] sm:$0xff] %v7430
                %v7432 = vld [vmem:[%s7408 + $0x58] sm:$0xff]
                %7433 = vst [vmem:[%s7409 + $0x118] sm:$0xff] %v7432
                %v7434 = vld [vmem:[%s7408 + $0x60] sm:$0xff]
                %7435 = vst [vmem:[%s7409 + $0x180] sm:$0xff] %v7434
                %v7436 = vld [vmem:[%s7408 + $0x68] sm:$0xff]
                %7437 = vst [vmem:[%s7409 + $0x188] sm:$0xff] %v7436
                %v7438 = vld [vmem:[%s7408 + $0x70] sm:$0xff]
                %7439 = vst [vmem:[%s7409 + $0x190] sm:$0xff] %v7438
                %v7440 = vld [vmem:[%s7408 + $0x78] sm:$0xff]
                %7441 = vst [vmem:[%s7409 + $0x198] sm:$0xff] %v7440
                %v7442 = vld [vmem:[%s7408 + $0x80] sm:$0xff]
                %7443 = vst [vmem:[%s7409 + $0x200] sm:$0xff] %v7442
                %v7444 = vld [vmem:[%s7408 + $0x88] sm:$0xff]
                %7445 = vst [vmem:[%s7409 + $0x208] sm:$0xff] %v7444
                %v7446 = vld [vmem:[%s7408 + $0x90] sm:$0xff]
                %7447 = vst [vmem:[%s7409 + $0x210] sm:$0xff] %v7446
                %v7448 = vld [vmem:[%s7408 + $0x98] sm:$0xff]
                %7449 = vst [vmem:[%s7409 + $0x218] sm:$0xff] %v7448
                %v7450 = vld [vmem:[%s7408 + $0xa0] sm:$0xff]
                %7451 = vst [vmem:[%s7409 + $0x280] sm:$0xff] %v7450
                %v7452 = vld [vmem:[%s7408 + $0xa8] sm:$0xff]
                %7453 = vst [vmem:[%s7409 + $0x288] sm:$0xff] %v7452
                %v7454 = vld [vmem:[%s7408 + $0xb0] sm:$0xff]
                %7455 = vst [vmem:[%s7409 + $0x290] sm:$0xff] %v7454
                %v7456 = vld [vmem:[%s7408 + $0xb8] sm:$0xff]
                %7457 = vst [vmem:[%s7409 + $0x298] sm:$0xff] %v7456
                %v7458 = vld [vmem:[%s7408 + $0xc0] sm:$0xff]
                %7459 = vst [vmem:[%s7409 + $0x300] sm:$0xff] %v7458
                %v7460 = vld [vmem:[%s7408 + $0xc8] sm:$0xff]
                %7461 = vst [vmem:[%s7409 + $0x308] sm:$0xff] %v7460
                %v7462 = vld [vmem:[%s7408 + $0xd0] sm:$0xff]
                %7463 = vst [vmem:[%s7409 + $0x310] sm:$0xff] %v7462
                %v7464 = vld [vmem:[%s7408 + $0xd8] sm:$0xff]
                %7465 = vst [vmem:[%s7409 + $0x318] sm:$0xff] %v7464
                %v7466 = vld [vmem:[%s7408 + $0xe0] sm:$0xff]
                %7467 = vst [vmem:[%s7409 + $0x380] sm:$0xff] %v7466
                %v7468 = vld [vmem:[%s7408 + $0xe8] sm:$0xff]
                %7469 = vst [vmem:[%s7409 + $0x388] sm:$0xff] %v7468
                %v7470 = vld [vmem:[%s7408 + $0xf0] sm:$0xff]
                %7471 = vst [vmem:[%s7409 + $0x390] sm:$0xff] %v7470
                %v7472 = vld [vmem:[%s7408 + $0xf8] sm:$0xff]
                %7473 = vst [vmem:[%s7409 + $0x398] sm:$0xff] %v7472
                %v7474 = vld [vmem:[%s7408 + $0x100] sm:$0xff]
                %7475 = vst [vmem:[%s7409 + $0x400] sm:$0xff] %v7474
                %v7476 = vld [vmem:[%s7408 + $0x108] sm:$0xff]
                %7477 = vst [vmem:[%s7409 + $0x408] sm:$0xff] %v7476
                %v7478 = vld [vmem:[%s7408 + $0x110] sm:$0xff]
                %7479 = vst [vmem:[%s7409 + $0x410] sm:$0xff] %v7478
                %v7480 = vld [vmem:[%s7408 + $0x118] sm:$0xff]
                %7481 = vst [vmem:[%s7409 + $0x418] sm:$0xff] %v7480
                %v7482 = vld [vmem:[%s7408 + $0x120] sm:$0xff]
                %7483 = vst [vmem:[%s7409 + $0x480] sm:$0xff] %v7482
                %v7484 = vld [vmem:[%s7408 + $0x128] sm:$0xff]
                %7485 = vst [vmem:[%s7409 + $0x488] sm:$0xff] %v7484
                %v7486 = vld [vmem:[%s7408 + $0x130] sm:$0xff]
                %7487 = vst [vmem:[%s7409 + $0x490] sm:$0xff] %v7486
                %v7488 = vld [vmem:[%s7408 + $0x138] sm:$0xff]
                %7489 = vst [vmem:[%s7409 + $0x498] sm:$0xff] %v7488
                %v7490 = vld [vmem:[%s7408 + $0x140] sm:$0xff]
                %7491 = vst [vmem:[%s7409 + $0x500] sm:$0xff] %v7490
                %v7492 = vld [vmem:[%s7408 + $0x148] sm:$0xff]
                %7493 = vst [vmem:[%s7409 + $0x508] sm:$0xff] %v7492
                %v7494 = vld [vmem:[%s7408 + $0x150] sm:$0xff]
                %7495 = vst [vmem:[%s7409 + $0x510] sm:$0xff] %v7494
                %v7496 = vld [vmem:[%s7408 + $0x158] sm:$0xff]
                %7497 = vst [vmem:[%s7409 + $0x518] sm:$0xff] %v7496
                %v7498 = vld [vmem:[%s7408 + $0x160] sm:$0xff]
                %7499 = vst [vmem:[%s7409 + $0x580] sm:$0xff] %v7498
                %v7500 = vld [vmem:[%s7408 + $0x168] sm:$0xff]
                %7501 = vst [vmem:[%s7409 + $0x588] sm:$0xff] %v7500
                %v7502 = vld [vmem:[%s7408 + $0x170] sm:$0xff]
                %7503 = vst [vmem:[%s7409 + $0x590] sm:$0xff] %v7502
                %v7504 = vld [vmem:[%s7408 + $0x178] sm:$0xff]
                %7505 = vst [vmem:[%s7409 + $0x598] sm:$0xff] %v7504
                %v7506 = vld [vmem:[%s7408 + $0x180] sm:$0xff]
                %7507 = vst [vmem:[%s7409 + $0x600] sm:$0xff] %v7506
                %v7508 = vld [vmem:[%s7408 + $0x188] sm:$0xff]
                %7509 = vst [vmem:[%s7409 + $0x608] sm:$0xff] %v7508
                %v7510 = vld [vmem:[%s7408 + $0x190] sm:$0xff]
                %7511 = vst [vmem:[%s7409 + $0x610] sm:$0xff] %v7510
                %v7512 = vld [vmem:[%s7408 + $0x198] sm:$0xff]
                %7513 = vst [vmem:[%s7409 + $0x618] sm:$0xff] %v7512
                %v7514 = vld [vmem:[%s7408 + $0x1a0] sm:$0xff]
                %7515 = vst [vmem:[%s7409 + $0x680] sm:$0xff] %v7514
                %v7516 = vld [vmem:[%s7408 + $0x1a8] sm:$0xff]
                %7517 = vst [vmem:[%s7409 + $0x688] sm:$0xff] %v7516
                %v7518 = vld [vmem:[%s7408 + $0x1b0] sm:$0xff]
                %7519 = vst [vmem:[%s7409 + $0x690] sm:$0xff] %v7518
                %v7520 = vld [vmem:[%s7408 + $0x1b8] sm:$0xff]
                %7521 = vst [vmem:[%s7409 + $0x698] sm:$0xff] %v7520
                %v7522 = vld [vmem:[%s7408 + $0x1c0] sm:$0xff]
                %7523 = vst [vmem:[%s7409 + $0x700] sm:$0xff] %v7522
                %v7524 = vld [vmem:[%s7408 + $0x1c8] sm:$0xff]
                %7525 = vst [vmem:[%s7409 + $0x708] sm:$0xff] %v7524
                %v7526 = vld [vmem:[%s7408 + $0x1d0] sm:$0xff]
                %7527 = vst [vmem:[%s7409 + $0x710] sm:$0xff] %v7526
                %v7528 = vld [vmem:[%s7408 + $0x1d8] sm:$0xff]
                %7529 = vst [vmem:[%s7409 + $0x718] sm:$0xff] %v7528
                %v7530 = vld [vmem:[%s7408 + $0x1e0] sm:$0xff]
                %7531 = vst [vmem:[%s7409 + $0x780] sm:$0xff] %v7530
                %v7532 = vld [vmem:[%s7408 + $0x1e8] sm:$0xff]
                %7533 = vst [vmem:[%s7409 + $0x788] sm:$0xff] %v7532
                %v7534 = vld [vmem:[%s7408 + $0x1f0] sm:$0xff]
                %7535 = vst [vmem:[%s7409 + $0x790] sm:$0xff] %v7534
                %v7536 = vld [vmem:[%s7408 + $0x1f8] sm:$0xff]
                %7537 = vst [vmem:[%s7409 + $0x798] sm:$0xff] %v7536
                %v7538 = vld [vmem:[%s7408 + $0x200] sm:$0xff]
                %7539 = vst [vmem:[%s7409 + $0x800] sm:$0xff] %v7538
                %v7540 = vld [vmem:[%s7408 + $0x208] sm:$0xff]
                %7541 = vst [vmem:[%s7409 + $0x808] sm:$0xff] %v7540
                %v7542 = vld [vmem:[%s7408 + $0x210] sm:$0xff]
                %7543 = vst [vmem:[%s7409 + $0x810] sm:$0xff] %v7542
                %v7544 = vld [vmem:[%s7408 + $0x218] sm:$0xff]
                %7545 = vst [vmem:[%s7409 + $0x818] sm:$0xff] %v7544
                %v7546 = vld [vmem:[%s7408 + $0x220] sm:$0xff]
                %7547 = vst [vmem:[%s7409 + $0x880] sm:$0xff] %v7546
                %v7548 = vld [vmem:[%s7408 + $0x228] sm:$0xff]
                %7549 = vst [vmem:[%s7409 + $0x888] sm:$0xff] %v7548
                %v7550 = vld [vmem:[%s7408 + $0x230] sm:$0xff]
                %7551 = vst [vmem:[%s7409 + $0x890] sm:$0xff] %v7550
                %v7552 = vld [vmem:[%s7408 + $0x238] sm:$0xff]
                %7553 = vst [vmem:[%s7409 + $0x898] sm:$0xff] %v7552
              $region80: #{model_forward.1} parent=74 // loop_footer
                %s7407 = sadd.s32 1, %s7403
              $region81: #{model_forward.1} parent=74 // loop_footer_branch
                %7402 = sbr.rel target = $region77
              $region82: #{model_forward.1} parent=74 // loop_exit
                _
            $region75: #{model_forward.1} parent=70 // pred_fallthru
              _
            // Predicated region
            $region83: #{model_forward.1} parent=70 // pred_check
              _
            $region84: #{model_forward.1} parent=70 // pred_check_branch
              %7555 = sbr.rel target = $region86
            $region85: #{model_forward.1} parent=70 // pred_region
              _
            $region86: #{model_forward.1} parent=70 // pred_fallthru
              _
          $region71: #{model_forward.1} parent=66 // pred_fallthru
            _
          %7556 = vnop
        $region67: #{model_forward.1} parent=58 // pred_fallthru
          _
      $region59: #{model_forward.1} parent=5 // pred_fallthru
        _
      %p7557 = scmp.le.s32.totalorder 2, %s11
      // Predicated region
      $region87: #{model_forward.1} parent=5 // pred_check
        %p7558 = pneg %p7557
      $region88: #{model_forward.1} parent=5 // pred_check_branch
        %7560 = sbr.rel (%p7558) target = $region90
      $region89: #{model_forward.1} parent=5 // pred_region
        %s7561 = ssub.s32 %s11, 2
        // Predicated region
        $region91: #{model_forward.1} parent=89 // pred_check
          %p7562 = pneg %p179
        $region92: #{model_forward.1} parent=89 // pred_check_branch
          %7564 = sbr.rel (%p7562) target = $region94
        $region93: #{model_forward.1} parent=89 // pred_region
          %s7565 = sand.u32 %s164, 1
          %s7566 = sand.u32 %s164, 1
          %s7567 = smul.addr %s7566, 576
          %s7568 = scalar_lea.vmem [#allocation3], %s7567
        $region94: #{model_forward.1} parent=89 // pred_fallthru
          _
      $region90: #{model_forward.1} parent=5 // pred_fallthru
        _
    $region6: #{model_forward.1} parent=1 // loop_footer
      %s15 = sadd.s32 1, %s11
    $region7: #{model_forward.1} parent=1 // loop_footer_branch
      %10 = sbr.rel target = $region3
    $region8: #{model_forward.1} parent=1 // loop_exit
      _

</llo_original>
